<compile_context>
chip_gen: v5e
topology: v5e:2x2
jax: 0.10.0
libtpu: 0.0.40
codegen_flags: <defaults>
</compile_context>

<pallas_src>
import functools

import jax
import jax.numpy as jnp
from jax.experimental import pallas as pl
from jax.experimental.pallas import tpu as pltpu


def _round_up(x, m):
    return (x + m - 1) // m * m


def _vmem_limit(block_bytes):
    # Double-buffered pipeline blocks + headroom, capped below v7x's 64 MiB
    # physical VMEM per TensorCore (also plenty for v5e/v6e's 128 MiB).
    return int(min(2 * block_bytes + (8 << 20), 48 << 20))


# ----------------------------------------------------------------------------
# Pallas kernels
# ----------------------------------------------------------------------------
def _matmul_bias_act_kernel(x_ref, w_ref, b_ref, o_ref, *, apply_relu):
    acc = jnp.dot(x_ref[...], w_ref[...], preferred_element_type=jnp.float32)
    acc = acc + b_ref[...]
    if apply_relu:
        acc = jnp.maximum(acc, 0.0)
    o_ref[...] = acc.astype(o_ref.dtype)


def _fused_fc_kernel(x_ref, w1_ref, b1_ref, w2_ref, b2_ref, w3_ref, b3_ref, o_ref):
    # fc1 -> ReLU -> fc1_1 -> ReLU -> fc2, all in one kernel body.
    h1 = jnp.dot(x_ref[...], w1_ref[...], preferred_element_type=jnp.float32)
    h1 = jnp.maximum(h1 + b1_ref[...], 0.0)
    h2 = jnp.dot(h1.astype(w2_ref.dtype), w2_ref[...],
                 preferred_element_type=jnp.float32)
    h2 = jnp.maximum(h2 + b2_ref[...], 0.0)
    o = jnp.dot(h2.astype(w3_ref.dtype), w3_ref[...],
                preferred_element_type=jnp.float32)
    o_ref[...] = (o + b3_ref[...]).astype(o_ref.dtype)


# ----------------------------------------------------------------------------
# matmul + bias + ReLU wrapper (used by the conv layers)
# ----------------------------------------------------------------------------
def linear_pallas(x, w_p, b_p, *, apply_relu, tm):
    """relu?(x @ w_p + b_p).
    x: (M, K) unpadded; w_p: (Kp, Np) pre-padded; b_p: (1, Np) pre-padded.
    Returns the padded (Mp, Np) float32 result (caller slices)."""
    M, K = x.shape
    Kp, Np = w_p.shape
    Mp = _round_up(M, tm)

    x_p = x.astype(w_p.dtype)
    if (Mp, Kp) != (M, K):
        x_p = jnp.pad(x_p, ((0, Mp - M), (0, Kp - K)))

    block_bytes = ((tm * Kp) * x_p.dtype.itemsize
                   + w_p.size * w_p.dtype.itemsize
                   + b_p.size * b_p.dtype.itemsize
                   + (tm * Np) * 4)

    return pl.pallas_call(
        functools.partial(_matmul_bias_act_kernel, apply_relu=apply_relu),
        out_shape=jax.ShapeDtypeStruct((Mp, Np), jnp.float32),
        grid_spec=pltpu.PrefetchScalarGridSpec(
            num_scalar_prefetch=0,
            grid=(Mp // tm,),
            in_specs=[
                pl.BlockSpec((tm, Kp), lambda i: (i, 0)),
                pl.BlockSpec((Kp, Np), lambda i: (0, 0)),   # constant: fetched once
                pl.BlockSpec((1, Np), lambda i: (0, 0)),
            ],
            out_specs=pl.BlockSpec((tm, Np), lambda i: (i, 0)),
        ),
        compiler_params=pltpu.CompilerParams(
            dimension_semantics=("parallel",),
            vmem_limit_bytes=_vmem_limit(block_bytes),
        ),
    )(x_p, w_p, b_p)


# ----------------------------------------------------------------------------
# Conv2d (valid padding) = NHWC im2col glue + Pallas matmul kernel
# ----------------------------------------------------------------------------
def _im2col_nhwc(x, kh, kw, stride):
    """x: (B, H, W, C) NHWC -> (B*OH*OW, kh*kw*C) patches, feature order (kh, kw, c)."""
    B, H, W, C = x.shape
    OH = (H - kh) // stride + 1
    OW = (W - kw) // stride + 1
    cols = []
    for i in range(kh):
        for j in range(kw):
            cols.append(x[:, i:i + stride * OH:stride, j:j + stride * OW:stride, :])
    patches = jnp.concatenate(cols, axis=-1)               # (B, OH, OW, kh*kw*C)
    return patches.reshape(B * OH * OW, kh * kw * C), OH, OW


def conv2d_relu_pallas(x_nhwc, w_p, b_p, *, kh, kw, stride, cout):
    # TODO(synk): patch extraction stays as plain-JAX strided-slice glue; an
    # in-kernel im2col (pl.ds gathers from a VMEM-resident input) would also
    # remove the HBM round-trip of the patch matrix.
    B = x_nhwc.shape[0]
    patches, OH, OW = _im2col_nhwc(x_nhwc, kh, kw, stride)
    M = patches.shape[0]
    tm = min(128, _round_up(M, 8))
    y = linear_pallas(patches, w_p, b_p, apply_relu=True, tm=tm)
    return y[:M, :cout].reshape(B, OH, OW, cout)            # stays NHWC


# ----------------------------------------------------------------------------
# Fused FC stack: fc1 -> ReLU -> fc1_1 -> ReLU -> fc2 in one pallas_call
# ----------------------------------------------------------------------------
def fused_fc_pallas(x, w1, b1, w2, b2, w3, b3, *, n_out):
    """x: (M, K) unpadded; weights pre-transposed/padded:
    w1 (K1p, N1), w2 (N1, N2), w3 (N2, N3p); biases (1, Ni) f32."""
    M, K = x.shape
    K1p, N1 = w1.shape
    N2 = w2.shape[1]
    N3p = w3.shape[1]

    tm = min(128, _round_up(M, 8))          # tiny batch -> 8-row tile, not 128
    Mp = _round_up(M, tm)

    x_p = x.astype(w1.dtype)
    if (Mp, K1p) != (M, K):
        x_p = jnp.pad(x_p, ((0, Mp - M), (0, K1p - K)))

    block_bytes = (tm * K1p) * x_p.dtype.itemsize + (tm * N3p) * 4
    for a in (w1, b1, w2, b2, w3, b3):
        block_bytes += a.size * a.dtype.itemsize

    out = pl.pallas_call(
        _fused_fc_kernel,
        out_shape=jax.ShapeDtypeStruct((Mp, N3p), jnp.float32),
        grid_spec=pltpu.PrefetchScalarGridSpec(
            num_scalar_prefetch=0,
            grid=(Mp // tm,),
            in_specs=[
                pl.BlockSpec((tm, K1p), lambda i: (i, 0)),
                pl.BlockSpec((K1p, N1), lambda i: (0, 0)),
                pl.BlockSpec((1, N1), lambda i: (0, 0)),
                pl.BlockSpec((N1, N2), lambda i: (0, 0)),
                pl.BlockSpec((1, N2), lambda i: (0, 0)),
                pl.BlockSpec((N2, N3p), lambda i: (0, 0)),
                pl.BlockSpec((1, N3p), lambda i: (0, 0)),
            ],
            out_specs=pl.BlockSpec((tm, N3p), lambda i: (i, 0)),
        ),
        compiler_params=pltpu.CompilerParams(
            dimension_semantics=("parallel",),
            vmem_limit_bytes=_vmem_limit(block_bytes),
        ),
    )(x_p, w1, b1, w2, b2, w3, b3)
    return out[:M, :n_out]


# ----------------------------------------------------------------------------
# Parameter construction + ONE-TIME preprocessing (transpose / reorder / pad)
# ----------------------------------------------------------------------------
def _prep_conv(w, b, dtype):
    cout, cin, kh, kw = w.shape
    k = kh * kw * cin
    kp = _round_up(k, 128)
    np_ = _round_up(cout, 128)
    # torch (Cout, Cin, KH, KW) -> (KH, KW, Cin, Cout) so rows match the NHWC
    # im2col feature order (kh, kw, c).
    w2 = w.transpose(2, 3, 1, 0).reshape(k, cout)
    w2 = jnp.pad(w2, ((0, kp - k), (0, np_ - cout))).astype(dtype)
    b2 = jnp.pad(b, (0, np_ - cout)).reshape(1, np_).astype(jnp.float32)
    return w2, b2


def _prep_fc(w, b, dtype):
    nout, kin = w.shape
    kp = _round_up(kin, 128)
    np_ = _round_up(nout, 128)
    w2 = jnp.pad(w.T, ((0, kp - kin), (0, np_ - nout))).astype(dtype)
    b2 = jnp.pad(b, (0, np_ - nout)).reshape(1, np_).astype(jnp.float32)
    return w2, b2


def init_net2_params(key, *, use_bf16=False):
    """uniform(-0.01, 0.01) weights, zero biases (matches Net2._create_weights).
    All weights are transposed to (in, out), re-ordered for the NHWC pipeline
    and zero-padded to (8,128)-aligned tiles ONCE here (outside the jit)."""
    dtype = jnp.bfloat16 if use_bf16 else jnp.float32
    ks = jax.random.split(key, 6)
    u = lambda k, shape: jax.random.uniform(k, shape, jnp.float32, -0.01, 0.01)

    c1w, c1b = _prep_conv(u(ks[0], (32, 4, 8, 8)), jnp.zeros((32,), jnp.float32), dtype)
    c2w, c2b = _prep_conv(u(ks[1], (64, 32, 4, 4)), jnp.zeros((64,), jnp.float32), dtype)
    c3w, c3b = _prep_conv(u(ks[2], (64, 64, 3, 3)), jnp.zeros((64,), jnp.float32), dtype)

    # fc1: torch's input order is the NCHW flatten (c, h, w); permute its input
    # rows to the NHWC flatten order (h, w, c) so numerics match .view(B, -1).
    fc1_w = u(ks[3], (1024, 7 * 7 * 64))
    fc1_w = fc1_w.reshape(1024, 64, 7, 7).transpose(0, 2, 3, 1).reshape(1024, 7 * 7 * 64)
    f1w, f1b = _prep_fc(fc1_w, jnp.zeros((1024,), jnp.float32), dtype)
    f11w, f11b = _prep_fc(u(ks[4], (512, 1024)), jnp.zeros((512,), jnp.float32), dtype)
    f2w, f2b = _prep_fc(u(ks[5], (2, 512)), jnp.zeros((2,), jnp.float32), dtype)

    return {
        "conv1_w": c1w, "conv1_b": c1b,
        "conv2_w": c2w, "conv2_b": c2b,
        "conv3_w": c3w, "conv3_b": c3b,
        "fc1_w": f1w, "fc1_b": f1b,
        "fc1_1_w": f11w, "fc1_1_b": f11b,
        "fc2_w": f2w, "fc2_b": f2b,
    }


# ----------------------------------------------------------------------------
# Forward pass (semantics identical to Net2.forward on NCHW input)
# ----------------------------------------------------------------------------
@jax.jit
def net2_forward(params, x_nchw):
    x = jnp.transpose(x_nchw, (0, 2, 3, 1))                  # NCHW -> NHWC once
    y = conv2d_relu_pallas(x, params["conv1_w"], params["conv1_b"],
                           kh=8, kw=8, stride=4, cout=32)    # (B, 20, 20, 32)
    y = conv2d_relu_pallas(y, params["conv2_w"], params["conv2_b"],
                           kh=4, kw=4, stride=2, cout=64)    # (B,  9,  9, 64)
    y = conv2d_relu_pallas(y, params["conv3_w"], params["conv3_b"],
                           kh=3, kw=3, stride=1, cout=64)    # (B,  7,  7, 64)
    B = y.shape[0]
    feat = y.reshape(B, -1)   # NHWC flatten; fc1_w rows were permuted to match
    return fused_fc_pallas(feat,
                           params["fc1_w"], params["fc1_b"],
                           params["fc1_1_w"], params["fc1_1_b"],
                           params["fc2_w"], params["fc2_b"],
                           n_out=2)                          # (B, 2)


if __name__ == "__main__":
    key = jax.random.PRNGKey(0)
    pkey, xkey = jax.random.split(key)
    params = init_net2_params(pkey)   # f32 weights -> exact torch-matching numerics
    # fc1 expects 7*7*64 features, which forces 84x84 spatial input (DQN Atari).
    x = jax.random.normal(xkey, (2, 4, 84, 84), jnp.float32)

    out = net2_forward(params, x)
    out = jax.block_until_ready(out)
    assert out.shape == (2, 2), out.shape
    assert bool(jnp.all(jnp.isfinite(out)))
    print("KERNEL_OK")
</pallas_src>

<mosaic_0001>
module attributes {stable_mosaic.version = 11 : i64} {
  func.func @_matmul_bias_act_kernel(%arg0: i32, %arg1: memref<128x256xf32, #tpu.memory_space<vmem>>, %arg2: memref<256x128xf32, #tpu.memory_space<vmem>>, %arg3: memref<1x128xf32, #tpu.memory_space<vmem>>, %arg4: memref<128x128xf32, #tpu.memory_space<vmem>>) attributes {dimension_semantics = [#tpu.dimension_semantics<parallel>], iteration_bounds = array<i64: 7>, scalar_prefetch = 0 : i64, scratch_operands = 0 : i64, tpu.core_type = #tpu.core_type<tc>, window_params = [{transform_indices = @transform_0, window_bounds = array<i64: 128, 256>}, {pipeline_mode = #tpu.pipeline_mode<synchronous>, transform_indices = @transform_1, window_bounds = array<i64: 256, 128>}, {pipeline_mode = #tpu.pipeline_mode<synchronous>, transform_indices = @transform_2, window_bounds = array<i64: 1, 128>}, {transform_indices = @transform_3, window_bounds = array<i64: 128, 128>}]} {
    %c0 = arith.constant 0 : index
    %c0_0 = arith.constant 0 : index
    %0 = vector.load %arg1[%c0, %c0_0] : memref<128x256xf32, #tpu.memory_space<vmem>>, vector<128x256xf32>
    %c0_1 = arith.constant 0 : index
    %c0_2 = arith.constant 0 : index
    %1 = vector.load %arg2[%c0_1, %c0_2] : memref<256x128xf32, #tpu.memory_space<vmem>>, vector<256x128xf32>
    %cst = arith.constant dense<0.000000e+00> : vector<128x128xf32>
    %2 = tpu.matmul %0, %1, %cst {dimension_numbers = #tpu.dot_dimension_numbers<[1], [0], [0], [1], [0, 0, 1, 1], [], []>} : vector<128x256xf32>, vector<256x128xf32>, vector<128x128xf32> -> vector<128x128xf32>
    %c0_3 = arith.constant 0 : index
    %c0_4 = arith.constant 0 : index
    %3 = vector.load %arg3[%c0_3, %c0_4] : memref<1x128xf32, #tpu.memory_space<vmem>>, vector<1x128xf32>
    %4 = vector.broadcast %3 : vector<1x128xf32> to vector<128x128xf32>
    %5 = arith.addf %2, %4 : vector<128x128xf32>
    %cst_5 = arith.constant 0.000000e+00 : f32
    %6 = vector.broadcast %cst_5 : f32 to vector<128x128xf32>
    %7 = arith.maximumf %5, %6 : vector<128x128xf32>
    %c0_6 = arith.constant 0 : index
    %c0_7 = arith.constant 0 : index
    %8 = vector.load %arg4[%c0_6, %c0_7] : memref<128x128xf32, #tpu.memory_space<vmem>>, vector<128x128xf32>
    tpu.vector_store %arg4[%c0_6, %c0_7], %7 {strides = array<i32>} : memref<128x128xf32, #tpu.memory_space<vmem>>, vector<128x128xf32>,
    return
  }
  func.func @transform_0(%arg0: i32) -> (i32, i32) {
    %c0_i32 = arith.constant 0 : i32
    %c0_i32_0 = arith.constant 0 : i32
    return %arg0, %c0_i32 : i32, i32
  }
  func.func @transform_1(%arg0: i32) -> (i32, i32) {
    %c0_i32 = arith.constant 0 : i32
    %c0_i32_0 = arith.constant 0 : i32
    %c0_i32_1 = arith.constant 0 : i32
    return %c0_i32, %c0_i32_0 : i32, i32
  }
  func.func @transform_2(%arg0: i32) -> (i32, i32) {
    %c0_i32 = arith.constant 0 : i32
    %c0_i32_0 = arith.constant 0 : i32
    %c0_i32_1 = arith.constant 0 : i32
    return %c0_i32, %c0_i32_0 : i32, i32
  }
  func.func @transform_3(%arg0: i32) -> (i32, i32) {
    %c0_i32 = arith.constant 0 : i32
    %c0_i32_0 = arith.constant 0 : i32
    return %arg0, %c0_i32 : i32, i32
  }
}

module attributes {stable_mosaic.version = 11 : i64} {
  func.func @_matmul_bias_act_kernel(%arg0: i32, %arg1: memref<128x512xf32, #tpu.memory_space<vmem>>, %arg2: memref<512x128xf32, #tpu.memory_space<vmem>>, %arg3: memref<1x128xf32, #tpu.memory_space<vmem>>, %arg4: memref<128x128xf32, #tpu.memory_space<vmem>>) attributes {dimension_semantics = [#tpu.dimension_semantics<parallel>], iteration_bounds = array<i64: 2>, scalar_prefetch = 0 : i64, scratch_operands = 0 : i64, tpu.core_type = #tpu.core_type<tc>, window_params = [{transform_indices = @transform_0, window_bounds = array<i64: 128, 512>}, {pipeline_mode = #tpu.pipeline_mode<synchronous>, transform_indices = @transform_1, window_bounds = array<i64: 512, 128>}, {pipeline_mode = #tpu.pipeline_mode<synchronous>, transform_indices = @transform_2, window_bounds = array<i64: 1, 128>}, {transform_indices = @transform_3, window_bounds = array<i64: 128, 128>}]} {
    %c0 = arith.constant 0 : index
    %c0_0 = arith.constant 0 : index
    %0 = vector.load %arg1[%c0, %c0_0] : memref<128x512xf32, #tpu.memory_space<vmem>>, vector<128x512xf32>
    %c0_1 = arith.constant 0 : index
    %c0_2 = arith.constant 0 : index
    %1 = vector.load %arg2[%c0_1, %c0_2] : memref<512x128xf32, #tpu.memory_space<vmem>>, vector<512x128xf32>
    %cst = arith.constant dense<0.000000e+00> : vector<128x128xf32>
    %2 = tpu.matmul %0, %1, %cst {dimension_numbers = #tpu.dot_dimension_numbers<[1], [0], [0], [1], [0, 0, 1, 1], [], []>} : vector<128x512xf32>, vector<512x128xf32>, vector<128x128xf32> -> vector<128x128xf32>
    %c0_3 = arith.constant 0 : index
    %c0_4 = arith.constant 0 : index
    %3 = vector.load %arg3[%c0_3, %c0_4] : memref<1x128xf32, #tpu.memory_space<vmem>>, vector<1x128xf32>
    %4 = vector.broadcast %3 : vector<1x128xf32> to vector<128x128xf32>
    %5 = arith.addf %2, %4 : vector<128x128xf32>
    %cst_5 = arith.constant 0.000000e+00 : f32
    %6 = vector.broadcast %cst_5 : f32 to vector<128x128xf32>
    %7 = arith.maximumf %5, %6 : vector<128x128xf32>
    %c0_6 = arith.constant 0 : index
    %c0_7 = arith.constant 0 : index
    %8 = vector.load %arg4[%c0_6, %c0_7] : memref<128x128xf32, #tpu.memory_space<vmem>>, vector<128x128xf32>
    tpu.vector_store %arg4[%c0_6, %c0_7], %7 {strides = array<i32>} : memref<128x128xf32, #tpu.memory_space<vmem>>, vector<128x128xf32>,
    return
  }
  func.func @transform_0(%arg0: i32) -> (i32, i32) {
    %c0_i32 = arith.constant 0 : i32
    %c0_i32_0 = arith.constant 0 : i32
    return %arg0, %c0_i32 : i32, i32
  }
  func.func @transform_1(%arg0: i32) -> (i32, i32) {
    %c0_i32 = arith.constant 0 : i32
    %c0_i32_0 = arith.constant 0 : i32
    %c0_i32_1 = arith.constant 0 : i32
    return %c0_i32, %c0_i32_0 : i32, i32
  }
  func.func @transform_2(%arg0: i32) -> (i32, i32) {
    %c0_i32 = arith.constant 0 : i32
    %c0_i32_0 = arith.constant 0 : i32
    %c0_i32_1 = arith.constant 0 : i32
    return %c0_i32, %c0_i32_0 : i32, i32
  }
  func.func @transform_3(%arg0: i32) -> (i32, i32) {
    %c0_i32 = arith.constant 0 : i32
    %c0_i32_0 = arith.constant 0 : i32
    return %arg0, %c0_i32 : i32, i32
  }
}

module attributes {stable_mosaic.version = 11 : i64} {
  func.func @_matmul_bias_act_kernel(%arg0: i32, %arg1: memref<104x640xf32, #tpu.memory_space<vmem>>, %arg2: memref<640x128xf32, #tpu.memory_space<vmem>>, %arg3: memref<1x128xf32, #tpu.memory_space<vmem>>, %arg4: memref<104x128xf32, #tpu.memory_space<vmem>>) attributes {dimension_semantics = [#tpu.dimension_semantics<parallel>], iteration_bounds = array<i64: 1>, scalar_prefetch = 0 : i64, scratch_operands = 0 : i64, tpu.core_type = #tpu.core_type<tc>, window_params = [{transform_indices = @transform_0, window_bounds = array<i64: 104, 640>}, {pipeline_mode = #tpu.pipeline_mode<synchronous>, transform_indices = @transform_1, window_bounds = array<i64: 640, 128>}, {pipeline_mode = #tpu.pipeline_mode<synchronous>, transform_indices = @transform_2, window_bounds = array<i64: 1, 128>}, {transform_indices = @transform_3, window_bounds = array<i64: 104, 128>}]} {
    %c0 = arith.constant 0 : index
    %c0_0 = arith.constant 0 : index
    %0 = vector.load %arg1[%c0, %c0_0] : memref<104x640xf32, #tpu.memory_space<vmem>>, vector<104x640xf32>
    %c0_1 = arith.constant 0 : index
    %c0_2 = arith.constant 0 : index
    %1 = vector.load %arg2[%c0_1, %c0_2] : memref<640x128xf32, #tpu.memory_space<vmem>>, vector<640x128xf32>
    %cst = arith.constant dense<0.000000e+00> : vector<104x128xf32>
    %2 = tpu.matmul %0, %1, %cst {dimension_numbers = #tpu.dot_dimension_numbers<[1], [0], [0], [1], [0, 0, 1, 1], [], []>} : vector<104x640xf32>, vector<640x128xf32>, vector<104x128xf32> -> vector<104x128xf32>
    %c0_3 = arith.constant 0 : index
    %c0_4 = arith.constant 0 : index
    %3 = vector.load %arg3[%c0_3, %c0_4] : memref<1x128xf32, #tpu.memory_space<vmem>>, vector<1x128xf32>
    %4 = vector.broadcast %3 : vector<1x128xf32> to vector<104x128xf32>
    %5 = arith.addf %2, %4 : vector<104x128xf32>
    %cst_5 = arith.constant 0.000000e+00 : f32
    %6 = vector.broadcast %cst_5 : f32 to vector<104x128xf32>
    %7 = arith.maximumf %5, %6 : vector<104x128xf32>
    %c0_6 = arith.constant 0 : index
    %c0_7 = arith.constant 0 : index
    %8 = vector.load %arg4[%c0_6, %c0_7] : memref<104x128xf32, #tpu.memory_space<vmem>>, vector<104x128xf32>
    tpu.vector_store %arg4[%c0_6, %c0_7], %7 {strides = array<i32>} : memref<104x128xf32, #tpu.memory_space<vmem>>, vector<104x128xf32>,
    return
  }
  func.func @transform_0(%arg0: i32) -> (i32, i32) {
    %c0_i32 = arith.constant 0 : i32
    %c0_i32_0 = arith.constant 0 : i32
    return %arg0, %c0_i32 : i32, i32
  }
  func.func @transform_1(%arg0: i32) -> (i32, i32) {
    %c0_i32 = arith.constant 0 : i32
    %c0_i32_0 = arith.constant 0 : i32
    %c0_i32_1 = arith.constant 0 : i32
    return %c0_i32, %c0_i32_0 : i32, i32
  }
  func.func @transform_2(%arg0: i32) -> (i32, i32) {
    %c0_i32 = arith.constant 0 : i32
    %c0_i32_0 = arith.constant 0 : i32
    %c0_i32_1 = arith.constant 0 : i32
    return %c0_i32, %c0_i32_0 : i32, i32
  }
  func.func @transform_3(%arg0: i32) -> (i32, i32) {
    %c0_i32 = arith.constant 0 : i32
    %c0_i32_0 = arith.constant 0 : i32
    return %arg0, %c0_i32 : i32, i32
  }
}

module attributes {stable_mosaic.version = 11 : i64} {
  func.func @_fused_fc_kernel(%arg0: i32, %arg1: memref<8x3200xf32, #tpu.memory_space<vmem>>, %arg2: memref<3200x1024xf32, #tpu.memory_space<vmem>>, %arg3: memref<1x1024xf32, #tpu.memory_space<vmem>>, %arg4: memref<1024x512xf32, #tpu.memory_space<vmem>>, %arg5: memref<1x512xf32, #tpu.memory_space<vmem>>, %arg6: memref<512x128xf32, #tpu.memory_space<vmem>>, %arg7: memref<1x128xf32, #tpu.memory_space<vmem>>, %arg8: memref<8x128xf32, #tpu.memory_space<vmem>>) attributes {dimension_semantics = [#tpu.dimension_semantics<parallel>], iteration_bounds = array<i64: 1>, scalar_prefetch = 0 : i64, scratch_operands = 0 : i64, tpu.core_type = #tpu.core_type<tc>, window_params = [{transform_indices = @transform_0, window_bounds = array<i64: 8, 3200>}, {pipeline_mode = #tpu.pipeline_mode<synchronous>, transform_indices = @transform_1, window_bounds = array<i64: 3200, 1024>}, {pipeline_mode = #tpu.pipeline_mode<synchronous>, transform_indices = @transform_2, window_bounds = array<i64: 1, 1024>}, {pipeline_mode = #tpu.pipeline_mode<synchronous>, transform_indices = @transform_3, window_bounds = array<i64: 1024, 512>}, {pipeline_mode = #tpu.pipeline_mode<synchronous>, transform_indices = @transform_4, window_bounds = array<i64: 1, 512>}, {pipeline_mode = #tpu.pipeline_mode<synchronous>, transform_indices = @transform_5, window_bounds = array<i64: 512, 128>}, {pipeline_mode = #tpu.pipeline_mode<synchronous>, transform_indices = @transform_6, window_bounds = array<i64: 1, 128>}, {transform_indices = @transform_7, window_bounds = array<i64: 8, 128>}]} {
    %c0 = arith.constant 0 : index
    %c0_0 = arith.constant 0 : index
    %0 = vector.load %arg1[%c0, %c0_0] : memref<8x3200xf32, #tpu.memory_space<vmem>>, vector<8x3200xf32>
    %c0_1 = arith.constant 0 : index
    %c0_2 = arith.constant 0 : index
    %1 = vector.load %arg2[%c0_1, %c0_2] : memref<3200x1024xf32, #tpu.memory_space<vmem>>, vector<3200x1024xf32>
    %cst = arith.constant dense<0.000000e+00> : vector<8x1024xf32>
    %2 = tpu.matmul %0, %1, %cst {dimension_numbers = #tpu.dot_dimension_numbers<[1], [0], [0], [1], [0, 0, 1, 1], [], []>} : vector<8x3200xf32>, vector<3200x1024xf32>, vector<8x1024xf32> -> vector<8x1024xf32>
    %c0_3 = arith.constant 0 : index
    %c0_4 = arith.constant 0 : index
    %3 = vector.load %arg3[%c0_3, %c0_4] : memref<1x1024xf32, #tpu.memory_space<vmem>>, vector<1x1024xf32>
    %4 = vector.broadcast %3 : vector<1x1024xf32> to vector<8x1024xf32>
    %5 = arith.addf %2, %4 : vector<8x1024xf32>
    %cst_5 = arith.constant 0.000000e+00 : f32
    %6 = vector.broadcast %cst_5 : f32 to vector<8x1024xf32>
    %7 = arith.maximumf %5, %6 : vector<8x1024xf32>
    %c0_6 = arith.constant 0 : index
    %c0_7 = arith.constant 0 : index
    %8 = vector.load %arg4[%c0_6, %c0_7] : memref<1024x512xf32, #tpu.memory_space<vmem>>, vector<1024x512xf32>
    %cst_8 = arith.constant dense<0.000000e+00> : vector<8x512xf32>
    %9 = tpu.matmul %7, %8, %cst_8 {dimension_numbers = #tpu.dot_dimension_numbers<[1], [0], [0], [1], [0, 0, 1, 1], [], []>} : vector<8x1024xf32>, vector<1024x512xf32>, vector<8x512xf32> -> vector<8x512xf32>
    %c0_9 = arith.constant 0 : index
    %c0_10 = arith.constant 0 : index
    %10 = vector.load %arg5[%c0_9, %c0_10] : memref<1x512xf32, #tpu.memory_space<vmem>>, vector<1x512xf32>
    %11 = vector.broadcast %10 : vector<1x512xf32> to vector<8x512xf32>
    %12 = arith.addf %9, %11 : vector<8x512xf32>
    %cst_11 = arith.constant 0.000000e+00 : f32
    %13 = vector.broadcast %cst_11 : f32 to vector<8x512xf32>
    %14 = arith.maximumf %12, %13 : vector<8x512xf32>
    %c0_12 = arith.constant 0 : index
    %c0_13 = arith.constant 0 : index
    %15 = vector.load %arg6[%c0_12, %c0_13] : memref<512x128xf32, #tpu.memory_space<vmem>>, vector<512x128xf32>
    %cst_14 = arith.constant dense<0.000000e+00> : vector<8x128xf32>
    %16 = tpu.matmul %14, %15, %cst_14 {dimension_numbers = #tpu.dot_dimension_numbers<[1], [0], [0], [1], [0, 0, 1, 1], [], []>} : vector<8x512xf32>, vector<512x128xf32>, vector<8x128xf32> -> vector<8x128xf32>
    %c0_15 = arith.constant 0 : index
    %c0_16 = arith.constant 0 : index
    %17 = vector.load %arg7[%c0_15, %c0_16] : memref<1x128xf32, #tpu.memory_space<vmem>>, vector<1x128xf32>
    %18 = vector.broadcast %17 : vector<1x128xf32> to vector<8x128xf32>
    %19 = arith.addf %16, %18 : vector<8x128xf32>
    %c0_17 = arith.constant 0 : index
    %c0_18 = arith.constant 0 : index
    %20 = vector.load %arg8[%c0_17, %c0_18] : memref<8x128xf32, #tpu.memory_space<vmem>>, vector<8x128xf32>
    tpu.vector_store %arg8[%c0_17, %c0_18], %19 {strides = array<i32>} : memref<8x128xf32, #tpu.memory_space<vmem>>, vector<8x128xf32>,
    return
  }
  func.func @transform_0(%arg0: i32) -> (i32, i32) {
    %c0_i32 = arith.constant 0 : i32
    %c0_i32_0 = arith.constant 0 : i32
    return %arg0, %c0_i32 : i32, i32
  }
  func.func @transform_1(%arg0: i32) -> (i32, i32) {
    %c0_i32 = arith.constant 0 : i32
    %c0_i32_0 = arith.constant 0 : i32
    %c0_i32_1 = arith.constant 0 : i32
    return %c0_i32, %c0_i32_0 : i32, i32
  }
  func.func @transform_2(%arg0: i32) -> (i32, i32) {
    %c0_i32 = arith.constant 0 : i32
    %c0_i32_0 = arith.constant 0 : i32
    %c0_i32_1 = arith.constant 0 : i32
    return %c0_i32, %c0_i32_0 : i32, i32
  }
  func.func @transform_3(%arg0: i32) -> (i32, i32) {
    %c0_i32 = arith.constant 0 : i32
    %c0_i32_0 = arith.constant 0 : i32
    %c0_i32_1 = arith.constant 0 : i32
    return %c0_i32, %c0_i32_0 : i32, i32
  }
  func.func @transform_4(%arg0: i32) -> (i32, i32) {
    %c0_i32 = arith.constant 0 : i32
    %c0_i32_0 = arith.constant 0 : i32
    %c0_i32_1 = arith.constant 0 : i32
    return %c0_i32, %c0_i32_0 : i32, i32
  }
  func.func @transform_5(%arg0: i32) -> (i32, i32) {
    %c0_i32 = arith.constant 0 : i32
    %c0_i32_0 = arith.constant 0 : i32
    %c0_i32_1 = arith.constant 0 : i32
    return %c0_i32, %c0_i32_0 : i32, i32
  }
  func.func @transform_6(%arg0: i32) -> (i32, i32) {
    %c0_i32 = arith.constant 0 : i32
    %c0_i32_0 = arith.constant 0 : i32
    %c0_i32_1 = arith.constant 0 : i32
    return %c0_i32, %c0_i32_0 : i32, i32
  }
  func.func @transform_7(%arg0: i32) -> (i32, i32) {
    %c0_i32 = arith.constant 0 : i32
    %c0_i32_0 = arith.constant 0 : i32
    return %arg0, %c0_i32 : i32, i32
  }
}

</mosaic_0001>

<llo_original>
// kernel: net2_forward.4
$region0: #{net2_forward.4}
  #allocation0 [shape = 'u32[]', space=smem, size = 0x4, offset = 0x4, fixed_abs, tag = 'smem constant byte address 0x4 - core index']
  #allocation1 [shape = 'u32[72,128]{1,0:T(1,128)}', space=vmem, size = 0x9000, scoped, tag = 'internal scratch']
  %s0 = inlined_call_operand.vmem [shape: f32[896,256], index: 0, kind: input, shape index: {}]
  %s1 = inlined_call_operand.vmem [shape: f32[256,128], index: 1, kind: input, shape index: {}]
  %s2 = inlined_call_operand.vmem [shape: f32[1,128], index: 2, kind: input, shape index: {}]
  %s3 = inlined_call_operand.vmem [shape: f32[896,128], index: 3, kind: output, shape index: {}]
  %s4 = sld [smem:[#allocation0]]
  $region45: #{net2_forward.4} parent=0
    _
  %s6 = ssub.s32 1, %s4
  %s7 = scalar_select 0, %s6, %s4
  loop: start=0, step=1, limit=9
  $region2: #{net2_forward.4} parent=0 // loop_pre_header
    _
  $region3: #{net2_forward.4} parent=0 // loop_header
    %s9 = sphi 0, %s13
    %p10 = scmp.ge.s32.totalorder %s9, 9
    %s19 = sphi 0, %s21
    %s22 = sphi 0, %s19
    %s23 = sphi 0, %s22
    %s39 = sphi 0, %s23
    %s43 = sphi 0, %s43
    %s45 = sphi 0, %s43
    %s46 = sphi 0, %s45
    %s60 = sphi 0, %s46
    %s64 = sphi 0, %s64
    %s66 = sphi 0, %s64
    %s67 = sphi 0, %s66
    %s81 = sphi 0, %s67
    %s87 = sphi 0, %s89
    %s90 = sphi 0, %s87
    %s91 = sphi 0, %s90
    %s107 = sphi 0, %s91
  $region4: #{net2_forward.4} parent=0 // loop_header_branch
    %12 = sbr.rel (%p10) target = $region8
  $region5: #{net2_forward.4} parent=0 // loop_body
    %s14 = ssub.s32 %s9, 1
    %s15 = ssub.s32 %s9, 2
    %s16 = sadd.s32 %s9, 1
    %s17 = ssub.s32 %s9, %s16
    %p18 = scmp.eq.s32.totalorder %s17, 0
    %s20 = sadd.s32 %s19, 1
    %s21 = scalar_select %p18, %s19, %s20
    %p24 = pneg %p18
    %p25 = scmp.eq.s32.totalorder %s9, 6
    %p26 = por %p24, %p25
    %p27 = scmp.ne.s32.totalorder %s19, %s22
    %p28 = scmp.eq.s32.totalorder %s9, 0
    %p29 = por %p27, %p28
    %p30 = scmp.ne.s32.totalorder %s19, %s22
    %p31 = scmp.eq.s32.totalorder %s14, 6
    %p32 = por %p30, %p31
    %p33 = scmp.ne.s32.totalorder %s22, %s23
    %p34 = scmp.eq.s32.totalorder %s14, 0
    %p35 = por %p33, %p34
    %p36 = scmp.ne.s32.totalorder %s22, %s23
    %p37 = scmp.eq.s32.totalorder %s15, 6
    %p38 = por %p36, %p37
    %p40 = scmp.ne.s32.totalorder %s23, %s39
    %p41 = scmp.eq.s32.totalorder %s15, 0
    %p42 = por %p40, %p41
    %s44 = sadd.s32 %s43, 1
    %p47 = scmp.eq.s32.totalorder %s9, 6
    %p48 = scmp.ne.s32.totalorder %s43, %s45
    %p49 = scmp.eq.s32.totalorder %s9, 0
    %p50 = por %p48, %p49
    %p51 = scmp.ne.s32.totalorder %s43, %s45
    %p52 = scmp.eq.s32.totalorder %s14, 6
    %p53 = por %p51, %p52
    %p54 = scmp.ne.s32.totalorder %s45, %s46
    %p55 = scmp.eq.s32.totalorder %s14, 0
    %p56 = por %p54, %p55
    %p57 = scmp.ne.s32.totalorder %s45, %s46
    %p58 = scmp.eq.s32.totalorder %s15, 6
    %p59 = por %p57, %p58
    %p61 = scmp.ne.s32.totalorder %s46, %s60
    %p62 = scmp.eq.s32.totalorder %s15, 0
    %p63 = por %p61, %p62
    %s65 = sadd.s32 %s64, 1
    %p68 = scmp.eq.s32.totalorder %s9, 6
    %p69 = scmp.ne.s32.totalorder %s64, %s66
    %p70 = scmp.eq.s32.totalorder %s9, 0
    %p71 = por %p69, %p70
    %p72 = scmp.ne.s32.totalorder %s64, %s66
    %p73 = scmp.eq.s32.totalorder %s14, 6
    %p74 = por %p72, %p73
    %p75 = scmp.ne.s32.totalorder %s66, %s67
    %p76 = scmp.eq.s32.totalorder %s14, 0
    %p77 = por %p75, %p76
    %p78 = scmp.ne.s32.totalorder %s66, %s67
    %p79 = scmp.eq.s32.totalorder %s15, 6
    %p80 = por %p78, %p79
    %p82 = scmp.ne.s32.totalorder %s67, %s81
    %p83 = scmp.eq.s32.totalorder %s15, 0
    %p84 = por %p82, %p83
    %s85 = ssub.s32 %s9, %s16
    %p86 = scmp.eq.s32.totalorder %s85, 0
    %s88 = sadd.s32 %s87, 1
    %s89 = scalar_select %p86, %s87, %s88
    %p92 = pneg %p86
    %p93 = scmp.eq.s32.totalorder %s9, 6
    %p94 = por %p92, %p93
    %p95 = scmp.ne.s32.totalorder %s87, %s90
    %p96 = scmp.eq.s32.totalorder %s9, 0
    %p97 = por %p95, %p96
    %p98 = scmp.ne.s32.totalorder %s87, %s90
    %p99 = scmp.eq.s32.totalorder %s14, 6
    %p100 = por %p98, %p99
    %p101 = scmp.ne.s32.totalorder %s90, %s91
    %p102 = scmp.eq.s32.totalorder %s14, 0
    %p103 = por %p101, %p102
    %p104 = scmp.ne.s32.totalorder %s90, %s91
    %p105 = scmp.eq.s32.totalorder %s15, 6
    %p106 = por %p104, %p105
    %p108 = scmp.ne.s32.totalorder %s91, %s107
    %p109 = scmp.eq.s32.totalorder %s15, 0
    %p110 = por %p108, %p109
    %p111 = scmp.le.s32.totalorder 1, %s9
    %p112 = scmp.lt.s32.totalorder %s9, 8
    %p113 = pnand %p111, %p112
    %p114 = pneg %p113
    // Predicated region
    $region9: #{net2_forward.4} parent=5 // pred_check
      _
    $region10: #{net2_forward.4} parent=5 // pred_check_branch
      %116 = sbr.rel (%p113) target = $region12
    $region11: #{net2_forward.4} parent=5 // pred_region
      %s117 = ssub.s32 %s9, 1
      // Predicated region
      $region13: #{net2_forward.4} parent=11 // pred_check
        %p118 = pneg %p56
      $region14: #{net2_forward.4} parent=11 // pred_check_branch
        %120 = sbr.rel (%p118) target = $region16
      $region15: #{net2_forward.4} parent=11 // pred_region
        _
      $region16: #{net2_forward.4} parent=11 // pred_fallthru
        _
      // Predicated region
      $region17: #{net2_forward.4} parent=11 // pred_check
        %p121 = pneg %p77
      $region18: #{net2_forward.4} parent=11 // pred_check_branch
        %123 = sbr.rel (%p121) target = $region20
      $region19: #{net2_forward.4} parent=11 // pred_region
        _
      $region20: #{net2_forward.4} parent=11 // pred_fallthru
        _
    $region12: #{net2_forward.4} parent=5 // pred_fallthru
      _
    %p124 = scmp.lt.s32.totalorder %s9, 7
    // Predicated region
    $region21: #{net2_forward.4} parent=5 // pred_check
      %p125 = pneg %p124
    $region22: #{net2_forward.4} parent=5 // pred_check_branch
      %127 = sbr.rel (%p125) target = $region24
    $region23: #{net2_forward.4} parent=5 // pred_region
      // Predicated region
      $region25: #{net2_forward.4} parent=23 // pred_check
        %p128 = pneg %p29
      $region26: #{net2_forward.4} parent=23 // pred_check_branch
        %130 = sbr.rel (%p128) target = $region28
      $region27: #{net2_forward.4} parent=23 // pred_region
        %s131 = smul.u32 16, %s9
        %p132 = scmp.lt.s32.totalorder %s131, 111
        %s133 = scalar_select %p132, %s131, 111
        %s134 = smul.addr %s133, 2
        %s135 = smul.addr %s134, 8
        %s136 = scalar_lea.vmem %s0, %s135
        %s137 = smul.u32 16, %s9
      $region28: #{net2_forward.4} parent=23 // pred_fallthru
        _
    $region24: #{net2_forward.4} parent=5 // pred_fallthru
      _
    %p138 = scmp.le.s32.totalorder 1, %s9
    %p139 = scmp.lt.s32.totalorder %s9, 8
    %p140 = pnand %p138, %p139
    %p141 = pneg %p140
    // Predicated region
    $region29: #{net2_forward.4} parent=5 // pred_check
      _
    $region30: #{net2_forward.4} parent=5 // pred_check_branch
      %143 = sbr.rel (%p140) target = $region32
    $region31: #{net2_forward.4} parent=5 // pred_region
      %s144 = ssub.s32 %s9, 1
      %s145 = smul.u32 16, %s14
      %p146 = scmp.lt.s32.totalorder %s145, 111
      %s147 = scalar_select %p146, %s145, 111
      %s148 = smul.addr %s147, 2
      %s149 = smul.addr %s148, 8
      %s150 = scalar_lea.vmem %s0, %s149
      %p151 = pneg %p35
      %p152 = pneg %p32
      %p153 = pneg %p56
      %p154 = pneg %p53
      %p155 = pneg %p77
      %p156 = pneg %p74
      %p157 = pneg %p103
      %p158 = pneg %p100
      %s159 = smul.u32 16, %s14
      %p160 = scmp.lt.s32.totalorder %s159, 111
      %s161 = scalar_select %p160, %s159, 111
      %s162 = smul.addr %s161, 8
      %s163 = scalar_lea.vmem %s3, %s162
      %s164 = smul.u32 16, %s14
      %p165 = scmp.lt.s32.totalorder %s164, 111
      %s166 = scalar_select %p165, %s164, 111
      %s167 = smul.addr %s166, 2
      %s168 = smul.addr %s167, 8
      %s169 = scalar_lea.vmem %s0, %s168
      %s170 = smul.u32 16, %s14
      %s171 = smul.u32 16, %s14
      %p172 = scmp.lt.s32.totalorder %s171, 111
      %s173 = scalar_select %p172, %s171, 111
      %s174 = smul.addr %s173, 8
      %s175 = scalar_lea.vmem %s3, %s174
      %s176 = smul.u32 16, %s14
      %v177 = vld [vmem:[%s169] sm:$0xff]
      %v178 = vld [vmem:[%s169 + $0x8] sm:$0xff]
      %v179 = vld [vmem:[%s169 + $0x10] sm:$0xff]
      %v180 = vld [vmem:[%s169 + $0x18] sm:$0xff]
      %v181 = vld [vmem:[%s169 + $0x20] sm:$0xff]
      %v182 = vld [vmem:[%s169 + $0x28] sm:$0xff]
      %v183 = vld [vmem:[%s169 + $0x30] sm:$0xff]
      %v184 = vld [vmem:[%s169 + $0x38] sm:$0xff]
      %v185 = vld [vmem:[%s169 + $0x40] sm:$0xff]
      %v186 = vld [vmem:[%s169 + $0x48] sm:$0xff]
      %v187 = vld [vmem:[%s169 + $0x50] sm:$0xff]
      %v188 = vld [vmem:[%s169 + $0x58] sm:$0xff]
      %v189 = vld [vmem:[%s169 + $0x60] sm:$0xff]
      %v190 = vld [vmem:[%s169 + $0x68] sm:$0xff]
      %v191 = vld [vmem:[%s169 + $0x70] sm:$0xff]
      %v192 = vld [vmem:[%s169 + $0x78] sm:$0xff]
      %v193 = vld [vmem:[%s169 + $0x80] sm:$0xff]
      %v194 = vld [vmem:[%s169 + $0x88] sm:$0xff]
      %v195 = vld [vmem:[%s169 + $0x90] sm:$0xff]
      %v196 = vld [vmem:[%s169 + $0x98] sm:$0xff]
      %v197 = vld [vmem:[%s169 + $0xa0] sm:$0xff]
      %v198 = vld [vmem:[%s169 + $0xa8] sm:$0xff]
      %v199 = vld [vmem:[%s169 + $0xb0] sm:$0xff]
      %v200 = vld [vmem:[%s169 + $0xb8] sm:$0xff]
      %v201 = vld [vmem:[%s169 + $0xc0] sm:$0xff]
      %v202 = vld [vmem:[%s169 + $0xc8] sm:$0xff]
      %v203 = vld [vmem:[%s169 + $0xd0] sm:$0xff]
      %v204 = vld [vmem:[%s169 + $0xd8] sm:$0xff]
      %v205 = vld [vmem:[%s169 + $0xe0] sm:$0xff]
      %v206 = vld [vmem:[%s169 + $0xe8] sm:$0xff]
      %v207 = vld [vmem:[%s169 + $0xf0] sm:$0xff]
      %v208 = vld [vmem:[%s169 + $0xf8] sm:$0xff]
      %v209 = vld [vmem:[%s1] sm:$0xff]
      %v210 = vld [vmem:[%s1 + $0x8] sm:$0xff]
      %v211 = vld [vmem:[%s1 + $0x10] sm:$0xff]
      %v212 = vld [vmem:[%s1 + $0x18] sm:$0xff]
      %v213 = vld [vmem:[%s1 + $0x20] sm:$0xff]
      %v214 = vld [vmem:[%s1 + $0x28] sm:$0xff]
      %v215 = vld [vmem:[%s1 + $0x30] sm:$0xff]
      %v216 = vld [vmem:[%s1 + $0x38] sm:$0xff]
      %v217 = vld [vmem:[%s1 + $0x40] sm:$0xff]
      %v218 = vld [vmem:[%s1 + $0x48] sm:$0xff]
      %v219 = vld [vmem:[%s1 + $0x50] sm:$0xff]
      %v220 = vld [vmem:[%s1 + $0x58] sm:$0xff]
      %v221 = vld [vmem:[%s1 + $0x60] sm:$0xff]
      %v222 = vld [vmem:[%s1 + $0x68] sm:$0xff]
      %v223 = vld [vmem:[%s1 + $0x70] sm:$0xff]
      %v224 = vld [vmem:[%s1 + $0x78] sm:$0xff]
      %v225 = vld [vmem:[%s1 + $0x80] sm:$0xff]
      %v226 = vld [vmem:[%s1 + $0x88] sm:$0xff]
      %v227 = vld [vmem:[%s1 + $0x90] sm:$0xff]
      %v228 = vld [vmem:[%s1 + $0x98] sm:$0xff]
      %v229 = vld [vmem:[%s1 + $0xa0] sm:$0xff]
      %v230 = vld [vmem:[%s1 + $0xa8] sm:$0xff]
      %v231 = vld [vmem:[%s1 + $0xb0] sm:$0xff]
      %v232 = vld [vmem:[%s1 + $0xb8] sm:$0xff]
      %v233 = vld [vmem:[%s1 + $0xc0] sm:$0xff]
      %v234 = vld [vmem:[%s1 + $0xc8] sm:$0xff]
      %v235 = vld [vmem:[%s1 + $0xd0] sm:$0xff]
      %v236 = vld [vmem:[%s1 + $0xd8] sm:$0xff]
      %v237 = vld [vmem:[%s1 + $0xe0] sm:$0xff]
      %v238 = vld [vmem:[%s1 + $0xe8] sm:$0xff]
      %v239 = vld [vmem:[%s1 + $0xf0] sm:$0xff]
      %v240 = vld [vmem:[%s1 + $0xf8] sm:$0xff]
      %v241 = vld [vmem:[%s2] sm:$0x1]
      %v243 = vperm.slane %v241, 0
      %245 = vmatpush.msra.mxu0 %v224
      %246 = vmatpush.msra.mxu0 %v223
      %247 = vmatpush.msra.mxu0 %v222
      %248 = vmatpush.msra.mxu0 %v221
      %249 = vmatpush.msra.mxu0 %v220
      %250 = vmatpush.msra.mxu0 %v219
      %251 = vmatpush.msra.mxu0 %v218
      %252 = vmatpush.msra.mxu0 %v217
      %253 = vmatpush.msra.mxu0 %v216
      %254 = vmatpush.msra.mxu0 %v215
      %255 = vmatpush.msra.mxu0 %v214
      %256 = vmatpush.msra.mxu0 %v213
      %257 = vmatpush.msra.mxu0 %v212
      %258 = vmatpush.msra.mxu0 %v211
      %259 = vmatpush.msra.mxu0 %v210
      %260 = vmatpush.msra.mxu0 %v209
      %261 = vmatmul.f32.gmra.mxu0 %v177
      %v262 = vpop.f32.mrf.mxu0
      %v263 = vadd.f32 %v243, %v262
      %264 = vmatmul.f32.gmra.mxu0 %v179
      %v265 = vpop.f32.mrf.mxu0
      %v266 = vadd.f32 %v243, %v265
      %267 = vmatmul.f32.gmra.mxu0 %v181
      %v268 = vpop.f32.mrf.mxu0
      %v269 = vadd.f32 %v243, %v268
      %270 = vmatmul.f32.gmra.mxu0 %v183
      %v271 = vpop.f32.mrf.mxu0
      %v272 = vadd.f32 %v243, %v271
      %273 = vmatmul.f32.gmra.mxu0 %v185
      %v274 = vpop.f32.mrf.mxu0
      %v275 = vadd.f32 %v243, %v274
      %276 = vmatmul.f32.gmra.mxu0 %v187
      %v277 = vpop.f32.mrf.mxu0
      %v278 = vadd.f32 %v243, %v277
      %279 = vmatmul.f32.gmra.mxu0 %v189
      %v280 = vpop.f32.mrf.mxu0
      %v281 = vadd.f32 %v243, %v280
      %282 = vmatmul.f32.gmra.mxu0 %v191
      %v283 = vpop.f32.mrf.mxu0
      %v284 = vadd.f32 %v243, %v283
      %285 = vmatmul.f32.gmra.mxu0 %v193
      %v286 = vpop.f32.mrf.mxu0
      %v287 = vadd.f32 %v243, %v286
      %288 = vmatmul.f32.gmra.mxu0 %v195
      %v289 = vpop.f32.mrf.mxu0
      %v290 = vadd.f32 %v243, %v289
      %291 = vmatmul.f32.gmra.mxu0 %v197
      %v292 = vpop.f32.mrf.mxu0
      %v293 = vadd.f32 %v243, %v292
      %294 = vmatmul.f32.gmra.mxu0 %v199
      %v295 = vpop.f32.mrf.mxu0
      %v296 = vadd.f32 %v243, %v295
      %297 = vmatmul.f32.gmra.mxu0 %v201
      %v298 = vpop.f32.mrf.mxu0
      %v299 = vadd.f32 %v243, %v298
      %300 = vmatmul.f32.gmra.mxu0 %v203
      %v301 = vpop.f32.mrf.mxu0
      %v302 = vadd.f32 %v243, %v301
      %303 = vmatmul.f32.gmra.mxu0 %v205
      %v304 = vpop.f32.mrf.mxu0
      %v305 = vadd.f32 %v243, %v304
      %306 = vmatmul.f32.gmra.mxu0 %v207
      %v307 = vpop.f32.mrf.mxu0
      %v308 = vadd.f32 %v243, %v307
      %309 = vdwg.mxu0
      %310 = vmatpush.msra.mxu0 %v240
      %311 = vmatpush.msra.mxu0 %v239
      %312 = vmatpush.msra.mxu0 %v238
      %313 = vmatpush.msra.mxu0 %v237
      %314 = vmatpush.msra.mxu0 %v236
      %315 = vmatpush.msra.mxu0 %v235
      %316 = vmatpush.msra.mxu0 %v234
      %317 = vmatpush.msra.mxu0 %v233
      %318 = vmatpush.msra.mxu0 %v232
      %319 = vmatpush.msra.mxu0 %v231
      %320 = vmatpush.msra.mxu0 %v230
      %321 = vmatpush.msra.mxu0 %v229
      %322 = vmatpush.msra.mxu0 %v228
      %323 = vmatpush.msra.mxu0 %v227
      %324 = vmatpush.msra.mxu0 %v226
      %325 = vmatpush.msra.mxu0 %v225
      %326 = vmatmul.f32.gmra.mxu0 %v178
      %v327 = vpop.f32.mrf.mxu0
      %v328 = vadd.f32 %v263, %v327
      %329 = vmatmul.f32.gmra.mxu0 %v180
      %v330 = vpop.f32.mrf.mxu0
      %v331 = vadd.f32 %v266, %v330
      %332 = vmatmul.f32.gmra.mxu0 %v182
      %v333 = vpop.f32.mrf.mxu0
      %v334 = vadd.f32 %v269, %v333
      %335 = vmatmul.f32.gmra.mxu0 %v184
      %v336 = vpop.f32.mrf.mxu0
      %v337 = vadd.f32 %v272, %v336
      %338 = vmatmul.f32.gmra.mxu0 %v186
      %v339 = vpop.f32.mrf.mxu0
      %v340 = vadd.f32 %v275, %v339
      %341 = vmatmul.f32.gmra.mxu0 %v188
      %v342 = vpop.f32.mrf.mxu0
      %v343 = vadd.f32 %v278, %v342
      %344 = vmatmul.f32.gmra.mxu0 %v190
      %v345 = vpop.f32.mrf.mxu0
      %v346 = vadd.f32 %v281, %v345
      %347 = vmatmul.f32.gmra.mxu0 %v192
      %v348 = vpop.f32.mrf.mxu0
      %v349 = vadd.f32 %v284, %v348
      %350 = vmatmul.f32.gmra.mxu0 %v194
      %v351 = vpop.f32.mrf.mxu0
      %v352 = vadd.f32 %v287, %v351
      %353 = vmatmul.f32.gmra.mxu0 %v196
      %v354 = vpop.f32.mrf.mxu0
      %v355 = vadd.f32 %v290, %v354
      %356 = vmatmul.f32.gmra.mxu0 %v198
      %v357 = vpop.f32.mrf.mxu0
      %v358 = vadd.f32 %v293, %v357
      %359 = vmatmul.f32.gmra.mxu0 %v200
      %v360 = vpop.f32.mrf.mxu0
      %v361 = vadd.f32 %v296, %v360
      %362 = vmatmul.f32.gmra.mxu0 %v202
      %v363 = vpop.f32.mrf.mxu0
      %v364 = vadd.f32 %v299, %v363
      %365 = vmatmul.f32.gmra.mxu0 %v204
      %v366 = vpop.f32.mrf.mxu0
      %v367 = vadd.f32 %v302, %v366
      %368 = vmatmul.f32.gmra.mxu0 %v206
      %v369 = vpop.f32.mrf.mxu0
      %v370 = vadd.f32 %v305, %v369
      %371 = vmatmul.f32.gmra.mxu0 %v208
      %v372 = vpop.f32.mrf.mxu0
      %v373 = vadd.f32 %v308, %v372
      %374 = vdwg.mxu0
      %v375 = vmax.f32 %v328, 0.0
      %v376 = vmax.f32 %v331, 0.0
      %v377 = vmax.f32 %v334, 0.0
      %v378 = vmax.f32 %v337, 0.0
      %v379 = vmax.f32 %v340, 0.0
      %v380 = vmax.f32 %v343, 0.0
      %v381 = vmax.f32 %v346, 0.0
      %v382 = vmax.f32 %v349, 0.0
      %v383 = vmax.f32 %v352, 0.0
      %v384 = vmax.f32 %v355, 0.0
      %v385 = vmax.f32 %v358, 0.0
      %v386 = vmax.f32 %v361, 0.0
      %v387 = vmax.f32 %v364, 0.0
      %v388 = vmax.f32 %v367, 0.0
      %v389 = vmax.f32 %v370, 0.0
      %v390 = vmax.f32 %v373, 0.0
      %391 = vst [vmem:[%s175] sm:$0xff] %v375
      %392 = vst [vmem:[%s175 + $0x8] sm:$0xff] %v376
      %393 = vst [vmem:[%s175 + $0x10] sm:$0xff] %v377
      %394 = vst [vmem:[%s175 + $0x18] sm:$0xff] %v378
      %395 = vst [vmem:[%s175 + $0x20] sm:$0xff] %v379
      %396 = vst [vmem:[%s175 + $0x28] sm:$0xff] %v380
      %397 = vst [vmem:[%s175 + $0x30] sm:$0xff] %v381
      %398 = vst [vmem:[%s175 + $0x38] sm:$0xff] %v382
      %399 = vst [vmem:[%s175 + $0x40] sm:$0xff] %v383
      %400 = vst [vmem:[%s175 + $0x48] sm:$0xff] %v384
      %401 = vst [vmem:[%s175 + $0x50] sm:$0xff] %v385
      %402 = vst [vmem:[%s175 + $0x58] sm:$0xff] %v386
      %403 = vst [vmem:[%s175 + $0x60] sm:$0xff] %v387
      %404 = vst [vmem:[%s175 + $0x68] sm:$0xff] %v388
      %405 = vst [vmem:[%s175 + $0x70] sm:$0xff] %v389
      %406 = vst [vmem:[%s175 + $0x78] sm:$0xff] %v390
      %s407 = smul.u32 16, %s14
      %p408 = scmp.lt.s32.totalorder %s407, 111
      %s409 = scalar_select %p408, %s407, 111
      %s410 = smul.addr %s409, 8
      %s411 = scalar_lea.vmem %s3, %s410
      // Predicated region
      $region33: #{net2_forward.4} parent=31 // pred_check
        %p412 = pneg %p100
      $region34: #{net2_forward.4} parent=31 // pred_check_branch
        %414 = sbr.rel (%p412) target = $region36
      $region35: #{net2_forward.4} parent=31 // pred_region
        %s415 = smul.u32 16, %s14
      $region36: #{net2_forward.4} parent=31 // pred_fallthru
        _
    $region32: #{net2_forward.4} parent=5 // pred_fallthru
      _
    %p416 = scmp.le.s32.totalorder 2, %s9
    // Predicated region
    $region37: #{net2_forward.4} parent=5 // pred_check
      %p417 = pneg %p416
    $region38: #{net2_forward.4} parent=5 // pred_check_branch
      %419 = sbr.rel (%p417) target = $region40
    $region39: #{net2_forward.4} parent=5 // pred_region
      %s420 = ssub.s32 %s9, 2
      // Predicated region
      $region41: #{net2_forward.4} parent=39 // pred_check
        %p421 = pneg %p106
      $region42: #{net2_forward.4} parent=39 // pred_check_branch
        %423 = sbr.rel (%p421) target = $region44
      $region43: #{net2_forward.4} parent=39 // pred_region
        %s424 = smul.u32 16, %s15
        %p425 = scmp.lt.s32.totalorder %s424, 111
        %s426 = scalar_select %p425, %s424, 111
        %s427 = smul.addr %s426, 8
        %s428 = scalar_lea.vmem %s3, %s427
      $region44: #{net2_forward.4} parent=39 // pred_fallthru
        _
    $region40: #{net2_forward.4} parent=5 // pred_fallthru
      _
  $region6: #{net2_forward.4} parent=0 // loop_footer
    %s13 = sadd.s32 1, %s9
  $region7: #{net2_forward.4} parent=0 // loop_footer_branch
    %8 = sbr.rel target = $region3
  $region8: #{net2_forward.4} parent=0 // loop_exit
    _

// kernel: net2_forward.5
$region0: #{net2_forward.5}
  #allocation0 [shape = 'u32[]', space=smem, size = 0x4, offset = 0x4, fixed_abs, tag = 'smem constant byte address 0x4 - core index']
  #allocation1 [shape = 'u32[72,128]{1,0:T(1,128)}', space=vmem, size = 0x9000, scoped, tag = 'internal scratch']
  %s0 = inlined_call_operand.vmem [shape: f32[256,512], index: 0, kind: input, shape index: {}]
  %s1 = inlined_call_operand.vmem [shape: f32[512,128], index: 1, kind: input, shape index: {}]
  %s2 = inlined_call_operand.vmem [shape: f32[1,128], index: 2, kind: input, shape index: {}]
  %s3 = inlined_call_operand.vmem [shape: f32[256,128], index: 3, kind: output, shape index: {}]
  %s4 = sld [smem:[#allocation0]]
  $region45: #{net2_forward.5} parent=0
    _
  %s6 = ssub.s32 1, %s4
  %s7 = scalar_select 0, %s6, %s4
  loop: start=0, step=1, limit=4
  $region2: #{net2_forward.5} parent=0 // loop_pre_header
    _
  $region3: #{net2_forward.5} parent=0 // loop_header
    %s9 = sphi 0, %s13
    %p10 = scmp.ge.s32.totalorder %s9, 4
    %s19 = sphi 0, %s21
    %s22 = sphi 0, %s19
    %s23 = sphi 0, %s22
    %s39 = sphi 0, %s23
    %s43 = sphi 0, %s43
    %s45 = sphi 0, %s43
    %s46 = sphi 0, %s45
    %s60 = sphi 0, %s46
    %s64 = sphi 0, %s64
    %s66 = sphi 0, %s64
    %s67 = sphi 0, %s66
    %s81 = sphi 0, %s67
    %s87 = sphi 0, %s89
    %s90 = sphi 0, %s87
    %s91 = sphi 0, %s90
    %s107 = sphi 0, %s91
  $region4: #{net2_forward.5} parent=0 // loop_header_branch
    %12 = sbr.rel (%p10) target = $region8
  $region5: #{net2_forward.5} parent=0 // loop_body
    %s14 = ssub.s32 %s9, 1
    %s15 = ssub.s32 %s9, 2
    %s16 = sadd.s32 %s9, 1
    %s17 = ssub.s32 %s9, %s16
    %p18 = scmp.eq.s32.totalorder %s17, 0
    %s20 = sadd.s32 %s19, 1
    %s21 = scalar_select %p18, %s19, %s20
    %p24 = pneg %p18
    %p25 = scmp.eq.s32.totalorder %s9, 1
    %p26 = por %p24, %p25
    %p27 = scmp.ne.s32.totalorder %s19, %s22
    %p28 = scmp.eq.s32.totalorder %s9, 0
    %p29 = por %p27, %p28
    %p30 = scmp.ne.s32.totalorder %s19, %s22
    %p31 = scmp.eq.s32.totalorder %s14, 1
    %p32 = por %p30, %p31
    %p33 = scmp.ne.s32.totalorder %s22, %s23
    %p34 = scmp.eq.s32.totalorder %s14, 0
    %p35 = por %p33, %p34
    %p36 = scmp.ne.s32.totalorder %s22, %s23
    %p37 = scmp.eq.s32.totalorder %s15, 1
    %p38 = por %p36, %p37
    %p40 = scmp.ne.s32.totalorder %s23, %s39
    %p41 = scmp.eq.s32.totalorder %s15, 0
    %p42 = por %p40, %p41
    %s44 = sadd.s32 %s43, 1
    %p47 = scmp.eq.s32.totalorder %s9, 1
    %p48 = scmp.ne.s32.totalorder %s43, %s45
    %p49 = scmp.eq.s32.totalorder %s9, 0
    %p50 = por %p48, %p49
    %p51 = scmp.ne.s32.totalorder %s43, %s45
    %p52 = scmp.eq.s32.totalorder %s14, 1
    %p53 = por %p51, %p52
    %p54 = scmp.ne.s32.totalorder %s45, %s46
    %p55 = scmp.eq.s32.totalorder %s14, 0
    %p56 = por %p54, %p55
    %p57 = scmp.ne.s32.totalorder %s45, %s46
    %p58 = scmp.eq.s32.totalorder %s15, 1
    %p59 = por %p57, %p58
    %p61 = scmp.ne.s32.totalorder %s46, %s60
    %p62 = scmp.eq.s32.totalorder %s15, 0
    %p63 = por %p61, %p62
    %s65 = sadd.s32 %s64, 1
    %p68 = scmp.eq.s32.totalorder %s9, 1
    %p69 = scmp.ne.s32.totalorder %s64, %s66
    %p70 = scmp.eq.s32.totalorder %s9, 0
    %p71 = por %p69, %p70
    %p72 = scmp.ne.s32.totalorder %s64, %s66
    %p73 = scmp.eq.s32.totalorder %s14, 1
    %p74 = por %p72, %p73
    %p75 = scmp.ne.s32.totalorder %s66, %s67
    %p76 = scmp.eq.s32.totalorder %s14, 0
    %p77 = por %p75, %p76
    %p78 = scmp.ne.s32.totalorder %s66, %s67
    %p79 = scmp.eq.s32.totalorder %s15, 1
    %p80 = por %p78, %p79
    %p82 = scmp.ne.s32.totalorder %s67, %s81
    %p83 = scmp.eq.s32.totalorder %s15, 0
    %p84 = por %p82, %p83
    %s85 = ssub.s32 %s9, %s16
    %p86 = scmp.eq.s32.totalorder %s85, 0
    %s88 = sadd.s32 %s87, 1
    %s89 = scalar_select %p86, %s87, %s88
    %p92 = pneg %p86
    %p93 = scmp.eq.s32.totalorder %s9, 1
    %p94 = por %p92, %p93
    %p95 = scmp.ne.s32.totalorder %s87, %s90
    %p96 = scmp.eq.s32.totalorder %s9, 0
    %p97 = por %p95, %p96
    %p98 = scmp.ne.s32.totalorder %s87, %s90
    %p99 = scmp.eq.s32.totalorder %s14, 1
    %p100 = por %p98, %p99
    %p101 = scmp.ne.s32.totalorder %s90, %s91
    %p102 = scmp.eq.s32.totalorder %s14, 0
    %p103 = por %p101, %p102
    %p104 = scmp.ne.s32.totalorder %s90, %s91
    %p105 = scmp.eq.s32.totalorder %s15, 1
    %p106 = por %p104, %p105
    %p108 = scmp.ne.s32.totalorder %s91, %s107
    %p109 = scmp.eq.s32.totalorder %s15, 0
    %p110 = por %p108, %p109
    %p111 = scmp.le.s32.totalorder 1, %s9
    %p112 = scmp.lt.s32.totalorder %s9, 3
    %p113 = pnand %p111, %p112
    %p114 = pneg %p113
    // Predicated region
    $region9: #{net2_forward.5} parent=5 // pred_check
      _
    $region10: #{net2_forward.5} parent=5 // pred_check_branch
      %116 = sbr.rel (%p113) target = $region12
    $region11: #{net2_forward.5} parent=5 // pred_region
      %s117 = ssub.s32 %s9, 1
      // Predicated region
      $region13: #{net2_forward.5} parent=11 // pred_check
        %p118 = pneg %p56
      $region14: #{net2_forward.5} parent=11 // pred_check_branch
        %120 = sbr.rel (%p118) target = $region16
      $region15: #{net2_forward.5} parent=11 // pred_region
        _
      $region16: #{net2_forward.5} parent=11 // pred_fallthru
        _
      // Predicated region
      $region17: #{net2_forward.5} parent=11 // pred_check
        %p121 = pneg %p77
      $region18: #{net2_forward.5} parent=11 // pred_check_branch
        %123 = sbr.rel (%p121) target = $region20
      $region19: #{net2_forward.5} parent=11 // pred_region
        _
      $region20: #{net2_forward.5} parent=11 // pred_fallthru
        _
    $region12: #{net2_forward.5} parent=5 // pred_fallthru
      _
    %p124 = scmp.lt.s32.totalorder %s9, 2
    // Predicated region
    $region21: #{net2_forward.5} parent=5 // pred_check
      %p125 = pneg %p124
    $region22: #{net2_forward.5} parent=5 // pred_check_branch
      %127 = sbr.rel (%p125) target = $region24
    $region23: #{net2_forward.5} parent=5 // pred_region
      // Predicated region
      $region25: #{net2_forward.5} parent=23 // pred_check
        %p128 = pneg %p29
      $region26: #{net2_forward.5} parent=23 // pred_check_branch
        %130 = sbr.rel (%p128) target = $region28
      $region27: #{net2_forward.5} parent=23 // pred_region
        %s131 = smul.u32 16, %s9
        %p132 = scmp.lt.s32.totalorder %s131, 31
        %s133 = scalar_select %p132, %s131, 31
        %s134 = smul.addr %s133, 4
        %s135 = smul.addr %s134, 8
        %s136 = scalar_lea.vmem %s0, %s135
        %s137 = smul.u32 16, %s9
      $region28: #{net2_forward.5} parent=23 // pred_fallthru
        _
    $region24: #{net2_forward.5} parent=5 // pred_fallthru
      _
    %p138 = scmp.le.s32.totalorder 1, %s9
    %p139 = scmp.lt.s32.totalorder %s9, 3
    %p140 = pnand %p138, %p139
    %p141 = pneg %p140
    // Predicated region
    $region29: #{net2_forward.5} parent=5 // pred_check
      _
    $region30: #{net2_forward.5} parent=5 // pred_check_branch
      %143 = sbr.rel (%p140) target = $region32
    $region31: #{net2_forward.5} parent=5 // pred_region
      %s144 = ssub.s32 %s9, 1
      %s145 = smul.u32 16, %s14
      %p146 = scmp.lt.s32.totalorder %s145, 31
      %s147 = scalar_select %p146, %s145, 31
      %s148 = smul.addr %s147, 4
      %s149 = smul.addr %s148, 8
      %s150 = scalar_lea.vmem %s0, %s149
      %p151 = pneg %p35
      %p152 = pneg %p32
      %p153 = pneg %p56
      %p154 = pneg %p53
      %p155 = pneg %p77
      %p156 = pneg %p74
      %p157 = pneg %p103
      %p158 = pneg %p100
      %s159 = smul.u32 16, %s14
      %p160 = scmp.lt.s32.totalorder %s159, 31
      %s161 = scalar_select %p160, %s159, 31
      %s162 = smul.addr %s161, 8
      %s163 = scalar_lea.vmem %s3, %s162
      %s164 = smul.u32 16, %s14
      %p165 = scmp.lt.s32.totalorder %s164, 31
      %s166 = scalar_select %p165, %s164, 31
      %s167 = smul.addr %s166, 4
      %s168 = smul.addr %s167, 8
      %s169 = scalar_lea.vmem %s0, %s168
      %s170 = smul.u32 16, %s14
      %s171 = smul.u32 16, %s14
      %p172 = scmp.lt.s32.totalorder %s171, 31
      %s173 = scalar_select %p172, %s171, 31
      %s174 = smul.addr %s173, 8
      %s175 = scalar_lea.vmem %s3, %s174
      %s176 = smul.u32 16, %s14
      %v177 = vld [vmem:[%s169] sm:$0xff]
      %v178 = vld [vmem:[%s169 + $0x8] sm:$0xff]
      %v179 = vld [vmem:[%s169 + $0x10] sm:$0xff]
      %v180 = vld [vmem:[%s169 + $0x18] sm:$0xff]
      %v181 = vld [vmem:[%s169 + $0x20] sm:$0xff]
      %v182 = vld [vmem:[%s169 + $0x28] sm:$0xff]
      %v183 = vld [vmem:[%s169 + $0x30] sm:$0xff]
      %v184 = vld [vmem:[%s169 + $0x38] sm:$0xff]
      %v185 = vld [vmem:[%s169 + $0x40] sm:$0xff]
      %v186 = vld [vmem:[%s169 + $0x48] sm:$0xff]
      %v187 = vld [vmem:[%s169 + $0x50] sm:$0xff]
      %v188 = vld [vmem:[%s169 + $0x58] sm:$0xff]
      %v189 = vld [vmem:[%s169 + $0x60] sm:$0xff]
      %v190 = vld [vmem:[%s169 + $0x68] sm:$0xff]
      %v191 = vld [vmem:[%s169 + $0x70] sm:$0xff]
      %v192 = vld [vmem:[%s169 + $0x78] sm:$0xff]
      %v193 = vld [vmem:[%s169 + $0x80] sm:$0xff]
      %v194 = vld [vmem:[%s169 + $0x88] sm:$0xff]
      %v195 = vld [vmem:[%s169 + $0x90] sm:$0xff]
      %v196 = vld [vmem:[%s169 + $0x98] sm:$0xff]
      %v197 = vld [vmem:[%s169 + $0xa0] sm:$0xff]
      %v198 = vld [vmem:[%s169 + $0xa8] sm:$0xff]
      %v199 = vld [vmem:[%s169 + $0xb0] sm:$0xff]
      %v200 = vld [vmem:[%s169 + $0xb8] sm:$0xff]
      %v201 = vld [vmem:[%s169 + $0xc0] sm:$0xff]
      %v202 = vld [vmem:[%s169 + $0xc8] sm:$0xff]
      %v203 = vld [vmem:[%s169 + $0xd0] sm:$0xff]
      %v204 = vld [vmem:[%s169 + $0xd8] sm:$0xff]
      %v205 = vld [vmem:[%s169 + $0xe0] sm:$0xff]
      %v206 = vld [vmem:[%s169 + $0xe8] sm:$0xff]
      %v207 = vld [vmem:[%s169 + $0xf0] sm:$0xff]
      %v208 = vld [vmem:[%s169 + $0xf8] sm:$0xff]
      %v209 = vld [vmem:[%s169 + $0x100] sm:$0xff]
      %v210 = vld [vmem:[%s169 + $0x108] sm:$0xff]
      %v211 = vld [vmem:[%s169 + $0x110] sm:$0xff]
      %v212 = vld [vmem:[%s169 + $0x118] sm:$0xff]
      %v213 = vld [vmem:[%s169 + $0x120] sm:$0xff]
      %v214 = vld [vmem:[%s169 + $0x128] sm:$0xff]
      %v215 = vld [vmem:[%s169 + $0x130] sm:$0xff]
      %v216 = vld [vmem:[%s169 + $0x138] sm:$0xff]
      %v217 = vld [vmem:[%s169 + $0x140] sm:$0xff]
      %v218 = vld [vmem:[%s169 + $0x148] sm:$0xff]
      %v219 = vld [vmem:[%s169 + $0x150] sm:$0xff]
      %v220 = vld [vmem:[%s169 + $0x158] sm:$0xff]
      %v221 = vld [vmem:[%s169 + $0x160] sm:$0xff]
      %v222 = vld [vmem:[%s169 + $0x168] sm:$0xff]
      %v223 = vld [vmem:[%s169 + $0x170] sm:$0xff]
      %v224 = vld [vmem:[%s169 + $0x178] sm:$0xff]
      %v225 = vld [vmem:[%s169 + $0x180] sm:$0xff]
      %v226 = vld [vmem:[%s169 + $0x188] sm:$0xff]
      %v227 = vld [vmem:[%s169 + $0x190] sm:$0xff]
      %v228 = vld [vmem:[%s169 + $0x198] sm:$0xff]
      %v229 = vld [vmem:[%s169 + $0x1a0] sm:$0xff]
      %v230 = vld [vmem:[%s169 + $0x1a8] sm:$0xff]
      %v231 = vld [vmem:[%s169 + $0x1b0] sm:$0xff]
      %v232 = vld [vmem:[%s169 + $0x1b8] sm:$0xff]
      %v233 = vld [vmem:[%s169 + $0x1c0] sm:$0xff]
      %v234 = vld [vmem:[%s169 + $0x1c8] sm:$0xff]
      %v235 = vld [vmem:[%s169 + $0x1d0] sm:$0xff]
      %v236 = vld [vmem:[%s169 + $0x1d8] sm:$0xff]
      %v237 = vld [vmem:[%s169 + $0x1e0] sm:$0xff]
      %v238 = vld [vmem:[%s169 + $0x1e8] sm:$0xff]
      %v239 = vld [vmem:[%s169 + $0x1f0] sm:$0xff]
      %v240 = vld [vmem:[%s169 + $0x1f8] sm:$0xff]
      %v241 = vld [vmem:[%s1] sm:$0xff]
      %v242 = vld [vmem:[%s1 + $0x8] sm:$0xff]
      %v243 = vld [vmem:[%s1 + $0x10] sm:$0xff]
      %v244 = vld [vmem:[%s1 + $0x18] sm:$0xff]
      %v245 = vld [vmem:[%s1 + $0x20] sm:$0xff]
      %v246 = vld [vmem:[%s1 + $0x28] sm:$0xff]
      %v247 = vld [vmem:[%s1 + $0x30] sm:$0xff]
      %v248 = vld [vmem:[%s1 + $0x38] sm:$0xff]
      %v249 = vld [vmem:[%s1 + $0x40] sm:$0xff]
      %v250 = vld [vmem:[%s1 + $0x48] sm:$0xff]
      %v251 = vld [vmem:[%s1 + $0x50] sm:$0xff]
      %v252 = vld [vmem:[%s1 + $0x58] sm:$0xff]
      %v253 = vld [vmem:[%s1 + $0x60] sm:$0xff]
      %v254 = vld [vmem:[%s1 + $0x68] sm:$0xff]
      %v255 = vld [vmem:[%s1 + $0x70] sm:$0xff]
      %v256 = vld [vmem:[%s1 + $0x78] sm:$0xff]
      %v257 = vld [vmem:[%s1 + $0x80] sm:$0xff]
      %v258 = vld [vmem:[%s1 + $0x88] sm:$0xff]
      %v259 = vld [vmem:[%s1 + $0x90] sm:$0xff]
      %v260 = vld [vmem:[%s1 + $0x98] sm:$0xff]
      %v261 = vld [vmem:[%s1 + $0xa0] sm:$0xff]
      %v262 = vld [vmem:[%s1 + $0xa8] sm:$0xff]
      %v263 = vld [vmem:[%s1 + $0xb0] sm:$0xff]
      %v264 = vld [vmem:[%s1 + $0xb8] sm:$0xff]
      %v265 = vld [vmem:[%s1 + $0xc0] sm:$0xff]
      %v266 = vld [vmem:[%s1 + $0xc8] sm:$0xff]
      %v267 = vld [vmem:[%s1 + $0xd0] sm:$0xff]
      %v268 = vld [vmem:[%s1 + $0xd8] sm:$0xff]
      %v269 = vld [vmem:[%s1 + $0xe0] sm:$0xff]
      %v270 = vld [vmem:[%s1 + $0xe8] sm:$0xff]
      %v271 = vld [vmem:[%s1 + $0xf0] sm:$0xff]
      %v272 = vld [vmem:[%s1 + $0xf8] sm:$0xff]
      %v273 = vld [vmem:[%s1 + $0x100] sm:$0xff]
      %v274 = vld [vmem:[%s1 + $0x108] sm:$0xff]
      %v275 = vld [vmem:[%s1 + $0x110] sm:$0xff]
      %v276 = vld [vmem:[%s1 + $0x118] sm:$0xff]
      %v277 = vld [vmem:[%s1 + $0x120] sm:$0xff]
      %v278 = vld [vmem:[%s1 + $0x128] sm:$0xff]
      %v279 = vld [vmem:[%s1 + $0x130] sm:$0xff]
      %v280 = vld [vmem:[%s1 + $0x138] sm:$0xff]
      %v281 = vld [vmem:[%s1 + $0x140] sm:$0xff]
      %v282 = vld [vmem:[%s1 + $0x148] sm:$0xff]
      %v283 = vld [vmem:[%s1 + $0x150] sm:$0xff]
      %v284 = vld [vmem:[%s1 + $0x158] sm:$0xff]
      %v285 = vld [vmem:[%s1 + $0x160] sm:$0xff]
      %v286 = vld [vmem:[%s1 + $0x168] sm:$0xff]
      %v287 = vld [vmem:[%s1 + $0x170] sm:$0xff]
      %v288 = vld [vmem:[%s1 + $0x178] sm:$0xff]
      %v289 = vld [vmem:[%s1 + $0x180] sm:$0xff]
      %v290 = vld [vmem:[%s1 + $0x188] sm:$0xff]
      %v291 = vld [vmem:[%s1 + $0x190] sm:$0xff]
      %v292 = vld [vmem:[%s1 + $0x198] sm:$0xff]
      %v293 = vld [vmem:[%s1 + $0x1a0] sm:$0xff]
      %v294 = vld [vmem:[%s1 + $0x1a8] sm:$0xff]
      %v295 = vld [vmem:[%s1 + $0x1b0] sm:$0xff]
      %v296 = vld [vmem:[%s1 + $0x1b8] sm:$0xff]
      %v297 = vld [vmem:[%s1 + $0x1c0] sm:$0xff]
      %v298 = vld [vmem:[%s1 + $0x1c8] sm:$0xff]
      %v299 = vld [vmem:[%s1 + $0x1d0] sm:$0xff]
      %v300 = vld [vmem:[%s1 + $0x1d8] sm:$0xff]
      %v301 = vld [vmem:[%s1 + $0x1e0] sm:$0xff]
      %v302 = vld [vmem:[%s1 + $0x1e8] sm:$0xff]
      %v303 = vld [vmem:[%s1 + $0x1f0] sm:$0xff]
      %v304 = vld [vmem:[%s1 + $0x1f8] sm:$0xff]
      %v305 = vld [vmem:[%s2] sm:$0x1]
      %v307 = vperm.slane %v305, 0
      %309 = vmatpush.msra.mxu0 %v256
      %310 = vmatpush.msra.mxu0 %v255
      %311 = vmatpush.msra.mxu0 %v254
      %312 = vmatpush.msra.mxu0 %v253
      %313 = vmatpush.msra.mxu0 %v252
      %314 = vmatpush.msra.mxu0 %v251
      %315 = vmatpush.msra.mxu0 %v250
      %316 = vmatpush.msra.mxu0 %v249
      %317 = vmatpush.msra.mxu0 %v248
      %318 = vmatpush.msra.mxu0 %v247
      %319 = vmatpush.msra.mxu0 %v246
      %320 = vmatpush.msra.mxu0 %v245
      %321 = vmatpush.msra.mxu0 %v244
      %322 = vmatpush.msra.mxu0 %v243
      %323 = vmatpush.msra.mxu0 %v242
      %324 = vmatpush.msra.mxu0 %v241
      %325 = vmatmul.f32.gmra.mxu0 %v177
      %v326 = vpop.f32.mrf.mxu0
      %v327 = vadd.f32 %v307, %v326
      %328 = vmatmul.f32.gmra.mxu0 %v181
      %v329 = vpop.f32.mrf.mxu0
      %v330 = vadd.f32 %v307, %v329
      %331 = vmatmul.f32.gmra.mxu0 %v185
      %v332 = vpop.f32.mrf.mxu0
      %v333 = vadd.f32 %v307, %v332
      %334 = vmatmul.f32.gmra.mxu0 %v189
      %v335 = vpop.f32.mrf.mxu0
      %v336 = vadd.f32 %v307, %v335
      %337 = vmatmul.f32.gmra.mxu0 %v193
      %v338 = vpop.f32.mrf.mxu0
      %v339 = vadd.f32 %v307, %v338
      %340 = vmatmul.f32.gmra.mxu0 %v197
      %v341 = vpop.f32.mrf.mxu0
      %v342 = vadd.f32 %v307, %v341
      %343 = vmatmul.f32.gmra.mxu0 %v201
      %v344 = vpop.f32.mrf.mxu0
      %v345 = vadd.f32 %v307, %v344
      %346 = vmatmul.f32.gmra.mxu0 %v205
      %v347 = vpop.f32.mrf.mxu0
      %v348 = vadd.f32 %v307, %v347
      %349 = vmatmul.f32.gmra.mxu0 %v209
      %v350 = vpop.f32.mrf.mxu0
      %v351 = vadd.f32 %v307, %v350
      %352 = vmatmul.f32.gmra.mxu0 %v213
      %v353 = vpop.f32.mrf.mxu0
      %v354 = vadd.f32 %v307, %v353
      %355 = vmatmul.f32.gmra.mxu0 %v217
      %v356 = vpop.f32.mrf.mxu0
      %v357 = vadd.f32 %v307, %v356
      %358 = vmatmul.f32.gmra.mxu0 %v221
      %v359 = vpop.f32.mrf.mxu0
      %v360 = vadd.f32 %v307, %v359
      %361 = vmatmul.f32.gmra.mxu0 %v225
      %v362 = vpop.f32.mrf.mxu0
      %v363 = vadd.f32 %v307, %v362
      %364 = vmatmul.f32.gmra.mxu0 %v229
      %v365 = vpop.f32.mrf.mxu0
      %v366 = vadd.f32 %v307, %v365
      %367 = vmatmul.f32.gmra.mxu0 %v233
      %v368 = vpop.f32.mrf.mxu0
      %v369 = vadd.f32 %v307, %v368
      %370 = vmatmul.f32.gmra.mxu0 %v237
      %v371 = vpop.f32.mrf.mxu0
      %v372 = vadd.f32 %v307, %v371
      %373 = vdwg.mxu0
      %374 = vmatpush.msra.mxu0 %v272
      %375 = vmatpush.msra.mxu0 %v271
      %376 = vmatpush.msra.mxu0 %v270
      %377 = vmatpush.msra.mxu0 %v269
      %378 = vmatpush.msra.mxu0 %v268
      %379 = vmatpush.msra.mxu0 %v267
      %380 = vmatpush.msra.mxu0 %v266
      %381 = vmatpush.msra.mxu0 %v265
      %382 = vmatpush.msra.mxu0 %v264
      %383 = vmatpush.msra.mxu0 %v263
      %384 = vmatpush.msra.mxu0 %v262
      %385 = vmatpush.msra.mxu0 %v261
      %386 = vmatpush.msra.mxu0 %v260
      %387 = vmatpush.msra.mxu0 %v259
      %388 = vmatpush.msra.mxu0 %v258
      %389 = vmatpush.msra.mxu0 %v257
      %390 = vmatmul.f32.gmra.mxu0 %v178
      %v391 = vpop.f32.mrf.mxu0
      %v392 = vadd.f32 %v327, %v391
      %393 = vmatmul.f32.gmra.mxu0 %v182
      %v394 = vpop.f32.mrf.mxu0
      %v395 = vadd.f32 %v330, %v394
      %396 = vmatmul.f32.gmra.mxu0 %v186
      %v397 = vpop.f32.mrf.mxu0
      %v398 = vadd.f32 %v333, %v397
      %399 = vmatmul.f32.gmra.mxu0 %v190
      %v400 = vpop.f32.mrf.mxu0
      %v401 = vadd.f32 %v336, %v400
      %402 = vmatmul.f32.gmra.mxu0 %v194
      %v403 = vpop.f32.mrf.mxu0
      %v404 = vadd.f32 %v339, %v403
      %405 = vmatmul.f32.gmra.mxu0 %v198
      %v406 = vpop.f32.mrf.mxu0
      %v407 = vadd.f32 %v342, %v406
      %408 = vmatmul.f32.gmra.mxu0 %v202
      %v409 = vpop.f32.mrf.mxu0
      %v410 = vadd.f32 %v345, %v409
      %411 = vmatmul.f32.gmra.mxu0 %v206
      %v412 = vpop.f32.mrf.mxu0
      %v413 = vadd.f32 %v348, %v412
      %414 = vmatmul.f32.gmra.mxu0 %v210
      %v415 = vpop.f32.mrf.mxu0
      %v416 = vadd.f32 %v351, %v415
      %417 = vmatmul.f32.gmra.mxu0 %v214
      %v418 = vpop.f32.mrf.mxu0
      %v419 = vadd.f32 %v354, %v418
      %420 = vmatmul.f32.gmra.mxu0 %v218
      %v421 = vpop.f32.mrf.mxu0
      %v422 = vadd.f32 %v357, %v421
      %423 = vmatmul.f32.gmra.mxu0 %v222
      %v424 = vpop.f32.mrf.mxu0
      %v425 = vadd.f32 %v360, %v424
      %426 = vmatmul.f32.gmra.mxu0 %v226
      %v427 = vpop.f32.mrf.mxu0
      %v428 = vadd.f32 %v363, %v427
      %429 = vmatmul.f32.gmra.mxu0 %v230
      %v430 = vpop.f32.mrf.mxu0
      %v431 = vadd.f32 %v366, %v430
      %432 = vmatmul.f32.gmra.mxu0 %v234
      %v433 = vpop.f32.mrf.mxu0
      %v434 = vadd.f32 %v369, %v433
      %435 = vmatmul.f32.gmra.mxu0 %v238
      %v436 = vpop.f32.mrf.mxu0
      %v437 = vadd.f32 %v372, %v436
      %438 = vdwg.mxu0
      %439 = vmatpush.msra.mxu0 %v288
      %440 = vmatpush.msra.mxu0 %v287
      %441 = vmatpush.msra.mxu0 %v286
      %442 = vmatpush.msra.mxu0 %v285
      %443 = vmatpush.msra.mxu0 %v284
      %444 = vmatpush.msra.mxu0 %v283
      %445 = vmatpush.msra.mxu0 %v282
      %446 = vmatpush.msra.mxu0 %v281
      %447 = vmatpush.msra.mxu0 %v280
      %448 = vmatpush.msra.mxu0 %v279
      %449 = vmatpush.msra.mxu0 %v278
      %450 = vmatpush.msra.mxu0 %v277
      %451 = vmatpush.msra.mxu0 %v276
      %452 = vmatpush.msra.mxu0 %v275
      %453 = vmatpush.msra.mxu0 %v274
      %454 = vmatpush.msra.mxu0 %v273
      %455 = vmatmul.f32.gmra.mxu0 %v179
      %v456 = vpop.f32.mrf.mxu0
      %v457 = vadd.f32 %v392, %v456
      %458 = vmatmul.f32.gmra.mxu0 %v183
      %v459 = vpop.f32.mrf.mxu0
      %v460 = vadd.f32 %v395, %v459
      %461 = vmatmul.f32.gmra.mxu0 %v187
      %v462 = vpop.f32.mrf.mxu0
      %v463 = vadd.f32 %v398, %v462
      %464 = vmatmul.f32.gmra.mxu0 %v191
      %v465 = vpop.f32.mrf.mxu0
      %v466 = vadd.f32 %v401, %v465
      %467 = vmatmul.f32.gmra.mxu0 %v195
      %v468 = vpop.f32.mrf.mxu0
      %v469 = vadd.f32 %v404, %v468
      %470 = vmatmul.f32.gmra.mxu0 %v199
      %v471 = vpop.f32.mrf.mxu0
      %v472 = vadd.f32 %v407, %v471
      %473 = vmatmul.f32.gmra.mxu0 %v203
      %v474 = vpop.f32.mrf.mxu0
      %v475 = vadd.f32 %v410, %v474
      %476 = vmatmul.f32.gmra.mxu0 %v207
      %v477 = vpop.f32.mrf.mxu0
      %v478 = vadd.f32 %v413, %v477
      %479 = vmatmul.f32.gmra.mxu0 %v211
      %v480 = vpop.f32.mrf.mxu0
      %v481 = vadd.f32 %v416, %v480
      %482 = vmatmul.f32.gmra.mxu0 %v215
      %v483 = vpop.f32.mrf.mxu0
      %v484 = vadd.f32 %v419, %v483
      %485 = vmatmul.f32.gmra.mxu0 %v219
      %v486 = vpop.f32.mrf.mxu0
      %v487 = vadd.f32 %v422, %v486
      %488 = vmatmul.f32.gmra.mxu0 %v223
      %v489 = vpop.f32.mrf.mxu0
      %v490 = vadd.f32 %v425, %v489
      %491 = vmatmul.f32.gmra.mxu0 %v227
      %v492 = vpop.f32.mrf.mxu0
      %v493 = vadd.f32 %v428, %v492
      %494 = vmatmul.f32.gmra.mxu0 %v231
      %v495 = vpop.f32.mrf.mxu0
      %v496 = vadd.f32 %v431, %v495
      %497 = vmatmul.f32.gmra.mxu0 %v235
      %v498 = vpop.f32.mrf.mxu0
      %v499 = vadd.f32 %v434, %v498
      %500 = vmatmul.f32.gmra.mxu0 %v239
      %v501 = vpop.f32.mrf.mxu0
      %v502 = vadd.f32 %v437, %v501
      %503 = vdwg.mxu0
      %504 = vmatpush.msra.mxu0 %v304
      %505 = vmatpush.msra.mxu0 %v303
      %506 = vmatpush.msra.mxu0 %v302
      %507 = vmatpush.msra.mxu0 %v301
      %508 = vmatpush.msra.mxu0 %v300
      %509 = vmatpush.msra.mxu0 %v299
      %510 = vmatpush.msra.mxu0 %v298
      %511 = vmatpush.msra.mxu0 %v297
      %512 = vmatpush.msra.mxu0 %v296
      %513 = vmatpush.msra.mxu0 %v295
      %514 = vmatpush.msra.mxu0 %v294
      %515 = vmatpush.msra.mxu0 %v293
      %516 = vmatpush.msra.mxu0 %v292
      %517 = vmatpush.msra.mxu0 %v291
      %518 = vmatpush.msra.mxu0 %v290
      %519 = vmatpush.msra.mxu0 %v289
      %520 = vmatmul.f32.gmra.mxu0 %v180
      %v521 = vpop.f32.mrf.mxu0
      %v522 = vadd.f32 %v457, %v521
      %523 = vmatmul.f32.gmra.mxu0 %v184
      %v524 = vpop.f32.mrf.mxu0
      %v525 = vadd.f32 %v460, %v524
      %526 = vmatmul.f32.gmra.mxu0 %v188
      %v527 = vpop.f32.mrf.mxu0
      %v528 = vadd.f32 %v463, %v527
      %529 = vmatmul.f32.gmra.mxu0 %v192
      %v530 = vpop.f32.mrf.mxu0
      %v531 = vadd.f32 %v466, %v530
      %532 = vmatmul.f32.gmra.mxu0 %v196
      %v533 = vpop.f32.mrf.mxu0
      %v534 = vadd.f32 %v469, %v533
      %535 = vmatmul.f32.gmra.mxu0 %v200
      %v536 = vpop.f32.mrf.mxu0
      %v537 = vadd.f32 %v472, %v536
      %538 = vmatmul.f32.gmra.mxu0 %v204
      %v539 = vpop.f32.mrf.mxu0
      %v540 = vadd.f32 %v475, %v539
      %541 = vmatmul.f32.gmra.mxu0 %v208
      %v542 = vpop.f32.mrf.mxu0
      %v543 = vadd.f32 %v478, %v542
      %544 = vmatmul.f32.gmra.mxu0 %v212
      %v545 = vpop.f32.mrf.mxu0
      %v546 = vadd.f32 %v481, %v545
      %547 = vmatmul.f32.gmra.mxu0 %v216
      %v548 = vpop.f32.mrf.mxu0
      %v549 = vadd.f32 %v484, %v548
      %550 = vmatmul.f32.gmra.mxu0 %v220
      %v551 = vpop.f32.mrf.mxu0
      %v552 = vadd.f32 %v487, %v551
      %553 = vmatmul.f32.gmra.mxu0 %v224
      %v554 = vpop.f32.mrf.mxu0
      %v555 = vadd.f32 %v490, %v554
      %556 = vmatmul.f32.gmra.mxu0 %v228
      %v557 = vpop.f32.mrf.mxu0
      %v558 = vadd.f32 %v493, %v557
      %559 = vmatmul.f32.gmra.mxu0 %v232
      %v560 = vpop.f32.mrf.mxu0
      %v561 = vadd.f32 %v496, %v560
      %562 = vmatmul.f32.gmra.mxu0 %v236
      %v563 = vpop.f32.mrf.mxu0
      %v564 = vadd.f32 %v499, %v563
      %565 = vmatmul.f32.gmra.mxu0 %v240
      %v566 = vpop.f32.mrf.mxu0
      %v567 = vadd.f32 %v502, %v566
      %568 = vdwg.mxu0
      %v569 = vmax.f32 %v522, 0.0
      %v570 = vmax.f32 %v525, 0.0
      %v571 = vmax.f32 %v528, 0.0
      %v572 = vmax.f32 %v531, 0.0
      %v573 = vmax.f32 %v534, 0.0
      %v574 = vmax.f32 %v537, 0.0
      %v575 = vmax.f32 %v540, 0.0
      %v576 = vmax.f32 %v543, 0.0
      %v577 = vmax.f32 %v546, 0.0
      %v578 = vmax.f32 %v549, 0.0
      %v579 = vmax.f32 %v552, 0.0
      %v580 = vmax.f32 %v555, 0.0
      %v581 = vmax.f32 %v558, 0.0
      %v582 = vmax.f32 %v561, 0.0
      %v583 = vmax.f32 %v564, 0.0
      %v584 = vmax.f32 %v567, 0.0
      %585 = vst [vmem:[%s175] sm:$0xff] %v569
      %586 = vst [vmem:[%s175 + $0x8] sm:$0xff] %v570
      %587 = vst [vmem:[%s175 + $0x10] sm:$0xff] %v571
      %588 = vst [vmem:[%s175 + $0x18] sm:$0xff] %v572
      %589 = vst [vmem:[%s175 + $0x20] sm:$0xff] %v573
      %590 = vst [vmem:[%s175 + $0x28] sm:$0xff] %v574
      %591 = vst [vmem:[%s175 + $0x30] sm:$0xff] %v575
      %592 = vst [vmem:[%s175 + $0x38] sm:$0xff] %v576
      %593 = vst [vmem:[%s175 + $0x40] sm:$0xff] %v577
      %594 = vst [vmem:[%s175 + $0x48] sm:$0xff] %v578
      %595 = vst [vmem:[%s175 + $0x50] sm:$0xff] %v579
      %596 = vst [vmem:[%s175 + $0x58] sm:$0xff] %v580
      %597 = vst [vmem:[%s175 + $0x60] sm:$0xff] %v581
      %598 = vst [vmem:[%s175 + $0x68] sm:$0xff] %v582
      %599 = vst [vmem:[%s175 + $0x70] sm:$0xff] %v583
      %600 = vst [vmem:[%s175 + $0x78] sm:$0xff] %v584
      %s601 = smul.u32 16, %s14
      %p602 = scmp.lt.s32.totalorder %s601, 31
      %s603 = scalar_select %p602, %s601, 31
      %s604 = smul.addr %s603, 8
      %s605 = scalar_lea.vmem %s3, %s604
      // Predicated region
      $region33: #{net2_forward.5} parent=31 // pred_check
        %p606 = pneg %p100
      $region34: #{net2_forward.5} parent=31 // pred_check_branch
        %608 = sbr.rel (%p606) target = $region36
      $region35: #{net2_forward.5} parent=31 // pred_region
        %s609 = smul.u32 16, %s14
      $region36: #{net2_forward.5} parent=31 // pred_fallthru
        _
    $region32: #{net2_forward.5} parent=5 // pred_fallthru
      _
    %p610 = scmp.le.s32.totalorder 2, %s9
    // Predicated region
    $region37: #{net2_forward.5} parent=5 // pred_check
      %p611 = pneg %p610
    $region38: #{net2_forward.5} parent=5 // pred_check_branch
      %613 = sbr.rel (%p611) target = $region40
    $region39: #{net2_forward.5} parent=5 // pred_region
      %s614 = ssub.s32 %s9, 2
      // Predicated region
      $region41: #{net2_forward.5} parent=39 // pred_check
        %p615 = pneg %p106
      $region42: #{net2_forward.5} parent=39 // pred_check_branch
        %617 = sbr.rel (%p615) target = $region44
      $region43: #{net2_forward.5} parent=39 // pred_region
        %s618 = smul.u32 16, %s15
        %p619 = scmp.lt.s32.totalorder %s618, 31
        %s620 = scalar_select %p619, %s618, 31
        %s621 = smul.addr %s620, 8
        %s622 = scalar_lea.vmem %s3, %s621
      $region44: #{net2_forward.5} parent=39 // pred_fallthru
        _
    $region40: #{net2_forward.5} parent=5 // pred_fallthru
      _
  $region6: #{net2_forward.5} parent=0 // loop_footer
    %s13 = sadd.s32 1, %s9
  $region7: #{net2_forward.5} parent=0 // loop_footer_branch
    %8 = sbr.rel target = $region3
  $region8: #{net2_forward.5} parent=0 // loop_exit
    _

// kernel: net2_forward.6
$region0: #{net2_forward.6}
  #allocation0 [shape = 'u32[]', space=smem, size = 0x4, offset = 0x4, fixed_abs, tag = 'smem constant byte address 0x4 - core index']
  #allocation1 [shape = 'u32[72,128]{1,0:T(1,128)}', space=vmem, size = 0x9000, scoped, tag = 'internal scratch']
  %s0 = inlined_call_operand.vmem [shape: f32[104,640], index: 0, kind: input, shape index: {}]
  %s1 = inlined_call_operand.vmem [shape: f32[640,128], index: 1, kind: input, shape index: {}]
  %s2 = inlined_call_operand.vmem [shape: f32[1,128], index: 2, kind: input, shape index: {}]
  %s3 = inlined_call_operand.vmem [shape: f32[104,128], index: 3, kind: output, shape index: {}]
  %s4 = sld [smem:[#allocation0]]
  $region22: #{net2_forward.6} parent=0
    _
  %s6 = ssub.s32 1, %s4
  %s7 = scalar_select 0, %s6, %s4
  // Predicated region
  $region2: #{net2_forward.6} parent=0 // pred_check
    _
  $region3: #{net2_forward.6} parent=0 // pred_check_branch
    %9 = sbr.rel (0) target = $region5
  $region4: #{net2_forward.6} parent=0 // pred_region
    _
  $region5: #{net2_forward.6} parent=0 // pred_fallthru
    _
  // Predicated region
  $region6: #{net2_forward.6} parent=0 // pred_check
    _
  $region7: #{net2_forward.6} parent=0 // pred_check_branch
    %11 = sbr.rel (0) target = $region9
  $region8: #{net2_forward.6} parent=0 // pred_region
    _
  $region9: #{net2_forward.6} parent=0 // pred_fallthru
    _
  // Predicated region
  $region10: #{net2_forward.6} parent=0 // pred_check
    _
  $region11: #{net2_forward.6} parent=0 // pred_check_branch
    %13 = sbr.rel (0) target = $region13
  $region12: #{net2_forward.6} parent=0 // pred_region
    _
  $region13: #{net2_forward.6} parent=0 // pred_fallthru
    _
  %v14 = vld [vmem:[%s0] sm:$0xff]
  %v15 = vld [vmem:[%s0 + $0x8] sm:$0xff]
  %v16 = vld [vmem:[%s0 + $0x10] sm:$0xff]
  %v17 = vld [vmem:[%s0 + $0x18] sm:$0xff]
  %v18 = vld [vmem:[%s0 + $0x20] sm:$0xff]
  %v19 = vld [vmem:[%s0 + $0x28] sm:$0xff]
  %v20 = vld [vmem:[%s0 + $0x30] sm:$0xff]
  %v21 = vld [vmem:[%s0 + $0x38] sm:$0xff]
  %v22 = vld [vmem:[%s0 + $0x40] sm:$0xff]
  %v23 = vld [vmem:[%s0 + $0x48] sm:$0xff]
  %v24 = vld [vmem:[%s0 + $0x50] sm:$0xff]
  %v25 = vld [vmem:[%s0 + $0x58] sm:$0xff]
  %v26 = vld [vmem:[%s0 + $0x60] sm:$0xff]
  %v27 = vld [vmem:[%s0 + $0x68] sm:$0xff]
  %v28 = vld [vmem:[%s0 + $0x70] sm:$0xff]
  %v29 = vld [vmem:[%s0 + $0x78] sm:$0xff]
  %v30 = vld [vmem:[%s0 + $0x80] sm:$0xff]
  %v31 = vld [vmem:[%s0 + $0x88] sm:$0xff]
  %v32 = vld [vmem:[%s0 + $0x90] sm:$0xff]
  %v33 = vld [vmem:[%s0 + $0x98] sm:$0xff]
  %v34 = vld [vmem:[%s0 + $0xa0] sm:$0xff]
  %v35 = vld [vmem:[%s0 + $0xa8] sm:$0xff]
  %v36 = vld [vmem:[%s0 + $0xb0] sm:$0xff]
  %v37 = vld [vmem:[%s0 + $0xb8] sm:$0xff]
  %v38 = vld [vmem:[%s0 + $0xc0] sm:$0xff]
  %v39 = vld [vmem:[%s0 + $0xc8] sm:$0xff]
  %v40 = vld [vmem:[%s0 + $0xd0] sm:$0xff]
  %v41 = vld [vmem:[%s0 + $0xd8] sm:$0xff]
  %v42 = vld [vmem:[%s0 + $0xe0] sm:$0xff]
  %v43 = vld [vmem:[%s0 + $0xe8] sm:$0xff]
  %v44 = vld [vmem:[%s0 + $0xf0] sm:$0xff]
  %v45 = vld [vmem:[%s0 + $0xf8] sm:$0xff]
  %v46 = vld [vmem:[%s0 + $0x100] sm:$0xff]
  %v47 = vld [vmem:[%s0 + $0x108] sm:$0xff]
  %v48 = vld [vmem:[%s0 + $0x110] sm:$0xff]
  %v49 = vld [vmem:[%s0 + $0x118] sm:$0xff]
  %v50 = vld [vmem:[%s0 + $0x120] sm:$0xff]
  %v51 = vld [vmem:[%s0 + $0x128] sm:$0xff]
  %v52 = vld [vmem:[%s0 + $0x130] sm:$0xff]
  %v53 = vld [vmem:[%s0 + $0x138] sm:$0xff]
  %v54 = vld [vmem:[%s0 + $0x140] sm:$0xff]
  %v55 = vld [vmem:[%s0 + $0x148] sm:$0xff]
  %v56 = vld [vmem:[%s0 + $0x150] sm:$0xff]
  %v57 = vld [vmem:[%s0 + $0x158] sm:$0xff]
  %v58 = vld [vmem:[%s0 + $0x160] sm:$0xff]
  %v59 = vld [vmem:[%s0 + $0x168] sm:$0xff]
  %v60 = vld [vmem:[%s0 + $0x170] sm:$0xff]
  %v61 = vld [vmem:[%s0 + $0x178] sm:$0xff]
  %v62 = vld [vmem:[%s0 + $0x180] sm:$0xff]
  %v63 = vld [vmem:[%s0 + $0x188] sm:$0xff]
  %v64 = vld [vmem:[%s0 + $0x190] sm:$0xff]
  %v65 = vld [vmem:[%s0 + $0x198] sm:$0xff]
  %v66 = vld [vmem:[%s0 + $0x1a0] sm:$0xff]
  %v67 = vld [vmem:[%s0 + $0x1a8] sm:$0xff]
  %v68 = vld [vmem:[%s0 + $0x1b0] sm:$0xff]
  %v69 = vld [vmem:[%s0 + $0x1b8] sm:$0xff]
  %v70 = vld [vmem:[%s0 + $0x1c0] sm:$0xff]
  %v71 = vld [vmem:[%s0 + $0x1c8] sm:$0xff]
  %v72 = vld [vmem:[%s0 + $0x1d0] sm:$0xff]
  %v73 = vld [vmem:[%s0 + $0x1d8] sm:$0xff]
  %v74 = vld [vmem:[%s0 + $0x1e0] sm:$0xff]
  %v75 = vld [vmem:[%s0 + $0x1e8] sm:$0xff]
  %v76 = vld [vmem:[%s0 + $0x1f0] sm:$0xff]
  %v77 = vld [vmem:[%s0 + $0x1f8] sm:$0xff]
  %v78 = vld [vmem:[%s0 + $0x200] sm:$0xff]
  %v79 = vld [vmem:[%s1] sm:$0xff]
  %v80 = vld [vmem:[%s1 + $0x8] sm:$0xff]
  %v81 = vld [vmem:[%s1 + $0x10] sm:$0xff]
  %v82 = vld [vmem:[%s1 + $0x18] sm:$0xff]
  %v83 = vld [vmem:[%s1 + $0x20] sm:$0xff]
  %v84 = vld [vmem:[%s1 + $0x28] sm:$0xff]
  %v85 = vld [vmem:[%s1 + $0x30] sm:$0xff]
  %v86 = vld [vmem:[%s1 + $0x38] sm:$0xff]
  %v87 = vld [vmem:[%s1 + $0x40] sm:$0xff]
  %v88 = vld [vmem:[%s1 + $0x48] sm:$0xff]
  %v89 = vld [vmem:[%s1 + $0x50] sm:$0xff]
  %v90 = vld [vmem:[%s1 + $0x58] sm:$0xff]
  %v91 = vld [vmem:[%s1 + $0x60] sm:$0xff]
  %v92 = vld [vmem:[%s1 + $0x68] sm:$0xff]
  %v93 = vld [vmem:[%s1 + $0x70] sm:$0xff]
  %v94 = vld [vmem:[%s1 + $0x78] sm:$0xff]
  %v95 = vld [vmem:[%s1 + $0x80] sm:$0xff]
  %v96 = vld [vmem:[%s1 + $0x88] sm:$0xff]
  %v97 = vld [vmem:[%s1 + $0x90] sm:$0xff]
  %v98 = vld [vmem:[%s1 + $0x98] sm:$0xff]
  %v99 = vld [vmem:[%s1 + $0xa0] sm:$0xff]
  %v100 = vld [vmem:[%s1 + $0xa8] sm:$0xff]
  %v101 = vld [vmem:[%s1 + $0xb0] sm:$0xff]
  %v102 = vld [vmem:[%s1 + $0xb8] sm:$0xff]
  %v103 = vld [vmem:[%s1 + $0xc0] sm:$0xff]
  %v104 = vld [vmem:[%s1 + $0xc8] sm:$0xff]
  %v105 = vld [vmem:[%s1 + $0xd0] sm:$0xff]
  %v106 = vld [vmem:[%s1 + $0xd8] sm:$0xff]
  %v107 = vld [vmem:[%s1 + $0xe0] sm:$0xff]
  %v108 = vld [vmem:[%s1 + $0xe8] sm:$0xff]
  %v109 = vld [vmem:[%s1 + $0xf0] sm:$0xff]
  %v110 = vld [vmem:[%s1 + $0xf8] sm:$0xff]
  %v111 = vld [vmem:[%s1 + $0x100] sm:$0xff]
  %v112 = vld [vmem:[%s1 + $0x108] sm:$0xff]
  %v113 = vld [vmem:[%s1 + $0x110] sm:$0xff]
  %v114 = vld [vmem:[%s1 + $0x118] sm:$0xff]
  %v115 = vld [vmem:[%s1 + $0x120] sm:$0xff]
  %v116 = vld [vmem:[%s1 + $0x128] sm:$0xff]
  %v117 = vld [vmem:[%s1 + $0x130] sm:$0xff]
  %v118 = vld [vmem:[%s1 + $0x138] sm:$0xff]
  %v119 = vld [vmem:[%s1 + $0x140] sm:$0xff]
  %v120 = vld [vmem:[%s1 + $0x148] sm:$0xff]
  %v121 = vld [vmem:[%s1 + $0x150] sm:$0xff]
  %v122 = vld [vmem:[%s1 + $0x158] sm:$0xff]
  %v123 = vld [vmem:[%s1 + $0x160] sm:$0xff]
  %v124 = vld [vmem:[%s1 + $0x168] sm:$0xff]
  %v125 = vld [vmem:[%s1 + $0x170] sm:$0xff]
  %v126 = vld [vmem:[%s1 + $0x178] sm:$0xff]
  %v127 = vld [vmem:[%s1 + $0x180] sm:$0xff]
  %v128 = vld [vmem:[%s1 + $0x188] sm:$0xff]
  %v129 = vld [vmem:[%s1 + $0x190] sm:$0xff]
  %v130 = vld [vmem:[%s1 + $0x198] sm:$0xff]
  %v131 = vld [vmem:[%s1 + $0x1a0] sm:$0xff]
  %v132 = vld [vmem:[%s1 + $0x1a8] sm:$0xff]
  %v133 = vld [vmem:[%s1 + $0x1b0] sm:$0xff]
  %v134 = vld [vmem:[%s1 + $0x1b8] sm:$0xff]
  %v135 = vld [vmem:[%s1 + $0x1c0] sm:$0xff]
  %v136 = vld [vmem:[%s1 + $0x1c8] sm:$0xff]
  %v137 = vld [vmem:[%s1 + $0x1d0] sm:$0xff]
  %v138 = vld [vmem:[%s1 + $0x1d8] sm:$0xff]
  %v139 = vld [vmem:[%s1 + $0x1e0] sm:$0xff]
  %v140 = vld [vmem:[%s1 + $0x1e8] sm:$0xff]
  %v141 = vld [vmem:[%s1 + $0x1f0] sm:$0xff]
  %v142 = vld [vmem:[%s1 + $0x1f8] sm:$0xff]
  %v143 = vld [vmem:[%s1 + $0x200] sm:$0xff]
  %v144 = vld [vmem:[%s1 + $0x208] sm:$0xff]
  %v145 = vld [vmem:[%s1 + $0x210] sm:$0xff]
  %v146 = vld [vmem:[%s1 + $0x218] sm:$0xff]
  %v147 = vld [vmem:[%s1 + $0x220] sm:$0xff]
  %v148 = vld [vmem:[%s1 + $0x228] sm:$0xff]
  %v149 = vld [vmem:[%s1 + $0x230] sm:$0xff]
  %v150 = vld [vmem:[%s1 + $0x238] sm:$0xff]
  %v151 = vld [vmem:[%s1 + $0x240] sm:$0xff]
  %v152 = vld [vmem:[%s1 + $0x248] sm:$0xff]
  %v153 = vld [vmem:[%s1 + $0x250] sm:$0xff]
  %v154 = vld [vmem:[%s1 + $0x258] sm:$0xff]
  %v155 = vld [vmem:[%s1 + $0x260] sm:$0xff]
  %v156 = vld [vmem:[%s1 + $0x268] sm:$0xff]
  %v157 = vld [vmem:[%s1 + $0x270] sm:$0xff]
  %v158 = vld [vmem:[%s1 + $0x278] sm:$0xff]
  %v159 = vld [vmem:[%s2] sm:$0x1]
  %v161 = vperm.slane %v159, 0
  %163 = vmatpush.msra.mxu0 %v94
  %164 = vmatpush.msra.mxu0 %v93
  %165 = vmatpush.msra.mxu0 %v92
  %166 = vmatpush.msra.mxu0 %v91
  %167 = vmatpush.msra.mxu0 %v90
  %168 = vmatpush.msra.mxu0 %v89
  %169 = vmatpush.msra.mxu0 %v88
  %170 = vmatpush.msra.mxu0 %v87
  %171 = vmatpush.msra.mxu0 %v86
  %172 = vmatpush.msra.mxu0 %v85
  %173 = vmatpush.msra.mxu0 %v84
  %174 = vmatpush.msra.mxu0 %v83
  %175 = vmatpush.msra.mxu0 %v82
  %176 = vmatpush.msra.mxu0 %v81
  %177 = vmatpush.msra.mxu0 %v80
  %178 = vmatpush.msra.mxu0 %v79
  %179 = vmatmul.f32.gmra.mxu0 %v14
  %v180 = vpop.f32.mrf.mxu0
  %v181 = vadd.f32 %v161, %v180
  %182 = vmatmul.f32.gmra.mxu0 %v19
  %v183 = vpop.f32.mrf.mxu0
  %v184 = vadd.f32 %v161, %v183
  %185 = vmatmul.f32.gmra.mxu0 %v24
  %v186 = vpop.f32.mrf.mxu0
  %v187 = vadd.f32 %v161, %v186
  %188 = vmatmul.f32.gmra.mxu0 %v29
  %v189 = vpop.f32.mrf.mxu0
  %v190 = vadd.f32 %v161, %v189
  %191 = vmatmul.f32.gmra.mxu0 %v34
  %v192 = vpop.f32.mrf.mxu0
  %v193 = vadd.f32 %v161, %v192
  %194 = vmatmul.f32.gmra.mxu0 %v39
  %v195 = vpop.f32.mrf.mxu0
  %v196 = vadd.f32 %v161, %v195
  %197 = vmatmul.f32.gmra.mxu0 %v44
  %v198 = vpop.f32.mrf.mxu0
  %v199 = vadd.f32 %v161, %v198
  %200 = vmatmul.f32.gmra.mxu0 %v49
  %v201 = vpop.f32.mrf.mxu0
  %v202 = vadd.f32 %v161, %v201
  %203 = vmatmul.f32.gmra.mxu0 %v54
  %v204 = vpop.f32.mrf.mxu0
  %v205 = vadd.f32 %v161, %v204
  %206 = vmatmul.f32.gmra.mxu0 %v59
  %v207 = vpop.f32.mrf.mxu0
  %v208 = vadd.f32 %v161, %v207
  %209 = vmatmul.f32.gmra.mxu0 %v64
  %v210 = vpop.f32.mrf.mxu0
  %v211 = vadd.f32 %v161, %v210
  %212 = vmatmul.f32.gmra.mxu0 %v69
  %v213 = vpop.f32.mrf.mxu0
  %v214 = vadd.f32 %v161, %v213
  %215 = vmatmul.f32.gmra.mxu0 %v74
  %v216 = vpop.f32.mrf.mxu0
  %v217 = vadd.f32 %v161, %v216
  %218 = vdwg.mxu0
  %219 = vmatpush.msra.mxu0 %v110
  %220 = vmatpush.msra.mxu0 %v109
  %221 = vmatpush.msra.mxu0 %v108
  %222 = vmatpush.msra.mxu0 %v107
  %223 = vmatpush.msra.mxu0 %v106
  %224 = vmatpush.msra.mxu0 %v105
  %225 = vmatpush.msra.mxu0 %v104
  %226 = vmatpush.msra.mxu0 %v103
  %227 = vmatpush.msra.mxu0 %v102
  %228 = vmatpush.msra.mxu0 %v101
  %229 = vmatpush.msra.mxu0 %v100
  %230 = vmatpush.msra.mxu0 %v99
  %231 = vmatpush.msra.mxu0 %v98
  %232 = vmatpush.msra.mxu0 %v97
  %233 = vmatpush.msra.mxu0 %v96
  %234 = vmatpush.msra.mxu0 %v95
  %235 = vmatmul.f32.gmra.mxu0 %v15
  %v236 = vpop.f32.mrf.mxu0
  %v237 = vadd.f32 %v181, %v236
  %238 = vmatmul.f32.gmra.mxu0 %v20
  %v239 = vpop.f32.mrf.mxu0
  %v240 = vadd.f32 %v184, %v239
  %241 = vmatmul.f32.gmra.mxu0 %v25
  %v242 = vpop.f32.mrf.mxu0
  %v243 = vadd.f32 %v187, %v242
  %244 = vmatmul.f32.gmra.mxu0 %v30
  %v245 = vpop.f32.mrf.mxu0
  %v246 = vadd.f32 %v190, %v245
  %247 = vmatmul.f32.gmra.mxu0 %v35
  %v248 = vpop.f32.mrf.mxu0
  %v249 = vadd.f32 %v193, %v248
  %250 = vmatmul.f32.gmra.mxu0 %v40
  %v251 = vpop.f32.mrf.mxu0
  %v252 = vadd.f32 %v196, %v251
  %253 = vmatmul.f32.gmra.mxu0 %v45
  %v254 = vpop.f32.mrf.mxu0
  %v255 = vadd.f32 %v199, %v254
  %256 = vmatmul.f32.gmra.mxu0 %v50
  %v257 = vpop.f32.mrf.mxu0
  %v258 = vadd.f32 %v202, %v257
  %259 = vmatmul.f32.gmra.mxu0 %v55
  %v260 = vpop.f32.mrf.mxu0
  %v261 = vadd.f32 %v205, %v260
  %262 = vmatmul.f32.gmra.mxu0 %v60
  %v263 = vpop.f32.mrf.mxu0
  %v264 = vadd.f32 %v208, %v263
  %265 = vmatmul.f32.gmra.mxu0 %v65
  %v266 = vpop.f32.mrf.mxu0
  %v267 = vadd.f32 %v211, %v266
  %268 = vmatmul.f32.gmra.mxu0 %v70
  %v269 = vpop.f32.mrf.mxu0
  %v270 = vadd.f32 %v214, %v269
  %271 = vmatmul.f32.gmra.mxu0 %v75
  %v272 = vpop.f32.mrf.mxu0
  %v273 = vadd.f32 %v217, %v272
  %274 = vdwg.mxu0
  %275 = vmatpush.msra.mxu0 %v126
  %276 = vmatpush.msra.mxu0 %v125
  %277 = vmatpush.msra.mxu0 %v124
  %278 = vmatpush.msra.mxu0 %v123
  %279 = vmatpush.msra.mxu0 %v122
  %280 = vmatpush.msra.mxu0 %v121
  %281 = vmatpush.msra.mxu0 %v120
  %282 = vmatpush.msra.mxu0 %v119
  %283 = vmatpush.msra.mxu0 %v118
  %284 = vmatpush.msra.mxu0 %v117
  %285 = vmatpush.msra.mxu0 %v116
  %286 = vmatpush.msra.mxu0 %v115
  %287 = vmatpush.msra.mxu0 %v114
  %288 = vmatpush.msra.mxu0 %v113
  %289 = vmatpush.msra.mxu0 %v112
  %290 = vmatpush.msra.mxu0 %v111
  %291 = vmatmul.f32.gmra.mxu0 %v16
  %v292 = vpop.f32.mrf.mxu0
  %v293 = vadd.f32 %v237, %v292
  %294 = vmatmul.f32.gmra.mxu0 %v21
  %v295 = vpop.f32.mrf.mxu0
  %v296 = vadd.f32 %v240, %v295
  %297 = vmatmul.f32.gmra.mxu0 %v26
  %v298 = vpop.f32.mrf.mxu0
  %v299 = vadd.f32 %v243, %v298
  %300 = vmatmul.f32.gmra.mxu0 %v31
  %v301 = vpop.f32.mrf.mxu0
  %v302 = vadd.f32 %v246, %v301
  %303 = vmatmul.f32.gmra.mxu0 %v36
  %v304 = vpop.f32.mrf.mxu0
  %v305 = vadd.f32 %v249, %v304
  %306 = vmatmul.f32.gmra.mxu0 %v41
  %v307 = vpop.f32.mrf.mxu0
  %v308 = vadd.f32 %v252, %v307
  %309 = vmatmul.f32.gmra.mxu0 %v46
  %v310 = vpop.f32.mrf.mxu0
  %v311 = vadd.f32 %v255, %v310
  %312 = vmatmul.f32.gmra.mxu0 %v51
  %v313 = vpop.f32.mrf.mxu0
  %v314 = vadd.f32 %v258, %v313
  %315 = vmatmul.f32.gmra.mxu0 %v56
  %v316 = vpop.f32.mrf.mxu0
  %v317 = vadd.f32 %v261, %v316
  %318 = vmatmul.f32.gmra.mxu0 %v61
  %v319 = vpop.f32.mrf.mxu0
  %v320 = vadd.f32 %v264, %v319
  %321 = vmatmul.f32.gmra.mxu0 %v66
  %v322 = vpop.f32.mrf.mxu0
  %v323 = vadd.f32 %v267, %v322
  %324 = vmatmul.f32.gmra.mxu0 %v71
  %v325 = vpop.f32.mrf.mxu0
  %v326 = vadd.f32 %v270, %v325
  %327 = vmatmul.f32.gmra.mxu0 %v76
  %v328 = vpop.f32.mrf.mxu0
  %v329 = vadd.f32 %v273, %v328
  %330 = vdwg.mxu0
  %331 = vmatpush.msra.mxu0 %v142
  %332 = vmatpush.msra.mxu0 %v141
  %333 = vmatpush.msra.mxu0 %v140
  %334 = vmatpush.msra.mxu0 %v139
  %335 = vmatpush.msra.mxu0 %v138
  %336 = vmatpush.msra.mxu0 %v137
  %337 = vmatpush.msra.mxu0 %v136
  %338 = vmatpush.msra.mxu0 %v135
  %339 = vmatpush.msra.mxu0 %v134
  %340 = vmatpush.msra.mxu0 %v133
  %341 = vmatpush.msra.mxu0 %v132
  %342 = vmatpush.msra.mxu0 %v131
  %343 = vmatpush.msra.mxu0 %v130
  %344 = vmatpush.msra.mxu0 %v129
  %345 = vmatpush.msra.mxu0 %v128
  %346 = vmatpush.msra.mxu0 %v127
  %347 = vmatmul.f32.gmra.mxu0 %v17
  %v348 = vpop.f32.mrf.mxu0
  %v349 = vadd.f32 %v293, %v348
  %350 = vmatmul.f32.gmra.mxu0 %v22
  %v351 = vpop.f32.mrf.mxu0
  %v352 = vadd.f32 %v296, %v351
  %353 = vmatmul.f32.gmra.mxu0 %v27
  %v354 = vpop.f32.mrf.mxu0
  %v355 = vadd.f32 %v299, %v354
  %356 = vmatmul.f32.gmra.mxu0 %v32
  %v357 = vpop.f32.mrf.mxu0
  %v358 = vadd.f32 %v302, %v357
  %359 = vmatmul.f32.gmra.mxu0 %v37
  %v360 = vpop.f32.mrf.mxu0
  %v361 = vadd.f32 %v305, %v360
  %362 = vmatmul.f32.gmra.mxu0 %v42
  %v363 = vpop.f32.mrf.mxu0
  %v364 = vadd.f32 %v308, %v363
  %365 = vmatmul.f32.gmra.mxu0 %v47
  %v366 = vpop.f32.mrf.mxu0
  %v367 = vadd.f32 %v311, %v366
  %368 = vmatmul.f32.gmra.mxu0 %v52
  %v369 = vpop.f32.mrf.mxu0
  %v370 = vadd.f32 %v314, %v369
  %371 = vmatmul.f32.gmra.mxu0 %v57
  %v372 = vpop.f32.mrf.mxu0
  %v373 = vadd.f32 %v317, %v372
  %374 = vmatmul.f32.gmra.mxu0 %v62
  %v375 = vpop.f32.mrf.mxu0
  %v376 = vadd.f32 %v320, %v375
  %377 = vmatmul.f32.gmra.mxu0 %v67
  %v378 = vpop.f32.mrf.mxu0
  %v379 = vadd.f32 %v323, %v378
  %380 = vmatmul.f32.gmra.mxu0 %v72
  %v381 = vpop.f32.mrf.mxu0
  %v382 = vadd.f32 %v326, %v381
  %383 = vmatmul.f32.gmra.mxu0 %v77
  %v384 = vpop.f32.mrf.mxu0
  %v385 = vadd.f32 %v329, %v384
  %386 = vdwg.mxu0
  %387 = vmatpush.msra.mxu0 %v158
  %388 = vmatpush.msra.mxu0 %v157
  %389 = vmatpush.msra.mxu0 %v156
  %390 = vmatpush.msra.mxu0 %v155
  %391 = vmatpush.msra.mxu0 %v154
  %392 = vmatpush.msra.mxu0 %v153
  %393 = vmatpush.msra.mxu0 %v152
  %394 = vmatpush.msra.mxu0 %v151
  %395 = vmatpush.msra.mxu0 %v150
  %396 = vmatpush.msra.mxu0 %v149
  %397 = vmatpush.msra.mxu0 %v148
  %398 = vmatpush.msra.mxu0 %v147
  %399 = vmatpush.msra.mxu0 %v146
  %400 = vmatpush.msra.mxu0 %v145
  %401 = vmatpush.msra.mxu0 %v144
  %402 = vmatpush.msra.mxu0 %v143
  %403 = vmatmul.f32.gmra.mxu0 %v18
  %v404 = vpop.f32.mrf.mxu0
  %v405 = vadd.f32 %v349, %v404
  %406 = vmatmul.f32.gmra.mxu0 %v23
  %v407 = vpop.f32.mrf.mxu0
  %v408 = vadd.f32 %v352, %v407
  %409 = vmatmul.f32.gmra.mxu0 %v28
  %v410 = vpop.f32.mrf.mxu0
  %v411 = vadd.f32 %v355, %v410
  %412 = vmatmul.f32.gmra.mxu0 %v33
  %v413 = vpop.f32.mrf.mxu0
  %v414 = vadd.f32 %v358, %v413
  %415 = vmatmul.f32.gmra.mxu0 %v38
  %v416 = vpop.f32.mrf.mxu0
  %v417 = vadd.f32 %v361, %v416
  %418 = vmatmul.f32.gmra.mxu0 %v43
  %v419 = vpop.f32.mrf.mxu0
  %v420 = vadd.f32 %v364, %v419
  %421 = vmatmul.f32.gmra.mxu0 %v48
  %v422 = vpop.f32.mrf.mxu0
  %v423 = vadd.f32 %v367, %v422
  %424 = vmatmul.f32.gmra.mxu0 %v53
  %v425 = vpop.f32.mrf.mxu0
  %v426 = vadd.f32 %v370, %v425
  %427 = vmatmul.f32.gmra.mxu0 %v58
  %v428 = vpop.f32.mrf.mxu0
  %v429 = vadd.f32 %v373, %v428
  %430 = vmatmul.f32.gmra.mxu0 %v63
  %v431 = vpop.f32.mrf.mxu0
  %v432 = vadd.f32 %v376, %v431
  %433 = vmatmul.f32.gmra.mxu0 %v68
  %v434 = vpop.f32.mrf.mxu0
  %v435 = vadd.f32 %v379, %v434
  %436 = vmatmul.f32.gmra.mxu0 %v73
  %v437 = vpop.f32.mrf.mxu0
  %v438 = vadd.f32 %v382, %v437
  %439 = vmatmul.f32.gmra.mxu0 %v78
  %v440 = vpop.f32.mrf.mxu0
  %v441 = vadd.f32 %v385, %v440
  %442 = vdwg.mxu0
  %v443 = vmax.f32 %v405, 0.0
  %v444 = vmax.f32 %v408, 0.0
  %v445 = vmax.f32 %v411, 0.0
  %v446 = vmax.f32 %v414, 0.0
  %v447 = vmax.f32 %v417, 0.0
  %v448 = vmax.f32 %v420, 0.0
  %v449 = vmax.f32 %v423, 0.0
  %v450 = vmax.f32 %v426, 0.0
  %v451 = vmax.f32 %v429, 0.0
  %v452 = vmax.f32 %v432, 0.0
  %v453 = vmax.f32 %v435, 0.0
  %v454 = vmax.f32 %v438, 0.0
  %v455 = vmax.f32 %v441, 0.0
  %456 = vst [vmem:[%s3] sm:$0xff] %v443
  %457 = vst [vmem:[%s3 + $0x8] sm:$0xff] %v444
  %458 = vst [vmem:[%s3 + $0x10] sm:$0xff] %v445
  %459 = vst [vmem:[%s3 + $0x18] sm:$0xff] %v446
  %460 = vst [vmem:[%s3 + $0x20] sm:$0xff] %v447
  %461 = vst [vmem:[%s3 + $0x28] sm:$0xff] %v448
  %462 = vst [vmem:[%s3 + $0x30] sm:$0xff] %v449
  %463 = vst [vmem:[%s3 + $0x38] sm:$0xff] %v450
  %464 = vst [vmem:[%s3 + $0x40] sm:$0xff] %v451
  %465 = vst [vmem:[%s3 + $0x48] sm:$0xff] %v452
  %466 = vst [vmem:[%s3 + $0x50] sm:$0xff] %v453
  %467 = vst [vmem:[%s3 + $0x58] sm:$0xff] %v454
  %468 = vst [vmem:[%s3 + $0x60] sm:$0xff] %v455
  // Predicated region
  $region14: #{net2_forward.6} parent=0 // pred_check
    _
  $region15: #{net2_forward.6} parent=0 // pred_check_branch
    %470 = sbr.rel (0) target = $region17
  $region16: #{net2_forward.6} parent=0 // pred_region
    _
  $region17: #{net2_forward.6} parent=0 // pred_fallthru
    _
  // Predicated region
  $region18: #{net2_forward.6} parent=0 // pred_check
    _
  $region19: #{net2_forward.6} parent=0 // pred_check_branch
    %472 = sbr.rel (0) target = $region21
  $region20: #{net2_forward.6} parent=0 // pred_region
    _
  $region21: #{net2_forward.6} parent=0 // pred_fallthru
    _

// kernel: net2_forward.7
$region0: #{net2_forward.7}
  #allocation0 [shape = 'u32[]', space=smem, size = 0x4, offset = 0x4, fixed_abs, tag = 'smem constant byte address 0x4 - core index']
  #allocation1 [shape = 'u32[72,128]{1,0:T(1,128)}', space=vmem, size = 0x9000, scoped, tag = 'internal scratch']
  %s0 = inlined_call_operand.vmem [shape: f32[8,3200], index: 0, kind: input, shape index: {}]
  %s1 = inlined_call_operand.vmem [shape: f32[3200,1024], index: 1, kind: input, shape index: {}]
  %s2 = inlined_call_operand.vmem [shape: f32[1,1024], index: 2, kind: input, shape index: {}]
  %s3 = inlined_call_operand.vmem [shape: f32[1024,512], index: 3, kind: input, shape index: {}]
  %s4 = inlined_call_operand.vmem [shape: f32[1,512], index: 4, kind: input, shape index: {}]
  %s5 = inlined_call_operand.vmem [shape: f32[512,128], index: 5, kind: input, shape index: {}]
  %s6 = inlined_call_operand.vmem [shape: f32[1,128], index: 6, kind: input, shape index: {}]
  %s7 = inlined_call_operand.vmem [shape: f32[8,128], index: 7, kind: output, shape index: {}]
  %s8 = sld [smem:[#allocation0]]
  $region38: #{net2_forward.7} parent=0
    _
  %s10 = ssub.s32 1, %s8
  %s11 = scalar_select 0, %s10, %s8
  // Predicated region
  $region2: #{net2_forward.7} parent=0 // pred_check
    _
  $region3: #{net2_forward.7} parent=0 // pred_check_branch
    %13 = sbr.rel (0) target = $region5
  $region4: #{net2_forward.7} parent=0 // pred_region
    _
  $region5: #{net2_forward.7} parent=0 // pred_fallthru
    _
  // Predicated region
  $region6: #{net2_forward.7} parent=0 // pred_check
    _
  $region7: #{net2_forward.7} parent=0 // pred_check_branch
    %15 = sbr.rel (0) target = $region9
  $region8: #{net2_forward.7} parent=0 // pred_region
    _
  $region9: #{net2_forward.7} parent=0 // pred_fallthru
    _
  // Predicated region
  $region10: #{net2_forward.7} parent=0 // pred_check
    _
  $region11: #{net2_forward.7} parent=0 // pred_check_branch
    %17 = sbr.rel (0) target = $region13
  $region12: #{net2_forward.7} parent=0 // pred_region
    _
  $region13: #{net2_forward.7} parent=0 // pred_fallthru
    _
  // Predicated region
  $region14: #{net2_forward.7} parent=0 // pred_check
    _
  $region15: #{net2_forward.7} parent=0 // pred_check_branch
    %19 = sbr.rel (0) target = $region17
  $region16: #{net2_forward.7} parent=0 // pred_region
    _
  $region17: #{net2_forward.7} parent=0 // pred_fallthru
    _
  // Predicated region
  $region18: #{net2_forward.7} parent=0 // pred_check
    _
  $region19: #{net2_forward.7} parent=0 // pred_check_branch
    %21 = sbr.rel (0) target = $region21
  $region20: #{net2_forward.7} parent=0 // pred_region
    _
  $region21: #{net2_forward.7} parent=0 // pred_fallthru
    _
  // Predicated region
  $region22: #{net2_forward.7} parent=0 // pred_check
    _
  $region23: #{net2_forward.7} parent=0 // pred_check_branch
    %23 = sbr.rel (0) target = $region25
  $region24: #{net2_forward.7} parent=0 // pred_region
    _
  $region25: #{net2_forward.7} parent=0 // pred_fallthru
    _
  // Predicated region
  $region26: #{net2_forward.7} parent=0 // pred_check
    _
  $region27: #{net2_forward.7} parent=0 // pred_check_branch
    %25 = sbr.rel (0) target = $region29
  $region28: #{net2_forward.7} parent=0 // pred_region
    _
  $region29: #{net2_forward.7} parent=0 // pred_fallthru
    _
  %v26 = vld [vmem:[%s0] sm:$0xff]
  %v27 = vld [vmem:[%s0 + $0x8] sm:$0xff]
  %v28 = vld [vmem:[%s0 + $0x10] sm:$0xff]
  %v29 = vld [vmem:[%s0 + $0x18] sm:$0xff]
  %v30 = vld [vmem:[%s0 + $0x20] sm:$0xff]
  %v31 = vld [vmem:[%s0 + $0x28] sm:$0xff]
  %v32 = vld [vmem:[%s0 + $0x30] sm:$0xff]
  %v33 = vld [vmem:[%s0 + $0x38] sm:$0xff]
  %v34 = vld [vmem:[%s0 + $0x40] sm:$0xff]
  %v35 = vld [vmem:[%s0 + $0x48] sm:$0xff]
  %v36 = vld [vmem:[%s0 + $0x50] sm:$0xff]
  %v37 = vld [vmem:[%s0 + $0x58] sm:$0xff]
  %v38 = vld [vmem:[%s0 + $0x60] sm:$0xff]
  %v39 = vld [vmem:[%s0 + $0x68] sm:$0xff]
  %v40 = vld [vmem:[%s0 + $0x70] sm:$0xff]
  %v41 = vld [vmem:[%s0 + $0x78] sm:$0xff]
  %v42 = vld [vmem:[%s0 + $0x80] sm:$0xff]
  %v43 = vld [vmem:[%s0 + $0x88] sm:$0xff]
  %v44 = vld [vmem:[%s0 + $0x90] sm:$0xff]
  %v45 = vld [vmem:[%s0 + $0x98] sm:$0xff]
  %v46 = vld [vmem:[%s0 + $0xa0] sm:$0xff]
  %v47 = vld [vmem:[%s0 + $0xa8] sm:$0xff]
  %v48 = vld [vmem:[%s0 + $0xb0] sm:$0xff]
  %v49 = vld [vmem:[%s0 + $0xb8] sm:$0xff]
  %v50 = vld [vmem:[%s0 + $0xc0] sm:$0xff]
  %v51 = vld [vmem:[%s1] sm:$0xff]
  %v52 = vld [vmem:[%s1 + $0x8] sm:$0xff]
  %v53 = vld [vmem:[%s1 + $0x10] sm:$0xff]
  %v54 = vld [vmem:[%s1 + $0x18] sm:$0xff]
  %v55 = vld [vmem:[%s1 + $0x20] sm:$0xff]
  %v56 = vld [vmem:[%s1 + $0x28] sm:$0xff]
  %v57 = vld [vmem:[%s1 + $0x30] sm:$0xff]
  %v58 = vld [vmem:[%s1 + $0x38] sm:$0xff]
  %v59 = vld [vmem:[%s1 + $0x40] sm:$0xff]
  %v60 = vld [vmem:[%s1 + $0x48] sm:$0xff]
  %v61 = vld [vmem:[%s1 + $0x50] sm:$0xff]
  %v62 = vld [vmem:[%s1 + $0x58] sm:$0xff]
  %v63 = vld [vmem:[%s1 + $0x60] sm:$0xff]
  %v64 = vld [vmem:[%s1 + $0x68] sm:$0xff]
  %v65 = vld [vmem:[%s1 + $0x70] sm:$0xff]
  %v66 = vld [vmem:[%s1 + $0x78] sm:$0xff]
  %v67 = vld [vmem:[%s1 + $0x80] sm:$0xff]
  %v68 = vld [vmem:[%s1 + $0x88] sm:$0xff]
  %v69 = vld [vmem:[%s1 + $0x90] sm:$0xff]
  %v70 = vld [vmem:[%s1 + $0x98] sm:$0xff]
  %v71 = vld [vmem:[%s1 + $0xa0] sm:$0xff]
  %v72 = vld [vmem:[%s1 + $0xa8] sm:$0xff]
  %v73 = vld [vmem:[%s1 + $0xb0] sm:$0xff]
  %v74 = vld [vmem:[%s1 + $0xb8] sm:$0xff]
  %v75 = vld [vmem:[%s1 + $0xc0] sm:$0xff]
  %v76 = vld [vmem:[%s1 + $0xc8] sm:$0xff]
  %v77 = vld [vmem:[%s1 + $0xd0] sm:$0xff]
  %v78 = vld [vmem:[%s1 + $0xd8] sm:$0xff]
  %v79 = vld [vmem:[%s1 + $0xe0] sm:$0xff]
  %v80 = vld [vmem:[%s1 + $0xe8] sm:$0xff]
  %v81 = vld [vmem:[%s1 + $0xf0] sm:$0xff]
  %v82 = vld [vmem:[%s1 + $0xf8] sm:$0xff]
  %v83 = vld [vmem:[%s1 + $0x100] sm:$0xff]
  %v84 = vld [vmem:[%s1 + $0x108] sm:$0xff]
  %v85 = vld [vmem:[%s1 + $0x110] sm:$0xff]
  %v86 = vld [vmem:[%s1 + $0x118] sm:$0xff]
  %v87 = vld [vmem:[%s1 + $0x120] sm:$0xff]
  %v88 = vld [vmem:[%s1 + $0x128] sm:$0xff]
  %v89 = vld [vmem:[%s1 + $0x130] sm:$0xff]
  %v90 = vld [vmem:[%s1 + $0x138] sm:$0xff]
  %v91 = vld [vmem:[%s1 + $0x140] sm:$0xff]
  %v92 = vld [vmem:[%s1 + $0x148] sm:$0xff]
  %v93 = vld [vmem:[%s1 + $0x150] sm:$0xff]
  %v94 = vld [vmem:[%s1 + $0x158] sm:$0xff]
  %v95 = vld [vmem:[%s1 + $0x160] sm:$0xff]
  %v96 = vld [vmem:[%s1 + $0x168] sm:$0xff]
  %v97 = vld [vmem:[%s1 + $0x170] sm:$0xff]
  %v98 = vld [vmem:[%s1 + $0x178] sm:$0xff]
  %v99 = vld [vmem:[%s1 + $0x180] sm:$0xff]
  %v100 = vld [vmem:[%s1 + $0x188] sm:$0xff]
  %v101 = vld [vmem:[%s1 + $0x190] sm:$0xff]
  %v102 = vld [vmem:[%s1 + $0x198] sm:$0xff]
  %v103 = vld [vmem:[%s1 + $0x1a0] sm:$0xff]
  %v104 = vld [vmem:[%s1 + $0x1a8] sm:$0xff]
  %v105 = vld [vmem:[%s1 + $0x1b0] sm:$0xff]
  %v106 = vld [vmem:[%s1 + $0x1b8] sm:$0xff]
  %v107 = vld [vmem:[%s1 + $0x1c0] sm:$0xff]
  %v108 = vld [vmem:[%s1 + $0x1c8] sm:$0xff]
  %v109 = vld [vmem:[%s1 + $0x1d0] sm:$0xff]
  %v110 = vld [vmem:[%s1 + $0x1d8] sm:$0xff]
  %v111 = vld [vmem:[%s1 + $0x1e0] sm:$0xff]
  %v112 = vld [vmem:[%s1 + $0x1e8] sm:$0xff]
  %v113 = vld [vmem:[%s1 + $0x1f0] sm:$0xff]
  %v114 = vld [vmem:[%s1 + $0x1f8] sm:$0xff]
  %v115 = vld [vmem:[%s1 + $0x200] sm:$0xff]
  %v116 = vld [vmem:[%s1 + $0x208] sm:$0xff]
  %v117 = vld [vmem:[%s1 + $0x210] sm:$0xff]
  %v118 = vld [vmem:[%s1 + $0x218] sm:$0xff]
  %v119 = vld [vmem:[%s1 + $0x220] sm:$0xff]
  %v120 = vld [vmem:[%s1 + $0x228] sm:$0xff]
  %v121 = vld [vmem:[%s1 + $0x230] sm:$0xff]
  %v122 = vld [vmem:[%s1 + $0x238] sm:$0xff]
  %v123 = vld [vmem:[%s1 + $0x240] sm:$0xff]
  %v124 = vld [vmem:[%s1 + $0x248] sm:$0xff]
  %v125 = vld [vmem:[%s1 + $0x250] sm:$0xff]
  %v126 = vld [vmem:[%s1 + $0x258] sm:$0xff]
  %v127 = vld [vmem:[%s1 + $0x260] sm:$0xff]
  %v128 = vld [vmem:[%s1 + $0x268] sm:$0xff]
  %v129 = vld [vmem:[%s1 + $0x270] sm:$0xff]
  %v130 = vld [vmem:[%s1 + $0x278] sm:$0xff]
  %v131 = vld [vmem:[%s1 + $0x280] sm:$0xff]
  %v132 = vld [vmem:[%s1 + $0x288] sm:$0xff]
  %v133 = vld [vmem:[%s1 + $0x290] sm:$0xff]
  %v134 = vld [vmem:[%s1 + $0x298] sm:$0xff]
  %v135 = vld [vmem:[%s1 + $0x2a0] sm:$0xff]
  %v136 = vld [vmem:[%s1 + $0x2a8] sm:$0xff]
  %v137 = vld [vmem:[%s1 + $0x2b0] sm:$0xff]
  %v138 = vld [vmem:[%s1 + $0x2b8] sm:$0xff]
  %v139 = vld [vmem:[%s1 + $0x2c0] sm:$0xff]
  %v140 = vld [vmem:[%s1 + $0x2c8] sm:$0xff]
  %v141 = vld [vmem:[%s1 + $0x2d0] sm:$0xff]
  %v142 = vld [vmem:[%s1 + $0x2d8] sm:$0xff]
  %v143 = vld [vmem:[%s1 + $0x2e0] sm:$0xff]
  %v144 = vld [vmem:[%s1 + $0x2e8] sm:$0xff]
  %v145 = vld [vmem:[%s1 + $0x2f0] sm:$0xff]
  %v146 = vld [vmem:[%s1 + $0x2f8] sm:$0xff]
  %v147 = vld [vmem:[%s1 + $0x300] sm:$0xff]
  %v148 = vld [vmem:[%s1 + $0x308] sm:$0xff]
  %v149 = vld [vmem:[%s1 + $0x310] sm:$0xff]
  %v150 = vld [vmem:[%s1 + $0x318] sm:$0xff]
  %v151 = vld [vmem:[%s1 + $0x320] sm:$0xff]
  %v152 = vld [vmem:[%s1 + $0x328] sm:$0xff]
  %v153 = vld [vmem:[%s1 + $0x330] sm:$0xff]
  %v154 = vld [vmem:[%s1 + $0x338] sm:$0xff]
  %v155 = vld [vmem:[%s1 + $0x340] sm:$0xff]
  %v156 = vld [vmem:[%s1 + $0x348] sm:$0xff]
  %v157 = vld [vmem:[%s1 + $0x350] sm:$0xff]
  %v158 = vld [vmem:[%s1 + $0x358] sm:$0xff]
  %v159 = vld [vmem:[%s1 + $0x360] sm:$0xff]
  %v160 = vld [vmem:[%s1 + $0x368] sm:$0xff]
  %v161 = vld [vmem:[%s1 + $0x370] sm:$0xff]
  %v162 = vld [vmem:[%s1 + $0x378] sm:$0xff]
  %v163 = vld [vmem:[%s1 + $0x380] sm:$0xff]
  %v164 = vld [vmem:[%s1 + $0x388] sm:$0xff]
  %v165 = vld [vmem:[%s1 + $0x390] sm:$0xff]
  %v166 = vld [vmem:[%s1 + $0x398] sm:$0xff]
  %v167 = vld [vmem:[%s1 + $0x3a0] sm:$0xff]
  %v168 = vld [vmem:[%s1 + $0x3a8] sm:$0xff]
  %v169 = vld [vmem:[%s1 + $0x3b0] sm:$0xff]
  %v170 = vld [vmem:[%s1 + $0x3b8] sm:$0xff]
  %v171 = vld [vmem:[%s1 + $0x3c0] sm:$0xff]
  %v172 = vld [vmem:[%s1 + $0x3c8] sm:$0xff]
  %v173 = vld [vmem:[%s1 + $0x3d0] sm:$0xff]
  %v174 = vld [vmem:[%s1 + $0x3d8] sm:$0xff]
  %v175 = vld [vmem:[%s1 + $0x3e0] sm:$0xff]
  %v176 = vld [vmem:[%s1 + $0x3e8] sm:$0xff]
  %v177 = vld [vmem:[%s1 + $0x3f0] sm:$0xff]
  %v178 = vld [vmem:[%s1 + $0x3f8] sm:$0xff]
  %v179 = vld [vmem:[%s1 + $0x400] sm:$0xff]
  %v180 = vld [vmem:[%s1 + $0x408] sm:$0xff]
  %v181 = vld [vmem:[%s1 + $0x410] sm:$0xff]
  %v182 = vld [vmem:[%s1 + $0x418] sm:$0xff]
  %v183 = vld [vmem:[%s1 + $0x420] sm:$0xff]
  %v184 = vld [vmem:[%s1 + $0x428] sm:$0xff]
  %v185 = vld [vmem:[%s1 + $0x430] sm:$0xff]
  %v186 = vld [vmem:[%s1 + $0x438] sm:$0xff]
  %v187 = vld [vmem:[%s1 + $0x440] sm:$0xff]
  %v188 = vld [vmem:[%s1 + $0x448] sm:$0xff]
  %v189 = vld [vmem:[%s1 + $0x450] sm:$0xff]
  %v190 = vld [vmem:[%s1 + $0x458] sm:$0xff]
  %v191 = vld [vmem:[%s1 + $0x460] sm:$0xff]
  %v192 = vld [vmem:[%s1 + $0x468] sm:$0xff]
  %v193 = vld [vmem:[%s1 + $0x470] sm:$0xff]
  %v194 = vld [vmem:[%s1 + $0x478] sm:$0xff]
  %v195 = vld [vmem:[%s1 + $0x480] sm:$0xff]
  %v196 = vld [vmem:[%s1 + $0x488] sm:$0xff]
  %v197 = vld [vmem:[%s1 + $0x490] sm:$0xff]
  %v198 = vld [vmem:[%s1 + $0x498] sm:$0xff]
  %v199 = vld [vmem:[%s1 + $0x4a0] sm:$0xff]
  %v200 = vld [vmem:[%s1 + $0x4a8] sm:$0xff]
  %v201 = vld [vmem:[%s1 + $0x4b0] sm:$0xff]
  %v202 = vld [vmem:[%s1 + $0x4b8] sm:$0xff]
  %v203 = vld [vmem:[%s1 + $0x4c0] sm:$0xff]
  %v204 = vld [vmem:[%s1 + $0x4c8] sm:$0xff]
  %v205 = vld [vmem:[%s1 + $0x4d0] sm:$0xff]
  %v206 = vld [vmem:[%s1 + $0x4d8] sm:$0xff]
  %v207 = vld [vmem:[%s1 + $0x4e0] sm:$0xff]
  %v208 = vld [vmem:[%s1 + $0x4e8] sm:$0xff]
  %v209 = vld [vmem:[%s1 + $0x4f0] sm:$0xff]
  %v210 = vld [vmem:[%s1 + $0x4f8] sm:$0xff]
  %v211 = vld [vmem:[%s1 + $0x500] sm:$0xff]
  %v212 = vld [vmem:[%s1 + $0x508] sm:$0xff]
  %v213 = vld [vmem:[%s1 + $0x510] sm:$0xff]
  %v214 = vld [vmem:[%s1 + $0x518] sm:$0xff]
  %v215 = vld [vmem:[%s1 + $0x520] sm:$0xff]
  %v216 = vld [vmem:[%s1 + $0x528] sm:$0xff]
  %v217 = vld [vmem:[%s1 + $0x530] sm:$0xff]
  %v218 = vld [vmem:[%s1 + $0x538] sm:$0xff]
  %v219 = vld [vmem:[%s1 + $0x540] sm:$0xff]
  %v220 = vld [vmem:[%s1 + $0x548] sm:$0xff]
  %v221 = vld [vmem:[%s1 + $0x550] sm:$0xff]
  %v222 = vld [vmem:[%s1 + $0x558] sm:$0xff]
  %v223 = vld [vmem:[%s1 + $0x560] sm:$0xff]
  %v224 = vld [vmem:[%s1 + $0x568] sm:$0xff]
  %v225 = vld [vmem:[%s1 + $0x570] sm:$0xff]
  %v226 = vld [vmem:[%s1 + $0x578] sm:$0xff]
  %v227 = vld [vmem:[%s1 + $0x580] sm:$0xff]
  %v228 = vld [vmem:[%s1 + $0x588] sm:$0xff]
  %v229 = vld [vmem:[%s1 + $0x590] sm:$0xff]
  %v230 = vld [vmem:[%s1 + $0x598] sm:$0xff]
  %v231 = vld [vmem:[%s1 + $0x5a0] sm:$0xff]
  %v232 = vld [vmem:[%s1 + $0x5a8] sm:$0xff]
  %v233 = vld [vmem:[%s1 + $0x5b0] sm:$0xff]
  %v234 = vld [vmem:[%s1 + $0x5b8] sm:$0xff]
  %v235 = vld [vmem:[%s1 + $0x5c0] sm:$0xff]
  %v236 = vld [vmem:[%s1 + $0x5c8] sm:$0xff]
  %v237 = vld [vmem:[%s1 + $0x5d0] sm:$0xff]
  %v238 = vld [vmem:[%s1 + $0x5d8] sm:$0xff]
  %v239 = vld [vmem:[%s1 + $0x5e0] sm:$0xff]
  %v240 = vld [vmem:[%s1 + $0x5e8] sm:$0xff]
  %v241 = vld [vmem:[%s1 + $0x5f0] sm:$0xff]
  %v242 = vld [vmem:[%s1 + $0x5f8] sm:$0xff]
  %v243 = vld [vmem:[%s1 + $0x600] sm:$0xff]
  %v244 = vld [vmem:[%s1 + $0x608] sm:$0xff]
  %v245 = vld [vmem:[%s1 + $0x610] sm:$0xff]
  %v246 = vld [vmem:[%s1 + $0x618] sm:$0xff]
  %v247 = vld [vmem:[%s1 + $0x620] sm:$0xff]
  %v248 = vld [vmem:[%s1 + $0x628] sm:$0xff]
  %v249 = vld [vmem:[%s1 + $0x630] sm:$0xff]
  %v250 = vld [vmem:[%s1 + $0x638] sm:$0xff]
  %v251 = vld [vmem:[%s1 + $0x640] sm:$0xff]
  %v252 = vld [vmem:[%s1 + $0x648] sm:$0xff]
  %v253 = vld [vmem:[%s1 + $0x650] sm:$0xff]
  %v254 = vld [vmem:[%s1 + $0x658] sm:$0xff]
  %v255 = vld [vmem:[%s1 + $0x660] sm:$0xff]
  %v256 = vld [vmem:[%s1 + $0x668] sm:$0xff]
  %v257 = vld [vmem:[%s1 + $0x670] sm:$0xff]
  %v258 = vld [vmem:[%s1 + $0x678] sm:$0xff]
  %v259 = vld [vmem:[%s1 + $0x680] sm:$0xff]
  %v260 = vld [vmem:[%s1 + $0x688] sm:$0xff]
  %v261 = vld [vmem:[%s1 + $0x690] sm:$0xff]
  %v262 = vld [vmem:[%s1 + $0x698] sm:$0xff]
  %v263 = vld [vmem:[%s1 + $0x6a0] sm:$0xff]
  %v264 = vld [vmem:[%s1 + $0x6a8] sm:$0xff]
  %v265 = vld [vmem:[%s1 + $0x6b0] sm:$0xff]
  %v266 = vld [vmem:[%s1 + $0x6b8] sm:$0xff]
  %v267 = vld [vmem:[%s1 + $0x6c0] sm:$0xff]
  %v268 = vld [vmem:[%s1 + $0x6c8] sm:$0xff]
  %v269 = vld [vmem:[%s1 + $0x6d0] sm:$0xff]
  %v270 = vld [vmem:[%s1 + $0x6d8] sm:$0xff]
  %v271 = vld [vmem:[%s1 + $0x6e0] sm:$0xff]
  %v272 = vld [vmem:[%s1 + $0x6e8] sm:$0xff]
  %v273 = vld [vmem:[%s1 + $0x6f0] sm:$0xff]
  %v274 = vld [vmem:[%s1 + $0x6f8] sm:$0xff]
  %v275 = vld [vmem:[%s1 + $0x700] sm:$0xff]
  %v276 = vld [vmem:[%s1 + $0x708] sm:$0xff]
  %v277 = vld [vmem:[%s1 + $0x710] sm:$0xff]
  %v278 = vld [vmem:[%s1 + $0x718] sm:$0xff]
  %v279 = vld [vmem:[%s1 + $0x720] sm:$0xff]
  %v280 = vld [vmem:[%s1 + $0x728] sm:$0xff]
  %v281 = vld [vmem:[%s1 + $0x730] sm:$0xff]
  %v282 = vld [vmem:[%s1 + $0x738] sm:$0xff]
  %v283 = vld [vmem:[%s1 + $0x740] sm:$0xff]
  %v284 = vld [vmem:[%s1 + $0x748] sm:$0xff]
  %v285 = vld [vmem:[%s1 + $0x750] sm:$0xff]
  %v286 = vld [vmem:[%s1 + $0x758] sm:$0xff]
  %v287 = vld [vmem:[%s1 + $0x760] sm:$0xff]
  %v288 = vld [vmem:[%s1 + $0x768] sm:$0xff]
  %v289 = vld [vmem:[%s1 + $0x770] sm:$0xff]
  %v290 = vld [vmem:[%s1 + $0x778] sm:$0xff]
  %v291 = vld [vmem:[%s1 + $0x780] sm:$0xff]
  %v292 = vld [vmem:[%s1 + $0x788] sm:$0xff]
  %v293 = vld [vmem:[%s1 + $0x790] sm:$0xff]
  %v294 = vld [vmem:[%s1 + $0x798] sm:$0xff]
  %v295 = vld [vmem:[%s1 + $0x7a0] sm:$0xff]
  %v296 = vld [vmem:[%s1 + $0x7a8] sm:$0xff]
  %v297 = vld [vmem:[%s1 + $0x7b0] sm:$0xff]
  %v298 = vld [vmem:[%s1 + $0x7b8] sm:$0xff]
  %v299 = vld [vmem:[%s1 + $0x7c0] sm:$0xff]
  %v300 = vld [vmem:[%s1 + $0x7c8] sm:$0xff]
  %v301 = vld [vmem:[%s1 + $0x7d0] sm:$0xff]
  %v302 = vld [vmem:[%s1 + $0x7d8] sm:$0xff]
  %v303 = vld [vmem:[%s1 + $0x7e0] sm:$0xff]
  %v304 = vld [vmem:[%s1 + $0x7e8] sm:$0xff]
  %v305 = vld [vmem:[%s1 + $0x7f0] sm:$0xff]
  %v306 = vld [vmem:[%s1 + $0x7f8] sm:$0xff]
  %v307 = vld [vmem:[%s1 + $0x800] sm:$0xff]
  %v308 = vld [vmem:[%s1 + $0x808] sm:$0xff]
  %v309 = vld [vmem:[%s1 + $0x810] sm:$0xff]
  %v310 = vld [vmem:[%s1 + $0x818] sm:$0xff]
  %v311 = vld [vmem:[%s1 + $0x820] sm:$0xff]
  %v312 = vld [vmem:[%s1 + $0x828] sm:$0xff]
  %v313 = vld [vmem:[%s1 + $0x830] sm:$0xff]
  %v314 = vld [vmem:[%s1 + $0x838] sm:$0xff]
  %v315 = vld [vmem:[%s1 + $0x840] sm:$0xff]
  %v316 = vld [vmem:[%s1 + $0x848] sm:$0xff]
  %v317 = vld [vmem:[%s1 + $0x850] sm:$0xff]
  %v318 = vld [vmem:[%s1 + $0x858] sm:$0xff]
  %v319 = vld [vmem:[%s1 + $0x860] sm:$0xff]
  %v320 = vld [vmem:[%s1 + $0x868] sm:$0xff]
  %v321 = vld [vmem:[%s1 + $0x870] sm:$0xff]
  %v322 = vld [vmem:[%s1 + $0x878] sm:$0xff]
  %v323 = vld [vmem:[%s1 + $0x880] sm:$0xff]
  %v324 = vld [vmem:[%s1 + $0x888] sm:$0xff]
  %v325 = vld [vmem:[%s1 + $0x890] sm:$0xff]
  %v326 = vld [vmem:[%s1 + $0x898] sm:$0xff]
  %v327 = vld [vmem:[%s1 + $0x8a0] sm:$0xff]
  %v328 = vld [vmem:[%s1 + $0x8a8] sm:$0xff]
  %v329 = vld [vmem:[%s1 + $0x8b0] sm:$0xff]
  %v330 = vld [vmem:[%s1 + $0x8b8] sm:$0xff]
  %v331 = vld [vmem:[%s1 + $0x8c0] sm:$0xff]
  %v332 = vld [vmem:[%s1 + $0x8c8] sm:$0xff]
  %v333 = vld [vmem:[%s1 + $0x8d0] sm:$0xff]
  %v334 = vld [vmem:[%s1 + $0x8d8] sm:$0xff]
  %v335 = vld [vmem:[%s1 + $0x8e0] sm:$0xff]
  %v336 = vld [vmem:[%s1 + $0x8e8] sm:$0xff]
  %v337 = vld [vmem:[%s1 + $0x8f0] sm:$0xff]
  %v338 = vld [vmem:[%s1 + $0x8f8] sm:$0xff]
  %v339 = vld [vmem:[%s1 + $0x900] sm:$0xff]
  %v340 = vld [vmem:[%s1 + $0x908] sm:$0xff]
  %v341 = vld [vmem:[%s1 + $0x910] sm:$0xff]
  %v342 = vld [vmem:[%s1 + $0x918] sm:$0xff]
  %v343 = vld [vmem:[%s1 + $0x920] sm:$0xff]
  %v344 = vld [vmem:[%s1 + $0x928] sm:$0xff]
  %v345 = vld [vmem:[%s1 + $0x930] sm:$0xff]
  %v346 = vld [vmem:[%s1 + $0x938] sm:$0xff]
  %v347 = vld [vmem:[%s1 + $0x940] sm:$0xff]
  %v348 = vld [vmem:[%s1 + $0x948] sm:$0xff]
  %v349 = vld [vmem:[%s1 + $0x950] sm:$0xff]
  %v350 = vld [vmem:[%s1 + $0x958] sm:$0xff]
  %v351 = vld [vmem:[%s1 + $0x960] sm:$0xff]
  %v352 = vld [vmem:[%s1 + $0x968] sm:$0xff]
  %v353 = vld [vmem:[%s1 + $0x970] sm:$0xff]
  %v354 = vld [vmem:[%s1 + $0x978] sm:$0xff]
  %v355 = vld [vmem:[%s1 + $0x980] sm:$0xff]
  %v356 = vld [vmem:[%s1 + $0x988] sm:$0xff]
  %v357 = vld [vmem:[%s1 + $0x990] sm:$0xff]
  %v358 = vld [vmem:[%s1 + $0x998] sm:$0xff]
  %v359 = vld [vmem:[%s1 + $0x9a0] sm:$0xff]
  %v360 = vld [vmem:[%s1 + $0x9a8] sm:$0xff]
  %v361 = vld [vmem:[%s1 + $0x9b0] sm:$0xff]
  %v362 = vld [vmem:[%s1 + $0x9b8] sm:$0xff]
  %v363 = vld [vmem:[%s1 + $0x9c0] sm:$0xff]
  %v364 = vld [vmem:[%s1 + $0x9c8] sm:$0xff]
  %v365 = vld [vmem:[%s1 + $0x9d0] sm:$0xff]
  %v366 = vld [vmem:[%s1 + $0x9d8] sm:$0xff]
  %v367 = vld [vmem:[%s1 + $0x9e0] sm:$0xff]
  %v368 = vld [vmem:[%s1 + $0x9e8] sm:$0xff]
  %v369 = vld [vmem:[%s1 + $0x9f0] sm:$0xff]
  %v370 = vld [vmem:[%s1 + $0x9f8] sm:$0xff]
  %v371 = vld [vmem:[%s1 + $0xa00] sm:$0xff]
  %v372 = vld [vmem:[%s1 + $0xa08] sm:$0xff]
  %v373 = vld [vmem:[%s1 + $0xa10] sm:$0xff]
  %v374 = vld [vmem:[%s1 + $0xa18] sm:$0xff]
  %v375 = vld [vmem:[%s1 + $0xa20] sm:$0xff]
  %v376 = vld [vmem:[%s1 + $0xa28] sm:$0xff]
  %v377 = vld [vmem:[%s1 + $0xa30] sm:$0xff]
  %v378 = vld [vmem:[%s1 + $0xa38] sm:$0xff]
  %v379 = vld [vmem:[%s1 + $0xa40] sm:$0xff]
  %v380 = vld [vmem:[%s1 + $0xa48] sm:$0xff]
  %v381 = vld [vmem:[%s1 + $0xa50] sm:$0xff]
  %v382 = vld [vmem:[%s1 + $0xa58] sm:$0xff]
  %v383 = vld [vmem:[%s1 + $0xa60] sm:$0xff]
  %v384 = vld [vmem:[%s1 + $0xa68] sm:$0xff]
  %v385 = vld [vmem:[%s1 + $0xa70] sm:$0xff]
  %v386 = vld [vmem:[%s1 + $0xa78] sm:$0xff]
  %v387 = vld [vmem:[%s1 + $0xa80] sm:$0xff]
  %v388 = vld [vmem:[%s1 + $0xa88] sm:$0xff]
  %v389 = vld [vmem:[%s1 + $0xa90] sm:$0xff]
  %v390 = vld [vmem:[%s1 + $0xa98] sm:$0xff]
  %v391 = vld [vmem:[%s1 + $0xaa0] sm:$0xff]
  %v392 = vld [vmem:[%s1 + $0xaa8] sm:$0xff]
  %v393 = vld [vmem:[%s1 + $0xab0] sm:$0xff]
  %v394 = vld [vmem:[%s1 + $0xab8] sm:$0xff]
  %v395 = vld [vmem:[%s1 + $0xac0] sm:$0xff]
  %v396 = vld [vmem:[%s1 + $0xac8] sm:$0xff]
  %v397 = vld [vmem:[%s1 + $0xad0] sm:$0xff]
  %v398 = vld [vmem:[%s1 + $0xad8] sm:$0xff]
  %v399 = vld [vmem:[%s1 + $0xae0] sm:$0xff]
  %v400 = vld [vmem:[%s1 + $0xae8] sm:$0xff]
  %v401 = vld [vmem:[%s1 + $0xaf0] sm:$0xff]
  %v402 = vld [vmem:[%s1 + $0xaf8] sm:$0xff]
  %v403 = vld [vmem:[%s1 + $0xb00] sm:$0xff]
  %v404 = vld [vmem:[%s1 + $0xb08] sm:$0xff]
  %v405 = vld [vmem:[%s1 + $0xb10] sm:$0xff]
  %v406 = vld [vmem:[%s1 + $0xb18] sm:$0xff]
  %v407 = vld [vmem:[%s1 + $0xb20] sm:$0xff]
  %v408 = vld [vmem:[%s1 + $0xb28] sm:$0xff]
  %v409 = vld [vmem:[%s1 + $0xb30] sm:$0xff]
  %v410 = vld [vmem:[%s1 + $0xb38] sm:$0xff]
  %v411 = vld [vmem:[%s1 + $0xb40] sm:$0xff]
  %v412 = vld [vmem:[%s1 + $0xb48] sm:$0xff]
  %v413 = vld [vmem:[%s1 + $0xb50] sm:$0xff]
  %v414 = vld [vmem:[%s1 + $0xb58] sm:$0xff]
  %v415 = vld [vmem:[%s1 + $0xb60] sm:$0xff]
  %v416 = vld [vmem:[%s1 + $0xb68] sm:$0xff]
  %v417 = vld [vmem:[%s1 + $0xb70] sm:$0xff]
  %v418 = vld [vmem:[%s1 + $0xb78] sm:$0xff]
  %v419 = vld [vmem:[%s1 + $0xb80] sm:$0xff]
  %v420 = vld [vmem:[%s1 + $0xb88] sm:$0xff]
  %v421 = vld [vmem:[%s1 + $0xb90] sm:$0xff]
  %v422 = vld [vmem:[%s1 + $0xb98] sm:$0xff]
  %v423 = vld [vmem:[%s1 + $0xba0] sm:$0xff]
  %v424 = vld [vmem:[%s1 + $0xba8] sm:$0xff]
  %v425 = vld [vmem:[%s1 + $0xbb0] sm:$0xff]
  %v426 = vld [vmem:[%s1 + $0xbb8] sm:$0xff]
  %v427 = vld [vmem:[%s1 + $0xbc0] sm:$0xff]
  %v428 = vld [vmem:[%s1 + $0xbc8] sm:$0xff]
  %v429 = vld [vmem:[%s1 + $0xbd0] sm:$0xff]
  %v430 = vld [vmem:[%s1 + $0xbd8] sm:$0xff]
  %v431 = vld [vmem:[%s1 + $0xbe0] sm:$0xff]
  %v432 = vld [vmem:[%s1 + $0xbe8] sm:$0xff]
  %v433 = vld [vmem:[%s1 + $0xbf0] sm:$0xff]
  %v434 = vld [vmem:[%s1 + $0xbf8] sm:$0xff]
  %v435 = vld [vmem:[%s1 + $0xc00] sm:$0xff]
  %v436 = vld [vmem:[%s1 + $0xc08] sm:$0xff]
  %v437 = vld [vmem:[%s1 + $0xc10] sm:$0xff]
  %v438 = vld [vmem:[%s1 + $0xc18] sm:$0xff]
  %v439 = vld [vmem:[%s1 + $0xc20] sm:$0xff]
  %v440 = vld [vmem:[%s1 + $0xc28] sm:$0xff]
  %v441 = vld [vmem:[%s1 + $0xc30] sm:$0xff]
  %v442 = vld [vmem:[%s1 + $0xc38] sm:$0xff]
  %v443 = vld [vmem:[%s1 + $0xc40] sm:$0xff]
  %v444 = vld [vmem:[%s1 + $0xc48] sm:$0xff]
  %v445 = vld [vmem:[%s1 + $0xc50] sm:$0xff]
  %v446 = vld [vmem:[%s1 + $0xc58] sm:$0xff]
  %v447 = vld [vmem:[%s1 + $0xc60] sm:$0xff]
  %v448 = vld [vmem:[%s1 + $0xc68] sm:$0xff]
  %v449 = vld [vmem:[%s1 + $0xc70] sm:$0xff]
  %v450 = vld [vmem:[%s1 + $0xc78] sm:$0xff]
  %v451 = vld [vmem:[%s1 + $0xc80] sm:$0xff]
  %v452 = vld [vmem:[%s1 + $0xc88] sm:$0xff]
  %v453 = vld [vmem:[%s1 + $0xc90] sm:$0xff]
  %v454 = vld [vmem:[%s1 + $0xc98] sm:$0xff]
  %v455 = vld [vmem:[%s1 + $0xca0] sm:$0xff]
  %v456 = vld [vmem:[%s1 + $0xca8] sm:$0xff]
  %v457 = vld [vmem:[%s1 + $0xcb0] sm:$0xff]
  %v458 = vld [vmem:[%s1 + $0xcb8] sm:$0xff]
  %v459 = vld [vmem:[%s1 + $0xcc0] sm:$0xff]
  %v460 = vld [vmem:[%s1 + $0xcc8] sm:$0xff]
  %v461 = vld [vmem:[%s1 + $0xcd0] sm:$0xff]
  %v462 = vld [vmem:[%s1 + $0xcd8] sm:$0xff]
  %v463 = vld [vmem:[%s1 + $0xce0] sm:$0xff]
  %v464 = vld [vmem:[%s1 + $0xce8] sm:$0xff]
  %v465 = vld [vmem:[%s1 + $0xcf0] sm:$0xff]
  %v466 = vld [vmem:[%s1 + $0xcf8] sm:$0xff]
  %v467 = vld [vmem:[%s1 + $0xd00] sm:$0xff]
  %v468 = vld [vmem:[%s1 + $0xd08] sm:$0xff]
  %v469 = vld [vmem:[%s1 + $0xd10] sm:$0xff]
  %v470 = vld [vmem:[%s1 + $0xd18] sm:$0xff]
  %v471 = vld [vmem:[%s1 + $0xd20] sm:$0xff]
  %v472 = vld [vmem:[%s1 + $0xd28] sm:$0xff]
  %v473 = vld [vmem:[%s1 + $0xd30] sm:$0xff]
  %v474 = vld [vmem:[%s1 + $0xd38] sm:$0xff]
  %v475 = vld [vmem:[%s1 + $0xd40] sm:$0xff]
  %v476 = vld [vmem:[%s1 + $0xd48] sm:$0xff]
  %v477 = vld [vmem:[%s1 + $0xd50] sm:$0xff]
  %v478 = vld [vmem:[%s1 + $0xd58] sm:$0xff]
  %v479 = vld [vmem:[%s1 + $0xd60] sm:$0xff]
  %v480 = vld [vmem:[%s1 + $0xd68] sm:$0xff]
  %v481 = vld [vmem:[%s1 + $0xd70] sm:$0xff]
  %v482 = vld [vmem:[%s1 + $0xd78] sm:$0xff]
  %v483 = vld [vmem:[%s1 + $0xd80] sm:$0xff]
  %v484 = vld [vmem:[%s1 + $0xd88] sm:$0xff]
  %v485 = vld [vmem:[%s1 + $0xd90] sm:$0xff]
  %v486 = vld [vmem:[%s1 + $0xd98] sm:$0xff]
  %v487 = vld [vmem:[%s1 + $0xda0] sm:$0xff]
  %v488 = vld [vmem:[%s1 + $0xda8] sm:$0xff]
  %v489 = vld [vmem:[%s1 + $0xdb0] sm:$0xff]
  %v490 = vld [vmem:[%s1 + $0xdb8] sm:$0xff]
  %v491 = vld [vmem:[%s1 + $0xdc0] sm:$0xff]
  %v492 = vld [vmem:[%s1 + $0xdc8] sm:$0xff]
  %v493 = vld [vmem:[%s1 + $0xdd0] sm:$0xff]
  %v494 = vld [vmem:[%s1 + $0xdd8] sm:$0xff]
  %v495 = vld [vmem:[%s1 + $0xde0] sm:$0xff]
  %v496 = vld [vmem:[%s1 + $0xde8] sm:$0xff]
  %v497 = vld [vmem:[%s1 + $0xdf0] sm:$0xff]
  %v498 = vld [vmem:[%s1 + $0xdf8] sm:$0xff]
  %v499 = vld [vmem:[%s1 + $0xe00] sm:$0xff]
  %v500 = vld [vmem:[%s1 + $0xe08] sm:$0xff]
  %v501 = vld [vmem:[%s1 + $0xe10] sm:$0xff]
  %v502 = vld [vmem:[%s1 + $0xe18] sm:$0xff]
  %v503 = vld [vmem:[%s1 + $0xe20] sm:$0xff]
  %v504 = vld [vmem:[%s1 + $0xe28] sm:$0xff]
  %v505 = vld [vmem:[%s1 + $0xe30] sm:$0xff]
  %v506 = vld [vmem:[%s1 + $0xe38] sm:$0xff]
  %v507 = vld [vmem:[%s1 + $0xe40] sm:$0xff]
  %v508 = vld [vmem:[%s1 + $0xe48] sm:$0xff]
  %v509 = vld [vmem:[%s1 + $0xe50] sm:$0xff]
  %v510 = vld [vmem:[%s1 + $0xe58] sm:$0xff]
  %v511 = vld [vmem:[%s1 + $0xe60] sm:$0xff]
  %v512 = vld [vmem:[%s1 + $0xe68] sm:$0xff]
  %v513 = vld [vmem:[%s1 + $0xe70] sm:$0xff]
  %v514 = vld [vmem:[%s1 + $0xe78] sm:$0xff]
  %v515 = vld [vmem:[%s1 + $0xe80] sm:$0xff]
  %v516 = vld [vmem:[%s1 + $0xe88] sm:$0xff]
  %v517 = vld [vmem:[%s1 + $0xe90] sm:$0xff]
  %v518 = vld [vmem:[%s1 + $0xe98] sm:$0xff]
  %v519 = vld [vmem:[%s1 + $0xea0] sm:$0xff]
  %v520 = vld [vmem:[%s1 + $0xea8] sm:$0xff]
  %v521 = vld [vmem:[%s1 + $0xeb0] sm:$0xff]
  %v522 = vld [vmem:[%s1 + $0xeb8] sm:$0xff]
  %v523 = vld [vmem:[%s1 + $0xec0] sm:$0xff]
  %v524 = vld [vmem:[%s1 + $0xec8] sm:$0xff]
  %v525 = vld [vmem:[%s1 + $0xed0] sm:$0xff]
  %v526 = vld [vmem:[%s1 + $0xed8] sm:$0xff]
  %v527 = vld [vmem:[%s1 + $0xee0] sm:$0xff]
  %v528 = vld [vmem:[%s1 + $0xee8] sm:$0xff]
  %v529 = vld [vmem:[%s1 + $0xef0] sm:$0xff]
  %v530 = vld [vmem:[%s1 + $0xef8] sm:$0xff]
  %v531 = vld [vmem:[%s1 + $0xf00] sm:$0xff]
  %v532 = vld [vmem:[%s1 + $0xf08] sm:$0xff]
  %v533 = vld [vmem:[%s1 + $0xf10] sm:$0xff]
  %v534 = vld [vmem:[%s1 + $0xf18] sm:$0xff]
  %v535 = vld [vmem:[%s1 + $0xf20] sm:$0xff]
  %v536 = vld [vmem:[%s1 + $0xf28] sm:$0xff]
  %v537 = vld [vmem:[%s1 + $0xf30] sm:$0xff]
  %v538 = vld [vmem:[%s1 + $0xf38] sm:$0xff]
  %v539 = vld [vmem:[%s1 + $0xf40] sm:$0xff]
  %v540 = vld [vmem:[%s1 + $0xf48] sm:$0xff]
  %v541 = vld [vmem:[%s1 + $0xf50] sm:$0xff]
  %v542 = vld [vmem:[%s1 + $0xf58] sm:$0xff]
  %v543 = vld [vmem:[%s1 + $0xf60] sm:$0xff]
  %v544 = vld [vmem:[%s1 + $0xf68] sm:$0xff]
  %v545 = vld [vmem:[%s1 + $0xf70] sm:$0xff]
  %v546 = vld [vmem:[%s1 + $0xf78] sm:$0xff]
  %v547 = vld [vmem:[%s1 + $0xf80] sm:$0xff]
  %v548 = vld [vmem:[%s1 + $0xf88] sm:$0xff]
  %v549 = vld [vmem:[%s1 + $0xf90] sm:$0xff]
  %v550 = vld [vmem:[%s1 + $0xf98] sm:$0xff]
  %v551 = vld [vmem:[%s1 + $0xfa0] sm:$0xff]
  %v552 = vld [vmem:[%s1 + $0xfa8] sm:$0xff]
  %v553 = vld [vmem:[%s1 + $0xfb0] sm:$0xff]
  %v554 = vld [vmem:[%s1 + $0xfb8] sm:$0xff]
  %v555 = vld [vmem:[%s1 + $0xfc0] sm:$0xff]
  %v556 = vld [vmem:[%s1 + $0xfc8] sm:$0xff]
  %v557 = vld [vmem:[%s1 + $0xfd0] sm:$0xff]
  %v558 = vld [vmem:[%s1 + $0xfd8] sm:$0xff]
  %v559 = vld [vmem:[%s1 + $0xfe0] sm:$0xff]
  %v560 = vld [vmem:[%s1 + $0xfe8] sm:$0xff]
  %v561 = vld [vmem:[%s1 + $0xff0] sm:$0xff]
  %v562 = vld [vmem:[%s1 + $0xff8] sm:$0xff]
  %v563 = vld [vmem:[%s1 + $0x1000] sm:$0xff]
  %v564 = vld [vmem:[%s1 + $0x1008] sm:$0xff]
  %v565 = vld [vmem:[%s1 + $0x1010] sm:$0xff]
  %v566 = vld [vmem:[%s1 + $0x1018] sm:$0xff]
  %v567 = vld [vmem:[%s1 + $0x1020] sm:$0xff]
  %v568 = vld [vmem:[%s1 + $0x1028] sm:$0xff]
  %v569 = vld [vmem:[%s1 + $0x1030] sm:$0xff]
  %v570 = vld [vmem:[%s1 + $0x1038] sm:$0xff]
  %v571 = vld [vmem:[%s1 + $0x1040] sm:$0xff]
  %v572 = vld [vmem:[%s1 + $0x1048] sm:$0xff]
  %v573 = vld [vmem:[%s1 + $0x1050] sm:$0xff]
  %v574 = vld [vmem:[%s1 + $0x1058] sm:$0xff]
  %v575 = vld [vmem:[%s1 + $0x1060] sm:$0xff]
  %v576 = vld [vmem:[%s1 + $0x1068] sm:$0xff]
  %v577 = vld [vmem:[%s1 + $0x1070] sm:$0xff]
  %v578 = vld [vmem:[%s1 + $0x1078] sm:$0xff]
  %v579 = vld [vmem:[%s1 + $0x1080] sm:$0xff]
  %v580 = vld [vmem:[%s1 + $0x1088] sm:$0xff]
  %v581 = vld [vmem:[%s1 + $0x1090] sm:$0xff]
  %v582 = vld [vmem:[%s1 + $0x1098] sm:$0xff]
  %v583 = vld [vmem:[%s1 + $0x10a0] sm:$0xff]
  %v584 = vld [vmem:[%s1 + $0x10a8] sm:$0xff]
  %v585 = vld [vmem:[%s1 + $0x10b0] sm:$0xff]
  %v586 = vld [vmem:[%s1 + $0x10b8] sm:$0xff]
  %v587 = vld [vmem:[%s1 + $0x10c0] sm:$0xff]
  %v588 = vld [vmem:[%s1 + $0x10c8] sm:$0xff]
  %v589 = vld [vmem:[%s1 + $0x10d0] sm:$0xff]
  %v590 = vld [vmem:[%s1 + $0x10d8] sm:$0xff]
  %v591 = vld [vmem:[%s1 + $0x10e0] sm:$0xff]
  %v592 = vld [vmem:[%s1 + $0x10e8] sm:$0xff]
  %v593 = vld [vmem:[%s1 + $0x10f0] sm:$0xff]
  %v594 = vld [vmem:[%s1 + $0x10f8] sm:$0xff]
  %v595 = vld [vmem:[%s1 + $0x1100] sm:$0xff]
  %v596 = vld [vmem:[%s1 + $0x1108] sm:$0xff]
  %v597 = vld [vmem:[%s1 + $0x1110] sm:$0xff]
  %v598 = vld [vmem:[%s1 + $0x1118] sm:$0xff]
  %v599 = vld [vmem:[%s1 + $0x1120] sm:$0xff]
  %v600 = vld [vmem:[%s1 + $0x1128] sm:$0xff]
  %v601 = vld [vmem:[%s1 + $0x1130] sm:$0xff]
  %v602 = vld [vmem:[%s1 + $0x1138] sm:$0xff]
  %v603 = vld [vmem:[%s1 + $0x1140] sm:$0xff]
  %v604 = vld [vmem:[%s1 + $0x1148] sm:$0xff]
  %v605 = vld [vmem:[%s1 + $0x1150] sm:$0xff]
  %v606 = vld [vmem:[%s1 + $0x1158] sm:$0xff]
  %v607 = vld [vmem:[%s1 + $0x1160] sm:$0xff]
  %v608 = vld [vmem:[%s1 + $0x1168] sm:$0xff]
  %v609 = vld [vmem:[%s1 + $0x1170] sm:$0xff]
  %v610 = vld [vmem:[%s1 + $0x1178] sm:$0xff]
  %v611 = vld [vmem:[%s1 + $0x1180] sm:$0xff]
  %v612 = vld [vmem:[%s1 + $0x1188] sm:$0xff]
  %v613 = vld [vmem:[%s1 + $0x1190] sm:$0xff]
  %v614 = vld [vmem:[%s1 + $0x1198] sm:$0xff]
  %v615 = vld [vmem:[%s1 + $0x11a0] sm:$0xff]
  %v616 = vld [vmem:[%s1 + $0x11a8] sm:$0xff]
  %v617 = vld [vmem:[%s1 + $0x11b0] sm:$0xff]
  %v618 = vld [vmem:[%s1 + $0x11b8] sm:$0xff]
  %v619 = vld [vmem:[%s1 + $0x11c0] sm:$0xff]
  %v620 = vld [vmem:[%s1 + $0x11c8] sm:$0xff]
  %v621 = vld [vmem:[%s1 + $0x11d0] sm:$0xff]
  %v622 = vld [vmem:[%s1 + $0x11d8] sm:$0xff]
  %v623 = vld [vmem:[%s1 + $0x11e0] sm:$0xff]
  %v624 = vld [vmem:[%s1 + $0x11e8] sm:$0xff]
  %v625 = vld [vmem:[%s1 + $0x11f0] sm:$0xff]
  %v626 = vld [vmem:[%s1 + $0x11f8] sm:$0xff]
  %v627 = vld [vmem:[%s1 + $0x1200] sm:$0xff]
  %v628 = vld [vmem:[%s1 + $0x1208] sm:$0xff]
  %v629 = vld [vmem:[%s1 + $0x1210] sm:$0xff]
  %v630 = vld [vmem:[%s1 + $0x1218] sm:$0xff]
  %v631 = vld [vmem:[%s1 + $0x1220] sm:$0xff]
  %v632 = vld [vmem:[%s1 + $0x1228] sm:$0xff]
  %v633 = vld [vmem:[%s1 + $0x1230] sm:$0xff]
  %v634 = vld [vmem:[%s1 + $0x1238] sm:$0xff]
  %v635 = vld [vmem:[%s1 + $0x1240] sm:$0xff]
  %v636 = vld [vmem:[%s1 + $0x1248] sm:$0xff]
  %v637 = vld [vmem:[%s1 + $0x1250] sm:$0xff]
  %v638 = vld [vmem:[%s1 + $0x1258] sm:$0xff]
  %v639 = vld [vmem:[%s1 + $0x1260] sm:$0xff]
  %v640 = vld [vmem:[%s1 + $0x1268] sm:$0xff]
  %v641 = vld [vmem:[%s1 + $0x1270] sm:$0xff]
  %v642 = vld [vmem:[%s1 + $0x1278] sm:$0xff]
  %v643 = vld [vmem:[%s1 + $0x1280] sm:$0xff]
  %v644 = vld [vmem:[%s1 + $0x1288] sm:$0xff]
  %v645 = vld [vmem:[%s1 + $0x1290] sm:$0xff]
  %v646 = vld [vmem:[%s1 + $0x1298] sm:$0xff]
  %v647 = vld [vmem:[%s1 + $0x12a0] sm:$0xff]
  %v648 = vld [vmem:[%s1 + $0x12a8] sm:$0xff]
  %v649 = vld [vmem:[%s1 + $0x12b0] sm:$0xff]
  %v650 = vld [vmem:[%s1 + $0x12b8] sm:$0xff]
  %v651 = vld [vmem:[%s1 + $0x12c0] sm:$0xff]
  %v652 = vld [vmem:[%s1 + $0x12c8] sm:$0xff]
  %v653 = vld [vmem:[%s1 + $0x12d0] sm:$0xff]
  %v654 = vld [vmem:[%s1 + $0x12d8] sm:$0xff]
  %v655 = vld [vmem:[%s1 + $0x12e0] sm:$0xff]
  %v656 = vld [vmem:[%s1 + $0x12e8] sm:$0xff]
  %v657 = vld [vmem:[%s1 + $0x12f0] sm:$0xff]
  %v658 = vld [vmem:[%s1 + $0x12f8] sm:$0xff]
  %v659 = vld [vmem:[%s1 + $0x1300] sm:$0xff]
  %v660 = vld [vmem:[%s1 + $0x1308] sm:$0xff]
  %v661 = vld [vmem:[%s1 + $0x1310] sm:$0xff]
  %v662 = vld [vmem:[%s1 + $0x1318] sm:$0xff]
  %v663 = vld [vmem:[%s1 + $0x1320] sm:$0xff]
  %v664 = vld [vmem:[%s1 + $0x1328] sm:$0xff]
  %v665 = vld [vmem:[%s1 + $0x1330] sm:$0xff]
  %v666 = vld [vmem:[%s1 + $0x1338] sm:$0xff]
  %v667 = vld [vmem:[%s1 + $0x1340] sm:$0xff]
  %v668 = vld [vmem:[%s1 + $0x1348] sm:$0xff]
  %v669 = vld [vmem:[%s1 + $0x1350] sm:$0xff]
  %v670 = vld [vmem:[%s1 + $0x1358] sm:$0xff]
  %v671 = vld [vmem:[%s1 + $0x1360] sm:$0xff]
  %v672 = vld [vmem:[%s1 + $0x1368] sm:$0xff]
  %v673 = vld [vmem:[%s1 + $0x1370] sm:$0xff]
  %v674 = vld [vmem:[%s1 + $0x1378] sm:$0xff]
  %v675 = vld [vmem:[%s1 + $0x1380] sm:$0xff]
  %v676 = vld [vmem:[%s1 + $0x1388] sm:$0xff]
  %v677 = vld [vmem:[%s1 + $0x1390] sm:$0xff]
  %v678 = vld [vmem:[%s1 + $0x1398] sm:$0xff]
  %v679 = vld [vmem:[%s1 + $0x13a0] sm:$0xff]
  %v680 = vld [vmem:[%s1 + $0x13a8] sm:$0xff]
  %v681 = vld [vmem:[%s1 + $0x13b0] sm:$0xff]
  %v682 = vld [vmem:[%s1 + $0x13b8] sm:$0xff]
  %v683 = vld [vmem:[%s1 + $0x13c0] sm:$0xff]
  %v684 = vld [vmem:[%s1 + $0x13c8] sm:$0xff]
  %v685 = vld [vmem:[%s1 + $0x13d0] sm:$0xff]
  %v686 = vld [vmem:[%s1 + $0x13d8] sm:$0xff]
  %v687 = vld [vmem:[%s1 + $0x13e0] sm:$0xff]
  %v688 = vld [vmem:[%s1 + $0x13e8] sm:$0xff]
  %v689 = vld [vmem:[%s1 + $0x13f0] sm:$0xff]
  %v690 = vld [vmem:[%s1 + $0x13f8] sm:$0xff]
  %v691 = vld [vmem:[%s1 + $0x1400] sm:$0xff]
  %v692 = vld [vmem:[%s1 + $0x1408] sm:$0xff]
  %v693 = vld [vmem:[%s1 + $0x1410] sm:$0xff]
  %v694 = vld [vmem:[%s1 + $0x1418] sm:$0xff]
  %v695 = vld [vmem:[%s1 + $0x1420] sm:$0xff]
  %v696 = vld [vmem:[%s1 + $0x1428] sm:$0xff]
  %v697 = vld [vmem:[%s1 + $0x1430] sm:$0xff]
  %v698 = vld [vmem:[%s1 + $0x1438] sm:$0xff]
  %v699 = vld [vmem:[%s1 + $0x1440] sm:$0xff]
  %v700 = vld [vmem:[%s1 + $0x1448] sm:$0xff]
  %v701 = vld [vmem:[%s1 + $0x1450] sm:$0xff]
  %v702 = vld [vmem:[%s1 + $0x1458] sm:$0xff]
  %v703 = vld [vmem:[%s1 + $0x1460] sm:$0xff]
  %v704 = vld [vmem:[%s1 + $0x1468] sm:$0xff]
  %v705 = vld [vmem:[%s1 + $0x1470] sm:$0xff]
  %v706 = vld [vmem:[%s1 + $0x1478] sm:$0xff]
  %v707 = vld [vmem:[%s1 + $0x1480] sm:$0xff]
  %v708 = vld [vmem:[%s1 + $0x1488] sm:$0xff]
  %v709 = vld [vmem:[%s1 + $0x1490] sm:$0xff]
  %v710 = vld [vmem:[%s1 + $0x1498] sm:$0xff]
  %v711 = vld [vmem:[%s1 + $0x14a0] sm:$0xff]
  %v712 = vld [vmem:[%s1 + $0x14a8] sm:$0xff]
  %v713 = vld [vmem:[%s1 + $0x14b0] sm:$0xff]
  %v714 = vld [vmem:[%s1 + $0x14b8] sm:$0xff]
  %v715 = vld [vmem:[%s1 + $0x14c0] sm:$0xff]
  %v716 = vld [vmem:[%s1 + $0x14c8] sm:$0xff]
  %v717 = vld [vmem:[%s1 + $0x14d0] sm:$0xff]
  %v718 = vld [vmem:[%s1 + $0x14d8] sm:$0xff]
  %v719 = vld [vmem:[%s1 + $0x14e0] sm:$0xff]
  %v720 = vld [vmem:[%s1 + $0x14e8] sm:$0xff]
  %v721 = vld [vmem:[%s1 + $0x14f0] sm:$0xff]
  %v722 = vld [vmem:[%s1 + $0x14f8] sm:$0xff]
  %v723 = vld [vmem:[%s1 + $0x1500] sm:$0xff]
  %v724 = vld [vmem:[%s1 + $0x1508] sm:$0xff]
  %v725 = vld [vmem:[%s1 + $0x1510] sm:$0xff]
  %v726 = vld [vmem:[%s1 + $0x1518] sm:$0xff]
  %v727 = vld [vmem:[%s1 + $0x1520] sm:$0xff]
  %v728 = vld [vmem:[%s1 + $0x1528] sm:$0xff]
  %v729 = vld [vmem:[%s1 + $0x1530] sm:$0xff]
  %v730 = vld [vmem:[%s1 + $0x1538] sm:$0xff]
  %v731 = vld [vmem:[%s1 + $0x1540] sm:$0xff]
  %v732 = vld [vmem:[%s1 + $0x1548] sm:$0xff]
  %v733 = vld [vmem:[%s1 + $0x1550] sm:$0xff]
  %v734 = vld [vmem:[%s1 + $0x1558] sm:$0xff]
  %v735 = vld [vmem:[%s1 + $0x1560] sm:$0xff]
  %v736 = vld [vmem:[%s1 + $0x1568] sm:$0xff]
  %v737 = vld [vmem:[%s1 + $0x1570] sm:$0xff]
  %v738 = vld [vmem:[%s1 + $0x1578] sm:$0xff]
  %v739 = vld [vmem:[%s1 + $0x1580] sm:$0xff]
  %v740 = vld [vmem:[%s1 + $0x1588] sm:$0xff]
  %v741 = vld [vmem:[%s1 + $0x1590] sm:$0xff]
  %v742 = vld [vmem:[%s1 + $0x1598] sm:$0xff]
  %v743 = vld [vmem:[%s1 + $0x15a0] sm:$0xff]
  %v744 = vld [vmem:[%s1 + $0x15a8] sm:$0xff]
  %v745 = vld [vmem:[%s1 + $0x15b0] sm:$0xff]
  %v746 = vld [vmem:[%s1 + $0x15b8] sm:$0xff]
  %v747 = vld [vmem:[%s1 + $0x15c0] sm:$0xff]
  %v748 = vld [vmem:[%s1 + $0x15c8] sm:$0xff]
  %v749 = vld [vmem:[%s1 + $0x15d0] sm:$0xff]
  %v750 = vld [vmem:[%s1 + $0x15d8] sm:$0xff]
  %v751 = vld [vmem:[%s1 + $0x15e0] sm:$0xff]
  %v752 = vld [vmem:[%s1 + $0x15e8] sm:$0xff]
  %v753 = vld [vmem:[%s1 + $0x15f0] sm:$0xff]
  %v754 = vld [vmem:[%s1 + $0x15f8] sm:$0xff]
  %v755 = vld [vmem:[%s1 + $0x1600] sm:$0xff]
  %v756 = vld [vmem:[%s1 + $0x1608] sm:$0xff]
  %v757 = vld [vmem:[%s1 + $0x1610] sm:$0xff]
  %v758 = vld [vmem:[%s1 + $0x1618] sm:$0xff]
  %v759 = vld [vmem:[%s1 + $0x1620] sm:$0xff]
  %v760 = vld [vmem:[%s1 + $0x1628] sm:$0xff]
  %v761 = vld [vmem:[%s1 + $0x1630] sm:$0xff]
  %v762 = vld [vmem:[%s1 + $0x1638] sm:$0xff]
  %v763 = vld [vmem:[%s1 + $0x1640] sm:$0xff]
  %v764 = vld [vmem:[%s1 + $0x1648] sm:$0xff]
  %v765 = vld [vmem:[%s1 + $0x1650] sm:$0xff]
  %v766 = vld [vmem:[%s1 + $0x1658] sm:$0xff]
  %v767 = vld [vmem:[%s1 + $0x1660] sm:$0xff]
  %v768 = vld [vmem:[%s1 + $0x1668] sm:$0xff]
  %v769 = vld [vmem:[%s1 + $0x1670] sm:$0xff]
  %v770 = vld [vmem:[%s1 + $0x1678] sm:$0xff]
  %v771 = vld [vmem:[%s1 + $0x1680] sm:$0xff]
  %v772 = vld [vmem:[%s1 + $0x1688] sm:$0xff]
  %v773 = vld [vmem:[%s1 + $0x1690] sm:$0xff]
  %v774 = vld [vmem:[%s1 + $0x1698] sm:$0xff]
  %v775 = vld [vmem:[%s1 + $0x16a0] sm:$0xff]
  %v776 = vld [vmem:[%s1 + $0x16a8] sm:$0xff]
  %v777 = vld [vmem:[%s1 + $0x16b0] sm:$0xff]
  %v778 = vld [vmem:[%s1 + $0x16b8] sm:$0xff]
  %v779 = vld [vmem:[%s1 + $0x16c0] sm:$0xff]
  %v780 = vld [vmem:[%s1 + $0x16c8] sm:$0xff]
  %v781 = vld [vmem:[%s1 + $0x16d0] sm:$0xff]
  %v782 = vld [vmem:[%s1 + $0x16d8] sm:$0xff]
  %v783 = vld [vmem:[%s1 + $0x16e0] sm:$0xff]
  %v784 = vld [vmem:[%s1 + $0x16e8] sm:$0xff]
  %v785 = vld [vmem:[%s1 + $0x16f0] sm:$0xff]
  %v786 = vld [vmem:[%s1 + $0x16f8] sm:$0xff]
  %v787 = vld [vmem:[%s1 + $0x1700] sm:$0xff]
  %v788 = vld [vmem:[%s1 + $0x1708] sm:$0xff]
  %v789 = vld [vmem:[%s1 + $0x1710] sm:$0xff]
  %v790 = vld [vmem:[%s1 + $0x1718] sm:$0xff]
  %v791 = vld [vmem:[%s1 + $0x1720] sm:$0xff]
  %v792 = vld [vmem:[%s1 + $0x1728] sm:$0xff]
  %v793 = vld [vmem:[%s1 + $0x1730] sm:$0xff]
  %v794 = vld [vmem:[%s1 + $0x1738] sm:$0xff]
  %v795 = vld [vmem:[%s1 + $0x1740] sm:$0xff]
  %v796 = vld [vmem:[%s1 + $0x1748] sm:$0xff]
  %v797 = vld [vmem:[%s1 + $0x1750] sm:$0xff]
  %v798 = vld [vmem:[%s1 + $0x1758] sm:$0xff]
  %v799 = vld [vmem:[%s1 + $0x1760] sm:$0xff]
  %v800 = vld [vmem:[%s1 + $0x1768] sm:$0xff]
  %v801 = vld [vmem:[%s1 + $0x1770] sm:$0xff]
  %v802 = vld [vmem:[%s1 + $0x1778] sm:$0xff]
  %v803 = vld [vmem:[%s1 + $0x1780] sm:$0xff]
  %v804 = vld [vmem:[%s1 + $0x1788] sm:$0xff]
  %v805 = vld [vmem:[%s1 + $0x1790] sm:$0xff]
  %v806 = vld [vmem:[%s1 + $0x1798] sm:$0xff]
  %v807 = vld [vmem:[%s1 + $0x17a0] sm:$0xff]
  %v808 = vld [vmem:[%s1 + $0x17a8] sm:$0xff]
  %v809 = vld [vmem:[%s1 + $0x17b0] sm:$0xff]
  %v810 = vld [vmem:[%s1 + $0x17b8] sm:$0xff]
  %v811 = vld [vmem:[%s1 + $0x17c0] sm:$0xff]
  %v812 = vld [vmem:[%s1 + $0x17c8] sm:$0xff]
  %v813 = vld [vmem:[%s1 + $0x17d0] sm:$0xff]
  %v814 = vld [vmem:[%s1 + $0x17d8] sm:$0xff]
  %v815 = vld [vmem:[%s1 + $0x17e0] sm:$0xff]
  %v816 = vld [vmem:[%s1 + $0x17e8] sm:$0xff]
  %v817 = vld [vmem:[%s1 + $0x17f0] sm:$0xff]
  %v818 = vld [vmem:[%s1 + $0x17f8] sm:$0xff]
  %v819 = vld [vmem:[%s1 + $0x1800] sm:$0xff]
  %v820 = vld [vmem:[%s1 + $0x1808] sm:$0xff]
  %v821 = vld [vmem:[%s1 + $0x1810] sm:$0xff]
  %v822 = vld [vmem:[%s1 + $0x1818] sm:$0xff]
  %v823 = vld [vmem:[%s1 + $0x1820] sm:$0xff]
  %v824 = vld [vmem:[%s1 + $0x1828] sm:$0xff]
  %v825 = vld [vmem:[%s1 + $0x1830] sm:$0xff]
  %v826 = vld [vmem:[%s1 + $0x1838] sm:$0xff]
  %v827 = vld [vmem:[%s1 + $0x1840] sm:$0xff]
  %v828 = vld [vmem:[%s1 + $0x1848] sm:$0xff]
  %v829 = vld [vmem:[%s1 + $0x1850] sm:$0xff]
  %v830 = vld [vmem:[%s1 + $0x1858] sm:$0xff]
  %v831 = vld [vmem:[%s1 + $0x1860] sm:$0xff]
  %v832 = vld [vmem:[%s1 + $0x1868] sm:$0xff]
  %v833 = vld [vmem:[%s1 + $0x1870] sm:$0xff]
  %v834 = vld [vmem:[%s1 + $0x1878] sm:$0xff]
  %v835 = vld [vmem:[%s1 + $0x1880] sm:$0xff]
  %v836 = vld [vmem:[%s1 + $0x1888] sm:$0xff]
  %v837 = vld [vmem:[%s1 + $0x1890] sm:$0xff]
  %v838 = vld [vmem:[%s1 + $0x1898] sm:$0xff]
  %v839 = vld [vmem:[%s1 + $0x18a0] sm:$0xff]
  %v840 = vld [vmem:[%s1 + $0x18a8] sm:$0xff]
  %v841 = vld [vmem:[%s1 + $0x18b0] sm:$0xff]
  %v842 = vld [vmem:[%s1 + $0x18b8] sm:$0xff]
  %v843 = vld [vmem:[%s1 + $0x18c0] sm:$0xff]
  %v844 = vld [vmem:[%s1 + $0x18c8] sm:$0xff]
  %v845 = vld [vmem:[%s1 + $0x18d0] sm:$0xff]
  %v846 = vld [vmem:[%s1 + $0x18d8] sm:$0xff]
  %v847 = vld [vmem:[%s1 + $0x18e0] sm:$0xff]
  %v848 = vld [vmem:[%s1 + $0x18e8] sm:$0xff]
  %v849 = vld [vmem:[%s1 + $0x18f0] sm:$0xff]
  %v850 = vld [vmem:[%s1 + $0x18f8] sm:$0xff]
  %v851 = vld [vmem:[%s1 + $0x1900] sm:$0xff]
  %v852 = vld [vmem:[%s1 + $0x1908] sm:$0xff]
  %v853 = vld [vmem:[%s1 + $0x1910] sm:$0xff]
  %v854 = vld [vmem:[%s1 + $0x1918] sm:$0xff]
  %v855 = vld [vmem:[%s1 + $0x1920] sm:$0xff]
  %v856 = vld [vmem:[%s1 + $0x1928] sm:$0xff]
  %v857 = vld [vmem:[%s1 + $0x1930] sm:$0xff]
  %v858 = vld [vmem:[%s1 + $0x1938] sm:$0xff]
  %v859 = vld [vmem:[%s1 + $0x1940] sm:$0xff]
  %v860 = vld [vmem:[%s1 + $0x1948] sm:$0xff]
  %v861 = vld [vmem:[%s1 + $0x1950] sm:$0xff]
  %v862 = vld [vmem:[%s1 + $0x1958] sm:$0xff]
  %v863 = vld [vmem:[%s1 + $0x1960] sm:$0xff]
  %v864 = vld [vmem:[%s1 + $0x1968] sm:$0xff]
  %v865 = vld [vmem:[%s1 + $0x1970] sm:$0xff]
  %v866 = vld [vmem:[%s1 + $0x1978] sm:$0xff]
  %v867 = vld [vmem:[%s1 + $0x1980] sm:$0xff]
  %v868 = vld [vmem:[%s1 + $0x1988] sm:$0xff]
  %v869 = vld [vmem:[%s1 + $0x1990] sm:$0xff]
  %v870 = vld [vmem:[%s1 + $0x1998] sm:$0xff]
  %v871 = vld [vmem:[%s1 + $0x19a0] sm:$0xff]
  %v872 = vld [vmem:[%s1 + $0x19a8] sm:$0xff]
  %v873 = vld [vmem:[%s1 + $0x19b0] sm:$0xff]
  %v874 = vld [vmem:[%s1 + $0x19b8] sm:$0xff]
  %v875 = vld [vmem:[%s1 + $0x19c0] sm:$0xff]
  %v876 = vld [vmem:[%s1 + $0x19c8] sm:$0xff]
  %v877 = vld [vmem:[%s1 + $0x19d0] sm:$0xff]
  %v878 = vld [vmem:[%s1 + $0x19d8] sm:$0xff]
  %v879 = vld [vmem:[%s1 + $0x19e0] sm:$0xff]
  %v880 = vld [vmem:[%s1 + $0x19e8] sm:$0xff]
  %v881 = vld [vmem:[%s1 + $0x19f0] sm:$0xff]
  %v882 = vld [vmem:[%s1 + $0x19f8] sm:$0xff]
  %v883 = vld [vmem:[%s1 + $0x1a00] sm:$0xff]
  %v884 = vld [vmem:[%s1 + $0x1a08] sm:$0xff]
  %v885 = vld [vmem:[%s1 + $0x1a10] sm:$0xff]
  %v886 = vld [vmem:[%s1 + $0x1a18] sm:$0xff]
  %v887 = vld [vmem:[%s1 + $0x1a20] sm:$0xff]
  %v888 = vld [vmem:[%s1 + $0x1a28] sm:$0xff]
  %v889 = vld [vmem:[%s1 + $0x1a30] sm:$0xff]
  %v890 = vld [vmem:[%s1 + $0x1a38] sm:$0xff]
  %v891 = vld [vmem:[%s1 + $0x1a40] sm:$0xff]
  %v892 = vld [vmem:[%s1 + $0x1a48] sm:$0xff]
  %v893 = vld [vmem:[%s1 + $0x1a50] sm:$0xff]
  %v894 = vld [vmem:[%s1 + $0x1a58] sm:$0xff]
  %v895 = vld [vmem:[%s1 + $0x1a60] sm:$0xff]
  %v896 = vld [vmem:[%s1 + $0x1a68] sm:$0xff]
  %v897 = vld [vmem:[%s1 + $0x1a70] sm:$0xff]
  %v898 = vld [vmem:[%s1 + $0x1a78] sm:$0xff]
  %v899 = vld [vmem:[%s1 + $0x1a80] sm:$0xff]
  %v900 = vld [vmem:[%s1 + $0x1a88] sm:$0xff]
  %v901 = vld [vmem:[%s1 + $0x1a90] sm:$0xff]
  %v902 = vld [vmem:[%s1 + $0x1a98] sm:$0xff]
  %v903 = vld [vmem:[%s1 + $0x1aa0] sm:$0xff]
  %v904 = vld [vmem:[%s1 + $0x1aa8] sm:$0xff]
  %v905 = vld [vmem:[%s1 + $0x1ab0] sm:$0xff]
  %v906 = vld [vmem:[%s1 + $0x1ab8] sm:$0xff]
  %v907 = vld [vmem:[%s1 + $0x1ac0] sm:$0xff]
  %v908 = vld [vmem:[%s1 + $0x1ac8] sm:$0xff]
  %v909 = vld [vmem:[%s1 + $0x1ad0] sm:$0xff]
  %v910 = vld [vmem:[%s1 + $0x1ad8] sm:$0xff]
  %v911 = vld [vmem:[%s1 + $0x1ae0] sm:$0xff]
  %v912 = vld [vmem:[%s1 + $0x1ae8] sm:$0xff]
  %v913 = vld [vmem:[%s1 + $0x1af0] sm:$0xff]
  %v914 = vld [vmem:[%s1 + $0x1af8] sm:$0xff]
  %v915 = vld [vmem:[%s1 + $0x1b00] sm:$0xff]
  %v916 = vld [vmem:[%s1 + $0x1b08] sm:$0xff]
  %v917 = vld [vmem:[%s1 + $0x1b10] sm:$0xff]
  %v918 = vld [vmem:[%s1 + $0x1b18] sm:$0xff]
  %v919 = vld [vmem:[%s1 + $0x1b20] sm:$0xff]
  %v920 = vld [vmem:[%s1 + $0x1b28] sm:$0xff]
  %v921 = vld [vmem:[%s1 + $0x1b30] sm:$0xff]
  %v922 = vld [vmem:[%s1 + $0x1b38] sm:$0xff]
  %v923 = vld [vmem:[%s1 + $0x1b40] sm:$0xff]
  %v924 = vld [vmem:[%s1 + $0x1b48] sm:$0xff]
  %v925 = vld [vmem:[%s1 + $0x1b50] sm:$0xff]
  %v926 = vld [vmem:[%s1 + $0x1b58] sm:$0xff]
  %v927 = vld [vmem:[%s1 + $0x1b60] sm:$0xff]
  %v928 = vld [vmem:[%s1 + $0x1b68] sm:$0xff]
  %v929 = vld [vmem:[%s1 + $0x1b70] sm:$0xff]
  %v930 = vld [vmem:[%s1 + $0x1b78] sm:$0xff]
  %v931 = vld [vmem:[%s1 + $0x1b80] sm:$0xff]
  %v932 = vld [vmem:[%s1 + $0x1b88] sm:$0xff]
  %v933 = vld [vmem:[%s1 + $0x1b90] sm:$0xff]
  %v934 = vld [vmem:[%s1 + $0x1b98] sm:$0xff]
  %v935 = vld [vmem:[%s1 + $0x1ba0] sm:$0xff]
  %v936 = vld [vmem:[%s1 + $0x1ba8] sm:$0xff]
  %v937 = vld [vmem:[%s1 + $0x1bb0] sm:$0xff]
  %v938 = vld [vmem:[%s1 + $0x1bb8] sm:$0xff]
  %v939 = vld [vmem:[%s1 + $0x1bc0] sm:$0xff]
  %v940 = vld [vmem:[%s1 + $0x1bc8] sm:$0xff]
  %v941 = vld [vmem:[%s1 + $0x1bd0] sm:$0xff]
  %v942 = vld [vmem:[%s1 + $0x1bd8] sm:$0xff]
  %v943 = vld [vmem:[%s1 + $0x1be0] sm:$0xff]
  %v944 = vld [vmem:[%s1 + $0x1be8] sm:$0xff]
  %v945 = vld [vmem:[%s1 + $0x1bf0] sm:$0xff]
  %v946 = vld [vmem:[%s1 + $0x1bf8] sm:$0xff]
  %v947 = vld [vmem:[%s1 + $0x1c00] sm:$0xff]
  %v948 = vld [vmem:[%s1 + $0x1c08] sm:$0xff]
  %v949 = vld [vmem:[%s1 + $0x1c10] sm:$0xff]
  %v950 = vld [vmem:[%s1 + $0x1c18] sm:$0xff]
  %v951 = vld [vmem:[%s1 + $0x1c20] sm:$0xff]
  %v952 = vld [vmem:[%s1 + $0x1c28] sm:$0xff]
  %v953 = vld [vmem:[%s1 + $0x1c30] sm:$0xff]
  %v954 = vld [vmem:[%s1 + $0x1c38] sm:$0xff]
  %v955 = vld [vmem:[%s1 + $0x1c40] sm:$0xff]
  %v956 = vld [vmem:[%s1 + $0x1c48] sm:$0xff]
  %v957 = vld [vmem:[%s1 + $0x1c50] sm:$0xff]
  %v958 = vld [vmem:[%s1 + $0x1c58] sm:$0xff]
  %v959 = vld [vmem:[%s1 + $0x1c60] sm:$0xff]
  %v960 = vld [vmem:[%s1 + $0x1c68] sm:$0xff]
  %v961 = vld [vmem:[%s1 + $0x1c70] sm:$0xff]
  %v962 = vld [vmem:[%s1 + $0x1c78] sm:$0xff]
  %v963 = vld [vmem:[%s1 + $0x1c80] sm:$0xff]
  %v964 = vld [vmem:[%s1 + $0x1c88] sm:$0xff]
  %v965 = vld [vmem:[%s1 + $0x1c90] sm:$0xff]
  %v966 = vld [vmem:[%s1 + $0x1c98] sm:$0xff]
  %v967 = vld [vmem:[%s1 + $0x1ca0] sm:$0xff]
  %v968 = vld [vmem:[%s1 + $0x1ca8] sm:$0xff]
  %v969 = vld [vmem:[%s1 + $0x1cb0] sm:$0xff]
  %v970 = vld [vmem:[%s1 + $0x1cb8] sm:$0xff]
  %v971 = vld [vmem:[%s1 + $0x1cc0] sm:$0xff]
  %v972 = vld [vmem:[%s1 + $0x1cc8] sm:$0xff]
  %v973 = vld [vmem:[%s1 + $0x1cd0] sm:$0xff]
  %v974 = vld [vmem:[%s1 + $0x1cd8] sm:$0xff]
  %v975 = vld [vmem:[%s1 + $0x1ce0] sm:$0xff]
  %v976 = vld [vmem:[%s1 + $0x1ce8] sm:$0xff]
  %v977 = vld [vmem:[%s1 + $0x1cf0] sm:$0xff]
  %v978 = vld [vmem:[%s1 + $0x1cf8] sm:$0xff]
  %v979 = vld [vmem:[%s1 + $0x1d00] sm:$0xff]
  %v980 = vld [vmem:[%s1 + $0x1d08] sm:$0xff]
  %v981 = vld [vmem:[%s1 + $0x1d10] sm:$0xff]
  %v982 = vld [vmem:[%s1 + $0x1d18] sm:$0xff]
  %v983 = vld [vmem:[%s1 + $0x1d20] sm:$0xff]
  %v984 = vld [vmem:[%s1 + $0x1d28] sm:$0xff]
  %v985 = vld [vmem:[%s1 + $0x1d30] sm:$0xff]
  %v986 = vld [vmem:[%s1 + $0x1d38] sm:$0xff]
  %v987 = vld [vmem:[%s1 + $0x1d40] sm:$0xff]
  %v988 = vld [vmem:[%s1 + $0x1d48] sm:$0xff]
  %v989 = vld [vmem:[%s1 + $0x1d50] sm:$0xff]
  %v990 = vld [vmem:[%s1 + $0x1d58] sm:$0xff]
  %v991 = vld [vmem:[%s1 + $0x1d60] sm:$0xff]
  %v992 = vld [vmem:[%s1 + $0x1d68] sm:$0xff]
  %v993 = vld [vmem:[%s1 + $0x1d70] sm:$0xff]
  %v994 = vld [vmem:[%s1 + $0x1d78] sm:$0xff]
  %v995 = vld [vmem:[%s1 + $0x1d80] sm:$0xff]
  %v996 = vld [vmem:[%s1 + $0x1d88] sm:$0xff]
  %v997 = vld [vmem:[%s1 + $0x1d90] sm:$0xff]
  %v998 = vld [vmem:[%s1 + $0x1d98] sm:$0xff]
  %v999 = vld [vmem:[%s1 + $0x1da0] sm:$0xff]
  %v1000 = vld [vmem:[%s1 + $0x1da8] sm:$0xff]
  %v1001 = vld [vmem:[%s1 + $0x1db0] sm:$0xff]
  %v1002 = vld [vmem:[%s1 + $0x1db8] sm:$0xff]
  %v1003 = vld [vmem:[%s1 + $0x1dc0] sm:$0xff]
  %v1004 = vld [vmem:[%s1 + $0x1dc8] sm:$0xff]
  %v1005 = vld [vmem:[%s1 + $0x1dd0] sm:$0xff]
  %v1006 = vld [vmem:[%s1 + $0x1dd8] sm:$0xff]
  %v1007 = vld [vmem:[%s1 + $0x1de0] sm:$0xff]
  %v1008 = vld [vmem:[%s1 + $0x1de8] sm:$0xff]
  %v1009 = vld [vmem:[%s1 + $0x1df0] sm:$0xff]
  %v1010 = vld [vmem:[%s1 + $0x1df8] sm:$0xff]
  %v1011 = vld [vmem:[%s1 + $0x1e00] sm:$0xff]
  %v1012 = vld [vmem:[%s1 + $0x1e08] sm:$0xff]
  %v1013 = vld [vmem:[%s1 + $0x1e10] sm:$0xff]
  %v1014 = vld [vmem:[%s1 + $0x1e18] sm:$0xff]
  %v1015 = vld [vmem:[%s1 + $0x1e20] sm:$0xff]
  %v1016 = vld [vmem:[%s1 + $0x1e28] sm:$0xff]
  %v1017 = vld [vmem:[%s1 + $0x1e30] sm:$0xff]
  %v1018 = vld [vmem:[%s1 + $0x1e38] sm:$0xff]
  %v1019 = vld [vmem:[%s1 + $0x1e40] sm:$0xff]
  %v1020 = vld [vmem:[%s1 + $0x1e48] sm:$0xff]
  %v1021 = vld [vmem:[%s1 + $0x1e50] sm:$0xff]
  %v1022 = vld [vmem:[%s1 + $0x1e58] sm:$0xff]
  %v1023 = vld [vmem:[%s1 + $0x1e60] sm:$0xff]
  %v1024 = vld [vmem:[%s1 + $0x1e68] sm:$0xff]
  %v1025 = vld [vmem:[%s1 + $0x1e70] sm:$0xff]
  %v1026 = vld [vmem:[%s1 + $0x1e78] sm:$0xff]
  %v1027 = vld [vmem:[%s1 + $0x1e80] sm:$0xff]
  %v1028 = vld [vmem:[%s1 + $0x1e88] sm:$0xff]
  %v1029 = vld [vmem:[%s1 + $0x1e90] sm:$0xff]
  %v1030 = vld [vmem:[%s1 + $0x1e98] sm:$0xff]
  %v1031 = vld [vmem:[%s1 + $0x1ea0] sm:$0xff]
  %v1032 = vld [vmem:[%s1 + $0x1ea8] sm:$0xff]
  %v1033 = vld [vmem:[%s1 + $0x1eb0] sm:$0xff]
  %v1034 = vld [vmem:[%s1 + $0x1eb8] sm:$0xff]
  %v1035 = vld [vmem:[%s1 + $0x1ec0] sm:$0xff]
  %v1036 = vld [vmem:[%s1 + $0x1ec8] sm:$0xff]
  %v1037 = vld [vmem:[%s1 + $0x1ed0] sm:$0xff]
  %v1038 = vld [vmem:[%s1 + $0x1ed8] sm:$0xff]
  %v1039 = vld [vmem:[%s1 + $0x1ee0] sm:$0xff]
  %v1040 = vld [vmem:[%s1 + $0x1ee8] sm:$0xff]
  %v1041 = vld [vmem:[%s1 + $0x1ef0] sm:$0xff]
  %v1042 = vld [vmem:[%s1 + $0x1ef8] sm:$0xff]
  %v1043 = vld [vmem:[%s1 + $0x1f00] sm:$0xff]
  %v1044 = vld [vmem:[%s1 + $0x1f08] sm:$0xff]
  %v1045 = vld [vmem:[%s1 + $0x1f10] sm:$0xff]
  %v1046 = vld [vmem:[%s1 + $0x1f18] sm:$0xff]
  %v1047 = vld [vmem:[%s1 + $0x1f20] sm:$0xff]
  %v1048 = vld [vmem:[%s1 + $0x1f28] sm:$0xff]
  %v1049 = vld [vmem:[%s1 + $0x1f30] sm:$0xff]
  %v1050 = vld [vmem:[%s1 + $0x1f38] sm:$0xff]
  %v1051 = vld [vmem:[%s1 + $0x1f40] sm:$0xff]
  %v1052 = vld [vmem:[%s1 + $0x1f48] sm:$0xff]
  %v1053 = vld [vmem:[%s1 + $0x1f50] sm:$0xff]
  %v1054 = vld [vmem:[%s1 + $0x1f58] sm:$0xff]
  %v1055 = vld [vmem:[%s1 + $0x1f60] sm:$0xff]
  %v1056 = vld [vmem:[%s1 + $0x1f68] sm:$0xff]
  %v1057 = vld [vmem:[%s1 + $0x1f70] sm:$0xff]
  %v1058 = vld [vmem:[%s1 + $0x1f78] sm:$0xff]
  %v1059 = vld [vmem:[%s1 + $0x1f80] sm:$0xff]
  %v1060 = vld [vmem:[%s1 + $0x1f88] sm:$0xff]
  %v1061 = vld [vmem:[%s1 + $0x1f90] sm:$0xff]
  %v1062 = vld [vmem:[%s1 + $0x1f98] sm:$0xff]
  %v1063 = vld [vmem:[%s1 + $0x1fa0] sm:$0xff]
  %v1064 = vld [vmem:[%s1 + $0x1fa8] sm:$0xff]
  %v1065 = vld [vmem:[%s1 + $0x1fb0] sm:$0xff]
  %v1066 = vld [vmem:[%s1 + $0x1fb8] sm:$0xff]
  %v1067 = vld [vmem:[%s1 + $0x1fc0] sm:$0xff]
  %v1068 = vld [vmem:[%s1 + $0x1fc8] sm:$0xff]
  %v1069 = vld [vmem:[%s1 + $0x1fd0] sm:$0xff]
  %v1070 = vld [vmem:[%s1 + $0x1fd8] sm:$0xff]
  %v1071 = vld [vmem:[%s1 + $0x1fe0] sm:$0xff]
  %v1072 = vld [vmem:[%s1 + $0x1fe8] sm:$0xff]
  %v1073 = vld [vmem:[%s1 + $0x1ff0] sm:$0xff]
  %v1074 = vld [vmem:[%s1 + $0x1ff8] sm:$0xff]
  %v1075 = vld [vmem:[%s1 + $0x2000] sm:$0xff]
  %v1076 = vld [vmem:[%s1 + $0x2008] sm:$0xff]
  %v1077 = vld [vmem:[%s1 + $0x2010] sm:$0xff]
  %v1078 = vld [vmem:[%s1 + $0x2018] sm:$0xff]
  %v1079 = vld [vmem:[%s1 + $0x2020] sm:$0xff]
  %v1080 = vld [vmem:[%s1 + $0x2028] sm:$0xff]
  %v1081 = vld [vmem:[%s1 + $0x2030] sm:$0xff]
  %v1082 = vld [vmem:[%s1 + $0x2038] sm:$0xff]
  %v1083 = vld [vmem:[%s1 + $0x2040] sm:$0xff]
  %v1084 = vld [vmem:[%s1 + $0x2048] sm:$0xff]
  %v1085 = vld [vmem:[%s1 + $0x2050] sm:$0xff]
  %v1086 = vld [vmem:[%s1 + $0x2058] sm:$0xff]
  %v1087 = vld [vmem:[%s1 + $0x2060] sm:$0xff]
  %v1088 = vld [vmem:[%s1 + $0x2068] sm:$0xff]
  %v1089 = vld [vmem:[%s1 + $0x2070] sm:$0xff]
  %v1090 = vld [vmem:[%s1 + $0x2078] sm:$0xff]
  %v1091 = vld [vmem:[%s1 + $0x2080] sm:$0xff]
  %v1092 = vld [vmem:[%s1 + $0x2088] sm:$0xff]
  %v1093 = vld [vmem:[%s1 + $0x2090] sm:$0xff]
  %v1094 = vld [vmem:[%s1 + $0x2098] sm:$0xff]
  %v1095 = vld [vmem:[%s1 + $0x20a0] sm:$0xff]
  %v1096 = vld [vmem:[%s1 + $0x20a8] sm:$0xff]
  %v1097 = vld [vmem:[%s1 + $0x20b0] sm:$0xff]
  %v1098 = vld [vmem:[%s1 + $0x20b8] sm:$0xff]
  %v1099 = vld [vmem:[%s1 + $0x20c0] sm:$0xff]
  %v1100 = vld [vmem:[%s1 + $0x20c8] sm:$0xff]
  %v1101 = vld [vmem:[%s1 + $0x20d0] sm:$0xff]
  %v1102 = vld [vmem:[%s1 + $0x20d8] sm:$0xff]
  %v1103 = vld [vmem:[%s1 + $0x20e0] sm:$0xff]
  %v1104 = vld [vmem:[%s1 + $0x20e8] sm:$0xff]
  %v1105 = vld [vmem:[%s1 + $0x20f0] sm:$0xff]
  %v1106 = vld [vmem:[%s1 + $0x20f8] sm:$0xff]
  %v1107 = vld [vmem:[%s1 + $0x2100] sm:$0xff]
  %v1108 = vld [vmem:[%s1 + $0x2108] sm:$0xff]
  %v1109 = vld [vmem:[%s1 + $0x2110] sm:$0xff]
  %v1110 = vld [vmem:[%s1 + $0x2118] sm:$0xff]
  %v1111 = vld [vmem:[%s1 + $0x2120] sm:$0xff]
  %v1112 = vld [vmem:[%s1 + $0x2128] sm:$0xff]
  %v1113 = vld [vmem:[%s1 + $0x2130] sm:$0xff]
  %v1114 = vld [vmem:[%s1 + $0x2138] sm:$0xff]
  %v1115 = vld [vmem:[%s1 + $0x2140] sm:$0xff]
  %v1116 = vld [vmem:[%s1 + $0x2148] sm:$0xff]
  %v1117 = vld [vmem:[%s1 + $0x2150] sm:$0xff]
  %v1118 = vld [vmem:[%s1 + $0x2158] sm:$0xff]
  %v1119 = vld [vmem:[%s1 + $0x2160] sm:$0xff]
  %v1120 = vld [vmem:[%s1 + $0x2168] sm:$0xff]
  %v1121 = vld [vmem:[%s1 + $0x2170] sm:$0xff]
  %v1122 = vld [vmem:[%s1 + $0x2178] sm:$0xff]
  %v1123 = vld [vmem:[%s1 + $0x2180] sm:$0xff]
  %v1124 = vld [vmem:[%s1 + $0x2188] sm:$0xff]
  %v1125 = vld [vmem:[%s1 + $0x2190] sm:$0xff]
  %v1126 = vld [vmem:[%s1 + $0x2198] sm:$0xff]
  %v1127 = vld [vmem:[%s1 + $0x21a0] sm:$0xff]
  %v1128 = vld [vmem:[%s1 + $0x21a8] sm:$0xff]
  %v1129 = vld [vmem:[%s1 + $0x21b0] sm:$0xff]
  %v1130 = vld [vmem:[%s1 + $0x21b8] sm:$0xff]
  %v1131 = vld [vmem:[%s1 + $0x21c0] sm:$0xff]
  %v1132 = vld [vmem:[%s1 + $0x21c8] sm:$0xff]
  %v1133 = vld [vmem:[%s1 + $0x21d0] sm:$0xff]
  %v1134 = vld [vmem:[%s1 + $0x21d8] sm:$0xff]
  %v1135 = vld [vmem:[%s1 + $0x21e0] sm:$0xff]
  %v1136 = vld [vmem:[%s1 + $0x21e8] sm:$0xff]
  %v1137 = vld [vmem:[%s1 + $0x21f0] sm:$0xff]
  %v1138 = vld [vmem:[%s1 + $0x21f8] sm:$0xff]
  %v1139 = vld [vmem:[%s1 + $0x2200] sm:$0xff]
  %v1140 = vld [vmem:[%s1 + $0x2208] sm:$0xff]
  %v1141 = vld [vmem:[%s1 + $0x2210] sm:$0xff]
  %v1142 = vld [vmem:[%s1 + $0x2218] sm:$0xff]
  %v1143 = vld [vmem:[%s1 + $0x2220] sm:$0xff]
  %v1144 = vld [vmem:[%s1 + $0x2228] sm:$0xff]
  %v1145 = vld [vmem:[%s1 + $0x2230] sm:$0xff]
  %v1146 = vld [vmem:[%s1 + $0x2238] sm:$0xff]
  %v1147 = vld [vmem:[%s1 + $0x2240] sm:$0xff]
  %v1148 = vld [vmem:[%s1 + $0x2248] sm:$0xff]
  %v1149 = vld [vmem:[%s1 + $0x2250] sm:$0xff]
  %v1150 = vld [vmem:[%s1 + $0x2258] sm:$0xff]
  %v1151 = vld [vmem:[%s1 + $0x2260] sm:$0xff]
  %v1152 = vld [vmem:[%s1 + $0x2268] sm:$0xff]
  %v1153 = vld [vmem:[%s1 + $0x2270] sm:$0xff]
  %v1154 = vld [vmem:[%s1 + $0x2278] sm:$0xff]
  %v1155 = vld [vmem:[%s1 + $0x2280] sm:$0xff]
  %v1156 = vld [vmem:[%s1 + $0x2288] sm:$0xff]
  %v1157 = vld [vmem:[%s1 + $0x2290] sm:$0xff]
  %v1158 = vld [vmem:[%s1 + $0x2298] sm:$0xff]
  %v1159 = vld [vmem:[%s1 + $0x22a0] sm:$0xff]
  %v1160 = vld [vmem:[%s1 + $0x22a8] sm:$0xff]
  %v1161 = vld [vmem:[%s1 + $0x22b0] sm:$0xff]
  %v1162 = vld [vmem:[%s1 + $0x22b8] sm:$0xff]
  %v1163 = vld [vmem:[%s1 + $0x22c0] sm:$0xff]
  %v1164 = vld [vmem:[%s1 + $0x22c8] sm:$0xff]
  %v1165 = vld [vmem:[%s1 + $0x22d0] sm:$0xff]
  %v1166 = vld [vmem:[%s1 + $0x22d8] sm:$0xff]
  %v1167 = vld [vmem:[%s1 + $0x22e0] sm:$0xff]
  %v1168 = vld [vmem:[%s1 + $0x22e8] sm:$0xff]
  %v1169 = vld [vmem:[%s1 + $0x22f0] sm:$0xff]
  %v1170 = vld [vmem:[%s1 + $0x22f8] sm:$0xff]
  %v1171 = vld [vmem:[%s1 + $0x2300] sm:$0xff]
  %v1172 = vld [vmem:[%s1 + $0x2308] sm:$0xff]
  %v1173 = vld [vmem:[%s1 + $0x2310] sm:$0xff]
  %v1174 = vld [vmem:[%s1 + $0x2318] sm:$0xff]
  %v1175 = vld [vmem:[%s1 + $0x2320] sm:$0xff]
  %v1176 = vld [vmem:[%s1 + $0x2328] sm:$0xff]
  %v1177 = vld [vmem:[%s1 + $0x2330] sm:$0xff]
  %v1178 = vld [vmem:[%s1 + $0x2338] sm:$0xff]
  %v1179 = vld [vmem:[%s1 + $0x2340] sm:$0xff]
  %v1180 = vld [vmem:[%s1 + $0x2348] sm:$0xff]
  %v1181 = vld [vmem:[%s1 + $0x2350] sm:$0xff]
  %v1182 = vld [vmem:[%s1 + $0x2358] sm:$0xff]
  %v1183 = vld [vmem:[%s1 + $0x2360] sm:$0xff]
  %v1184 = vld [vmem:[%s1 + $0x2368] sm:$0xff]
  %v1185 = vld [vmem:[%s1 + $0x2370] sm:$0xff]
  %v1186 = vld [vmem:[%s1 + $0x2378] sm:$0xff]
  %v1187 = vld [vmem:[%s1 + $0x2380] sm:$0xff]
  %v1188 = vld [vmem:[%s1 + $0x2388] sm:$0xff]
  %v1189 = vld [vmem:[%s1 + $0x2390] sm:$0xff]
  %v1190 = vld [vmem:[%s1 + $0x2398] sm:$0xff]
  %v1191 = vld [vmem:[%s1 + $0x23a0] sm:$0xff]
  %v1192 = vld [vmem:[%s1 + $0x23a8] sm:$0xff]
  %v1193 = vld [vmem:[%s1 + $0x23b0] sm:$0xff]
  %v1194 = vld [vmem:[%s1 + $0x23b8] sm:$0xff]
  %v1195 = vld [vmem:[%s1 + $0x23c0] sm:$0xff]
  %v1196 = vld [vmem:[%s1 + $0x23c8] sm:$0xff]
  %v1197 = vld [vmem:[%s1 + $0x23d0] sm:$0xff]
  %v1198 = vld [vmem:[%s1 + $0x23d8] sm:$0xff]
  %v1199 = vld [vmem:[%s1 + $0x23e0] sm:$0xff]
  %v1200 = vld [vmem:[%s1 + $0x23e8] sm:$0xff]
  %v1201 = vld [vmem:[%s1 + $0x23f0] sm:$0xff]
  %v1202 = vld [vmem:[%s1 + $0x23f8] sm:$0xff]
  %v1203 = vld [vmem:[%s1 + $0x2400] sm:$0xff]
  %v1204 = vld [vmem:[%s1 + $0x2408] sm:$0xff]
  %v1205 = vld [vmem:[%s1 + $0x2410] sm:$0xff]
  %v1206 = vld [vmem:[%s1 + $0x2418] sm:$0xff]
  %v1207 = vld [vmem:[%s1 + $0x2420] sm:$0xff]
  %v1208 = vld [vmem:[%s1 + $0x2428] sm:$0xff]
  %v1209 = vld [vmem:[%s1 + $0x2430] sm:$0xff]
  %v1210 = vld [vmem:[%s1 + $0x2438] sm:$0xff]
  %v1211 = vld [vmem:[%s1 + $0x2440] sm:$0xff]
  %v1212 = vld [vmem:[%s1 + $0x2448] sm:$0xff]
  %v1213 = vld [vmem:[%s1 + $0x2450] sm:$0xff]
  %v1214 = vld [vmem:[%s1 + $0x2458] sm:$0xff]
  %v1215 = vld [vmem:[%s1 + $0x2460] sm:$0xff]
  %v1216 = vld [vmem:[%s1 + $0x2468] sm:$0xff]
  %v1217 = vld [vmem:[%s1 + $0x2470] sm:$0xff]
  %v1218 = vld [vmem:[%s1 + $0x2478] sm:$0xff]
  %v1219 = vld [vmem:[%s1 + $0x2480] sm:$0xff]
  %v1220 = vld [vmem:[%s1 + $0x2488] sm:$0xff]
  %v1221 = vld [vmem:[%s1 + $0x2490] sm:$0xff]
  %v1222 = vld [vmem:[%s1 + $0x2498] sm:$0xff]
  %v1223 = vld [vmem:[%s1 + $0x24a0] sm:$0xff]
  %v1224 = vld [vmem:[%s1 + $0x24a8] sm:$0xff]
  %v1225 = vld [vmem:[%s1 + $0x24b0] sm:$0xff]
  %v1226 = vld [vmem:[%s1 + $0x24b8] sm:$0xff]
  %v1227 = vld [vmem:[%s1 + $0x24c0] sm:$0xff]
  %v1228 = vld [vmem:[%s1 + $0x24c8] sm:$0xff]
  %v1229 = vld [vmem:[%s1 + $0x24d0] sm:$0xff]
  %v1230 = vld [vmem:[%s1 + $0x24d8] sm:$0xff]
  %v1231 = vld [vmem:[%s1 + $0x24e0] sm:$0xff]
  %v1232 = vld [vmem:[%s1 + $0x24e8] sm:$0xff]
  %v1233 = vld [vmem:[%s1 + $0x24f0] sm:$0xff]
  %v1234 = vld [vmem:[%s1 + $0x24f8] sm:$0xff]
  %v1235 = vld [vmem:[%s1 + $0x2500] sm:$0xff]
  %v1236 = vld [vmem:[%s1 + $0x2508] sm:$0xff]
  %v1237 = vld [vmem:[%s1 + $0x2510] sm:$0xff]
  %v1238 = vld [vmem:[%s1 + $0x2518] sm:$0xff]
  %v1239 = vld [vmem:[%s1 + $0x2520] sm:$0xff]
  %v1240 = vld [vmem:[%s1 + $0x2528] sm:$0xff]
  %v1241 = vld [vmem:[%s1 + $0x2530] sm:$0xff]
  %v1242 = vld [vmem:[%s1 + $0x2538] sm:$0xff]
  %v1243 = vld [vmem:[%s1 + $0x2540] sm:$0xff]
  %v1244 = vld [vmem:[%s1 + $0x2548] sm:$0xff]
  %v1245 = vld [vmem:[%s1 + $0x2550] sm:$0xff]
  %v1246 = vld [vmem:[%s1 + $0x2558] sm:$0xff]
  %v1247 = vld [vmem:[%s1 + $0x2560] sm:$0xff]
  %v1248 = vld [vmem:[%s1 + $0x2568] sm:$0xff]
  %v1249 = vld [vmem:[%s1 + $0x2570] sm:$0xff]
  %v1250 = vld [vmem:[%s1 + $0x2578] sm:$0xff]
  %v1251 = vld [vmem:[%s1 + $0x2580] sm:$0xff]
  %v1252 = vld [vmem:[%s1 + $0x2588] sm:$0xff]
  %v1253 = vld [vmem:[%s1 + $0x2590] sm:$0xff]
  %v1254 = vld [vmem:[%s1 + $0x2598] sm:$0xff]
  %v1255 = vld [vmem:[%s1 + $0x25a0] sm:$0xff]
  %v1256 = vld [vmem:[%s1 + $0x25a8] sm:$0xff]
  %v1257 = vld [vmem:[%s1 + $0x25b0] sm:$0xff]
  %v1258 = vld [vmem:[%s1 + $0x25b8] sm:$0xff]
  %v1259 = vld [vmem:[%s1 + $0x25c0] sm:$0xff]
  %v1260 = vld [vmem:[%s1 + $0x25c8] sm:$0xff]
  %v1261 = vld [vmem:[%s1 + $0x25d0] sm:$0xff]
  %v1262 = vld [vmem:[%s1 + $0x25d8] sm:$0xff]
  %v1263 = vld [vmem:[%s1 + $0x25e0] sm:$0xff]
  %v1264 = vld [vmem:[%s1 + $0x25e8] sm:$0xff]
  %v1265 = vld [vmem:[%s1 + $0x25f0] sm:$0xff]
  %v1266 = vld [vmem:[%s1 + $0x25f8] sm:$0xff]
  %v1267 = vld [vmem:[%s1 + $0x2600] sm:$0xff]
  %v1268 = vld [vmem:[%s1 + $0x2608] sm:$0xff]
  %v1269 = vld [vmem:[%s1 + $0x2610] sm:$0xff]
  %v1270 = vld [vmem:[%s1 + $0x2618] sm:$0xff]
  %v1271 = vld [vmem:[%s1 + $0x2620] sm:$0xff]
  %v1272 = vld [vmem:[%s1 + $0x2628] sm:$0xff]
  %v1273 = vld [vmem:[%s1 + $0x2630] sm:$0xff]
  %v1274 = vld [vmem:[%s1 + $0x2638] sm:$0xff]
  %v1275 = vld [vmem:[%s1 + $0x2640] sm:$0xff]
  %v1276 = vld [vmem:[%s1 + $0x2648] sm:$0xff]
  %v1277 = vld [vmem:[%s1 + $0x2650] sm:$0xff]
  %v1278 = vld [vmem:[%s1 + $0x2658] sm:$0xff]
  %v1279 = vld [vmem:[%s1 + $0x2660] sm:$0xff]
  %v1280 = vld [vmem:[%s1 + $0x2668] sm:$0xff]
  %v1281 = vld [vmem:[%s1 + $0x2670] sm:$0xff]
  %v1282 = vld [vmem:[%s1 + $0x2678] sm:$0xff]
  %v1283 = vld [vmem:[%s1 + $0x2680] sm:$0xff]
  %v1284 = vld [vmem:[%s1 + $0x2688] sm:$0xff]
  %v1285 = vld [vmem:[%s1 + $0x2690] sm:$0xff]
  %v1286 = vld [vmem:[%s1 + $0x2698] sm:$0xff]
  %v1287 = vld [vmem:[%s1 + $0x26a0] sm:$0xff]
  %v1288 = vld [vmem:[%s1 + $0x26a8] sm:$0xff]
  %v1289 = vld [vmem:[%s1 + $0x26b0] sm:$0xff]
  %v1290 = vld [vmem:[%s1 + $0x26b8] sm:$0xff]
  %v1291 = vld [vmem:[%s1 + $0x26c0] sm:$0xff]
  %v1292 = vld [vmem:[%s1 + $0x26c8] sm:$0xff]
  %v1293 = vld [vmem:[%s1 + $0x26d0] sm:$0xff]
  %v1294 = vld [vmem:[%s1 + $0x26d8] sm:$0xff]
  %v1295 = vld [vmem:[%s1 + $0x26e0] sm:$0xff]
  %v1296 = vld [vmem:[%s1 + $0x26e8] sm:$0xff]
  %v1297 = vld [vmem:[%s1 + $0x26f0] sm:$0xff]
  %v1298 = vld [vmem:[%s1 + $0x26f8] sm:$0xff]
  %v1299 = vld [vmem:[%s1 + $0x2700] sm:$0xff]
  %v1300 = vld [vmem:[%s1 + $0x2708] sm:$0xff]
  %v1301 = vld [vmem:[%s1 + $0x2710] sm:$0xff]
  %v1302 = vld [vmem:[%s1 + $0x2718] sm:$0xff]
  %v1303 = vld [vmem:[%s1 + $0x2720] sm:$0xff]
  %v1304 = vld [vmem:[%s1 + $0x2728] sm:$0xff]
  %v1305 = vld [vmem:[%s1 + $0x2730] sm:$0xff]
  %v1306 = vld [vmem:[%s1 + $0x2738] sm:$0xff]
  %v1307 = vld [vmem:[%s1 + $0x2740] sm:$0xff]
  %v1308 = vld [vmem:[%s1 + $0x2748] sm:$0xff]
  %v1309 = vld [vmem:[%s1 + $0x2750] sm:$0xff]
  %v1310 = vld [vmem:[%s1 + $0x2758] sm:$0xff]
  %v1311 = vld [vmem:[%s1 + $0x2760] sm:$0xff]
  %v1312 = vld [vmem:[%s1 + $0x2768] sm:$0xff]
  %v1313 = vld [vmem:[%s1 + $0x2770] sm:$0xff]
  %v1314 = vld [vmem:[%s1 + $0x2778] sm:$0xff]
  %v1315 = vld [vmem:[%s1 + $0x2780] sm:$0xff]
  %v1316 = vld [vmem:[%s1 + $0x2788] sm:$0xff]
  %v1317 = vld [vmem:[%s1 + $0x2790] sm:$0xff]
  %v1318 = vld [vmem:[%s1 + $0x2798] sm:$0xff]
  %v1319 = vld [vmem:[%s1 + $0x27a0] sm:$0xff]
  %v1320 = vld [vmem:[%s1 + $0x27a8] sm:$0xff]
  %v1321 = vld [vmem:[%s1 + $0x27b0] sm:$0xff]
  %v1322 = vld [vmem:[%s1 + $0x27b8] sm:$0xff]
  %v1323 = vld [vmem:[%s1 + $0x27c0] sm:$0xff]
  %v1324 = vld [vmem:[%s1 + $0x27c8] sm:$0xff]
  %v1325 = vld [vmem:[%s1 + $0x27d0] sm:$0xff]
  %v1326 = vld [vmem:[%s1 + $0x27d8] sm:$0xff]
  %v1327 = vld [vmem:[%s1 + $0x27e0] sm:$0xff]
  %v1328 = vld [vmem:[%s1 + $0x27e8] sm:$0xff]
  %v1329 = vld [vmem:[%s1 + $0x27f0] sm:$0xff]
  %v1330 = vld [vmem:[%s1 + $0x27f8] sm:$0xff]
  %v1331 = vld [vmem:[%s1 + $0x2800] sm:$0xff]
  %v1332 = vld [vmem:[%s1 + $0x2808] sm:$0xff]
  %v1333 = vld [vmem:[%s1 + $0x2810] sm:$0xff]
  %v1334 = vld [vmem:[%s1 + $0x2818] sm:$0xff]
  %v1335 = vld [vmem:[%s1 + $0x2820] sm:$0xff]
  %v1336 = vld [vmem:[%s1 + $0x2828] sm:$0xff]
  %v1337 = vld [vmem:[%s1 + $0x2830] sm:$0xff]
  %v1338 = vld [vmem:[%s1 + $0x2838] sm:$0xff]
  %v1339 = vld [vmem:[%s1 + $0x2840] sm:$0xff]
  %v1340 = vld [vmem:[%s1 + $0x2848] sm:$0xff]
  %v1341 = vld [vmem:[%s1 + $0x2850] sm:$0xff]
  %v1342 = vld [vmem:[%s1 + $0x2858] sm:$0xff]
  %v1343 = vld [vmem:[%s1 + $0x2860] sm:$0xff]
  %v1344 = vld [vmem:[%s1 + $0x2868] sm:$0xff]
  %v1345 = vld [vmem:[%s1 + $0x2870] sm:$0xff]
  %v1346 = vld [vmem:[%s1 + $0x2878] sm:$0xff]
  %v1347 = vld [vmem:[%s1 + $0x2880] sm:$0xff]
  %v1348 = vld [vmem:[%s1 + $0x2888] sm:$0xff]
  %v1349 = vld [vmem:[%s1 + $0x2890] sm:$0xff]
  %v1350 = vld [vmem:[%s1 + $0x2898] sm:$0xff]
  %v1351 = vld [vmem:[%s1 + $0x28a0] sm:$0xff]
  %v1352 = vld [vmem:[%s1 + $0x28a8] sm:$0xff]
  %v1353 = vld [vmem:[%s1 + $0x28b0] sm:$0xff]
  %v1354 = vld [vmem:[%s1 + $0x28b8] sm:$0xff]
  %v1355 = vld [vmem:[%s1 + $0x28c0] sm:$0xff]
  %v1356 = vld [vmem:[%s1 + $0x28c8] sm:$0xff]
  %v1357 = vld [vmem:[%s1 + $0x28d0] sm:$0xff]
  %v1358 = vld [vmem:[%s1 + $0x28d8] sm:$0xff]
  %v1359 = vld [vmem:[%s1 + $0x28e0] sm:$0xff]
  %v1360 = vld [vmem:[%s1 + $0x28e8] sm:$0xff]
  %v1361 = vld [vmem:[%s1 + $0x28f0] sm:$0xff]
  %v1362 = vld [vmem:[%s1 + $0x28f8] sm:$0xff]
  %v1363 = vld [vmem:[%s1 + $0x2900] sm:$0xff]
  %v1364 = vld [vmem:[%s1 + $0x2908] sm:$0xff]
  %v1365 = vld [vmem:[%s1 + $0x2910] sm:$0xff]
  %v1366 = vld [vmem:[%s1 + $0x2918] sm:$0xff]
  %v1367 = vld [vmem:[%s1 + $0x2920] sm:$0xff]
  %v1368 = vld [vmem:[%s1 + $0x2928] sm:$0xff]
  %v1369 = vld [vmem:[%s1 + $0x2930] sm:$0xff]
  %v1370 = vld [vmem:[%s1 + $0x2938] sm:$0xff]
  %v1371 = vld [vmem:[%s1 + $0x2940] sm:$0xff]
  %v1372 = vld [vmem:[%s1 + $0x2948] sm:$0xff]
  %v1373 = vld [vmem:[%s1 + $0x2950] sm:$0xff]
  %v1374 = vld [vmem:[%s1 + $0x2958] sm:$0xff]
  %v1375 = vld [vmem:[%s1 + $0x2960] sm:$0xff]
  %v1376 = vld [vmem:[%s1 + $0x2968] sm:$0xff]
  %v1377 = vld [vmem:[%s1 + $0x2970] sm:$0xff]
  %v1378 = vld [vmem:[%s1 + $0x2978] sm:$0xff]
  %v1379 = vld [vmem:[%s1 + $0x2980] sm:$0xff]
  %v1380 = vld [vmem:[%s1 + $0x2988] sm:$0xff]
  %v1381 = vld [vmem:[%s1 + $0x2990] sm:$0xff]
  %v1382 = vld [vmem:[%s1 + $0x2998] sm:$0xff]
  %v1383 = vld [vmem:[%s1 + $0x29a0] sm:$0xff]
  %v1384 = vld [vmem:[%s1 + $0x29a8] sm:$0xff]
  %v1385 = vld [vmem:[%s1 + $0x29b0] sm:$0xff]
  %v1386 = vld [vmem:[%s1 + $0x29b8] sm:$0xff]
  %v1387 = vld [vmem:[%s1 + $0x29c0] sm:$0xff]
  %v1388 = vld [vmem:[%s1 + $0x29c8] sm:$0xff]
  %v1389 = vld [vmem:[%s1 + $0x29d0] sm:$0xff]
  %v1390 = vld [vmem:[%s1 + $0x29d8] sm:$0xff]
  %v1391 = vld [vmem:[%s1 + $0x29e0] sm:$0xff]
  %v1392 = vld [vmem:[%s1 + $0x29e8] sm:$0xff]
  %v1393 = vld [vmem:[%s1 + $0x29f0] sm:$0xff]
  %v1394 = vld [vmem:[%s1 + $0x29f8] sm:$0xff]
  %v1395 = vld [vmem:[%s1 + $0x2a00] sm:$0xff]
  %v1396 = vld [vmem:[%s1 + $0x2a08] sm:$0xff]
  %v1397 = vld [vmem:[%s1 + $0x2a10] sm:$0xff]
  %v1398 = vld [vmem:[%s1 + $0x2a18] sm:$0xff]
  %v1399 = vld [vmem:[%s1 + $0x2a20] sm:$0xff]
  %v1400 = vld [vmem:[%s1 + $0x2a28] sm:$0xff]
  %v1401 = vld [vmem:[%s1 + $0x2a30] sm:$0xff]
  %v1402 = vld [vmem:[%s1 + $0x2a38] sm:$0xff]
  %v1403 = vld [vmem:[%s1 + $0x2a40] sm:$0xff]
  %v1404 = vld [vmem:[%s1 + $0x2a48] sm:$0xff]
  %v1405 = vld [vmem:[%s1 + $0x2a50] sm:$0xff]
  %v1406 = vld [vmem:[%s1 + $0x2a58] sm:$0xff]
  %v1407 = vld [vmem:[%s1 + $0x2a60] sm:$0xff]
  %v1408 = vld [vmem:[%s1 + $0x2a68] sm:$0xff]
  %v1409 = vld [vmem:[%s1 + $0x2a70] sm:$0xff]
  %v1410 = vld [vmem:[%s1 + $0x2a78] sm:$0xff]
  %v1411 = vld [vmem:[%s1 + $0x2a80] sm:$0xff]
  %v1412 = vld [vmem:[%s1 + $0x2a88] sm:$0xff]
  %v1413 = vld [vmem:[%s1 + $0x2a90] sm:$0xff]
  %v1414 = vld [vmem:[%s1 + $0x2a98] sm:$0xff]
  %v1415 = vld [vmem:[%s1 + $0x2aa0] sm:$0xff]
  %v1416 = vld [vmem:[%s1 + $0x2aa8] sm:$0xff]
  %v1417 = vld [vmem:[%s1 + $0x2ab0] sm:$0xff]
  %v1418 = vld [vmem:[%s1 + $0x2ab8] sm:$0xff]
  %v1419 = vld [vmem:[%s1 + $0x2ac0] sm:$0xff]
  %v1420 = vld [vmem:[%s1 + $0x2ac8] sm:$0xff]
  %v1421 = vld [vmem:[%s1 + $0x2ad0] sm:$0xff]
  %v1422 = vld [vmem:[%s1 + $0x2ad8] sm:$0xff]
  %v1423 = vld [vmem:[%s1 + $0x2ae0] sm:$0xff]
  %v1424 = vld [vmem:[%s1 + $0x2ae8] sm:$0xff]
  %v1425 = vld [vmem:[%s1 + $0x2af0] sm:$0xff]
  %v1426 = vld [vmem:[%s1 + $0x2af8] sm:$0xff]
  %v1427 = vld [vmem:[%s1 + $0x2b00] sm:$0xff]
  %v1428 = vld [vmem:[%s1 + $0x2b08] sm:$0xff]
  %v1429 = vld [vmem:[%s1 + $0x2b10] sm:$0xff]
  %v1430 = vld [vmem:[%s1 + $0x2b18] sm:$0xff]
  %v1431 = vld [vmem:[%s1 + $0x2b20] sm:$0xff]
  %v1432 = vld [vmem:[%s1 + $0x2b28] sm:$0xff]
  %v1433 = vld [vmem:[%s1 + $0x2b30] sm:$0xff]
  %v1434 = vld [vmem:[%s1 + $0x2b38] sm:$0xff]
  %v1435 = vld [vmem:[%s1 + $0x2b40] sm:$0xff]
  %v1436 = vld [vmem:[%s1 + $0x2b48] sm:$0xff]
  %v1437 = vld [vmem:[%s1 + $0x2b50] sm:$0xff]
  %v1438 = vld [vmem:[%s1 + $0x2b58] sm:$0xff]
  %v1439 = vld [vmem:[%s1 + $0x2b60] sm:$0xff]
  %v1440 = vld [vmem:[%s1 + $0x2b68] sm:$0xff]
  %v1441 = vld [vmem:[%s1 + $0x2b70] sm:$0xff]
  %v1442 = vld [vmem:[%s1 + $0x2b78] sm:$0xff]
  %v1443 = vld [vmem:[%s1 + $0x2b80] sm:$0xff]
  %v1444 = vld [vmem:[%s1 + $0x2b88] sm:$0xff]
  %v1445 = vld [vmem:[%s1 + $0x2b90] sm:$0xff]
  %v1446 = vld [vmem:[%s1 + $0x2b98] sm:$0xff]
  %v1447 = vld [vmem:[%s1 + $0x2ba0] sm:$0xff]
  %v1448 = vld [vmem:[%s1 + $0x2ba8] sm:$0xff]
  %v1449 = vld [vmem:[%s1 + $0x2bb0] sm:$0xff]
  %v1450 = vld [vmem:[%s1 + $0x2bb8] sm:$0xff]
  %v1451 = vld [vmem:[%s1 + $0x2bc0] sm:$0xff]
  %v1452 = vld [vmem:[%s1 + $0x2bc8] sm:$0xff]
  %v1453 = vld [vmem:[%s1 + $0x2bd0] sm:$0xff]
  %v1454 = vld [vmem:[%s1 + $0x2bd8] sm:$0xff]
  %v1455 = vld [vmem:[%s1 + $0x2be0] sm:$0xff]
  %v1456 = vld [vmem:[%s1 + $0x2be8] sm:$0xff]
  %v1457 = vld [vmem:[%s1 + $0x2bf0] sm:$0xff]
  %v1458 = vld [vmem:[%s1 + $0x2bf8] sm:$0xff]
  %v1459 = vld [vmem:[%s1 + $0x2c00] sm:$0xff]
  %v1460 = vld [vmem:[%s1 + $0x2c08] sm:$0xff]
  %v1461 = vld [vmem:[%s1 + $0x2c10] sm:$0xff]
  %v1462 = vld [vmem:[%s1 + $0x2c18] sm:$0xff]
  %v1463 = vld [vmem:[%s1 + $0x2c20] sm:$0xff]
  %v1464 = vld [vmem:[%s1 + $0x2c28] sm:$0xff]
  %v1465 = vld [vmem:[%s1 + $0x2c30] sm:$0xff]
  %v1466 = vld [vmem:[%s1 + $0x2c38] sm:$0xff]
  %v1467 = vld [vmem:[%s1 + $0x2c40] sm:$0xff]
  %v1468 = vld [vmem:[%s1 + $0x2c48] sm:$0xff]
  %v1469 = vld [vmem:[%s1 + $0x2c50] sm:$0xff]
  %v1470 = vld [vmem:[%s1 + $0x2c58] sm:$0xff]
  %v1471 = vld [vmem:[%s1 + $0x2c60] sm:$0xff]
  %v1472 = vld [vmem:[%s1 + $0x2c68] sm:$0xff]
  %v1473 = vld [vmem:[%s1 + $0x2c70] sm:$0xff]
  %v1474 = vld [vmem:[%s1 + $0x2c78] sm:$0xff]
  %v1475 = vld [vmem:[%s1 + $0x2c80] sm:$0xff]
  %v1476 = vld [vmem:[%s1 + $0x2c88] sm:$0xff]
  %v1477 = vld [vmem:[%s1 + $0x2c90] sm:$0xff]
  %v1478 = vld [vmem:[%s1 + $0x2c98] sm:$0xff]
  %v1479 = vld [vmem:[%s1 + $0x2ca0] sm:$0xff]
  %v1480 = vld [vmem:[%s1 + $0x2ca8] sm:$0xff]
  %v1481 = vld [vmem:[%s1 + $0x2cb0] sm:$0xff]
  %v1482 = vld [vmem:[%s1 + $0x2cb8] sm:$0xff]
  %v1483 = vld [vmem:[%s1 + $0x2cc0] sm:$0xff]
  %v1484 = vld [vmem:[%s1 + $0x2cc8] sm:$0xff]
  %v1485 = vld [vmem:[%s1 + $0x2cd0] sm:$0xff]
  %v1486 = vld [vmem:[%s1 + $0x2cd8] sm:$0xff]
  %v1487 = vld [vmem:[%s1 + $0x2ce0] sm:$0xff]
  %v1488 = vld [vmem:[%s1 + $0x2ce8] sm:$0xff]
  %v1489 = vld [vmem:[%s1 + $0x2cf0] sm:$0xff]
  %v1490 = vld [vmem:[%s1 + $0x2cf8] sm:$0xff]
  %v1491 = vld [vmem:[%s1 + $0x2d00] sm:$0xff]
  %v1492 = vld [vmem:[%s1 + $0x2d08] sm:$0xff]
  %v1493 = vld [vmem:[%s1 + $0x2d10] sm:$0xff]
  %v1494 = vld [vmem:[%s1 + $0x2d18] sm:$0xff]
  %v1495 = vld [vmem:[%s1 + $0x2d20] sm:$0xff]
  %v1496 = vld [vmem:[%s1 + $0x2d28] sm:$0xff]
  %v1497 = vld [vmem:[%s1 + $0x2d30] sm:$0xff]
  %v1498 = vld [vmem:[%s1 + $0x2d38] sm:$0xff]
  %v1499 = vld [vmem:[%s1 + $0x2d40] sm:$0xff]
  %v1500 = vld [vmem:[%s1 + $0x2d48] sm:$0xff]
  %v1501 = vld [vmem:[%s1 + $0x2d50] sm:$0xff]
  %v1502 = vld [vmem:[%s1 + $0x2d58] sm:$0xff]
  %v1503 = vld [vmem:[%s1 + $0x2d60] sm:$0xff]
  %v1504 = vld [vmem:[%s1 + $0x2d68] sm:$0xff]
  %v1505 = vld [vmem:[%s1 + $0x2d70] sm:$0xff]
  %v1506 = vld [vmem:[%s1 + $0x2d78] sm:$0xff]
  %v1507 = vld [vmem:[%s1 + $0x2d80] sm:$0xff]
  %v1508 = vld [vmem:[%s1 + $0x2d88] sm:$0xff]
  %v1509 = vld [vmem:[%s1 + $0x2d90] sm:$0xff]
  %v1510 = vld [vmem:[%s1 + $0x2d98] sm:$0xff]
  %v1511 = vld [vmem:[%s1 + $0x2da0] sm:$0xff]
  %v1512 = vld [vmem:[%s1 + $0x2da8] sm:$0xff]
  %v1513 = vld [vmem:[%s1 + $0x2db0] sm:$0xff]
  %v1514 = vld [vmem:[%s1 + $0x2db8] sm:$0xff]
  %v1515 = vld [vmem:[%s1 + $0x2dc0] sm:$0xff]
  %v1516 = vld [vmem:[%s1 + $0x2dc8] sm:$0xff]
  %v1517 = vld [vmem:[%s1 + $0x2dd0] sm:$0xff]
  %v1518 = vld [vmem:[%s1 + $0x2dd8] sm:$0xff]
  %v1519 = vld [vmem:[%s1 + $0x2de0] sm:$0xff]
  %v1520 = vld [vmem:[%s1 + $0x2de8] sm:$0xff]
  %v1521 = vld [vmem:[%s1 + $0x2df0] sm:$0xff]
  %v1522 = vld [vmem:[%s1 + $0x2df8] sm:$0xff]
  %v1523 = vld [vmem:[%s1 + $0x2e00] sm:$0xff]
  %v1524 = vld [vmem:[%s1 + $0x2e08] sm:$0xff]
  %v1525 = vld [vmem:[%s1 + $0x2e10] sm:$0xff]
  %v1526 = vld [vmem:[%s1 + $0x2e18] sm:$0xff]
  %v1527 = vld [vmem:[%s1 + $0x2e20] sm:$0xff]
  %v1528 = vld [vmem:[%s1 + $0x2e28] sm:$0xff]
  %v1529 = vld [vmem:[%s1 + $0x2e30] sm:$0xff]
  %v1530 = vld [vmem:[%s1 + $0x2e38] sm:$0xff]
  %v1531 = vld [vmem:[%s1 + $0x2e40] sm:$0xff]
  %v1532 = vld [vmem:[%s1 + $0x2e48] sm:$0xff]
  %v1533 = vld [vmem:[%s1 + $0x2e50] sm:$0xff]
  %v1534 = vld [vmem:[%s1 + $0x2e58] sm:$0xff]
  %v1535 = vld [vmem:[%s1 + $0x2e60] sm:$0xff]
  %v1536 = vld [vmem:[%s1 + $0x2e68] sm:$0xff]
  %v1537 = vld [vmem:[%s1 + $0x2e70] sm:$0xff]
  %v1538 = vld [vmem:[%s1 + $0x2e78] sm:$0xff]
  %v1539 = vld [vmem:[%s1 + $0x2e80] sm:$0xff]
  %v1540 = vld [vmem:[%s1 + $0x2e88] sm:$0xff]
  %v1541 = vld [vmem:[%s1 + $0x2e90] sm:$0xff]
  %v1542 = vld [vmem:[%s1 + $0x2e98] sm:$0xff]
  %v1543 = vld [vmem:[%s1 + $0x2ea0] sm:$0xff]
  %v1544 = vld [vmem:[%s1 + $0x2ea8] sm:$0xff]
  %v1545 = vld [vmem:[%s1 + $0x2eb0] sm:$0xff]
  %v1546 = vld [vmem:[%s1 + $0x2eb8] sm:$0xff]
  %v1547 = vld [vmem:[%s1 + $0x2ec0] sm:$0xff]
  %v1548 = vld [vmem:[%s1 + $0x2ec8] sm:$0xff]
  %v1549 = vld [vmem:[%s1 + $0x2ed0] sm:$0xff]
  %v1550 = vld [vmem:[%s1 + $0x2ed8] sm:$0xff]
  %v1551 = vld [vmem:[%s1 + $0x2ee0] sm:$0xff]
  %v1552 = vld [vmem:[%s1 + $0x2ee8] sm:$0xff]
  %v1553 = vld [vmem:[%s1 + $0x2ef0] sm:$0xff]
  %v1554 = vld [vmem:[%s1 + $0x2ef8] sm:$0xff]
  %v1555 = vld [vmem:[%s1 + $0x2f00] sm:$0xff]
  %v1556 = vld [vmem:[%s1 + $0x2f08] sm:$0xff]
  %v1557 = vld [vmem:[%s1 + $0x2f10] sm:$0xff]
  %v1558 = vld [vmem:[%s1 + $0x2f18] sm:$0xff]
  %v1559 = vld [vmem:[%s1 + $0x2f20] sm:$0xff]
  %v1560 = vld [vmem:[%s1 + $0x2f28] sm:$0xff]
  %v1561 = vld [vmem:[%s1 + $0x2f30] sm:$0xff]
  %v1562 = vld [vmem:[%s1 + $0x2f38] sm:$0xff]
  %v1563 = vld [vmem:[%s1 + $0x2f40] sm:$0xff]
  %v1564 = vld [vmem:[%s1 + $0x2f48] sm:$0xff]
  %v1565 = vld [vmem:[%s1 + $0x2f50] sm:$0xff]
  %v1566 = vld [vmem:[%s1 + $0x2f58] sm:$0xff]
  %v1567 = vld [vmem:[%s1 + $0x2f60] sm:$0xff]
  %v1568 = vld [vmem:[%s1 + $0x2f68] sm:$0xff]
  %v1569 = vld [vmem:[%s1 + $0x2f70] sm:$0xff]
  %v1570 = vld [vmem:[%s1 + $0x2f78] sm:$0xff]
  %v1571 = vld [vmem:[%s1 + $0x2f80] sm:$0xff]
  %v1572 = vld [vmem:[%s1 + $0x2f88] sm:$0xff]
  %v1573 = vld [vmem:[%s1 + $0x2f90] sm:$0xff]
  %v1574 = vld [vmem:[%s1 + $0x2f98] sm:$0xff]
  %v1575 = vld [vmem:[%s1 + $0x2fa0] sm:$0xff]
  %v1576 = vld [vmem:[%s1 + $0x2fa8] sm:$0xff]
  %v1577 = vld [vmem:[%s1 + $0x2fb0] sm:$0xff]
  %v1578 = vld [vmem:[%s1 + $0x2fb8] sm:$0xff]
  %v1579 = vld [vmem:[%s1 + $0x2fc0] sm:$0xff]
  %v1580 = vld [vmem:[%s1 + $0x2fc8] sm:$0xff]
  %v1581 = vld [vmem:[%s1 + $0x2fd0] sm:$0xff]
  %v1582 = vld [vmem:[%s1 + $0x2fd8] sm:$0xff]
  %v1583 = vld [vmem:[%s1 + $0x2fe0] sm:$0xff]
  %v1584 = vld [vmem:[%s1 + $0x2fe8] sm:$0xff]
  %v1585 = vld [vmem:[%s1 + $0x2ff0] sm:$0xff]
  %v1586 = vld [vmem:[%s1 + $0x2ff8] sm:$0xff]
  %v1587 = vld [vmem:[%s1 + $0x3000] sm:$0xff]
  %v1588 = vld [vmem:[%s1 + $0x3008] sm:$0xff]
  %v1589 = vld [vmem:[%s1 + $0x3010] sm:$0xff]
  %v1590 = vld [vmem:[%s1 + $0x3018] sm:$0xff]
  %v1591 = vld [vmem:[%s1 + $0x3020] sm:$0xff]
  %v1592 = vld [vmem:[%s1 + $0x3028] sm:$0xff]
  %v1593 = vld [vmem:[%s1 + $0x3030] sm:$0xff]
  %v1594 = vld [vmem:[%s1 + $0x3038] sm:$0xff]
  %v1595 = vld [vmem:[%s1 + $0x3040] sm:$0xff]
  %v1596 = vld [vmem:[%s1 + $0x3048] sm:$0xff]
  %v1597 = vld [vmem:[%s1 + $0x3050] sm:$0xff]
  %v1598 = vld [vmem:[%s1 + $0x3058] sm:$0xff]
  %v1599 = vld [vmem:[%s1 + $0x3060] sm:$0xff]
  %v1600 = vld [vmem:[%s1 + $0x3068] sm:$0xff]
  %v1601 = vld [vmem:[%s1 + $0x3070] sm:$0xff]
  %v1602 = vld [vmem:[%s1 + $0x3078] sm:$0xff]
  %v1603 = vld [vmem:[%s1 + $0x3080] sm:$0xff]
  %v1604 = vld [vmem:[%s1 + $0x3088] sm:$0xff]
  %v1605 = vld [vmem:[%s1 + $0x3090] sm:$0xff]
  %v1606 = vld [vmem:[%s1 + $0x3098] sm:$0xff]
  %v1607 = vld [vmem:[%s1 + $0x30a0] sm:$0xff]
  %v1608 = vld [vmem:[%s1 + $0x30a8] sm:$0xff]
  %v1609 = vld [vmem:[%s1 + $0x30b0] sm:$0xff]
  %v1610 = vld [vmem:[%s1 + $0x30b8] sm:$0xff]
  %v1611 = vld [vmem:[%s1 + $0x30c0] sm:$0xff]
  %v1612 = vld [vmem:[%s1 + $0x30c8] sm:$0xff]
  %v1613 = vld [vmem:[%s1 + $0x30d0] sm:$0xff]
  %v1614 = vld [vmem:[%s1 + $0x30d8] sm:$0xff]
  %v1615 = vld [vmem:[%s1 + $0x30e0] sm:$0xff]
  %v1616 = vld [vmem:[%s1 + $0x30e8] sm:$0xff]
  %v1617 = vld [vmem:[%s1 + $0x30f0] sm:$0xff]
  %v1618 = vld [vmem:[%s1 + $0x30f8] sm:$0xff]
  %v1619 = vld [vmem:[%s1 + $0x3100] sm:$0xff]
  %v1620 = vld [vmem:[%s1 + $0x3108] sm:$0xff]
  %v1621 = vld [vmem:[%s1 + $0x3110] sm:$0xff]
  %v1622 = vld [vmem:[%s1 + $0x3118] sm:$0xff]
  %v1623 = vld [vmem:[%s1 + $0x3120] sm:$0xff]
  %v1624 = vld [vmem:[%s1 + $0x3128] sm:$0xff]
  %v1625 = vld [vmem:[%s1 + $0x3130] sm:$0xff]
  %v1626 = vld [vmem:[%s1 + $0x3138] sm:$0xff]
  %v1627 = vld [vmem:[%s1 + $0x3140] sm:$0xff]
  %v1628 = vld [vmem:[%s1 + $0x3148] sm:$0xff]
  %v1629 = vld [vmem:[%s1 + $0x3150] sm:$0xff]
  %v1630 = vld [vmem:[%s1 + $0x3158] sm:$0xff]
  %v1631 = vld [vmem:[%s1 + $0x3160] sm:$0xff]
  %v1632 = vld [vmem:[%s1 + $0x3168] sm:$0xff]
  %v1633 = vld [vmem:[%s1 + $0x3170] sm:$0xff]
  %v1634 = vld [vmem:[%s1 + $0x3178] sm:$0xff]
  %v1635 = vld [vmem:[%s1 + $0x3180] sm:$0xff]
  %v1636 = vld [vmem:[%s1 + $0x3188] sm:$0xff]
  %v1637 = vld [vmem:[%s1 + $0x3190] sm:$0xff]
  %v1638 = vld [vmem:[%s1 + $0x3198] sm:$0xff]
  %v1639 = vld [vmem:[%s1 + $0x31a0] sm:$0xff]
  %v1640 = vld [vmem:[%s1 + $0x31a8] sm:$0xff]
  %v1641 = vld [vmem:[%s1 + $0x31b0] sm:$0xff]
  %v1642 = vld [vmem:[%s1 + $0x31b8] sm:$0xff]
  %v1643 = vld [vmem:[%s1 + $0x31c0] sm:$0xff]
  %v1644 = vld [vmem:[%s1 + $0x31c8] sm:$0xff]
  %v1645 = vld [vmem:[%s1 + $0x31d0] sm:$0xff]
  %v1646 = vld [vmem:[%s1 + $0x31d8] sm:$0xff]
  %v1647 = vld [vmem:[%s1 + $0x31e0] sm:$0xff]
  %v1648 = vld [vmem:[%s1 + $0x31e8] sm:$0xff]
  %v1649 = vld [vmem:[%s1 + $0x31f0] sm:$0xff]
  %v1650 = vld [vmem:[%s1 + $0x31f8] sm:$0xff]
  %v1651 = vld [vmem:[%s1 + $0x3200] sm:$0xff]
  %v1652 = vld [vmem:[%s1 + $0x3208] sm:$0xff]
  %v1653 = vld [vmem:[%s1 + $0x3210] sm:$0xff]
  %v1654 = vld [vmem:[%s1 + $0x3218] sm:$0xff]
  %v1655 = vld [vmem:[%s1 + $0x3220] sm:$0xff]
  %v1656 = vld [vmem:[%s1 + $0x3228] sm:$0xff]
  %v1657 = vld [vmem:[%s1 + $0x3230] sm:$0xff]
  %v1658 = vld [vmem:[%s1 + $0x3238] sm:$0xff]
  %v1659 = vld [vmem:[%s1 + $0x3240] sm:$0xff]
  %v1660 = vld [vmem:[%s1 + $0x3248] sm:$0xff]
  %v1661 = vld [vmem:[%s1 + $0x3250] sm:$0xff]
  %v1662 = vld [vmem:[%s1 + $0x3258] sm:$0xff]
  %v1663 = vld [vmem:[%s1 + $0x3260] sm:$0xff]
  %v1664 = vld [vmem:[%s1 + $0x3268] sm:$0xff]
  %v1665 = vld [vmem:[%s1 + $0x3270] sm:$0xff]
  %v1666 = vld [vmem:[%s1 + $0x3278] sm:$0xff]
  %v1667 = vld [vmem:[%s1 + $0x3280] sm:$0xff]
  %v1668 = vld [vmem:[%s1 + $0x3288] sm:$0xff]
  %v1669 = vld [vmem:[%s1 + $0x3290] sm:$0xff]
  %v1670 = vld [vmem:[%s1 + $0x3298] sm:$0xff]
  %v1671 = vld [vmem:[%s1 + $0x32a0] sm:$0xff]
  %v1672 = vld [vmem:[%s1 + $0x32a8] sm:$0xff]
  %v1673 = vld [vmem:[%s1 + $0x32b0] sm:$0xff]
  %v1674 = vld [vmem:[%s1 + $0x32b8] sm:$0xff]
  %v1675 = vld [vmem:[%s1 + $0x32c0] sm:$0xff]
  %v1676 = vld [vmem:[%s1 + $0x32c8] sm:$0xff]
  %v1677 = vld [vmem:[%s1 + $0x32d0] sm:$0xff]
  %v1678 = vld [vmem:[%s1 + $0x32d8] sm:$0xff]
  %v1679 = vld [vmem:[%s1 + $0x32e0] sm:$0xff]
  %v1680 = vld [vmem:[%s1 + $0x32e8] sm:$0xff]
  %v1681 = vld [vmem:[%s1 + $0x32f0] sm:$0xff]
  %v1682 = vld [vmem:[%s1 + $0x32f8] sm:$0xff]
  %v1683 = vld [vmem:[%s1 + $0x3300] sm:$0xff]
  %v1684 = vld [vmem:[%s1 + $0x3308] sm:$0xff]
  %v1685 = vld [vmem:[%s1 + $0x3310] sm:$0xff]
  %v1686 = vld [vmem:[%s1 + $0x3318] sm:$0xff]
  %v1687 = vld [vmem:[%s1 + $0x3320] sm:$0xff]
  %v1688 = vld [vmem:[%s1 + $0x3328] sm:$0xff]
  %v1689 = vld [vmem:[%s1 + $0x3330] sm:$0xff]
  %v1690 = vld [vmem:[%s1 + $0x3338] sm:$0xff]
  %v1691 = vld [vmem:[%s1 + $0x3340] sm:$0xff]
  %v1692 = vld [vmem:[%s1 + $0x3348] sm:$0xff]
  %v1693 = vld [vmem:[%s1 + $0x3350] sm:$0xff]
  %v1694 = vld [vmem:[%s1 + $0x3358] sm:$0xff]
  %v1695 = vld [vmem:[%s1 + $0x3360] sm:$0xff]
  %v1696 = vld [vmem:[%s1 + $0x3368] sm:$0xff]
  %v1697 = vld [vmem:[%s1 + $0x3370] sm:$0xff]
  %v1698 = vld [vmem:[%s1 + $0x3378] sm:$0xff]
  %v1699 = vld [vmem:[%s1 + $0x3380] sm:$0xff]
  %v1700 = vld [vmem:[%s1 + $0x3388] sm:$0xff]
  %v1701 = vld [vmem:[%s1 + $0x3390] sm:$0xff]
  %v1702 = vld [vmem:[%s1 + $0x3398] sm:$0xff]
  %v1703 = vld [vmem:[%s1 + $0x33a0] sm:$0xff]
  %v1704 = vld [vmem:[%s1 + $0x33a8] sm:$0xff]
  %v1705 = vld [vmem:[%s1 + $0x33b0] sm:$0xff]
  %v1706 = vld [vmem:[%s1 + $0x33b8] sm:$0xff]
  %v1707 = vld [vmem:[%s1 + $0x33c0] sm:$0xff]
  %v1708 = vld [vmem:[%s1 + $0x33c8] sm:$0xff]
  %v1709 = vld [vmem:[%s1 + $0x33d0] sm:$0xff]
  %v1710 = vld [vmem:[%s1 + $0x33d8] sm:$0xff]
  %v1711 = vld [vmem:[%s1 + $0x33e0] sm:$0xff]
  %v1712 = vld [vmem:[%s1 + $0x33e8] sm:$0xff]
  %v1713 = vld [vmem:[%s1 + $0x33f0] sm:$0xff]
  %v1714 = vld [vmem:[%s1 + $0x33f8] sm:$0xff]
  %v1715 = vld [vmem:[%s1 + $0x3400] sm:$0xff]
  %v1716 = vld [vmem:[%s1 + $0x3408] sm:$0xff]
  %v1717 = vld [vmem:[%s1 + $0x3410] sm:$0xff]
  %v1718 = vld [vmem:[%s1 + $0x3418] sm:$0xff]
  %v1719 = vld [vmem:[%s1 + $0x3420] sm:$0xff]
  %v1720 = vld [vmem:[%s1 + $0x3428] sm:$0xff]
  %v1721 = vld [vmem:[%s1 + $0x3430] sm:$0xff]
  %v1722 = vld [vmem:[%s1 + $0x3438] sm:$0xff]
  %v1723 = vld [vmem:[%s1 + $0x3440] sm:$0xff]
  %v1724 = vld [vmem:[%s1 + $0x3448] sm:$0xff]
  %v1725 = vld [vmem:[%s1 + $0x3450] sm:$0xff]
  %v1726 = vld [vmem:[%s1 + $0x3458] sm:$0xff]
  %v1727 = vld [vmem:[%s1 + $0x3460] sm:$0xff]
  %v1728 = vld [vmem:[%s1 + $0x3468] sm:$0xff]
  %v1729 = vld [vmem:[%s1 + $0x3470] sm:$0xff]
  %v1730 = vld [vmem:[%s1 + $0x3478] sm:$0xff]
  %v1731 = vld [vmem:[%s1 + $0x3480] sm:$0xff]
  %v1732 = vld [vmem:[%s1 + $0x3488] sm:$0xff]
  %v1733 = vld [vmem:[%s1 + $0x3490] sm:$0xff]
  %v1734 = vld [vmem:[%s1 + $0x3498] sm:$0xff]
  %v1735 = vld [vmem:[%s1 + $0x34a0] sm:$0xff]
  %v1736 = vld [vmem:[%s1 + $0x34a8] sm:$0xff]
  %v1737 = vld [vmem:[%s1 + $0x34b0] sm:$0xff]
  %v1738 = vld [vmem:[%s1 + $0x34b8] sm:$0xff]
  %v1739 = vld [vmem:[%s1 + $0x34c0] sm:$0xff]
  %v1740 = vld [vmem:[%s1 + $0x34c8] sm:$0xff]
  %v1741 = vld [vmem:[%s1 + $0x34d0] sm:$0xff]
  %v1742 = vld [vmem:[%s1 + $0x34d8] sm:$0xff]
  %v1743 = vld [vmem:[%s1 + $0x34e0] sm:$0xff]
  %v1744 = vld [vmem:[%s1 + $0x34e8] sm:$0xff]
  %v1745 = vld [vmem:[%s1 + $0x34f0] sm:$0xff]
  %v1746 = vld [vmem:[%s1 + $0x34f8] sm:$0xff]
  %v1747 = vld [vmem:[%s1 + $0x3500] sm:$0xff]
  %v1748 = vld [vmem:[%s1 + $0x3508] sm:$0xff]
  %v1749 = vld [vmem:[%s1 + $0x3510] sm:$0xff]
  %v1750 = vld [vmem:[%s1 + $0x3518] sm:$0xff]
  %v1751 = vld [vmem:[%s1 + $0x3520] sm:$0xff]
  %v1752 = vld [vmem:[%s1 + $0x3528] sm:$0xff]
  %v1753 = vld [vmem:[%s1 + $0x3530] sm:$0xff]
  %v1754 = vld [vmem:[%s1 + $0x3538] sm:$0xff]
  %v1755 = vld [vmem:[%s1 + $0x3540] sm:$0xff]
  %v1756 = vld [vmem:[%s1 + $0x3548] sm:$0xff]
  %v1757 = vld [vmem:[%s1 + $0x3550] sm:$0xff]
  %v1758 = vld [vmem:[%s1 + $0x3558] sm:$0xff]
  %v1759 = vld [vmem:[%s1 + $0x3560] sm:$0xff]
  %v1760 = vld [vmem:[%s1 + $0x3568] sm:$0xff]
  %v1761 = vld [vmem:[%s1 + $0x3570] sm:$0xff]
  %v1762 = vld [vmem:[%s1 + $0x3578] sm:$0xff]
  %v1763 = vld [vmem:[%s1 + $0x3580] sm:$0xff]
  %v1764 = vld [vmem:[%s1 + $0x3588] sm:$0xff]
  %v1765 = vld [vmem:[%s1 + $0x3590] sm:$0xff]
  %v1766 = vld [vmem:[%s1 + $0x3598] sm:$0xff]
  %v1767 = vld [vmem:[%s1 + $0x35a0] sm:$0xff]
  %v1768 = vld [vmem:[%s1 + $0x35a8] sm:$0xff]
  %v1769 = vld [vmem:[%s1 + $0x35b0] sm:$0xff]
  %v1770 = vld [vmem:[%s1 + $0x35b8] sm:$0xff]
  %v1771 = vld [vmem:[%s1 + $0x35c0] sm:$0xff]
  %v1772 = vld [vmem:[%s1 + $0x35c8] sm:$0xff]
  %v1773 = vld [vmem:[%s1 + $0x35d0] sm:$0xff]
  %v1774 = vld [vmem:[%s1 + $0x35d8] sm:$0xff]
  %v1775 = vld [vmem:[%s1 + $0x35e0] sm:$0xff]
  %v1776 = vld [vmem:[%s1 + $0x35e8] sm:$0xff]
  %v1777 = vld [vmem:[%s1 + $0x35f0] sm:$0xff]
  %v1778 = vld [vmem:[%s1 + $0x35f8] sm:$0xff]
  %v1779 = vld [vmem:[%s1 + $0x3600] sm:$0xff]
  %v1780 = vld [vmem:[%s1 + $0x3608] sm:$0xff]
  %v1781 = vld [vmem:[%s1 + $0x3610] sm:$0xff]
  %v1782 = vld [vmem:[%s1 + $0x3618] sm:$0xff]
  %v1783 = vld [vmem:[%s1 + $0x3620] sm:$0xff]
  %v1784 = vld [vmem:[%s1 + $0x3628] sm:$0xff]
  %v1785 = vld [vmem:[%s1 + $0x3630] sm:$0xff]
  %v1786 = vld [vmem:[%s1 + $0x3638] sm:$0xff]
  %v1787 = vld [vmem:[%s1 + $0x3640] sm:$0xff]
  %v1788 = vld [vmem:[%s1 + $0x3648] sm:$0xff]
  %v1789 = vld [vmem:[%s1 + $0x3650] sm:$0xff]
  %v1790 = vld [vmem:[%s1 + $0x3658] sm:$0xff]
  %v1791 = vld [vmem:[%s1 + $0x3660] sm:$0xff]
  %v1792 = vld [vmem:[%s1 + $0x3668] sm:$0xff]
  %v1793 = vld [vmem:[%s1 + $0x3670] sm:$0xff]
  %v1794 = vld [vmem:[%s1 + $0x3678] sm:$0xff]
  %v1795 = vld [vmem:[%s1 + $0x3680] sm:$0xff]
  %v1796 = vld [vmem:[%s1 + $0x3688] sm:$0xff]
  %v1797 = vld [vmem:[%s1 + $0x3690] sm:$0xff]
  %v1798 = vld [vmem:[%s1 + $0x3698] sm:$0xff]
  %v1799 = vld [vmem:[%s1 + $0x36a0] sm:$0xff]
  %v1800 = vld [vmem:[%s1 + $0x36a8] sm:$0xff]
  %v1801 = vld [vmem:[%s1 + $0x36b0] sm:$0xff]
  %v1802 = vld [vmem:[%s1 + $0x36b8] sm:$0xff]
  %v1803 = vld [vmem:[%s1 + $0x36c0] sm:$0xff]
  %v1804 = vld [vmem:[%s1 + $0x36c8] sm:$0xff]
  %v1805 = vld [vmem:[%s1 + $0x36d0] sm:$0xff]
  %v1806 = vld [vmem:[%s1 + $0x36d8] sm:$0xff]
  %v1807 = vld [vmem:[%s1 + $0x36e0] sm:$0xff]
  %v1808 = vld [vmem:[%s1 + $0x36e8] sm:$0xff]
  %v1809 = vld [vmem:[%s1 + $0x36f0] sm:$0xff]
  %v1810 = vld [vmem:[%s1 + $0x36f8] sm:$0xff]
  %v1811 = vld [vmem:[%s1 + $0x3700] sm:$0xff]
  %v1812 = vld [vmem:[%s1 + $0x3708] sm:$0xff]
  %v1813 = vld [vmem:[%s1 + $0x3710] sm:$0xff]
  %v1814 = vld [vmem:[%s1 + $0x3718] sm:$0xff]
  %v1815 = vld [vmem:[%s1 + $0x3720] sm:$0xff]
  %v1816 = vld [vmem:[%s1 + $0x3728] sm:$0xff]
  %v1817 = vld [vmem:[%s1 + $0x3730] sm:$0xff]
  %v1818 = vld [vmem:[%s1 + $0x3738] sm:$0xff]
  %v1819 = vld [vmem:[%s1 + $0x3740] sm:$0xff]
  %v1820 = vld [vmem:[%s1 + $0x3748] sm:$0xff]
  %v1821 = vld [vmem:[%s1 + $0x3750] sm:$0xff]
  %v1822 = vld [vmem:[%s1 + $0x3758] sm:$0xff]
  %v1823 = vld [vmem:[%s1 + $0x3760] sm:$0xff]
  %v1824 = vld [vmem:[%s1 + $0x3768] sm:$0xff]
  %v1825 = vld [vmem:[%s1 + $0x3770] sm:$0xff]
  %v1826 = vld [vmem:[%s1 + $0x3778] sm:$0xff]
  %v1827 = vld [vmem:[%s1 + $0x3780] sm:$0xff]
  %v1828 = vld [vmem:[%s1 + $0x3788] sm:$0xff]
  %v1829 = vld [vmem:[%s1 + $0x3790] sm:$0xff]
  %v1830 = vld [vmem:[%s1 + $0x3798] sm:$0xff]
  %v1831 = vld [vmem:[%s1 + $0x37a0] sm:$0xff]
  %v1832 = vld [vmem:[%s1 + $0x37a8] sm:$0xff]
  %v1833 = vld [vmem:[%s1 + $0x37b0] sm:$0xff]
  %v1834 = vld [vmem:[%s1 + $0x37b8] sm:$0xff]
  %v1835 = vld [vmem:[%s1 + $0x37c0] sm:$0xff]
  %v1836 = vld [vmem:[%s1 + $0x37c8] sm:$0xff]
  %v1837 = vld [vmem:[%s1 + $0x37d0] sm:$0xff]
  %v1838 = vld [vmem:[%s1 + $0x37d8] sm:$0xff]
  %v1839 = vld [vmem:[%s1 + $0x37e0] sm:$0xff]
  %v1840 = vld [vmem:[%s1 + $0x37e8] sm:$0xff]
  %v1841 = vld [vmem:[%s1 + $0x37f0] sm:$0xff]
  %v1842 = vld [vmem:[%s1 + $0x37f8] sm:$0xff]
  %v1843 = vld [vmem:[%s1 + $0x3800] sm:$0xff]
  %v1844 = vld [vmem:[%s1 + $0x3808] sm:$0xff]
  %v1845 = vld [vmem:[%s1 + $0x3810] sm:$0xff]
  %v1846 = vld [vmem:[%s1 + $0x3818] sm:$0xff]
  %v1847 = vld [vmem:[%s1 + $0x3820] sm:$0xff]
  %v1848 = vld [vmem:[%s1 + $0x3828] sm:$0xff]
  %v1849 = vld [vmem:[%s1 + $0x3830] sm:$0xff]
  %v1850 = vld [vmem:[%s1 + $0x3838] sm:$0xff]
  %v1851 = vld [vmem:[%s1 + $0x3840] sm:$0xff]
  %v1852 = vld [vmem:[%s1 + $0x3848] sm:$0xff]
  %v1853 = vld [vmem:[%s1 + $0x3850] sm:$0xff]
  %v1854 = vld [vmem:[%s1 + $0x3858] sm:$0xff]
  %v1855 = vld [vmem:[%s1 + $0x3860] sm:$0xff]
  %v1856 = vld [vmem:[%s1 + $0x3868] sm:$0xff]
  %v1857 = vld [vmem:[%s1 + $0x3870] sm:$0xff]
  %v1858 = vld [vmem:[%s1 + $0x3878] sm:$0xff]
  %v1859 = vld [vmem:[%s1 + $0x3880] sm:$0xff]
  %v1860 = vld [vmem:[%s1 + $0x3888] sm:$0xff]
  %v1861 = vld [vmem:[%s1 + $0x3890] sm:$0xff]
  %v1862 = vld [vmem:[%s1 + $0x3898] sm:$0xff]
  %v1863 = vld [vmem:[%s1 + $0x38a0] sm:$0xff]
  %v1864 = vld [vmem:[%s1 + $0x38a8] sm:$0xff]
  %v1865 = vld [vmem:[%s1 + $0x38b0] sm:$0xff]
  %v1866 = vld [vmem:[%s1 + $0x38b8] sm:$0xff]
  %v1867 = vld [vmem:[%s1 + $0x38c0] sm:$0xff]
  %v1868 = vld [vmem:[%s1 + $0x38c8] sm:$0xff]
  %v1869 = vld [vmem:[%s1 + $0x38d0] sm:$0xff]
  %v1870 = vld [vmem:[%s1 + $0x38d8] sm:$0xff]
  %v1871 = vld [vmem:[%s1 + $0x38e0] sm:$0xff]
  %v1872 = vld [vmem:[%s1 + $0x38e8] sm:$0xff]
  %v1873 = vld [vmem:[%s1 + $0x38f0] sm:$0xff]
  %v1874 = vld [vmem:[%s1 + $0x38f8] sm:$0xff]
  %v1875 = vld [vmem:[%s1 + $0x3900] sm:$0xff]
  %v1876 = vld [vmem:[%s1 + $0x3908] sm:$0xff]
  %v1877 = vld [vmem:[%s1 + $0x3910] sm:$0xff]
  %v1878 = vld [vmem:[%s1 + $0x3918] sm:$0xff]
  %v1879 = vld [vmem:[%s1 + $0x3920] sm:$0xff]
  %v1880 = vld [vmem:[%s1 + $0x3928] sm:$0xff]
  %v1881 = vld [vmem:[%s1 + $0x3930] sm:$0xff]
  %v1882 = vld [vmem:[%s1 + $0x3938] sm:$0xff]
  %v1883 = vld [vmem:[%s1 + $0x3940] sm:$0xff]
  %v1884 = vld [vmem:[%s1 + $0x3948] sm:$0xff]
  %v1885 = vld [vmem:[%s1 + $0x3950] sm:$0xff]
  %v1886 = vld [vmem:[%s1 + $0x3958] sm:$0xff]
  %v1887 = vld [vmem:[%s1 + $0x3960] sm:$0xff]
  %v1888 = vld [vmem:[%s1 + $0x3968] sm:$0xff]
  %v1889 = vld [vmem:[%s1 + $0x3970] sm:$0xff]
  %v1890 = vld [vmem:[%s1 + $0x3978] sm:$0xff]
  %v1891 = vld [vmem:[%s1 + $0x3980] sm:$0xff]
  %v1892 = vld [vmem:[%s1 + $0x3988] sm:$0xff]
  %v1893 = vld [vmem:[%s1 + $0x3990] sm:$0xff]
  %v1894 = vld [vmem:[%s1 + $0x3998] sm:$0xff]
  %v1895 = vld [vmem:[%s1 + $0x39a0] sm:$0xff]
  %v1896 = vld [vmem:[%s1 + $0x39a8] sm:$0xff]
  %v1897 = vld [vmem:[%s1 + $0x39b0] sm:$0xff]
  %v1898 = vld [vmem:[%s1 + $0x39b8] sm:$0xff]
  %v1899 = vld [vmem:[%s1 + $0x39c0] sm:$0xff]
  %v1900 = vld [vmem:[%s1 + $0x39c8] sm:$0xff]
  %v1901 = vld [vmem:[%s1 + $0x39d0] sm:$0xff]
  %v1902 = vld [vmem:[%s1 + $0x39d8] sm:$0xff]
  %v1903 = vld [vmem:[%s1 + $0x39e0] sm:$0xff]
  %v1904 = vld [vmem:[%s1 + $0x39e8] sm:$0xff]
  %v1905 = vld [vmem:[%s1 + $0x39f0] sm:$0xff]
  %v1906 = vld [vmem:[%s1 + $0x39f8] sm:$0xff]
  %v1907 = vld [vmem:[%s1 + $0x3a00] sm:$0xff]
  %v1908 = vld [vmem:[%s1 + $0x3a08] sm:$0xff]
  %v1909 = vld [vmem:[%s1 + $0x3a10] sm:$0xff]
  %v1910 = vld [vmem:[%s1 + $0x3a18] sm:$0xff]
  %v1911 = vld [vmem:[%s1 + $0x3a20] sm:$0xff]
  %v1912 = vld [vmem:[%s1 + $0x3a28] sm:$0xff]
  %v1913 = vld [vmem:[%s1 + $0x3a30] sm:$0xff]
  %v1914 = vld [vmem:[%s1 + $0x3a38] sm:$0xff]
  %v1915 = vld [vmem:[%s1 + $0x3a40] sm:$0xff]
  %v1916 = vld [vmem:[%s1 + $0x3a48] sm:$0xff]
  %v1917 = vld [vmem:[%s1 + $0x3a50] sm:$0xff]
  %v1918 = vld [vmem:[%s1 + $0x3a58] sm:$0xff]
  %v1919 = vld [vmem:[%s1 + $0x3a60] sm:$0xff]
  %v1920 = vld [vmem:[%s1 + $0x3a68] sm:$0xff]
  %v1921 = vld [vmem:[%s1 + $0x3a70] sm:$0xff]
  %v1922 = vld [vmem:[%s1 + $0x3a78] sm:$0xff]
  %v1923 = vld [vmem:[%s1 + $0x3a80] sm:$0xff]
  %v1924 = vld [vmem:[%s1 + $0x3a88] sm:$0xff]
  %v1925 = vld [vmem:[%s1 + $0x3a90] sm:$0xff]
  %v1926 = vld [vmem:[%s1 + $0x3a98] sm:$0xff]
  %v1927 = vld [vmem:[%s1 + $0x3aa0] sm:$0xff]
  %v1928 = vld [vmem:[%s1 + $0x3aa8] sm:$0xff]
  %v1929 = vld [vmem:[%s1 + $0x3ab0] sm:$0xff]
  %v1930 = vld [vmem:[%s1 + $0x3ab8] sm:$0xff]
  %v1931 = vld [vmem:[%s1 + $0x3ac0] sm:$0xff]
  %v1932 = vld [vmem:[%s1 + $0x3ac8] sm:$0xff]
  %v1933 = vld [vmem:[%s1 + $0x3ad0] sm:$0xff]
  %v1934 = vld [vmem:[%s1 + $0x3ad8] sm:$0xff]
  %v1935 = vld [vmem:[%s1 + $0x3ae0] sm:$0xff]
  %v1936 = vld [vmem:[%s1 + $0x3ae8] sm:$0xff]
  %v1937 = vld [vmem:[%s1 + $0x3af0] sm:$0xff]
  %v1938 = vld [vmem:[%s1 + $0x3af8] sm:$0xff]
  %v1939 = vld [vmem:[%s1 + $0x3b00] sm:$0xff]
  %v1940 = vld [vmem:[%s1 + $0x3b08] sm:$0xff]
  %v1941 = vld [vmem:[%s1 + $0x3b10] sm:$0xff]
  %v1942 = vld [vmem:[%s1 + $0x3b18] sm:$0xff]
  %v1943 = vld [vmem:[%s1 + $0x3b20] sm:$0xff]
  %v1944 = vld [vmem:[%s1 + $0x3b28] sm:$0xff]
  %v1945 = vld [vmem:[%s1 + $0x3b30] sm:$0xff]
  %v1946 = vld [vmem:[%s1 + $0x3b38] sm:$0xff]
  %v1947 = vld [vmem:[%s1 + $0x3b40] sm:$0xff]
  %v1948 = vld [vmem:[%s1 + $0x3b48] sm:$0xff]
  %v1949 = vld [vmem:[%s1 + $0x3b50] sm:$0xff]
  %v1950 = vld [vmem:[%s1 + $0x3b58] sm:$0xff]
  %v1951 = vld [vmem:[%s1 + $0x3b60] sm:$0xff]
  %v1952 = vld [vmem:[%s1 + $0x3b68] sm:$0xff]
  %v1953 = vld [vmem:[%s1 + $0x3b70] sm:$0xff]
  %v1954 = vld [vmem:[%s1 + $0x3b78] sm:$0xff]
  %v1955 = vld [vmem:[%s1 + $0x3b80] sm:$0xff]
  %v1956 = vld [vmem:[%s1 + $0x3b88] sm:$0xff]
  %v1957 = vld [vmem:[%s1 + $0x3b90] sm:$0xff]
  %v1958 = vld [vmem:[%s1 + $0x3b98] sm:$0xff]
  %v1959 = vld [vmem:[%s1 + $0x3ba0] sm:$0xff]
  %v1960 = vld [vmem:[%s1 + $0x3ba8] sm:$0xff]
  %v1961 = vld [vmem:[%s1 + $0x3bb0] sm:$0xff]
  %v1962 = vld [vmem:[%s1 + $0x3bb8] sm:$0xff]
  %v1963 = vld [vmem:[%s1 + $0x3bc0] sm:$0xff]
  %v1964 = vld [vmem:[%s1 + $0x3bc8] sm:$0xff]
  %v1965 = vld [vmem:[%s1 + $0x3bd0] sm:$0xff]
  %v1966 = vld [vmem:[%s1 + $0x3bd8] sm:$0xff]
  %v1967 = vld [vmem:[%s1 + $0x3be0] sm:$0xff]
  %v1968 = vld [vmem:[%s1 + $0x3be8] sm:$0xff]
  %v1969 = vld [vmem:[%s1 + $0x3bf0] sm:$0xff]
  %v1970 = vld [vmem:[%s1 + $0x3bf8] sm:$0xff]
  %v1971 = vld [vmem:[%s1 + $0x3c00] sm:$0xff]
  %v1972 = vld [vmem:[%s1 + $0x3c08] sm:$0xff]
  %v1973 = vld [vmem:[%s1 + $0x3c10] sm:$0xff]
  %v1974 = vld [vmem:[%s1 + $0x3c18] sm:$0xff]
  %v1975 = vld [vmem:[%s1 + $0x3c20] sm:$0xff]
  %v1976 = vld [vmem:[%s1 + $0x3c28] sm:$0xff]
  %v1977 = vld [vmem:[%s1 + $0x3c30] sm:$0xff]
  %v1978 = vld [vmem:[%s1 + $0x3c38] sm:$0xff]
  %v1979 = vld [vmem:[%s1 + $0x3c40] sm:$0xff]
  %v1980 = vld [vmem:[%s1 + $0x3c48] sm:$0xff]
  %v1981 = vld [vmem:[%s1 + $0x3c50] sm:$0xff]
  %v1982 = vld [vmem:[%s1 + $0x3c58] sm:$0xff]
  %v1983 = vld [vmem:[%s1 + $0x3c60] sm:$0xff]
  %v1984 = vld [vmem:[%s1 + $0x3c68] sm:$0xff]
  %v1985 = vld [vmem:[%s1 + $0x3c70] sm:$0xff]
  %v1986 = vld [vmem:[%s1 + $0x3c78] sm:$0xff]
  %v1987 = vld [vmem:[%s1 + $0x3c80] sm:$0xff]
  %v1988 = vld [vmem:[%s1 + $0x3c88] sm:$0xff]
  %v1989 = vld [vmem:[%s1 + $0x3c90] sm:$0xff]
  %v1990 = vld [vmem:[%s1 + $0x3c98] sm:$0xff]
  %v1991 = vld [vmem:[%s1 + $0x3ca0] sm:$0xff]
  %v1992 = vld [vmem:[%s1 + $0x3ca8] sm:$0xff]
  %v1993 = vld [vmem:[%s1 + $0x3cb0] sm:$0xff]
  %v1994 = vld [vmem:[%s1 + $0x3cb8] sm:$0xff]
  %v1995 = vld [vmem:[%s1 + $0x3cc0] sm:$0xff]
  %v1996 = vld [vmem:[%s1 + $0x3cc8] sm:$0xff]
  %v1997 = vld [vmem:[%s1 + $0x3cd0] sm:$0xff]
  %v1998 = vld [vmem:[%s1 + $0x3cd8] sm:$0xff]
  %v1999 = vld [vmem:[%s1 + $0x3ce0] sm:$0xff]
  %v2000 = vld [vmem:[%s1 + $0x3ce8] sm:$0xff]
  %v2001 = vld [vmem:[%s1 + $0x3cf0] sm:$0xff]
  %v2002 = vld [vmem:[%s1 + $0x3cf8] sm:$0xff]
  %v2003 = vld [vmem:[%s1 + $0x3d00] sm:$0xff]
  %v2004 = vld [vmem:[%s1 + $0x3d08] sm:$0xff]
  %v2005 = vld [vmem:[%s1 + $0x3d10] sm:$0xff]
  %v2006 = vld [vmem:[%s1 + $0x3d18] sm:$0xff]
  %v2007 = vld [vmem:[%s1 + $0x3d20] sm:$0xff]
  %v2008 = vld [vmem:[%s1 + $0x3d28] sm:$0xff]
  %v2009 = vld [vmem:[%s1 + $0x3d30] sm:$0xff]
  %v2010 = vld [vmem:[%s1 + $0x3d38] sm:$0xff]
  %v2011 = vld [vmem:[%s1 + $0x3d40] sm:$0xff]
  %v2012 = vld [vmem:[%s1 + $0x3d48] sm:$0xff]
  %v2013 = vld [vmem:[%s1 + $0x3d50] sm:$0xff]
  %v2014 = vld [vmem:[%s1 + $0x3d58] sm:$0xff]
  %v2015 = vld [vmem:[%s1 + $0x3d60] sm:$0xff]
  %v2016 = vld [vmem:[%s1 + $0x3d68] sm:$0xff]
  %v2017 = vld [vmem:[%s1 + $0x3d70] sm:$0xff]
  %v2018 = vld [vmem:[%s1 + $0x3d78] sm:$0xff]
  %v2019 = vld [vmem:[%s1 + $0x3d80] sm:$0xff]
  %v2020 = vld [vmem:[%s1 + $0x3d88] sm:$0xff]
  %v2021 = vld [vmem:[%s1 + $0x3d90] sm:$0xff]
  %v2022 = vld [vmem:[%s1 + $0x3d98] sm:$0xff]
  %v2023 = vld [vmem:[%s1 + $0x3da0] sm:$0xff]
  %v2024 = vld [vmem:[%s1 + $0x3da8] sm:$0xff]
  %v2025 = vld [vmem:[%s1 + $0x3db0] sm:$0xff]
  %v2026 = vld [vmem:[%s1 + $0x3db8] sm:$0xff]
  %v2027 = vld [vmem:[%s1 + $0x3dc0] sm:$0xff]
  %v2028 = vld [vmem:[%s1 + $0x3dc8] sm:$0xff]
  %v2029 = vld [vmem:[%s1 + $0x3dd0] sm:$0xff]
  %v2030 = vld [vmem:[%s1 + $0x3dd8] sm:$0xff]
  %v2031 = vld [vmem:[%s1 + $0x3de0] sm:$0xff]
  %v2032 = vld [vmem:[%s1 + $0x3de8] sm:$0xff]
  %v2033 = vld [vmem:[%s1 + $0x3df0] sm:$0xff]
  %v2034 = vld [vmem:[%s1 + $0x3df8] sm:$0xff]
  %v2035 = vld [vmem:[%s1 + $0x3e00] sm:$0xff]
  %v2036 = vld [vmem:[%s1 + $0x3e08] sm:$0xff]
  %v2037 = vld [vmem:[%s1 + $0x3e10] sm:$0xff]
  %v2038 = vld [vmem:[%s1 + $0x3e18] sm:$0xff]
  %v2039 = vld [vmem:[%s1 + $0x3e20] sm:$0xff]
  %v2040 = vld [vmem:[%s1 + $0x3e28] sm:$0xff]
  %v2041 = vld [vmem:[%s1 + $0x3e30] sm:$0xff]
  %v2042 = vld [vmem:[%s1 + $0x3e38] sm:$0xff]
  %v2043 = vld [vmem:[%s1 + $0x3e40] sm:$0xff]
  %v2044 = vld [vmem:[%s1 + $0x3e48] sm:$0xff]
  %v2045 = vld [vmem:[%s1 + $0x3e50] sm:$0xff]
  %v2046 = vld [vmem:[%s1 + $0x3e58] sm:$0xff]
  %v2047 = vld [vmem:[%s1 + $0x3e60] sm:$0xff]
  %v2048 = vld [vmem:[%s1 + $0x3e68] sm:$0xff]
  %v2049 = vld [vmem:[%s1 + $0x3e70] sm:$0xff]
  %v2050 = vld [vmem:[%s1 + $0x3e78] sm:$0xff]
  %v2051 = vld [vmem:[%s1 + $0x3e80] sm:$0xff]
  %v2052 = vld [vmem:[%s1 + $0x3e88] sm:$0xff]
  %v2053 = vld [vmem:[%s1 + $0x3e90] sm:$0xff]
  %v2054 = vld [vmem:[%s1 + $0x3e98] sm:$0xff]
  %v2055 = vld [vmem:[%s1 + $0x3ea0] sm:$0xff]
  %v2056 = vld [vmem:[%s1 + $0x3ea8] sm:$0xff]
  %v2057 = vld [vmem:[%s1 + $0x3eb0] sm:$0xff]
  %v2058 = vld [vmem:[%s1 + $0x3eb8] sm:$0xff]
  %v2059 = vld [vmem:[%s1 + $0x3ec0] sm:$0xff]
  %v2060 = vld [vmem:[%s1 + $0x3ec8] sm:$0xff]
  %v2061 = vld [vmem:[%s1 + $0x3ed0] sm:$0xff]
  %v2062 = vld [vmem:[%s1 + $0x3ed8] sm:$0xff]
  %v2063 = vld [vmem:[%s1 + $0x3ee0] sm:$0xff]
  %v2064 = vld [vmem:[%s1 + $0x3ee8] sm:$0xff]
  %v2065 = vld [vmem:[%s1 + $0x3ef0] sm:$0xff]
  %v2066 = vld [vmem:[%s1 + $0x3ef8] sm:$0xff]
  %v2067 = vld [vmem:[%s1 + $0x3f00] sm:$0xff]
  %v2068 = vld [vmem:[%s1 + $0x3f08] sm:$0xff]
  %v2069 = vld [vmem:[%s1 + $0x3f10] sm:$0xff]
  %v2070 = vld [vmem:[%s1 + $0x3f18] sm:$0xff]
  %v2071 = vld [vmem:[%s1 + $0x3f20] sm:$0xff]
  %v2072 = vld [vmem:[%s1 + $0x3f28] sm:$0xff]
  %v2073 = vld [vmem:[%s1 + $0x3f30] sm:$0xff]
  %v2074 = vld [vmem:[%s1 + $0x3f38] sm:$0xff]
  %v2075 = vld [vmem:[%s1 + $0x3f40] sm:$0xff]
  %v2076 = vld [vmem:[%s1 + $0x3f48] sm:$0xff]
  %v2077 = vld [vmem:[%s1 + $0x3f50] sm:$0xff]
  %v2078 = vld [vmem:[%s1 + $0x3f58] sm:$0xff]
  %v2079 = vld [vmem:[%s1 + $0x3f60] sm:$0xff]
  %v2080 = vld [vmem:[%s1 + $0x3f68] sm:$0xff]
  %v2081 = vld [vmem:[%s1 + $0x3f70] sm:$0xff]
  %v2082 = vld [vmem:[%s1 + $0x3f78] sm:$0xff]
  %v2083 = vld [vmem:[%s1 + $0x3f80] sm:$0xff]
  %v2084 = vld [vmem:[%s1 + $0x3f88] sm:$0xff]
  %v2085 = vld [vmem:[%s1 + $0x3f90] sm:$0xff]
  %v2086 = vld [vmem:[%s1 + $0x3f98] sm:$0xff]
  %v2087 = vld [vmem:[%s1 + $0x3fa0] sm:$0xff]
  %v2088 = vld [vmem:[%s1 + $0x3fa8] sm:$0xff]
  %v2089 = vld [vmem:[%s1 + $0x3fb0] sm:$0xff]
  %v2090 = vld [vmem:[%s1 + $0x3fb8] sm:$0xff]
  %v2091 = vld [vmem:[%s1 + $0x3fc0] sm:$0xff]
  %v2092 = vld [vmem:[%s1 + $0x3fc8] sm:$0xff]
  %v2093 = vld [vmem:[%s1 + $0x3fd0] sm:$0xff]
  %v2094 = vld [vmem:[%s1 + $0x3fd8] sm:$0xff]
  %v2095 = vld [vmem:[%s1 + $0x3fe0] sm:$0xff]
  %v2096 = vld [vmem:[%s1 + $0x3fe8] sm:$0xff]
  %v2097 = vld [vmem:[%s1 + $0x3ff0] sm:$0xff]
  %v2098 = vld [vmem:[%s1 + $0x3ff8] sm:$0xff]
  %v2099 = vld [vmem:[%s1 + $0x4000] sm:$0xff]
  %v2100 = vld [vmem:[%s1 + $0x4008] sm:$0xff]
  %v2101 = vld [vmem:[%s1 + $0x4010] sm:$0xff]
  %v2102 = vld [vmem:[%s1 + $0x4018] sm:$0xff]
  %v2103 = vld [vmem:[%s1 + $0x4020] sm:$0xff]
  %v2104 = vld [vmem:[%s1 + $0x4028] sm:$0xff]
  %v2105 = vld [vmem:[%s1 + $0x4030] sm:$0xff]
  %v2106 = vld [vmem:[%s1 + $0x4038] sm:$0xff]
  %v2107 = vld [vmem:[%s1 + $0x4040] sm:$0xff]
  %v2108 = vld [vmem:[%s1 + $0x4048] sm:$0xff]
  %v2109 = vld [vmem:[%s1 + $0x4050] sm:$0xff]
  %v2110 = vld [vmem:[%s1 + $0x4058] sm:$0xff]
  %v2111 = vld [vmem:[%s1 + $0x4060] sm:$0xff]
  %v2112 = vld [vmem:[%s1 + $0x4068] sm:$0xff]
  %v2113 = vld [vmem:[%s1 + $0x4070] sm:$0xff]
  %v2114 = vld [vmem:[%s1 + $0x4078] sm:$0xff]
  %v2115 = vld [vmem:[%s1 + $0x4080] sm:$0xff]
  %v2116 = vld [vmem:[%s1 + $0x4088] sm:$0xff]
  %v2117 = vld [vmem:[%s1 + $0x4090] sm:$0xff]
  %v2118 = vld [vmem:[%s1 + $0x4098] sm:$0xff]
  %v2119 = vld [vmem:[%s1 + $0x40a0] sm:$0xff]
  %v2120 = vld [vmem:[%s1 + $0x40a8] sm:$0xff]
  %v2121 = vld [vmem:[%s1 + $0x40b0] sm:$0xff]
  %v2122 = vld [vmem:[%s1 + $0x40b8] sm:$0xff]
  %v2123 = vld [vmem:[%s1 + $0x40c0] sm:$0xff]
  %v2124 = vld [vmem:[%s1 + $0x40c8] sm:$0xff]
  %v2125 = vld [vmem:[%s1 + $0x40d0] sm:$0xff]
  %v2126 = vld [vmem:[%s1 + $0x40d8] sm:$0xff]
  %v2127 = vld [vmem:[%s1 + $0x40e0] sm:$0xff]
  %v2128 = vld [vmem:[%s1 + $0x40e8] sm:$0xff]
  %v2129 = vld [vmem:[%s1 + $0x40f0] sm:$0xff]
  %v2130 = vld [vmem:[%s1 + $0x40f8] sm:$0xff]
  %v2131 = vld [vmem:[%s1 + $0x4100] sm:$0xff]
  %v2132 = vld [vmem:[%s1 + $0x4108] sm:$0xff]
  %v2133 = vld [vmem:[%s1 + $0x4110] sm:$0xff]
  %v2134 = vld [vmem:[%s1 + $0x4118] sm:$0xff]
  %v2135 = vld [vmem:[%s1 + $0x4120] sm:$0xff]
  %v2136 = vld [vmem:[%s1 + $0x4128] sm:$0xff]
  %v2137 = vld [vmem:[%s1 + $0x4130] sm:$0xff]
  %v2138 = vld [vmem:[%s1 + $0x4138] sm:$0xff]
  %v2139 = vld [vmem:[%s1 + $0x4140] sm:$0xff]
  %v2140 = vld [vmem:[%s1 + $0x4148] sm:$0xff]
  %v2141 = vld [vmem:[%s1 + $0x4150] sm:$0xff]
  %v2142 = vld [vmem:[%s1 + $0x4158] sm:$0xff]
  %v2143 = vld [vmem:[%s1 + $0x4160] sm:$0xff]
  %v2144 = vld [vmem:[%s1 + $0x4168] sm:$0xff]
  %v2145 = vld [vmem:[%s1 + $0x4170] sm:$0xff]
  %v2146 = vld [vmem:[%s1 + $0x4178] sm:$0xff]
  %v2147 = vld [vmem:[%s1 + $0x4180] sm:$0xff]
  %v2148 = vld [vmem:[%s1 + $0x4188] sm:$0xff]
  %v2149 = vld [vmem:[%s1 + $0x4190] sm:$0xff]
  %v2150 = vld [vmem:[%s1 + $0x4198] sm:$0xff]
  %v2151 = vld [vmem:[%s1 + $0x41a0] sm:$0xff]
  %v2152 = vld [vmem:[%s1 + $0x41a8] sm:$0xff]
  %v2153 = vld [vmem:[%s1 + $0x41b0] sm:$0xff]
  %v2154 = vld [vmem:[%s1 + $0x41b8] sm:$0xff]
  %v2155 = vld [vmem:[%s1 + $0x41c0] sm:$0xff]
  %v2156 = vld [vmem:[%s1 + $0x41c8] sm:$0xff]
  %v2157 = vld [vmem:[%s1 + $0x41d0] sm:$0xff]
  %v2158 = vld [vmem:[%s1 + $0x41d8] sm:$0xff]
  %v2159 = vld [vmem:[%s1 + $0x41e0] sm:$0xff]
  %v2160 = vld [vmem:[%s1 + $0x41e8] sm:$0xff]
  %v2161 = vld [vmem:[%s1 + $0x41f0] sm:$0xff]
  %v2162 = vld [vmem:[%s1 + $0x41f8] sm:$0xff]
  %v2163 = vld [vmem:[%s1 + $0x4200] sm:$0xff]
  %v2164 = vld [vmem:[%s1 + $0x4208] sm:$0xff]
  %v2165 = vld [vmem:[%s1 + $0x4210] sm:$0xff]
  %v2166 = vld [vmem:[%s1 + $0x4218] sm:$0xff]
  %v2167 = vld [vmem:[%s1 + $0x4220] sm:$0xff]
  %v2168 = vld [vmem:[%s1 + $0x4228] sm:$0xff]
  %v2169 = vld [vmem:[%s1 + $0x4230] sm:$0xff]
  %v2170 = vld [vmem:[%s1 + $0x4238] sm:$0xff]
  %v2171 = vld [vmem:[%s1 + $0x4240] sm:$0xff]
  %v2172 = vld [vmem:[%s1 + $0x4248] sm:$0xff]
  %v2173 = vld [vmem:[%s1 + $0x4250] sm:$0xff]
  %v2174 = vld [vmem:[%s1 + $0x4258] sm:$0xff]
  %v2175 = vld [vmem:[%s1 + $0x4260] sm:$0xff]
  %v2176 = vld [vmem:[%s1 + $0x4268] sm:$0xff]
  %v2177 = vld [vmem:[%s1 + $0x4270] sm:$0xff]
  %v2178 = vld [vmem:[%s1 + $0x4278] sm:$0xff]
  %v2179 = vld [vmem:[%s1 + $0x4280] sm:$0xff]
  %v2180 = vld [vmem:[%s1 + $0x4288] sm:$0xff]
  %v2181 = vld [vmem:[%s1 + $0x4290] sm:$0xff]
  %v2182 = vld [vmem:[%s1 + $0x4298] sm:$0xff]
  %v2183 = vld [vmem:[%s1 + $0x42a0] sm:$0xff]
  %v2184 = vld [vmem:[%s1 + $0x42a8] sm:$0xff]
  %v2185 = vld [vmem:[%s1 + $0x42b0] sm:$0xff]
  %v2186 = vld [vmem:[%s1 + $0x42b8] sm:$0xff]
  %v2187 = vld [vmem:[%s1 + $0x42c0] sm:$0xff]
  %v2188 = vld [vmem:[%s1 + $0x42c8] sm:$0xff]
  %v2189 = vld [vmem:[%s1 + $0x42d0] sm:$0xff]
  %v2190 = vld [vmem:[%s1 + $0x42d8] sm:$0xff]
  %v2191 = vld [vmem:[%s1 + $0x42e0] sm:$0xff]
  %v2192 = vld [vmem:[%s1 + $0x42e8] sm:$0xff]
  %v2193 = vld [vmem:[%s1 + $0x42f0] sm:$0xff]
  %v2194 = vld [vmem:[%s1 + $0x42f8] sm:$0xff]
  %v2195 = vld [vmem:[%s1 + $0x4300] sm:$0xff]
  %v2196 = vld [vmem:[%s1 + $0x4308] sm:$0xff]
  %v2197 = vld [vmem:[%s1 + $0x4310] sm:$0xff]
  %v2198 = vld [vmem:[%s1 + $0x4318] sm:$0xff]
  %v2199 = vld [vmem:[%s1 + $0x4320] sm:$0xff]
  %v2200 = vld [vmem:[%s1 + $0x4328] sm:$0xff]
  %v2201 = vld [vmem:[%s1 + $0x4330] sm:$0xff]
  %v2202 = vld [vmem:[%s1 + $0x4338] sm:$0xff]
  %v2203 = vld [vmem:[%s1 + $0x4340] sm:$0xff]
  %v2204 = vld [vmem:[%s1 + $0x4348] sm:$0xff]
  %v2205 = vld [vmem:[%s1 + $0x4350] sm:$0xff]
  %v2206 = vld [vmem:[%s1 + $0x4358] sm:$0xff]
  %v2207 = vld [vmem:[%s1 + $0x4360] sm:$0xff]
  %v2208 = vld [vmem:[%s1 + $0x4368] sm:$0xff]
  %v2209 = vld [vmem:[%s1 + $0x4370] sm:$0xff]
  %v2210 = vld [vmem:[%s1 + $0x4378] sm:$0xff]
  %v2211 = vld [vmem:[%s1 + $0x4380] sm:$0xff]
  %v2212 = vld [vmem:[%s1 + $0x4388] sm:$0xff]
  %v2213 = vld [vmem:[%s1 + $0x4390] sm:$0xff]
  %v2214 = vld [vmem:[%s1 + $0x4398] sm:$0xff]
  %v2215 = vld [vmem:[%s1 + $0x43a0] sm:$0xff]
  %v2216 = vld [vmem:[%s1 + $0x43a8] sm:$0xff]
  %v2217 = vld [vmem:[%s1 + $0x43b0] sm:$0xff]
  %v2218 = vld [vmem:[%s1 + $0x43b8] sm:$0xff]
  %v2219 = vld [vmem:[%s1 + $0x43c0] sm:$0xff]
  %v2220 = vld [vmem:[%s1 + $0x43c8] sm:$0xff]
  %v2221 = vld [vmem:[%s1 + $0x43d0] sm:$0xff]
  %v2222 = vld [vmem:[%s1 + $0x43d8] sm:$0xff]
  %v2223 = vld [vmem:[%s1 + $0x43e0] sm:$0xff]
  %v2224 = vld [vmem:[%s1 + $0x43e8] sm:$0xff]
  %v2225 = vld [vmem:[%s1 + $0x43f0] sm:$0xff]
  %v2226 = vld [vmem:[%s1 + $0x43f8] sm:$0xff]
  %v2227 = vld [vmem:[%s1 + $0x4400] sm:$0xff]
  %v2228 = vld [vmem:[%s1 + $0x4408] sm:$0xff]
  %v2229 = vld [vmem:[%s1 + $0x4410] sm:$0xff]
  %v2230 = vld [vmem:[%s1 + $0x4418] sm:$0xff]
  %v2231 = vld [vmem:[%s1 + $0x4420] sm:$0xff]
  %v2232 = vld [vmem:[%s1 + $0x4428] sm:$0xff]
  %v2233 = vld [vmem:[%s1 + $0x4430] sm:$0xff]
  %v2234 = vld [vmem:[%s1 + $0x4438] sm:$0xff]
  %v2235 = vld [vmem:[%s1 + $0x4440] sm:$0xff]
  %v2236 = vld [vmem:[%s1 + $0x4448] sm:$0xff]
  %v2237 = vld [vmem:[%s1 + $0x4450] sm:$0xff]
  %v2238 = vld [vmem:[%s1 + $0x4458] sm:$0xff]
  %v2239 = vld [vmem:[%s1 + $0x4460] sm:$0xff]
  %v2240 = vld [vmem:[%s1 + $0x4468] sm:$0xff]
  %v2241 = vld [vmem:[%s1 + $0x4470] sm:$0xff]
  %v2242 = vld [vmem:[%s1 + $0x4478] sm:$0xff]
  %v2243 = vld [vmem:[%s1 + $0x4480] sm:$0xff]
  %v2244 = vld [vmem:[%s1 + $0x4488] sm:$0xff]
  %v2245 = vld [vmem:[%s1 + $0x4490] sm:$0xff]
  %v2246 = vld [vmem:[%s1 + $0x4498] sm:$0xff]
  %v2247 = vld [vmem:[%s1 + $0x44a0] sm:$0xff]
  %v2248 = vld [vmem:[%s1 + $0x44a8] sm:$0xff]
  %v2249 = vld [vmem:[%s1 + $0x44b0] sm:$0xff]
  %v2250 = vld [vmem:[%s1 + $0x44b8] sm:$0xff]
  %v2251 = vld [vmem:[%s1 + $0x44c0] sm:$0xff]
  %v2252 = vld [vmem:[%s1 + $0x44c8] sm:$0xff]
  %v2253 = vld [vmem:[%s1 + $0x44d0] sm:$0xff]
  %v2254 = vld [vmem:[%s1 + $0x44d8] sm:$0xff]
  %v2255 = vld [vmem:[%s1 + $0x44e0] sm:$0xff]
  %v2256 = vld [vmem:[%s1 + $0x44e8] sm:$0xff]
  %v2257 = vld [vmem:[%s1 + $0x44f0] sm:$0xff]
  %v2258 = vld [vmem:[%s1 + $0x44f8] sm:$0xff]
  %v2259 = vld [vmem:[%s1 + $0x4500] sm:$0xff]
  %v2260 = vld [vmem:[%s1 + $0x4508] sm:$0xff]
  %v2261 = vld [vmem:[%s1 + $0x4510] sm:$0xff]
  %v2262 = vld [vmem:[%s1 + $0x4518] sm:$0xff]
  %v2263 = vld [vmem:[%s1 + $0x4520] sm:$0xff]
  %v2264 = vld [vmem:[%s1 + $0x4528] sm:$0xff]
  %v2265 = vld [vmem:[%s1 + $0x4530] sm:$0xff]
  %v2266 = vld [vmem:[%s1 + $0x4538] sm:$0xff]
  %v2267 = vld [vmem:[%s1 + $0x4540] sm:$0xff]
  %v2268 = vld [vmem:[%s1 + $0x4548] sm:$0xff]
  %v2269 = vld [vmem:[%s1 + $0x4550] sm:$0xff]
  %v2270 = vld [vmem:[%s1 + $0x4558] sm:$0xff]
  %v2271 = vld [vmem:[%s1 + $0x4560] sm:$0xff]
  %v2272 = vld [vmem:[%s1 + $0x4568] sm:$0xff]
  %v2273 = vld [vmem:[%s1 + $0x4570] sm:$0xff]
  %v2274 = vld [vmem:[%s1 + $0x4578] sm:$0xff]
  %v2275 = vld [vmem:[%s1 + $0x4580] sm:$0xff]
  %v2276 = vld [vmem:[%s1 + $0x4588] sm:$0xff]
  %v2277 = vld [vmem:[%s1 + $0x4590] sm:$0xff]
  %v2278 = vld [vmem:[%s1 + $0x4598] sm:$0xff]
  %v2279 = vld [vmem:[%s1 + $0x45a0] sm:$0xff]
  %v2280 = vld [vmem:[%s1 + $0x45a8] sm:$0xff]
  %v2281 = vld [vmem:[%s1 + $0x45b0] sm:$0xff]
  %v2282 = vld [vmem:[%s1 + $0x45b8] sm:$0xff]
  %v2283 = vld [vmem:[%s1 + $0x45c0] sm:$0xff]
  %v2284 = vld [vmem:[%s1 + $0x45c8] sm:$0xff]
  %v2285 = vld [vmem:[%s1 + $0x45d0] sm:$0xff]
  %v2286 = vld [vmem:[%s1 + $0x45d8] sm:$0xff]
  %v2287 = vld [vmem:[%s1 + $0x45e0] sm:$0xff]
  %v2288 = vld [vmem:[%s1 + $0x45e8] sm:$0xff]
  %v2289 = vld [vmem:[%s1 + $0x45f0] sm:$0xff]
  %v2290 = vld [vmem:[%s1 + $0x45f8] sm:$0xff]
  %v2291 = vld [vmem:[%s1 + $0x4600] sm:$0xff]
  %v2292 = vld [vmem:[%s1 + $0x4608] sm:$0xff]
  %v2293 = vld [vmem:[%s1 + $0x4610] sm:$0xff]
  %v2294 = vld [vmem:[%s1 + $0x4618] sm:$0xff]
  %v2295 = vld [vmem:[%s1 + $0x4620] sm:$0xff]
  %v2296 = vld [vmem:[%s1 + $0x4628] sm:$0xff]
  %v2297 = vld [vmem:[%s1 + $0x4630] sm:$0xff]
  %v2298 = vld [vmem:[%s1 + $0x4638] sm:$0xff]
  %v2299 = vld [vmem:[%s1 + $0x4640] sm:$0xff]
  %v2300 = vld [vmem:[%s1 + $0x4648] sm:$0xff]
  %v2301 = vld [vmem:[%s1 + $0x4650] sm:$0xff]
  %v2302 = vld [vmem:[%s1 + $0x4658] sm:$0xff]
  %v2303 = vld [vmem:[%s1 + $0x4660] sm:$0xff]
  %v2304 = vld [vmem:[%s1 + $0x4668] sm:$0xff]
  %v2305 = vld [vmem:[%s1 + $0x4670] sm:$0xff]
  %v2306 = vld [vmem:[%s1 + $0x4678] sm:$0xff]
  %v2307 = vld [vmem:[%s1 + $0x4680] sm:$0xff]
  %v2308 = vld [vmem:[%s1 + $0x4688] sm:$0xff]
  %v2309 = vld [vmem:[%s1 + $0x4690] sm:$0xff]
  %v2310 = vld [vmem:[%s1 + $0x4698] sm:$0xff]
  %v2311 = vld [vmem:[%s1 + $0x46a0] sm:$0xff]
  %v2312 = vld [vmem:[%s1 + $0x46a8] sm:$0xff]
  %v2313 = vld [vmem:[%s1 + $0x46b0] sm:$0xff]
  %v2314 = vld [vmem:[%s1 + $0x46b8] sm:$0xff]
  %v2315 = vld [vmem:[%s1 + $0x46c0] sm:$0xff]
  %v2316 = vld [vmem:[%s1 + $0x46c8] sm:$0xff]
  %v2317 = vld [vmem:[%s1 + $0x46d0] sm:$0xff]
  %v2318 = vld [vmem:[%s1 + $0x46d8] sm:$0xff]
  %v2319 = vld [vmem:[%s1 + $0x46e0] sm:$0xff]
  %v2320 = vld [vmem:[%s1 + $0x46e8] sm:$0xff]
  %v2321 = vld [vmem:[%s1 + $0x46f0] sm:$0xff]
  %v2322 = vld [vmem:[%s1 + $0x46f8] sm:$0xff]
  %v2323 = vld [vmem:[%s1 + $0x4700] sm:$0xff]
  %v2324 = vld [vmem:[%s1 + $0x4708] sm:$0xff]
  %v2325 = vld [vmem:[%s1 + $0x4710] sm:$0xff]
  %v2326 = vld [vmem:[%s1 + $0x4718] sm:$0xff]
  %v2327 = vld [vmem:[%s1 + $0x4720] sm:$0xff]
  %v2328 = vld [vmem:[%s1 + $0x4728] sm:$0xff]
  %v2329 = vld [vmem:[%s1 + $0x4730] sm:$0xff]
  %v2330 = vld [vmem:[%s1 + $0x4738] sm:$0xff]
  %v2331 = vld [vmem:[%s1 + $0x4740] sm:$0xff]
  %v2332 = vld [vmem:[%s1 + $0x4748] sm:$0xff]
  %v2333 = vld [vmem:[%s1 + $0x4750] sm:$0xff]
  %v2334 = vld [vmem:[%s1 + $0x4758] sm:$0xff]
  %v2335 = vld [vmem:[%s1 + $0x4760] sm:$0xff]
  %v2336 = vld [vmem:[%s1 + $0x4768] sm:$0xff]
  %v2337 = vld [vmem:[%s1 + $0x4770] sm:$0xff]
  %v2338 = vld [vmem:[%s1 + $0x4778] sm:$0xff]
  %v2339 = vld [vmem:[%s1 + $0x4780] sm:$0xff]
  %v2340 = vld [vmem:[%s1 + $0x4788] sm:$0xff]
  %v2341 = vld [vmem:[%s1 + $0x4790] sm:$0xff]
  %v2342 = vld [vmem:[%s1 + $0x4798] sm:$0xff]
  %v2343 = vld [vmem:[%s1 + $0x47a0] sm:$0xff]
  %v2344 = vld [vmem:[%s1 + $0x47a8] sm:$0xff]
  %v2345 = vld [vmem:[%s1 + $0x47b0] sm:$0xff]
  %v2346 = vld [vmem:[%s1 + $0x47b8] sm:$0xff]
  %v2347 = vld [vmem:[%s1 + $0x47c0] sm:$0xff]
  %v2348 = vld [vmem:[%s1 + $0x47c8] sm:$0xff]
  %v2349 = vld [vmem:[%s1 + $0x47d0] sm:$0xff]
  %v2350 = vld [vmem:[%s1 + $0x47d8] sm:$0xff]
  %v2351 = vld [vmem:[%s1 + $0x47e0] sm:$0xff]
  %v2352 = vld [vmem:[%s1 + $0x47e8] sm:$0xff]
  %v2353 = vld [vmem:[%s1 + $0x47f0] sm:$0xff]
  %v2354 = vld [vmem:[%s1 + $0x47f8] sm:$0xff]
  %v2355 = vld [vmem:[%s1 + $0x4800] sm:$0xff]
  %v2356 = vld [vmem:[%s1 + $0x4808] sm:$0xff]
  %v2357 = vld [vmem:[%s1 + $0x4810] sm:$0xff]
  %v2358 = vld [vmem:[%s1 + $0x4818] sm:$0xff]
  %v2359 = vld [vmem:[%s1 + $0x4820] sm:$0xff]
  %v2360 = vld [vmem:[%s1 + $0x4828] sm:$0xff]
  %v2361 = vld [vmem:[%s1 + $0x4830] sm:$0xff]
  %v2362 = vld [vmem:[%s1 + $0x4838] sm:$0xff]
  %v2363 = vld [vmem:[%s1 + $0x4840] sm:$0xff]
  %v2364 = vld [vmem:[%s1 + $0x4848] sm:$0xff]
  %v2365 = vld [vmem:[%s1 + $0x4850] sm:$0xff]
  %v2366 = vld [vmem:[%s1 + $0x4858] sm:$0xff]
  %v2367 = vld [vmem:[%s1 + $0x4860] sm:$0xff]
  %v2368 = vld [vmem:[%s1 + $0x4868] sm:$0xff]
  %v2369 = vld [vmem:[%s1 + $0x4870] sm:$0xff]
  %v2370 = vld [vmem:[%s1 + $0x4878] sm:$0xff]
  %v2371 = vld [vmem:[%s1 + $0x4880] sm:$0xff]
  %v2372 = vld [vmem:[%s1 + $0x4888] sm:$0xff]
  %v2373 = vld [vmem:[%s1 + $0x4890] sm:$0xff]
  %v2374 = vld [vmem:[%s1 + $0x4898] sm:$0xff]
  %v2375 = vld [vmem:[%s1 + $0x48a0] sm:$0xff]
  %v2376 = vld [vmem:[%s1 + $0x48a8] sm:$0xff]
  %v2377 = vld [vmem:[%s1 + $0x48b0] sm:$0xff]
  %v2378 = vld [vmem:[%s1 + $0x48b8] sm:$0xff]
  %v2379 = vld [vmem:[%s1 + $0x48c0] sm:$0xff]
  %v2380 = vld [vmem:[%s1 + $0x48c8] sm:$0xff]
  %v2381 = vld [vmem:[%s1 + $0x48d0] sm:$0xff]
  %v2382 = vld [vmem:[%s1 + $0x48d8] sm:$0xff]
  %v2383 = vld [vmem:[%s1 + $0x48e0] sm:$0xff]
  %v2384 = vld [vmem:[%s1 + $0x48e8] sm:$0xff]
  %v2385 = vld [vmem:[%s1 + $0x48f0] sm:$0xff]
  %v2386 = vld [vmem:[%s1 + $0x48f8] sm:$0xff]
  %v2387 = vld [vmem:[%s1 + $0x4900] sm:$0xff]
  %v2388 = vld [vmem:[%s1 + $0x4908] sm:$0xff]
  %v2389 = vld [vmem:[%s1 + $0x4910] sm:$0xff]
  %v2390 = vld [vmem:[%s1 + $0x4918] sm:$0xff]
  %v2391 = vld [vmem:[%s1 + $0x4920] sm:$0xff]
  %v2392 = vld [vmem:[%s1 + $0x4928] sm:$0xff]
  %v2393 = vld [vmem:[%s1 + $0x4930] sm:$0xff]
  %v2394 = vld [vmem:[%s1 + $0x4938] sm:$0xff]
  %v2395 = vld [vmem:[%s1 + $0x4940] sm:$0xff]
  %v2396 = vld [vmem:[%s1 + $0x4948] sm:$0xff]
  %v2397 = vld [vmem:[%s1 + $0x4950] sm:$0xff]
  %v2398 = vld [vmem:[%s1 + $0x4958] sm:$0xff]
  %v2399 = vld [vmem:[%s1 + $0x4960] sm:$0xff]
  %v2400 = vld [vmem:[%s1 + $0x4968] sm:$0xff]
  %v2401 = vld [vmem:[%s1 + $0x4970] sm:$0xff]
  %v2402 = vld [vmem:[%s1 + $0x4978] sm:$0xff]
  %v2403 = vld [vmem:[%s1 + $0x4980] sm:$0xff]
  %v2404 = vld [vmem:[%s1 + $0x4988] sm:$0xff]
  %v2405 = vld [vmem:[%s1 + $0x4990] sm:$0xff]
  %v2406 = vld [vmem:[%s1 + $0x4998] sm:$0xff]
  %v2407 = vld [vmem:[%s1 + $0x49a0] sm:$0xff]
  %v2408 = vld [vmem:[%s1 + $0x49a8] sm:$0xff]
  %v2409 = vld [vmem:[%s1 + $0x49b0] sm:$0xff]
  %v2410 = vld [vmem:[%s1 + $0x49b8] sm:$0xff]
  %v2411 = vld [vmem:[%s1 + $0x49c0] sm:$0xff]
  %v2412 = vld [vmem:[%s1 + $0x49c8] sm:$0xff]
  %v2413 = vld [vmem:[%s1 + $0x49d0] sm:$0xff]
  %v2414 = vld [vmem:[%s1 + $0x49d8] sm:$0xff]
  %v2415 = vld [vmem:[%s1 + $0x49e0] sm:$0xff]
  %v2416 = vld [vmem:[%s1 + $0x49e8] sm:$0xff]
  %v2417 = vld [vmem:[%s1 + $0x49f0] sm:$0xff]
  %v2418 = vld [vmem:[%s1 + $0x49f8] sm:$0xff]
  %v2419 = vld [vmem:[%s1 + $0x4a00] sm:$0xff]
  %v2420 = vld [vmem:[%s1 + $0x4a08] sm:$0xff]
  %v2421 = vld [vmem:[%s1 + $0x4a10] sm:$0xff]
  %v2422 = vld [vmem:[%s1 + $0x4a18] sm:$0xff]
  %v2423 = vld [vmem:[%s1 + $0x4a20] sm:$0xff]
  %v2424 = vld [vmem:[%s1 + $0x4a28] sm:$0xff]
  %v2425 = vld [vmem:[%s1 + $0x4a30] sm:$0xff]
  %v2426 = vld [vmem:[%s1 + $0x4a38] sm:$0xff]
  %v2427 = vld [vmem:[%s1 + $0x4a40] sm:$0xff]
  %v2428 = vld [vmem:[%s1 + $0x4a48] sm:$0xff]
  %v2429 = vld [vmem:[%s1 + $0x4a50] sm:$0xff]
  %v2430 = vld [vmem:[%s1 + $0x4a58] sm:$0xff]
  %v2431 = vld [vmem:[%s1 + $0x4a60] sm:$0xff]
  %v2432 = vld [vmem:[%s1 + $0x4a68] sm:$0xff]
  %v2433 = vld [vmem:[%s1 + $0x4a70] sm:$0xff]
  %v2434 = vld [vmem:[%s1 + $0x4a78] sm:$0xff]
  %v2435 = vld [vmem:[%s1 + $0x4a80] sm:$0xff]
  %v2436 = vld [vmem:[%s1 + $0x4a88] sm:$0xff]
  %v2437 = vld [vmem:[%s1 + $0x4a90] sm:$0xff]
  %v2438 = vld [vmem:[%s1 + $0x4a98] sm:$0xff]
  %v2439 = vld [vmem:[%s1 + $0x4aa0] sm:$0xff]
  %v2440 = vld [vmem:[%s1 + $0x4aa8] sm:$0xff]
  %v2441 = vld [vmem:[%s1 + $0x4ab0] sm:$0xff]
  %v2442 = vld [vmem:[%s1 + $0x4ab8] sm:$0xff]
  %v2443 = vld [vmem:[%s1 + $0x4ac0] sm:$0xff]
  %v2444 = vld [vmem:[%s1 + $0x4ac8] sm:$0xff]
  %v2445 = vld [vmem:[%s1 + $0x4ad0] sm:$0xff]
  %v2446 = vld [vmem:[%s1 + $0x4ad8] sm:$0xff]
  %v2447 = vld [vmem:[%s1 + $0x4ae0] sm:$0xff]
  %v2448 = vld [vmem:[%s1 + $0x4ae8] sm:$0xff]
  %v2449 = vld [vmem:[%s1 + $0x4af0] sm:$0xff]
  %v2450 = vld [vmem:[%s1 + $0x4af8] sm:$0xff]
  %v2451 = vld [vmem:[%s1 + $0x4b00] sm:$0xff]
  %v2452 = vld [vmem:[%s1 + $0x4b08] sm:$0xff]
  %v2453 = vld [vmem:[%s1 + $0x4b10] sm:$0xff]
  %v2454 = vld [vmem:[%s1 + $0x4b18] sm:$0xff]
  %v2455 = vld [vmem:[%s1 + $0x4b20] sm:$0xff]
  %v2456 = vld [vmem:[%s1 + $0x4b28] sm:$0xff]
  %v2457 = vld [vmem:[%s1 + $0x4b30] sm:$0xff]
  %v2458 = vld [vmem:[%s1 + $0x4b38] sm:$0xff]
  %v2459 = vld [vmem:[%s1 + $0x4b40] sm:$0xff]
  %v2460 = vld [vmem:[%s1 + $0x4b48] sm:$0xff]
  %v2461 = vld [vmem:[%s1 + $0x4b50] sm:$0xff]
  %v2462 = vld [vmem:[%s1 + $0x4b58] sm:$0xff]
  %v2463 = vld [vmem:[%s1 + $0x4b60] sm:$0xff]
  %v2464 = vld [vmem:[%s1 + $0x4b68] sm:$0xff]
  %v2465 = vld [vmem:[%s1 + $0x4b70] sm:$0xff]
  %v2466 = vld [vmem:[%s1 + $0x4b78] sm:$0xff]
  %v2467 = vld [vmem:[%s1 + $0x4b80] sm:$0xff]
  %v2468 = vld [vmem:[%s1 + $0x4b88] sm:$0xff]
  %v2469 = vld [vmem:[%s1 + $0x4b90] sm:$0xff]
  %v2470 = vld [vmem:[%s1 + $0x4b98] sm:$0xff]
  %v2471 = vld [vmem:[%s1 + $0x4ba0] sm:$0xff]
  %v2472 = vld [vmem:[%s1 + $0x4ba8] sm:$0xff]
  %v2473 = vld [vmem:[%s1 + $0x4bb0] sm:$0xff]
  %v2474 = vld [vmem:[%s1 + $0x4bb8] sm:$0xff]
  %v2475 = vld [vmem:[%s1 + $0x4bc0] sm:$0xff]
  %v2476 = vld [vmem:[%s1 + $0x4bc8] sm:$0xff]
  %v2477 = vld [vmem:[%s1 + $0x4bd0] sm:$0xff]
  %v2478 = vld [vmem:[%s1 + $0x4bd8] sm:$0xff]
  %v2479 = vld [vmem:[%s1 + $0x4be0] sm:$0xff]
  %v2480 = vld [vmem:[%s1 + $0x4be8] sm:$0xff]
  %v2481 = vld [vmem:[%s1 + $0x4bf0] sm:$0xff]
  %v2482 = vld [vmem:[%s1 + $0x4bf8] sm:$0xff]
  %v2483 = vld [vmem:[%s1 + $0x4c00] sm:$0xff]
  %v2484 = vld [vmem:[%s1 + $0x4c08] sm:$0xff]
  %v2485 = vld [vmem:[%s1 + $0x4c10] sm:$0xff]
  %v2486 = vld [vmem:[%s1 + $0x4c18] sm:$0xff]
  %v2487 = vld [vmem:[%s1 + $0x4c20] sm:$0xff]
  %v2488 = vld [vmem:[%s1 + $0x4c28] sm:$0xff]
  %v2489 = vld [vmem:[%s1 + $0x4c30] sm:$0xff]
  %v2490 = vld [vmem:[%s1 + $0x4c38] sm:$0xff]
  %v2491 = vld [vmem:[%s1 + $0x4c40] sm:$0xff]
  %v2492 = vld [vmem:[%s1 + $0x4c48] sm:$0xff]
  %v2493 = vld [vmem:[%s1 + $0x4c50] sm:$0xff]
  %v2494 = vld [vmem:[%s1 + $0x4c58] sm:$0xff]
  %v2495 = vld [vmem:[%s1 + $0x4c60] sm:$0xff]
  %v2496 = vld [vmem:[%s1 + $0x4c68] sm:$0xff]
  %v2497 = vld [vmem:[%s1 + $0x4c70] sm:$0xff]
  %v2498 = vld [vmem:[%s1 + $0x4c78] sm:$0xff]
  %v2499 = vld [vmem:[%s1 + $0x4c80] sm:$0xff]
  %v2500 = vld [vmem:[%s1 + $0x4c88] sm:$0xff]
  %v2501 = vld [vmem:[%s1 + $0x4c90] sm:$0xff]
  %v2502 = vld [vmem:[%s1 + $0x4c98] sm:$0xff]
  %v2503 = vld [vmem:[%s1 + $0x4ca0] sm:$0xff]
  %v2504 = vld [vmem:[%s1 + $0x4ca8] sm:$0xff]
  %v2505 = vld [vmem:[%s1 + $0x4cb0] sm:$0xff]
  %v2506 = vld [vmem:[%s1 + $0x4cb8] sm:$0xff]
  %v2507 = vld [vmem:[%s1 + $0x4cc0] sm:$0xff]
  %v2508 = vld [vmem:[%s1 + $0x4cc8] sm:$0xff]
  %v2509 = vld [vmem:[%s1 + $0x4cd0] sm:$0xff]
  %v2510 = vld [vmem:[%s1 + $0x4cd8] sm:$0xff]
  %v2511 = vld [vmem:[%s1 + $0x4ce0] sm:$0xff]
  %v2512 = vld [vmem:[%s1 + $0x4ce8] sm:$0xff]
  %v2513 = vld [vmem:[%s1 + $0x4cf0] sm:$0xff]
  %v2514 = vld [vmem:[%s1 + $0x4cf8] sm:$0xff]
  %v2515 = vld [vmem:[%s1 + $0x4d00] sm:$0xff]
  %v2516 = vld [vmem:[%s1 + $0x4d08] sm:$0xff]
  %v2517 = vld [vmem:[%s1 + $0x4d10] sm:$0xff]
  %v2518 = vld [vmem:[%s1 + $0x4d18] sm:$0xff]
  %v2519 = vld [vmem:[%s1 + $0x4d20] sm:$0xff]
  %v2520 = vld [vmem:[%s1 + $0x4d28] sm:$0xff]
  %v2521 = vld [vmem:[%s1 + $0x4d30] sm:$0xff]
  %v2522 = vld [vmem:[%s1 + $0x4d38] sm:$0xff]
  %v2523 = vld [vmem:[%s1 + $0x4d40] sm:$0xff]
  %v2524 = vld [vmem:[%s1 + $0x4d48] sm:$0xff]
  %v2525 = vld [vmem:[%s1 + $0x4d50] sm:$0xff]
  %v2526 = vld [vmem:[%s1 + $0x4d58] sm:$0xff]
  %v2527 = vld [vmem:[%s1 + $0x4d60] sm:$0xff]
  %v2528 = vld [vmem:[%s1 + $0x4d68] sm:$0xff]
  %v2529 = vld [vmem:[%s1 + $0x4d70] sm:$0xff]
  %v2530 = vld [vmem:[%s1 + $0x4d78] sm:$0xff]
  %v2531 = vld [vmem:[%s1 + $0x4d80] sm:$0xff]
  %v2532 = vld [vmem:[%s1 + $0x4d88] sm:$0xff]
  %v2533 = vld [vmem:[%s1 + $0x4d90] sm:$0xff]
  %v2534 = vld [vmem:[%s1 + $0x4d98] sm:$0xff]
  %v2535 = vld [vmem:[%s1 + $0x4da0] sm:$0xff]
  %v2536 = vld [vmem:[%s1 + $0x4da8] sm:$0xff]
  %v2537 = vld [vmem:[%s1 + $0x4db0] sm:$0xff]
  %v2538 = vld [vmem:[%s1 + $0x4db8] sm:$0xff]
  %v2539 = vld [vmem:[%s1 + $0x4dc0] sm:$0xff]
  %v2540 = vld [vmem:[%s1 + $0x4dc8] sm:$0xff]
  %v2541 = vld [vmem:[%s1 + $0x4dd0] sm:$0xff]
  %v2542 = vld [vmem:[%s1 + $0x4dd8] sm:$0xff]
  %v2543 = vld [vmem:[%s1 + $0x4de0] sm:$0xff]
  %v2544 = vld [vmem:[%s1 + $0x4de8] sm:$0xff]
  %v2545 = vld [vmem:[%s1 + $0x4df0] sm:$0xff]
  %v2546 = vld [vmem:[%s1 + $0x4df8] sm:$0xff]
  %v2547 = vld [vmem:[%s1 + $0x4e00] sm:$0xff]
  %v2548 = vld [vmem:[%s1 + $0x4e08] sm:$0xff]
  %v2549 = vld [vmem:[%s1 + $0x4e10] sm:$0xff]
  %v2550 = vld [vmem:[%s1 + $0x4e18] sm:$0xff]
  %v2551 = vld [vmem:[%s1 + $0x4e20] sm:$0xff]
  %v2552 = vld [vmem:[%s1 + $0x4e28] sm:$0xff]
  %v2553 = vld [vmem:[%s1 + $0x4e30] sm:$0xff]
  %v2554 = vld [vmem:[%s1 + $0x4e38] sm:$0xff]
  %v2555 = vld [vmem:[%s1 + $0x4e40] sm:$0xff]
  %v2556 = vld [vmem:[%s1 + $0x4e48] sm:$0xff]
  %v2557 = vld [vmem:[%s1 + $0x4e50] sm:$0xff]
  %v2558 = vld [vmem:[%s1 + $0x4e58] sm:$0xff]
  %v2559 = vld [vmem:[%s1 + $0x4e60] sm:$0xff]
  %v2560 = vld [vmem:[%s1 + $0x4e68] sm:$0xff]
  %v2561 = vld [vmem:[%s1 + $0x4e70] sm:$0xff]
  %v2562 = vld [vmem:[%s1 + $0x4e78] sm:$0xff]
  %v2563 = vld [vmem:[%s1 + $0x4e80] sm:$0xff]
  %v2564 = vld [vmem:[%s1 + $0x4e88] sm:$0xff]
  %v2565 = vld [vmem:[%s1 + $0x4e90] sm:$0xff]
  %v2566 = vld [vmem:[%s1 + $0x4e98] sm:$0xff]
  %v2567 = vld [vmem:[%s1 + $0x4ea0] sm:$0xff]
  %v2568 = vld [vmem:[%s1 + $0x4ea8] sm:$0xff]
  %v2569 = vld [vmem:[%s1 + $0x4eb0] sm:$0xff]
  %v2570 = vld [vmem:[%s1 + $0x4eb8] sm:$0xff]
  %v2571 = vld [vmem:[%s1 + $0x4ec0] sm:$0xff]
  %v2572 = vld [vmem:[%s1 + $0x4ec8] sm:$0xff]
  %v2573 = vld [vmem:[%s1 + $0x4ed0] sm:$0xff]
  %v2574 = vld [vmem:[%s1 + $0x4ed8] sm:$0xff]
  %v2575 = vld [vmem:[%s1 + $0x4ee0] sm:$0xff]
  %v2576 = vld [vmem:[%s1 + $0x4ee8] sm:$0xff]
  %v2577 = vld [vmem:[%s1 + $0x4ef0] sm:$0xff]
  %v2578 = vld [vmem:[%s1 + $0x4ef8] sm:$0xff]
  %v2579 = vld [vmem:[%s1 + $0x4f00] sm:$0xff]
  %v2580 = vld [vmem:[%s1 + $0x4f08] sm:$0xff]
  %v2581 = vld [vmem:[%s1 + $0x4f10] sm:$0xff]
  %v2582 = vld [vmem:[%s1 + $0x4f18] sm:$0xff]
  %v2583 = vld [vmem:[%s1 + $0x4f20] sm:$0xff]
  %v2584 = vld [vmem:[%s1 + $0x4f28] sm:$0xff]
  %v2585 = vld [vmem:[%s1 + $0x4f30] sm:$0xff]
  %v2586 = vld [vmem:[%s1 + $0x4f38] sm:$0xff]
  %v2587 = vld [vmem:[%s1 + $0x4f40] sm:$0xff]
  %v2588 = vld [vmem:[%s1 + $0x4f48] sm:$0xff]
  %v2589 = vld [vmem:[%s1 + $0x4f50] sm:$0xff]
  %v2590 = vld [vmem:[%s1 + $0x4f58] sm:$0xff]
  %v2591 = vld [vmem:[%s1 + $0x4f60] sm:$0xff]
  %v2592 = vld [vmem:[%s1 + $0x4f68] sm:$0xff]
  %v2593 = vld [vmem:[%s1 + $0x4f70] sm:$0xff]
  %v2594 = vld [vmem:[%s1 + $0x4f78] sm:$0xff]
  %v2595 = vld [vmem:[%s1 + $0x4f80] sm:$0xff]
  %v2596 = vld [vmem:[%s1 + $0x4f88] sm:$0xff]
  %v2597 = vld [vmem:[%s1 + $0x4f90] sm:$0xff]
  %v2598 = vld [vmem:[%s1 + $0x4f98] sm:$0xff]
  %v2599 = vld [vmem:[%s1 + $0x4fa0] sm:$0xff]
  %v2600 = vld [vmem:[%s1 + $0x4fa8] sm:$0xff]
  %v2601 = vld [vmem:[%s1 + $0x4fb0] sm:$0xff]
  %v2602 = vld [vmem:[%s1 + $0x4fb8] sm:$0xff]
  %v2603 = vld [vmem:[%s1 + $0x4fc0] sm:$0xff]
  %v2604 = vld [vmem:[%s1 + $0x4fc8] sm:$0xff]
  %v2605 = vld [vmem:[%s1 + $0x4fd0] sm:$0xff]
  %v2606 = vld [vmem:[%s1 + $0x4fd8] sm:$0xff]
  %v2607 = vld [vmem:[%s1 + $0x4fe0] sm:$0xff]
  %v2608 = vld [vmem:[%s1 + $0x4fe8] sm:$0xff]
  %v2609 = vld [vmem:[%s1 + $0x4ff0] sm:$0xff]
  %v2610 = vld [vmem:[%s1 + $0x4ff8] sm:$0xff]
  %v2611 = vld [vmem:[%s1 + $0x5000] sm:$0xff]
  %v2612 = vld [vmem:[%s1 + $0x5008] sm:$0xff]
  %v2613 = vld [vmem:[%s1 + $0x5010] sm:$0xff]
  %v2614 = vld [vmem:[%s1 + $0x5018] sm:$0xff]
  %v2615 = vld [vmem:[%s1 + $0x5020] sm:$0xff]
  %v2616 = vld [vmem:[%s1 + $0x5028] sm:$0xff]
  %v2617 = vld [vmem:[%s1 + $0x5030] sm:$0xff]
  %v2618 = vld [vmem:[%s1 + $0x5038] sm:$0xff]
  %v2619 = vld [vmem:[%s1 + $0x5040] sm:$0xff]
  %v2620 = vld [vmem:[%s1 + $0x5048] sm:$0xff]
  %v2621 = vld [vmem:[%s1 + $0x5050] sm:$0xff]
  %v2622 = vld [vmem:[%s1 + $0x5058] sm:$0xff]
  %v2623 = vld [vmem:[%s1 + $0x5060] sm:$0xff]
  %v2624 = vld [vmem:[%s1 + $0x5068] sm:$0xff]
  %v2625 = vld [vmem:[%s1 + $0x5070] sm:$0xff]
  %v2626 = vld [vmem:[%s1 + $0x5078] sm:$0xff]
  %v2627 = vld [vmem:[%s1 + $0x5080] sm:$0xff]
  %v2628 = vld [vmem:[%s1 + $0x5088] sm:$0xff]
  %v2629 = vld [vmem:[%s1 + $0x5090] sm:$0xff]
  %v2630 = vld [vmem:[%s1 + $0x5098] sm:$0xff]
  %v2631 = vld [vmem:[%s1 + $0x50a0] sm:$0xff]
  %v2632 = vld [vmem:[%s1 + $0x50a8] sm:$0xff]
  %v2633 = vld [vmem:[%s1 + $0x50b0] sm:$0xff]
  %v2634 = vld [vmem:[%s1 + $0x50b8] sm:$0xff]
  %v2635 = vld [vmem:[%s1 + $0x50c0] sm:$0xff]
  %v2636 = vld [vmem:[%s1 + $0x50c8] sm:$0xff]
  %v2637 = vld [vmem:[%s1 + $0x50d0] sm:$0xff]
  %v2638 = vld [vmem:[%s1 + $0x50d8] sm:$0xff]
  %v2639 = vld [vmem:[%s1 + $0x50e0] sm:$0xff]
  %v2640 = vld [vmem:[%s1 + $0x50e8] sm:$0xff]
  %v2641 = vld [vmem:[%s1 + $0x50f0] sm:$0xff]
  %v2642 = vld [vmem:[%s1 + $0x50f8] sm:$0xff]
  %v2643 = vld [vmem:[%s1 + $0x5100] sm:$0xff]
  %v2644 = vld [vmem:[%s1 + $0x5108] sm:$0xff]
  %v2645 = vld [vmem:[%s1 + $0x5110] sm:$0xff]
  %v2646 = vld [vmem:[%s1 + $0x5118] sm:$0xff]
  %v2647 = vld [vmem:[%s1 + $0x5120] sm:$0xff]
  %v2648 = vld [vmem:[%s1 + $0x5128] sm:$0xff]
  %v2649 = vld [vmem:[%s1 + $0x5130] sm:$0xff]
  %v2650 = vld [vmem:[%s1 + $0x5138] sm:$0xff]
  %v2651 = vld [vmem:[%s1 + $0x5140] sm:$0xff]
  %v2652 = vld [vmem:[%s1 + $0x5148] sm:$0xff]
  %v2653 = vld [vmem:[%s1 + $0x5150] sm:$0xff]
  %v2654 = vld [vmem:[%s1 + $0x5158] sm:$0xff]
  %v2655 = vld [vmem:[%s1 + $0x5160] sm:$0xff]
  %v2656 = vld [vmem:[%s1 + $0x5168] sm:$0xff]
  %v2657 = vld [vmem:[%s1 + $0x5170] sm:$0xff]
  %v2658 = vld [vmem:[%s1 + $0x5178] sm:$0xff]
  %v2659 = vld [vmem:[%s1 + $0x5180] sm:$0xff]
  %v2660 = vld [vmem:[%s1 + $0x5188] sm:$0xff]
  %v2661 = vld [vmem:[%s1 + $0x5190] sm:$0xff]
  %v2662 = vld [vmem:[%s1 + $0x5198] sm:$0xff]
  %v2663 = vld [vmem:[%s1 + $0x51a0] sm:$0xff]
  %v2664 = vld [vmem:[%s1 + $0x51a8] sm:$0xff]
  %v2665 = vld [vmem:[%s1 + $0x51b0] sm:$0xff]
  %v2666 = vld [vmem:[%s1 + $0x51b8] sm:$0xff]
  %v2667 = vld [vmem:[%s1 + $0x51c0] sm:$0xff]
  %v2668 = vld [vmem:[%s1 + $0x51c8] sm:$0xff]
  %v2669 = vld [vmem:[%s1 + $0x51d0] sm:$0xff]
  %v2670 = vld [vmem:[%s1 + $0x51d8] sm:$0xff]
  %v2671 = vld [vmem:[%s1 + $0x51e0] sm:$0xff]
  %v2672 = vld [vmem:[%s1 + $0x51e8] sm:$0xff]
  %v2673 = vld [vmem:[%s1 + $0x51f0] sm:$0xff]
  %v2674 = vld [vmem:[%s1 + $0x51f8] sm:$0xff]
  %v2675 = vld [vmem:[%s1 + $0x5200] sm:$0xff]
  %v2676 = vld [vmem:[%s1 + $0x5208] sm:$0xff]
  %v2677 = vld [vmem:[%s1 + $0x5210] sm:$0xff]
  %v2678 = vld [vmem:[%s1 + $0x5218] sm:$0xff]
  %v2679 = vld [vmem:[%s1 + $0x5220] sm:$0xff]
  %v2680 = vld [vmem:[%s1 + $0x5228] sm:$0xff]
  %v2681 = vld [vmem:[%s1 + $0x5230] sm:$0xff]
  %v2682 = vld [vmem:[%s1 + $0x5238] sm:$0xff]
  %v2683 = vld [vmem:[%s1 + $0x5240] sm:$0xff]
  %v2684 = vld [vmem:[%s1 + $0x5248] sm:$0xff]
  %v2685 = vld [vmem:[%s1 + $0x5250] sm:$0xff]
  %v2686 = vld [vmem:[%s1 + $0x5258] sm:$0xff]
  %v2687 = vld [vmem:[%s1 + $0x5260] sm:$0xff]
  %v2688 = vld [vmem:[%s1 + $0x5268] sm:$0xff]
  %v2689 = vld [vmem:[%s1 + $0x5270] sm:$0xff]
  %v2690 = vld [vmem:[%s1 + $0x5278] sm:$0xff]
  %v2691 = vld [vmem:[%s1 + $0x5280] sm:$0xff]
  %v2692 = vld [vmem:[%s1 + $0x5288] sm:$0xff]
  %v2693 = vld [vmem:[%s1 + $0x5290] sm:$0xff]
  %v2694 = vld [vmem:[%s1 + $0x5298] sm:$0xff]
  %v2695 = vld [vmem:[%s1 + $0x52a0] sm:$0xff]
  %v2696 = vld [vmem:[%s1 + $0x52a8] sm:$0xff]
  %v2697 = vld [vmem:[%s1 + $0x52b0] sm:$0xff]
  %v2698 = vld [vmem:[%s1 + $0x52b8] sm:$0xff]
  %v2699 = vld [vmem:[%s1 + $0x52c0] sm:$0xff]
  %v2700 = vld [vmem:[%s1 + $0x52c8] sm:$0xff]
  %v2701 = vld [vmem:[%s1 + $0x52d0] sm:$0xff]
  %v2702 = vld [vmem:[%s1 + $0x52d8] sm:$0xff]
  %v2703 = vld [vmem:[%s1 + $0x52e0] sm:$0xff]
  %v2704 = vld [vmem:[%s1 + $0x52e8] sm:$0xff]
  %v2705 = vld [vmem:[%s1 + $0x52f0] sm:$0xff]
  %v2706 = vld [vmem:[%s1 + $0x52f8] sm:$0xff]
  %v2707 = vld [vmem:[%s1 + $0x5300] sm:$0xff]
  %v2708 = vld [vmem:[%s1 + $0x5308] sm:$0xff]
  %v2709 = vld [vmem:[%s1 + $0x5310] sm:$0xff]
  %v2710 = vld [vmem:[%s1 + $0x5318] sm:$0xff]
  %v2711 = vld [vmem:[%s1 + $0x5320] sm:$0xff]
  %v2712 = vld [vmem:[%s1 + $0x5328] sm:$0xff]
  %v2713 = vld [vmem:[%s1 + $0x5330] sm:$0xff]
  %v2714 = vld [vmem:[%s1 + $0x5338] sm:$0xff]
  %v2715 = vld [vmem:[%s1 + $0x5340] sm:$0xff]
  %v2716 = vld [vmem:[%s1 + $0x5348] sm:$0xff]
  %v2717 = vld [vmem:[%s1 + $0x5350] sm:$0xff]
  %v2718 = vld [vmem:[%s1 + $0x5358] sm:$0xff]
  %v2719 = vld [vmem:[%s1 + $0x5360] sm:$0xff]
  %v2720 = vld [vmem:[%s1 + $0x5368] sm:$0xff]
  %v2721 = vld [vmem:[%s1 + $0x5370] sm:$0xff]
  %v2722 = vld [vmem:[%s1 + $0x5378] sm:$0xff]
  %v2723 = vld [vmem:[%s1 + $0x5380] sm:$0xff]
  %v2724 = vld [vmem:[%s1 + $0x5388] sm:$0xff]
  %v2725 = vld [vmem:[%s1 + $0x5390] sm:$0xff]
  %v2726 = vld [vmem:[%s1 + $0x5398] sm:$0xff]
  %v2727 = vld [vmem:[%s1 + $0x53a0] sm:$0xff]
  %v2728 = vld [vmem:[%s1 + $0x53a8] sm:$0xff]
  %v2729 = vld [vmem:[%s1 + $0x53b0] sm:$0xff]
  %v2730 = vld [vmem:[%s1 + $0x53b8] sm:$0xff]
  %v2731 = vld [vmem:[%s1 + $0x53c0] sm:$0xff]
  %v2732 = vld [vmem:[%s1 + $0x53c8] sm:$0xff]
  %v2733 = vld [vmem:[%s1 + $0x53d0] sm:$0xff]
  %v2734 = vld [vmem:[%s1 + $0x53d8] sm:$0xff]
  %v2735 = vld [vmem:[%s1 + $0x53e0] sm:$0xff]
  %v2736 = vld [vmem:[%s1 + $0x53e8] sm:$0xff]
  %v2737 = vld [vmem:[%s1 + $0x53f0] sm:$0xff]
  %v2738 = vld [vmem:[%s1 + $0x53f8] sm:$0xff]
  %v2739 = vld [vmem:[%s1 + $0x5400] sm:$0xff]
  %v2740 = vld [vmem:[%s1 + $0x5408] sm:$0xff]
  %v2741 = vld [vmem:[%s1 + $0x5410] sm:$0xff]
  %v2742 = vld [vmem:[%s1 + $0x5418] sm:$0xff]
  %v2743 = vld [vmem:[%s1 + $0x5420] sm:$0xff]
  %v2744 = vld [vmem:[%s1 + $0x5428] sm:$0xff]
  %v2745 = vld [vmem:[%s1 + $0x5430] sm:$0xff]
  %v2746 = vld [vmem:[%s1 + $0x5438] sm:$0xff]
  %v2747 = vld [vmem:[%s1 + $0x5440] sm:$0xff]
  %v2748 = vld [vmem:[%s1 + $0x5448] sm:$0xff]
  %v2749 = vld [vmem:[%s1 + $0x5450] sm:$0xff]
  %v2750 = vld [vmem:[%s1 + $0x5458] sm:$0xff]
  %v2751 = vld [vmem:[%s1 + $0x5460] sm:$0xff]
  %v2752 = vld [vmem:[%s1 + $0x5468] sm:$0xff]
  %v2753 = vld [vmem:[%s1 + $0x5470] sm:$0xff]
  %v2754 = vld [vmem:[%s1 + $0x5478] sm:$0xff]
  %v2755 = vld [vmem:[%s1 + $0x5480] sm:$0xff]
  %v2756 = vld [vmem:[%s1 + $0x5488] sm:$0xff]
  %v2757 = vld [vmem:[%s1 + $0x5490] sm:$0xff]
  %v2758 = vld [vmem:[%s1 + $0x5498] sm:$0xff]
  %v2759 = vld [vmem:[%s1 + $0x54a0] sm:$0xff]
  %v2760 = vld [vmem:[%s1 + $0x54a8] sm:$0xff]
  %v2761 = vld [vmem:[%s1 + $0x54b0] sm:$0xff]
  %v2762 = vld [vmem:[%s1 + $0x54b8] sm:$0xff]
  %v2763 = vld [vmem:[%s1 + $0x54c0] sm:$0xff]
  %v2764 = vld [vmem:[%s1 + $0x54c8] sm:$0xff]
  %v2765 = vld [vmem:[%s1 + $0x54d0] sm:$0xff]
  %v2766 = vld [vmem:[%s1 + $0x54d8] sm:$0xff]
  %v2767 = vld [vmem:[%s1 + $0x54e0] sm:$0xff]
  %v2768 = vld [vmem:[%s1 + $0x54e8] sm:$0xff]
  %v2769 = vld [vmem:[%s1 + $0x54f0] sm:$0xff]
  %v2770 = vld [vmem:[%s1 + $0x54f8] sm:$0xff]
  %v2771 = vld [vmem:[%s1 + $0x5500] sm:$0xff]
  %v2772 = vld [vmem:[%s1 + $0x5508] sm:$0xff]
  %v2773 = vld [vmem:[%s1 + $0x5510] sm:$0xff]
  %v2774 = vld [vmem:[%s1 + $0x5518] sm:$0xff]
  %v2775 = vld [vmem:[%s1 + $0x5520] sm:$0xff]
  %v2776 = vld [vmem:[%s1 + $0x5528] sm:$0xff]
  %v2777 = vld [vmem:[%s1 + $0x5530] sm:$0xff]
  %v2778 = vld [vmem:[%s1 + $0x5538] sm:$0xff]
  %v2779 = vld [vmem:[%s1 + $0x5540] sm:$0xff]
  %v2780 = vld [vmem:[%s1 + $0x5548] sm:$0xff]
  %v2781 = vld [vmem:[%s1 + $0x5550] sm:$0xff]
  %v2782 = vld [vmem:[%s1 + $0x5558] sm:$0xff]
  %v2783 = vld [vmem:[%s1 + $0x5560] sm:$0xff]
  %v2784 = vld [vmem:[%s1 + $0x5568] sm:$0xff]
  %v2785 = vld [vmem:[%s1 + $0x5570] sm:$0xff]
  %v2786 = vld [vmem:[%s1 + $0x5578] sm:$0xff]
  %v2787 = vld [vmem:[%s1 + $0x5580] sm:$0xff]
  %v2788 = vld [vmem:[%s1 + $0x5588] sm:$0xff]
  %v2789 = vld [vmem:[%s1 + $0x5590] sm:$0xff]
  %v2790 = vld [vmem:[%s1 + $0x5598] sm:$0xff]
  %v2791 = vld [vmem:[%s1 + $0x55a0] sm:$0xff]
  %v2792 = vld [vmem:[%s1 + $0x55a8] sm:$0xff]
  %v2793 = vld [vmem:[%s1 + $0x55b0] sm:$0xff]
  %v2794 = vld [vmem:[%s1 + $0x55b8] sm:$0xff]
  %v2795 = vld [vmem:[%s1 + $0x55c0] sm:$0xff]
  %v2796 = vld [vmem:[%s1 + $0x55c8] sm:$0xff]
  %v2797 = vld [vmem:[%s1 + $0x55d0] sm:$0xff]
  %v2798 = vld [vmem:[%s1 + $0x55d8] sm:$0xff]
  %v2799 = vld [vmem:[%s1 + $0x55e0] sm:$0xff]
  %v2800 = vld [vmem:[%s1 + $0x55e8] sm:$0xff]
  %v2801 = vld [vmem:[%s1 + $0x55f0] sm:$0xff]
  %v2802 = vld [vmem:[%s1 + $0x55f8] sm:$0xff]
  %v2803 = vld [vmem:[%s1 + $0x5600] sm:$0xff]
  %v2804 = vld [vmem:[%s1 + $0x5608] sm:$0xff]
  %v2805 = vld [vmem:[%s1 + $0x5610] sm:$0xff]
  %v2806 = vld [vmem:[%s1 + $0x5618] sm:$0xff]
  %v2807 = vld [vmem:[%s1 + $0x5620] sm:$0xff]
  %v2808 = vld [vmem:[%s1 + $0x5628] sm:$0xff]
  %v2809 = vld [vmem:[%s1 + $0x5630] sm:$0xff]
  %v2810 = vld [vmem:[%s1 + $0x5638] sm:$0xff]
  %v2811 = vld [vmem:[%s1 + $0x5640] sm:$0xff]
  %v2812 = vld [vmem:[%s1 + $0x5648] sm:$0xff]
  %v2813 = vld [vmem:[%s1 + $0x5650] sm:$0xff]
  %v2814 = vld [vmem:[%s1 + $0x5658] sm:$0xff]
  %v2815 = vld [vmem:[%s1 + $0x5660] sm:$0xff]
  %v2816 = vld [vmem:[%s1 + $0x5668] sm:$0xff]
  %v2817 = vld [vmem:[%s1 + $0x5670] sm:$0xff]
  %v2818 = vld [vmem:[%s1 + $0x5678] sm:$0xff]
  %v2819 = vld [vmem:[%s1 + $0x5680] sm:$0xff]
  %v2820 = vld [vmem:[%s1 + $0x5688] sm:$0xff]
  %v2821 = vld [vmem:[%s1 + $0x5690] sm:$0xff]
  %v2822 = vld [vmem:[%s1 + $0x5698] sm:$0xff]
  %v2823 = vld [vmem:[%s1 + $0x56a0] sm:$0xff]
  %v2824 = vld [vmem:[%s1 + $0x56a8] sm:$0xff]
  %v2825 = vld [vmem:[%s1 + $0x56b0] sm:$0xff]
  %v2826 = vld [vmem:[%s1 + $0x56b8] sm:$0xff]
  %v2827 = vld [vmem:[%s1 + $0x56c0] sm:$0xff]
  %v2828 = vld [vmem:[%s1 + $0x56c8] sm:$0xff]
  %v2829 = vld [vmem:[%s1 + $0x56d0] sm:$0xff]
  %v2830 = vld [vmem:[%s1 + $0x56d8] sm:$0xff]
  %v2831 = vld [vmem:[%s1 + $0x56e0] sm:$0xff]
  %v2832 = vld [vmem:[%s1 + $0x56e8] sm:$0xff]
  %v2833 = vld [vmem:[%s1 + $0x56f0] sm:$0xff]
  %v2834 = vld [vmem:[%s1 + $0x56f8] sm:$0xff]
  %v2835 = vld [vmem:[%s1 + $0x5700] sm:$0xff]
  %v2836 = vld [vmem:[%s1 + $0x5708] sm:$0xff]
  %v2837 = vld [vmem:[%s1 + $0x5710] sm:$0xff]
  %v2838 = vld [vmem:[%s1 + $0x5718] sm:$0xff]
  %v2839 = vld [vmem:[%s1 + $0x5720] sm:$0xff]
  %v2840 = vld [vmem:[%s1 + $0x5728] sm:$0xff]
  %v2841 = vld [vmem:[%s1 + $0x5730] sm:$0xff]
  %v2842 = vld [vmem:[%s1 + $0x5738] sm:$0xff]
  %v2843 = vld [vmem:[%s1 + $0x5740] sm:$0xff]
  %v2844 = vld [vmem:[%s1 + $0x5748] sm:$0xff]
  %v2845 = vld [vmem:[%s1 + $0x5750] sm:$0xff]
  %v2846 = vld [vmem:[%s1 + $0x5758] sm:$0xff]
  %v2847 = vld [vmem:[%s1 + $0x5760] sm:$0xff]
  %v2848 = vld [vmem:[%s1 + $0x5768] sm:$0xff]
  %v2849 = vld [vmem:[%s1 + $0x5770] sm:$0xff]
  %v2850 = vld [vmem:[%s1 + $0x5778] sm:$0xff]
  %v2851 = vld [vmem:[%s1 + $0x5780] sm:$0xff]
  %v2852 = vld [vmem:[%s1 + $0x5788] sm:$0xff]
  %v2853 = vld [vmem:[%s1 + $0x5790] sm:$0xff]
  %v2854 = vld [vmem:[%s1 + $0x5798] sm:$0xff]
  %v2855 = vld [vmem:[%s1 + $0x57a0] sm:$0xff]
  %v2856 = vld [vmem:[%s1 + $0x57a8] sm:$0xff]
  %v2857 = vld [vmem:[%s1 + $0x57b0] sm:$0xff]
  %v2858 = vld [vmem:[%s1 + $0x57b8] sm:$0xff]
  %v2859 = vld [vmem:[%s1 + $0x57c0] sm:$0xff]
  %v2860 = vld [vmem:[%s1 + $0x57c8] sm:$0xff]
  %v2861 = vld [vmem:[%s1 + $0x57d0] sm:$0xff]
  %v2862 = vld [vmem:[%s1 + $0x57d8] sm:$0xff]
  %v2863 = vld [vmem:[%s1 + $0x57e0] sm:$0xff]
  %v2864 = vld [vmem:[%s1 + $0x57e8] sm:$0xff]
  %v2865 = vld [vmem:[%s1 + $0x57f0] sm:$0xff]
  %v2866 = vld [vmem:[%s1 + $0x57f8] sm:$0xff]
  %v2867 = vld [vmem:[%s1 + $0x5800] sm:$0xff]
  %v2868 = vld [vmem:[%s1 + $0x5808] sm:$0xff]
  %v2869 = vld [vmem:[%s1 + $0x5810] sm:$0xff]
  %v2870 = vld [vmem:[%s1 + $0x5818] sm:$0xff]
  %v2871 = vld [vmem:[%s1 + $0x5820] sm:$0xff]
  %v2872 = vld [vmem:[%s1 + $0x5828] sm:$0xff]
  %v2873 = vld [vmem:[%s1 + $0x5830] sm:$0xff]
  %v2874 = vld [vmem:[%s1 + $0x5838] sm:$0xff]
  %v2875 = vld [vmem:[%s1 + $0x5840] sm:$0xff]
  %v2876 = vld [vmem:[%s1 + $0x5848] sm:$0xff]
  %v2877 = vld [vmem:[%s1 + $0x5850] sm:$0xff]
  %v2878 = vld [vmem:[%s1 + $0x5858] sm:$0xff]
  %v2879 = vld [vmem:[%s1 + $0x5860] sm:$0xff]
  %v2880 = vld [vmem:[%s1 + $0x5868] sm:$0xff]
  %v2881 = vld [vmem:[%s1 + $0x5870] sm:$0xff]
  %v2882 = vld [vmem:[%s1 + $0x5878] sm:$0xff]
  %v2883 = vld [vmem:[%s1 + $0x5880] sm:$0xff]
  %v2884 = vld [vmem:[%s1 + $0x5888] sm:$0xff]
  %v2885 = vld [vmem:[%s1 + $0x5890] sm:$0xff]
  %v2886 = vld [vmem:[%s1 + $0x5898] sm:$0xff]
  %v2887 = vld [vmem:[%s1 + $0x58a0] sm:$0xff]
  %v2888 = vld [vmem:[%s1 + $0x58a8] sm:$0xff]
  %v2889 = vld [vmem:[%s1 + $0x58b0] sm:$0xff]
  %v2890 = vld [vmem:[%s1 + $0x58b8] sm:$0xff]
  %v2891 = vld [vmem:[%s1 + $0x58c0] sm:$0xff]
  %v2892 = vld [vmem:[%s1 + $0x58c8] sm:$0xff]
  %v2893 = vld [vmem:[%s1 + $0x58d0] sm:$0xff]
  %v2894 = vld [vmem:[%s1 + $0x58d8] sm:$0xff]
  %v2895 = vld [vmem:[%s1 + $0x58e0] sm:$0xff]
  %v2896 = vld [vmem:[%s1 + $0x58e8] sm:$0xff]
  %v2897 = vld [vmem:[%s1 + $0x58f0] sm:$0xff]
  %v2898 = vld [vmem:[%s1 + $0x58f8] sm:$0xff]
  %v2899 = vld [vmem:[%s1 + $0x5900] sm:$0xff]
  %v2900 = vld [vmem:[%s1 + $0x5908] sm:$0xff]
  %v2901 = vld [vmem:[%s1 + $0x5910] sm:$0xff]
  %v2902 = vld [vmem:[%s1 + $0x5918] sm:$0xff]
  %v2903 = vld [vmem:[%s1 + $0x5920] sm:$0xff]
  %v2904 = vld [vmem:[%s1 + $0x5928] sm:$0xff]
  %v2905 = vld [vmem:[%s1 + $0x5930] sm:$0xff]
  %v2906 = vld [vmem:[%s1 + $0x5938] sm:$0xff]
  %v2907 = vld [vmem:[%s1 + $0x5940] sm:$0xff]
  %v2908 = vld [vmem:[%s1 + $0x5948] sm:$0xff]
  %v2909 = vld [vmem:[%s1 + $0x5950] sm:$0xff]
  %v2910 = vld [vmem:[%s1 + $0x5958] sm:$0xff]
  %v2911 = vld [vmem:[%s1 + $0x5960] sm:$0xff]
  %v2912 = vld [vmem:[%s1 + $0x5968] sm:$0xff]
  %v2913 = vld [vmem:[%s1 + $0x5970] sm:$0xff]
  %v2914 = vld [vmem:[%s1 + $0x5978] sm:$0xff]
  %v2915 = vld [vmem:[%s1 + $0x5980] sm:$0xff]
  %v2916 = vld [vmem:[%s1 + $0x5988] sm:$0xff]
  %v2917 = vld [vmem:[%s1 + $0x5990] sm:$0xff]
  %v2918 = vld [vmem:[%s1 + $0x5998] sm:$0xff]
  %v2919 = vld [vmem:[%s1 + $0x59a0] sm:$0xff]
  %v2920 = vld [vmem:[%s1 + $0x59a8] sm:$0xff]
  %v2921 = vld [vmem:[%s1 + $0x59b0] sm:$0xff]
  %v2922 = vld [vmem:[%s1 + $0x59b8] sm:$0xff]
  %v2923 = vld [vmem:[%s1 + $0x59c0] sm:$0xff]
  %v2924 = vld [vmem:[%s1 + $0x59c8] sm:$0xff]
  %v2925 = vld [vmem:[%s1 + $0x59d0] sm:$0xff]
  %v2926 = vld [vmem:[%s1 + $0x59d8] sm:$0xff]
  %v2927 = vld [vmem:[%s1 + $0x59e0] sm:$0xff]
  %v2928 = vld [vmem:[%s1 + $0x59e8] sm:$0xff]
  %v2929 = vld [vmem:[%s1 + $0x59f0] sm:$0xff]
  %v2930 = vld [vmem:[%s1 + $0x59f8] sm:$0xff]
  %v2931 = vld [vmem:[%s1 + $0x5a00] sm:$0xff]
  %v2932 = vld [vmem:[%s1 + $0x5a08] sm:$0xff]
  %v2933 = vld [vmem:[%s1 + $0x5a10] sm:$0xff]
  %v2934 = vld [vmem:[%s1 + $0x5a18] sm:$0xff]
  %v2935 = vld [vmem:[%s1 + $0x5a20] sm:$0xff]
  %v2936 = vld [vmem:[%s1 + $0x5a28] sm:$0xff]
  %v2937 = vld [vmem:[%s1 + $0x5a30] sm:$0xff]
  %v2938 = vld [vmem:[%s1 + $0x5a38] sm:$0xff]
  %v2939 = vld [vmem:[%s1 + $0x5a40] sm:$0xff]
  %v2940 = vld [vmem:[%s1 + $0x5a48] sm:$0xff]
  %v2941 = vld [vmem:[%s1 + $0x5a50] sm:$0xff]
  %v2942 = vld [vmem:[%s1 + $0x5a58] sm:$0xff]
  %v2943 = vld [vmem:[%s1 + $0x5a60] sm:$0xff]
  %v2944 = vld [vmem:[%s1 + $0x5a68] sm:$0xff]
  %v2945 = vld [vmem:[%s1 + $0x5a70] sm:$0xff]
  %v2946 = vld [vmem:[%s1 + $0x5a78] sm:$0xff]
  %v2947 = vld [vmem:[%s1 + $0x5a80] sm:$0xff]
  %v2948 = vld [vmem:[%s1 + $0x5a88] sm:$0xff]
  %v2949 = vld [vmem:[%s1 + $0x5a90] sm:$0xff]
  %v2950 = vld [vmem:[%s1 + $0x5a98] sm:$0xff]
  %v2951 = vld [vmem:[%s1 + $0x5aa0] sm:$0xff]
  %v2952 = vld [vmem:[%s1 + $0x5aa8] sm:$0xff]
  %v2953 = vld [vmem:[%s1 + $0x5ab0] sm:$0xff]
  %v2954 = vld [vmem:[%s1 + $0x5ab8] sm:$0xff]
  %v2955 = vld [vmem:[%s1 + $0x5ac0] sm:$0xff]
  %v2956 = vld [vmem:[%s1 + $0x5ac8] sm:$0xff]
  %v2957 = vld [vmem:[%s1 + $0x5ad0] sm:$0xff]
  %v2958 = vld [vmem:[%s1 + $0x5ad8] sm:$0xff]
  %v2959 = vld [vmem:[%s1 + $0x5ae0] sm:$0xff]
  %v2960 = vld [vmem:[%s1 + $0x5ae8] sm:$0xff]
  %v2961 = vld [vmem:[%s1 + $0x5af0] sm:$0xff]
  %v2962 = vld [vmem:[%s1 + $0x5af8] sm:$0xff]
  %v2963 = vld [vmem:[%s1 + $0x5b00] sm:$0xff]
  %v2964 = vld [vmem:[%s1 + $0x5b08] sm:$0xff]
  %v2965 = vld [vmem:[%s1 + $0x5b10] sm:$0xff]
  %v2966 = vld [vmem:[%s1 + $0x5b18] sm:$0xff]
  %v2967 = vld [vmem:[%s1 + $0x5b20] sm:$0xff]
  %v2968 = vld [vmem:[%s1 + $0x5b28] sm:$0xff]
  %v2969 = vld [vmem:[%s1 + $0x5b30] sm:$0xff]
  %v2970 = vld [vmem:[%s1 + $0x5b38] sm:$0xff]
  %v2971 = vld [vmem:[%s1 + $0x5b40] sm:$0xff]
  %v2972 = vld [vmem:[%s1 + $0x5b48] sm:$0xff]
  %v2973 = vld [vmem:[%s1 + $0x5b50] sm:$0xff]
  %v2974 = vld [vmem:[%s1 + $0x5b58] sm:$0xff]
  %v2975 = vld [vmem:[%s1 + $0x5b60] sm:$0xff]
  %v2976 = vld [vmem:[%s1 + $0x5b68] sm:$0xff]
  %v2977 = vld [vmem:[%s1 + $0x5b70] sm:$0xff]
  %v2978 = vld [vmem:[%s1 + $0x5b78] sm:$0xff]
  %v2979 = vld [vmem:[%s1 + $0x5b80] sm:$0xff]
  %v2980 = vld [vmem:[%s1 + $0x5b88] sm:$0xff]
  %v2981 = vld [vmem:[%s1 + $0x5b90] sm:$0xff]
  %v2982 = vld [vmem:[%s1 + $0x5b98] sm:$0xff]
  %v2983 = vld [vmem:[%s1 + $0x5ba0] sm:$0xff]
  %v2984 = vld [vmem:[%s1 + $0x5ba8] sm:$0xff]
  %v2985 = vld [vmem:[%s1 + $0x5bb0] sm:$0xff]
  %v2986 = vld [vmem:[%s1 + $0x5bb8] sm:$0xff]
  %v2987 = vld [vmem:[%s1 + $0x5bc0] sm:$0xff]
  %v2988 = vld [vmem:[%s1 + $0x5bc8] sm:$0xff]
  %v2989 = vld [vmem:[%s1 + $0x5bd0] sm:$0xff]
  %v2990 = vld [vmem:[%s1 + $0x5bd8] sm:$0xff]
  %v2991 = vld [vmem:[%s1 + $0x5be0] sm:$0xff]
  %v2992 = vld [vmem:[%s1 + $0x5be8] sm:$0xff]
  %v2993 = vld [vmem:[%s1 + $0x5bf0] sm:$0xff]
  %v2994 = vld [vmem:[%s1 + $0x5bf8] sm:$0xff]
  %v2995 = vld [vmem:[%s1 + $0x5c00] sm:$0xff]
  %v2996 = vld [vmem:[%s1 + $0x5c08] sm:$0xff]
  %v2997 = vld [vmem:[%s1 + $0x5c10] sm:$0xff]
  %v2998 = vld [vmem:[%s1 + $0x5c18] sm:$0xff]
  %v2999 = vld [vmem:[%s1 + $0x5c20] sm:$0xff]
  %v3000 = vld [vmem:[%s1 + $0x5c28] sm:$0xff]
  %v3001 = vld [vmem:[%s1 + $0x5c30] sm:$0xff]
  %v3002 = vld [vmem:[%s1 + $0x5c38] sm:$0xff]
  %v3003 = vld [vmem:[%s1 + $0x5c40] sm:$0xff]
  %v3004 = vld [vmem:[%s1 + $0x5c48] sm:$0xff]
  %v3005 = vld [vmem:[%s1 + $0x5c50] sm:$0xff]
  %v3006 = vld [vmem:[%s1 + $0x5c58] sm:$0xff]
  %v3007 = vld [vmem:[%s1 + $0x5c60] sm:$0xff]
  %v3008 = vld [vmem:[%s1 + $0x5c68] sm:$0xff]
  %v3009 = vld [vmem:[%s1 + $0x5c70] sm:$0xff]
  %v3010 = vld [vmem:[%s1 + $0x5c78] sm:$0xff]
  %v3011 = vld [vmem:[%s1 + $0x5c80] sm:$0xff]
  %v3012 = vld [vmem:[%s1 + $0x5c88] sm:$0xff]
  %v3013 = vld [vmem:[%s1 + $0x5c90] sm:$0xff]
  %v3014 = vld [vmem:[%s1 + $0x5c98] sm:$0xff]
  %v3015 = vld [vmem:[%s1 + $0x5ca0] sm:$0xff]
  %v3016 = vld [vmem:[%s1 + $0x5ca8] sm:$0xff]
  %v3017 = vld [vmem:[%s1 + $0x5cb0] sm:$0xff]
  %v3018 = vld [vmem:[%s1 + $0x5cb8] sm:$0xff]
  %v3019 = vld [vmem:[%s1 + $0x5cc0] sm:$0xff]
  %v3020 = vld [vmem:[%s1 + $0x5cc8] sm:$0xff]
  %v3021 = vld [vmem:[%s1 + $0x5cd0] sm:$0xff]
  %v3022 = vld [vmem:[%s1 + $0x5cd8] sm:$0xff]
  %v3023 = vld [vmem:[%s1 + $0x5ce0] sm:$0xff]
  %v3024 = vld [vmem:[%s1 + $0x5ce8] sm:$0xff]
  %v3025 = vld [vmem:[%s1 + $0x5cf0] sm:$0xff]
  %v3026 = vld [vmem:[%s1 + $0x5cf8] sm:$0xff]
  %v3027 = vld [vmem:[%s1 + $0x5d00] sm:$0xff]
  %v3028 = vld [vmem:[%s1 + $0x5d08] sm:$0xff]
  %v3029 = vld [vmem:[%s1 + $0x5d10] sm:$0xff]
  %v3030 = vld [vmem:[%s1 + $0x5d18] sm:$0xff]
  %v3031 = vld [vmem:[%s1 + $0x5d20] sm:$0xff]
  %v3032 = vld [vmem:[%s1 + $0x5d28] sm:$0xff]
  %v3033 = vld [vmem:[%s1 + $0x5d30] sm:$0xff]
  %v3034 = vld [vmem:[%s1 + $0x5d38] sm:$0xff]
  %v3035 = vld [vmem:[%s1 + $0x5d40] sm:$0xff]
  %v3036 = vld [vmem:[%s1 + $0x5d48] sm:$0xff]
  %v3037 = vld [vmem:[%s1 + $0x5d50] sm:$0xff]
  %v3038 = vld [vmem:[%s1 + $0x5d58] sm:$0xff]
  %v3039 = vld [vmem:[%s1 + $0x5d60] sm:$0xff]
  %v3040 = vld [vmem:[%s1 + $0x5d68] sm:$0xff]
  %v3041 = vld [vmem:[%s1 + $0x5d70] sm:$0xff]
  %v3042 = vld [vmem:[%s1 + $0x5d78] sm:$0xff]
  %v3043 = vld [vmem:[%s1 + $0x5d80] sm:$0xff]
  %v3044 = vld [vmem:[%s1 + $0x5d88] sm:$0xff]
  %v3045 = vld [vmem:[%s1 + $0x5d90] sm:$0xff]
  %v3046 = vld [vmem:[%s1 + $0x5d98] sm:$0xff]
  %v3047 = vld [vmem:[%s1 + $0x5da0] sm:$0xff]
  %v3048 = vld [vmem:[%s1 + $0x5da8] sm:$0xff]
  %v3049 = vld [vmem:[%s1 + $0x5db0] sm:$0xff]
  %v3050 = vld [vmem:[%s1 + $0x5db8] sm:$0xff]
  %v3051 = vld [vmem:[%s1 + $0x5dc0] sm:$0xff]
  %v3052 = vld [vmem:[%s1 + $0x5dc8] sm:$0xff]
  %v3053 = vld [vmem:[%s1 + $0x5dd0] sm:$0xff]
  %v3054 = vld [vmem:[%s1 + $0x5dd8] sm:$0xff]
  %v3055 = vld [vmem:[%s1 + $0x5de0] sm:$0xff]
  %v3056 = vld [vmem:[%s1 + $0x5de8] sm:$0xff]
  %v3057 = vld [vmem:[%s1 + $0x5df0] sm:$0xff]
  %v3058 = vld [vmem:[%s1 + $0x5df8] sm:$0xff]
  %v3059 = vld [vmem:[%s1 + $0x5e00] sm:$0xff]
  %v3060 = vld [vmem:[%s1 + $0x5e08] sm:$0xff]
  %v3061 = vld [vmem:[%s1 + $0x5e10] sm:$0xff]
  %v3062 = vld [vmem:[%s1 + $0x5e18] sm:$0xff]
  %v3063 = vld [vmem:[%s1 + $0x5e20] sm:$0xff]
  %v3064 = vld [vmem:[%s1 + $0x5e28] sm:$0xff]
  %v3065 = vld [vmem:[%s1 + $0x5e30] sm:$0xff]
  %v3066 = vld [vmem:[%s1 + $0x5e38] sm:$0xff]
  %v3067 = vld [vmem:[%s1 + $0x5e40] sm:$0xff]
  %v3068 = vld [vmem:[%s1 + $0x5e48] sm:$0xff]
  %v3069 = vld [vmem:[%s1 + $0x5e50] sm:$0xff]
  %v3070 = vld [vmem:[%s1 + $0x5e58] sm:$0xff]
  %v3071 = vld [vmem:[%s1 + $0x5e60] sm:$0xff]
  %v3072 = vld [vmem:[%s1 + $0x5e68] sm:$0xff]
  %v3073 = vld [vmem:[%s1 + $0x5e70] sm:$0xff]
  %v3074 = vld [vmem:[%s1 + $0x5e78] sm:$0xff]
  %v3075 = vld [vmem:[%s1 + $0x5e80] sm:$0xff]
  %v3076 = vld [vmem:[%s1 + $0x5e88] sm:$0xff]
  %v3077 = vld [vmem:[%s1 + $0x5e90] sm:$0xff]
  %v3078 = vld [vmem:[%s1 + $0x5e98] sm:$0xff]
  %v3079 = vld [vmem:[%s1 + $0x5ea0] sm:$0xff]
  %v3080 = vld [vmem:[%s1 + $0x5ea8] sm:$0xff]
  %v3081 = vld [vmem:[%s1 + $0x5eb0] sm:$0xff]
  %v3082 = vld [vmem:[%s1 + $0x5eb8] sm:$0xff]
  %v3083 = vld [vmem:[%s1 + $0x5ec0] sm:$0xff]
  %v3084 = vld [vmem:[%s1 + $0x5ec8] sm:$0xff]
  %v3085 = vld [vmem:[%s1 + $0x5ed0] sm:$0xff]
  %v3086 = vld [vmem:[%s1 + $0x5ed8] sm:$0xff]
  %v3087 = vld [vmem:[%s1 + $0x5ee0] sm:$0xff]
  %v3088 = vld [vmem:[%s1 + $0x5ee8] sm:$0xff]
  %v3089 = vld [vmem:[%s1 + $0x5ef0] sm:$0xff]
  %v3090 = vld [vmem:[%s1 + $0x5ef8] sm:$0xff]
  %v3091 = vld [vmem:[%s1 + $0x5f00] sm:$0xff]
  %v3092 = vld [vmem:[%s1 + $0x5f08] sm:$0xff]
  %v3093 = vld [vmem:[%s1 + $0x5f10] sm:$0xff]
  %v3094 = vld [vmem:[%s1 + $0x5f18] sm:$0xff]
  %v3095 = vld [vmem:[%s1 + $0x5f20] sm:$0xff]
  %v3096 = vld [vmem:[%s1 + $0x5f28] sm:$0xff]
  %v3097 = vld [vmem:[%s1 + $0x5f30] sm:$0xff]
  %v3098 = vld [vmem:[%s1 + $0x5f38] sm:$0xff]
  %v3099 = vld [vmem:[%s1 + $0x5f40] sm:$0xff]
  %v3100 = vld [vmem:[%s1 + $0x5f48] sm:$0xff]
  %v3101 = vld [vmem:[%s1 + $0x5f50] sm:$0xff]
  %v3102 = vld [vmem:[%s1 + $0x5f58] sm:$0xff]
  %v3103 = vld [vmem:[%s1 + $0x5f60] sm:$0xff]
  %v3104 = vld [vmem:[%s1 + $0x5f68] sm:$0xff]
  %v3105 = vld [vmem:[%s1 + $0x5f70] sm:$0xff]
  %v3106 = vld [vmem:[%s1 + $0x5f78] sm:$0xff]
  %v3107 = vld [vmem:[%s1 + $0x5f80] sm:$0xff]
  %v3108 = vld [vmem:[%s1 + $0x5f88] sm:$0xff]
  %v3109 = vld [vmem:[%s1 + $0x5f90] sm:$0xff]
  %v3110 = vld [vmem:[%s1 + $0x5f98] sm:$0xff]
  %v3111 = vld [vmem:[%s1 + $0x5fa0] sm:$0xff]
  %v3112 = vld [vmem:[%s1 + $0x5fa8] sm:$0xff]
  %v3113 = vld [vmem:[%s1 + $0x5fb0] sm:$0xff]
  %v3114 = vld [vmem:[%s1 + $0x5fb8] sm:$0xff]
  %v3115 = vld [vmem:[%s1 + $0x5fc0] sm:$0xff]
  %v3116 = vld [vmem:[%s1 + $0x5fc8] sm:$0xff]
  %v3117 = vld [vmem:[%s1 + $0x5fd0] sm:$0xff]
  %v3118 = vld [vmem:[%s1 + $0x5fd8] sm:$0xff]
  %v3119 = vld [vmem:[%s1 + $0x5fe0] sm:$0xff]
  %v3120 = vld [vmem:[%s1 + $0x5fe8] sm:$0xff]
  %v3121 = vld [vmem:[%s1 + $0x5ff0] sm:$0xff]
  %v3122 = vld [vmem:[%s1 + $0x5ff8] sm:$0xff]
  %v3123 = vld [vmem:[%s1 + $0x6000] sm:$0xff]
  %v3124 = vld [vmem:[%s1 + $0x6008] sm:$0xff]
  %v3125 = vld [vmem:[%s1 + $0x6010] sm:$0xff]
  %v3126 = vld [vmem:[%s1 + $0x6018] sm:$0xff]
  %v3127 = vld [vmem:[%s1 + $0x6020] sm:$0xff]
  %v3128 = vld [vmem:[%s1 + $0x6028] sm:$0xff]
  %v3129 = vld [vmem:[%s1 + $0x6030] sm:$0xff]
  %v3130 = vld [vmem:[%s1 + $0x6038] sm:$0xff]
  %v3131 = vld [vmem:[%s1 + $0x6040] sm:$0xff]
  %v3132 = vld [vmem:[%s1 + $0x6048] sm:$0xff]
  %v3133 = vld [vmem:[%s1 + $0x6050] sm:$0xff]
  %v3134 = vld [vmem:[%s1 + $0x6058] sm:$0xff]
  %v3135 = vld [vmem:[%s1 + $0x6060] sm:$0xff]
  %v3136 = vld [vmem:[%s1 + $0x6068] sm:$0xff]
  %v3137 = vld [vmem:[%s1 + $0x6070] sm:$0xff]
  %v3138 = vld [vmem:[%s1 + $0x6078] sm:$0xff]
  %v3139 = vld [vmem:[%s1 + $0x6080] sm:$0xff]
  %v3140 = vld [vmem:[%s1 + $0x6088] sm:$0xff]
  %v3141 = vld [vmem:[%s1 + $0x6090] sm:$0xff]
  %v3142 = vld [vmem:[%s1 + $0x6098] sm:$0xff]
  %v3143 = vld [vmem:[%s1 + $0x60a0] sm:$0xff]
  %v3144 = vld [vmem:[%s1 + $0x60a8] sm:$0xff]
  %v3145 = vld [vmem:[%s1 + $0x60b0] sm:$0xff]
  %v3146 = vld [vmem:[%s1 + $0x60b8] sm:$0xff]
  %v3147 = vld [vmem:[%s1 + $0x60c0] sm:$0xff]
  %v3148 = vld [vmem:[%s1 + $0x60c8] sm:$0xff]
  %v3149 = vld [vmem:[%s1 + $0x60d0] sm:$0xff]
  %v3150 = vld [vmem:[%s1 + $0x60d8] sm:$0xff]
  %v3151 = vld [vmem:[%s1 + $0x60e0] sm:$0xff]
  %v3152 = vld [vmem:[%s1 + $0x60e8] sm:$0xff]
  %v3153 = vld [vmem:[%s1 + $0x60f0] sm:$0xff]
  %v3154 = vld [vmem:[%s1 + $0x60f8] sm:$0xff]
  %v3155 = vld [vmem:[%s1 + $0x6100] sm:$0xff]
  %v3156 = vld [vmem:[%s1 + $0x6108] sm:$0xff]
  %v3157 = vld [vmem:[%s1 + $0x6110] sm:$0xff]
  %v3158 = vld [vmem:[%s1 + $0x6118] sm:$0xff]
  %v3159 = vld [vmem:[%s1 + $0x6120] sm:$0xff]
  %v3160 = vld [vmem:[%s1 + $0x6128] sm:$0xff]
  %v3161 = vld [vmem:[%s1 + $0x6130] sm:$0xff]
  %v3162 = vld [vmem:[%s1 + $0x6138] sm:$0xff]
  %v3163 = vld [vmem:[%s1 + $0x6140] sm:$0xff]
  %v3164 = vld [vmem:[%s1 + $0x6148] sm:$0xff]
  %v3165 = vld [vmem:[%s1 + $0x6150] sm:$0xff]
  %v3166 = vld [vmem:[%s1 + $0x6158] sm:$0xff]
  %v3167 = vld [vmem:[%s1 + $0x6160] sm:$0xff]
  %v3168 = vld [vmem:[%s1 + $0x6168] sm:$0xff]
  %v3169 = vld [vmem:[%s1 + $0x6170] sm:$0xff]
  %v3170 = vld [vmem:[%s1 + $0x6178] sm:$0xff]
  %v3171 = vld [vmem:[%s1 + $0x6180] sm:$0xff]
  %v3172 = vld [vmem:[%s1 + $0x6188] sm:$0xff]
  %v3173 = vld [vmem:[%s1 + $0x6190] sm:$0xff]
  %v3174 = vld [vmem:[%s1 + $0x6198] sm:$0xff]
  %v3175 = vld [vmem:[%s1 + $0x61a0] sm:$0xff]
  %v3176 = vld [vmem:[%s1 + $0x61a8] sm:$0xff]
  %v3177 = vld [vmem:[%s1 + $0x61b0] sm:$0xff]
  %v3178 = vld [vmem:[%s1 + $0x61b8] sm:$0xff]
  %v3179 = vld [vmem:[%s1 + $0x61c0] sm:$0xff]
  %v3180 = vld [vmem:[%s1 + $0x61c8] sm:$0xff]
  %v3181 = vld [vmem:[%s1 + $0x61d0] sm:$0xff]
  %v3182 = vld [vmem:[%s1 + $0x61d8] sm:$0xff]
  %v3183 = vld [vmem:[%s1 + $0x61e0] sm:$0xff]
  %v3184 = vld [vmem:[%s1 + $0x61e8] sm:$0xff]
  %v3185 = vld [vmem:[%s1 + $0x61f0] sm:$0xff]
  %v3186 = vld [vmem:[%s1 + $0x61f8] sm:$0xff]
  %v3187 = vld [vmem:[%s1 + $0x6200] sm:$0xff]
  %v3188 = vld [vmem:[%s1 + $0x6208] sm:$0xff]
  %v3189 = vld [vmem:[%s1 + $0x6210] sm:$0xff]
  %v3190 = vld [vmem:[%s1 + $0x6218] sm:$0xff]
  %v3191 = vld [vmem:[%s1 + $0x6220] sm:$0xff]
  %v3192 = vld [vmem:[%s1 + $0x6228] sm:$0xff]
  %v3193 = vld [vmem:[%s1 + $0x6230] sm:$0xff]
  %v3194 = vld [vmem:[%s1 + $0x6238] sm:$0xff]
  %v3195 = vld [vmem:[%s1 + $0x6240] sm:$0xff]
  %v3196 = vld [vmem:[%s1 + $0x6248] sm:$0xff]
  %v3197 = vld [vmem:[%s1 + $0x6250] sm:$0xff]
  %v3198 = vld [vmem:[%s1 + $0x6258] sm:$0xff]
  %v3199 = vld [vmem:[%s1 + $0x6260] sm:$0xff]
  %v3200 = vld [vmem:[%s1 + $0x6268] sm:$0xff]
  %v3201 = vld [vmem:[%s1 + $0x6270] sm:$0xff]
  %v3202 = vld [vmem:[%s1 + $0x6278] sm:$0xff]
  %v3203 = vld [vmem:[%s1 + $0x6280] sm:$0xff]
  %v3204 = vld [vmem:[%s1 + $0x6288] sm:$0xff]
  %v3205 = vld [vmem:[%s1 + $0x6290] sm:$0xff]
  %v3206 = vld [vmem:[%s1 + $0x6298] sm:$0xff]
  %v3207 = vld [vmem:[%s1 + $0x62a0] sm:$0xff]
  %v3208 = vld [vmem:[%s1 + $0x62a8] sm:$0xff]
  %v3209 = vld [vmem:[%s1 + $0x62b0] sm:$0xff]
  %v3210 = vld [vmem:[%s1 + $0x62b8] sm:$0xff]
  %v3211 = vld [vmem:[%s1 + $0x62c0] sm:$0xff]
  %v3212 = vld [vmem:[%s1 + $0x62c8] sm:$0xff]
  %v3213 = vld [vmem:[%s1 + $0x62d0] sm:$0xff]
  %v3214 = vld [vmem:[%s1 + $0x62d8] sm:$0xff]
  %v3215 = vld [vmem:[%s1 + $0x62e0] sm:$0xff]
  %v3216 = vld [vmem:[%s1 + $0x62e8] sm:$0xff]
  %v3217 = vld [vmem:[%s1 + $0x62f0] sm:$0xff]
  %v3218 = vld [vmem:[%s1 + $0x62f8] sm:$0xff]
  %v3219 = vld [vmem:[%s1 + $0x6300] sm:$0xff]
  %v3220 = vld [vmem:[%s1 + $0x6308] sm:$0xff]
  %v3221 = vld [vmem:[%s1 + $0x6310] sm:$0xff]
  %v3222 = vld [vmem:[%s1 + $0x6318] sm:$0xff]
  %v3223 = vld [vmem:[%s1 + $0x6320] sm:$0xff]
  %v3224 = vld [vmem:[%s1 + $0x6328] sm:$0xff]
  %v3225 = vld [vmem:[%s1 + $0x6330] sm:$0xff]
  %v3226 = vld [vmem:[%s1 + $0x6338] sm:$0xff]
  %v3227 = vld [vmem:[%s1 + $0x6340] sm:$0xff]
  %v3228 = vld [vmem:[%s1 + $0x6348] sm:$0xff]
  %v3229 = vld [vmem:[%s1 + $0x6350] sm:$0xff]
  %v3230 = vld [vmem:[%s1 + $0x6358] sm:$0xff]
  %v3231 = vld [vmem:[%s1 + $0x6360] sm:$0xff]
  %v3232 = vld [vmem:[%s1 + $0x6368] sm:$0xff]
  %v3233 = vld [vmem:[%s1 + $0x6370] sm:$0xff]
  %v3234 = vld [vmem:[%s1 + $0x6378] sm:$0xff]
  %v3235 = vld [vmem:[%s1 + $0x6380] sm:$0xff]
  %v3236 = vld [vmem:[%s1 + $0x6388] sm:$0xff]
  %v3237 = vld [vmem:[%s1 + $0x6390] sm:$0xff]
  %v3238 = vld [vmem:[%s1 + $0x6398] sm:$0xff]
  %v3239 = vld [vmem:[%s1 + $0x63a0] sm:$0xff]
  %v3240 = vld [vmem:[%s1 + $0x63a8] sm:$0xff]
  %v3241 = vld [vmem:[%s1 + $0x63b0] sm:$0xff]
  %v3242 = vld [vmem:[%s1 + $0x63b8] sm:$0xff]
  %v3243 = vld [vmem:[%s1 + $0x63c0] sm:$0xff]
  %v3244 = vld [vmem:[%s1 + $0x63c8] sm:$0xff]
  %v3245 = vld [vmem:[%s1 + $0x63d0] sm:$0xff]
  %v3246 = vld [vmem:[%s1 + $0x63d8] sm:$0xff]
  %v3247 = vld [vmem:[%s1 + $0x63e0] sm:$0xff]
  %v3248 = vld [vmem:[%s1 + $0x63e8] sm:$0xff]
  %v3249 = vld [vmem:[%s1 + $0x63f0] sm:$0xff]
  %v3250 = vld [vmem:[%s1 + $0x63f8] sm:$0xff]
  %v3251 = vld [vmem:[%s2] sm:$0xff]
  %v3253 = vperm.slane %v3251, 0
  %v3254 = vperm.slane %v3251, 1
  %v3255 = vperm.slane %v3251, 2
  %v3256 = vperm.slane %v3251, 3
  %v3257 = vperm.slane %v3251, 4
  %v3258 = vperm.slane %v3251, 5
  %v3259 = vperm.slane %v3251, 6
  %v3260 = vperm.slane %v3251, 7
  %3269 = vmatpush.msra.mxu0 %v171
  %3270 = vmatpush.msra.mxu0 %v163
  %3271 = vmatpush.msra.mxu0 %v155
  %3272 = vmatpush.msra.mxu0 %v147
  %3273 = vmatpush.msra.mxu0 %v139
  %3274 = vmatpush.msra.mxu0 %v131
  %3275 = vmatpush.msra.mxu0 %v123
  %3276 = vmatpush.msra.mxu0 %v115
  %3277 = vmatpush.msra.mxu0 %v107
  %3278 = vmatpush.msra.mxu0 %v99
  %3279 = vmatpush.msra.mxu0 %v91
  %3280 = vmatpush.msra.mxu0 %v83
  %3281 = vmatpush.msra.mxu0 %v75
  %3282 = vmatpush.msra.mxu0 %v67
  %3283 = vmatpush.msra.mxu0 %v59
  %3284 = vmatpush.msra.mxu0 %v51
  %3285 = vmatmul.f32.gmra.mxu0 %v26
  %v3286 = vpop.f32.mrf.mxu0
  %v3287 = vadd.f32 %v3253, %v3286
  %3288 = vdwg.mxu0
  %3289 = vmatpush.msra.mxu0 %v299
  %3290 = vmatpush.msra.mxu0 %v291
  %3291 = vmatpush.msra.mxu0 %v283
  %3292 = vmatpush.msra.mxu0 %v275
  %3293 = vmatpush.msra.mxu0 %v267
  %3294 = vmatpush.msra.mxu0 %v259
  %3295 = vmatpush.msra.mxu0 %v251
  %3296 = vmatpush.msra.mxu0 %v243
  %3297 = vmatpush.msra.mxu0 %v235
  %3298 = vmatpush.msra.mxu0 %v227
  %3299 = vmatpush.msra.mxu0 %v219
  %3300 = vmatpush.msra.mxu0 %v211
  %3301 = vmatpush.msra.mxu0 %v203
  %3302 = vmatpush.msra.mxu0 %v195
  %3303 = vmatpush.msra.mxu0 %v187
  %3304 = vmatpush.msra.mxu0 %v179
  %3305 = vmatmul.f32.gmra.mxu0 %v27
  %v3306 = vpop.f32.mrf.mxu0
  %v3307 = vadd.f32 %v3287, %v3306
  %3308 = vdwg.mxu0
  %3309 = vmatpush.msra.mxu0 %v427
  %3310 = vmatpush.msra.mxu0 %v419
  %3311 = vmatpush.msra.mxu0 %v411
  %3312 = vmatpush.msra.mxu0 %v403
  %3313 = vmatpush.msra.mxu0 %v395
  %3314 = vmatpush.msra.mxu0 %v387
  %3315 = vmatpush.msra.mxu0 %v379
  %3316 = vmatpush.msra.mxu0 %v371
  %3317 = vmatpush.msra.mxu0 %v363
  %3318 = vmatpush.msra.mxu0 %v355
  %3319 = vmatpush.msra.mxu0 %v347
  %3320 = vmatpush.msra.mxu0 %v339
  %3321 = vmatpush.msra.mxu0 %v331
  %3322 = vmatpush.msra.mxu0 %v323
  %3323 = vmatpush.msra.mxu0 %v315
  %3324 = vmatpush.msra.mxu0 %v307
  %3325 = vmatmul.f32.gmra.mxu0 %v28
  %v3326 = vpop.f32.mrf.mxu0
  %v3327 = vadd.f32 %v3307, %v3326
  %3328 = vdwg.mxu0
  %3329 = vmatpush.msra.mxu0 %v555
  %3330 = vmatpush.msra.mxu0 %v547
  %3331 = vmatpush.msra.mxu0 %v539
  %3332 = vmatpush.msra.mxu0 %v531
  %3333 = vmatpush.msra.mxu0 %v523
  %3334 = vmatpush.msra.mxu0 %v515
  %3335 = vmatpush.msra.mxu0 %v507
  %3336 = vmatpush.msra.mxu0 %v499
  %3337 = vmatpush.msra.mxu0 %v491
  %3338 = vmatpush.msra.mxu0 %v483
  %3339 = vmatpush.msra.mxu0 %v475
  %3340 = vmatpush.msra.mxu0 %v467
  %3341 = vmatpush.msra.mxu0 %v459
  %3342 = vmatpush.msra.mxu0 %v451
  %3343 = vmatpush.msra.mxu0 %v443
  %3344 = vmatpush.msra.mxu0 %v435
  %3345 = vmatmul.f32.gmra.mxu0 %v29
  %v3346 = vpop.f32.mrf.mxu0
  %v3347 = vadd.f32 %v3327, %v3346
  %3348 = vdwg.mxu0
  %3349 = vmatpush.msra.mxu0 %v683
  %3350 = vmatpush.msra.mxu0 %v675
  %3351 = vmatpush.msra.mxu0 %v667
  %3352 = vmatpush.msra.mxu0 %v659
  %3353 = vmatpush.msra.mxu0 %v651
  %3354 = vmatpush.msra.mxu0 %v643
  %3355 = vmatpush.msra.mxu0 %v635
  %3356 = vmatpush.msra.mxu0 %v627
  %3357 = vmatpush.msra.mxu0 %v619
  %3358 = vmatpush.msra.mxu0 %v611
  %3359 = vmatpush.msra.mxu0 %v603
  %3360 = vmatpush.msra.mxu0 %v595
  %3361 = vmatpush.msra.mxu0 %v587
  %3362 = vmatpush.msra.mxu0 %v579
  %3363 = vmatpush.msra.mxu0 %v571
  %3364 = vmatpush.msra.mxu0 %v563
  %3365 = vmatmul.f32.gmra.mxu0 %v30
  %v3366 = vpop.f32.mrf.mxu0
  %v3367 = vadd.f32 %v3347, %v3366
  %3368 = vdwg.mxu0
  %3369 = vmatpush.msra.mxu0 %v811
  %3370 = vmatpush.msra.mxu0 %v803
  %3371 = vmatpush.msra.mxu0 %v795
  %3372 = vmatpush.msra.mxu0 %v787
  %3373 = vmatpush.msra.mxu0 %v779
  %3374 = vmatpush.msra.mxu0 %v771
  %3375 = vmatpush.msra.mxu0 %v763
  %3376 = vmatpush.msra.mxu0 %v755
  %3377 = vmatpush.msra.mxu0 %v747
  %3378 = vmatpush.msra.mxu0 %v739
  %3379 = vmatpush.msra.mxu0 %v731
  %3380 = vmatpush.msra.mxu0 %v723
  %3381 = vmatpush.msra.mxu0 %v715
  %3382 = vmatpush.msra.mxu0 %v707
  %3383 = vmatpush.msra.mxu0 %v699
  %3384 = vmatpush.msra.mxu0 %v691
  %3385 = vmatmul.f32.gmra.mxu0 %v31
  %v3386 = vpop.f32.mrf.mxu0
  %v3387 = vadd.f32 %v3367, %v3386
  %3388 = vdwg.mxu0
  %3389 = vmatpush.msra.mxu0 %v939
  %3390 = vmatpush.msra.mxu0 %v931
  %3391 = vmatpush.msra.mxu0 %v923
  %3392 = vmatpush.msra.mxu0 %v915
  %3393 = vmatpush.msra.mxu0 %v907
  %3394 = vmatpush.msra.mxu0 %v899
  %3395 = vmatpush.msra.mxu0 %v891
  %3396 = vmatpush.msra.mxu0 %v883
  %3397 = vmatpush.msra.mxu0 %v875
  %3398 = vmatpush.msra.mxu0 %v867
  %3399 = vmatpush.msra.mxu0 %v859
  %3400 = vmatpush.msra.mxu0 %v851
  %3401 = vmatpush.msra.mxu0 %v843
  %3402 = vmatpush.msra.mxu0 %v835
  %3403 = vmatpush.msra.mxu0 %v827
  %3404 = vmatpush.msra.mxu0 %v819
  %3405 = vmatmul.f32.gmra.mxu0 %v32
  %v3406 = vpop.f32.mrf.mxu0
  %v3407 = vadd.f32 %v3387, %v3406
  %3408 = vdwg.mxu0
  %3409 = vmatpush.msra.mxu0 %v1067
  %3410 = vmatpush.msra.mxu0 %v1059
  %3411 = vmatpush.msra.mxu0 %v1051
  %3412 = vmatpush.msra.mxu0 %v1043
  %3413 = vmatpush.msra.mxu0 %v1035
  %3414 = vmatpush.msra.mxu0 %v1027
  %3415 = vmatpush.msra.mxu0 %v1019
  %3416 = vmatpush.msra.mxu0 %v1011
  %3417 = vmatpush.msra.mxu0 %v1003
  %3418 = vmatpush.msra.mxu0 %v995
  %3419 = vmatpush.msra.mxu0 %v987
  %3420 = vmatpush.msra.mxu0 %v979
  %3421 = vmatpush.msra.mxu0 %v971
  %3422 = vmatpush.msra.mxu0 %v963
  %3423 = vmatpush.msra.mxu0 %v955
  %3424 = vmatpush.msra.mxu0 %v947
  %3425 = vmatmul.f32.gmra.mxu0 %v33
  %v3426 = vpop.f32.mrf.mxu0
  %v3427 = vadd.f32 %v3407, %v3426
  %3428 = vdwg.mxu0
  %3429 = vmatpush.msra.mxu0 %v1195
  %3430 = vmatpush.msra.mxu0 %v1187
  %3431 = vmatpush.msra.mxu0 %v1179
  %3432 = vmatpush.msra.mxu0 %v1171
  %3433 = vmatpush.msra.mxu0 %v1163
  %3434 = vmatpush.msra.mxu0 %v1155
  %3435 = vmatpush.msra.mxu0 %v1147
  %3436 = vmatpush.msra.mxu0 %v1139
  %3437 = vmatpush.msra.mxu0 %v1131
  %3438 = vmatpush.msra.mxu0 %v1123
  %3439 = vmatpush.msra.mxu0 %v1115
  %3440 = vmatpush.msra.mxu0 %v1107
  %3441 = vmatpush.msra.mxu0 %v1099
  %3442 = vmatpush.msra.mxu0 %v1091
  %3443 = vmatpush.msra.mxu0 %v1083
  %3444 = vmatpush.msra.mxu0 %v1075
  %3445 = vmatmul.f32.gmra.mxu0 %v34
  %v3446 = vpop.f32.mrf.mxu0
  %v3447 = vadd.f32 %v3427, %v3446
  %3448 = vdwg.mxu0
  %3449 = vmatpush.msra.mxu0 %v1323
  %3450 = vmatpush.msra.mxu0 %v1315
  %3451 = vmatpush.msra.mxu0 %v1307
  %3452 = vmatpush.msra.mxu0 %v1299
  %3453 = vmatpush.msra.mxu0 %v1291
  %3454 = vmatpush.msra.mxu0 %v1283
  %3455 = vmatpush.msra.mxu0 %v1275
  %3456 = vmatpush.msra.mxu0 %v1267
  %3457 = vmatpush.msra.mxu0 %v1259
  %3458 = vmatpush.msra.mxu0 %v1251
  %3459 = vmatpush.msra.mxu0 %v1243
  %3460 = vmatpush.msra.mxu0 %v1235
  %3461 = vmatpush.msra.mxu0 %v1227
  %3462 = vmatpush.msra.mxu0 %v1219
  %3463 = vmatpush.msra.mxu0 %v1211
  %3464 = vmatpush.msra.mxu0 %v1203
  %3465 = vmatmul.f32.gmra.mxu0 %v35
  %v3466 = vpop.f32.mrf.mxu0
  %v3467 = vadd.f32 %v3447, %v3466
  %3468 = vdwg.mxu0
  %3469 = vmatpush.msra.mxu0 %v1451
  %3470 = vmatpush.msra.mxu0 %v1443
  %3471 = vmatpush.msra.mxu0 %v1435
  %3472 = vmatpush.msra.mxu0 %v1427
  %3473 = vmatpush.msra.mxu0 %v1419
  %3474 = vmatpush.msra.mxu0 %v1411
  %3475 = vmatpush.msra.mxu0 %v1403
  %3476 = vmatpush.msra.mxu0 %v1395
  %3477 = vmatpush.msra.mxu0 %v1387
  %3478 = vmatpush.msra.mxu0 %v1379
  %3479 = vmatpush.msra.mxu0 %v1371
  %3480 = vmatpush.msra.mxu0 %v1363
  %3481 = vmatpush.msra.mxu0 %v1355
  %3482 = vmatpush.msra.mxu0 %v1347
  %3483 = vmatpush.msra.mxu0 %v1339
  %3484 = vmatpush.msra.mxu0 %v1331
  %3485 = vmatmul.f32.gmra.mxu0 %v36
  %v3486 = vpop.f32.mrf.mxu0
  %v3487 = vadd.f32 %v3467, %v3486
  %3488 = vdwg.mxu0
  %3489 = vmatpush.msra.mxu0 %v1579
  %3490 = vmatpush.msra.mxu0 %v1571
  %3491 = vmatpush.msra.mxu0 %v1563
  %3492 = vmatpush.msra.mxu0 %v1555
  %3493 = vmatpush.msra.mxu0 %v1547
  %3494 = vmatpush.msra.mxu0 %v1539
  %3495 = vmatpush.msra.mxu0 %v1531
  %3496 = vmatpush.msra.mxu0 %v1523
  %3497 = vmatpush.msra.mxu0 %v1515
  %3498 = vmatpush.msra.mxu0 %v1507
  %3499 = vmatpush.msra.mxu0 %v1499
  %3500 = vmatpush.msra.mxu0 %v1491
  %3501 = vmatpush.msra.mxu0 %v1483
  %3502 = vmatpush.msra.mxu0 %v1475
  %3503 = vmatpush.msra.mxu0 %v1467
  %3504 = vmatpush.msra.mxu0 %v1459
  %3505 = vmatmul.f32.gmra.mxu0 %v37
  %v3506 = vpop.f32.mrf.mxu0
  %v3507 = vadd.f32 %v3487, %v3506
  %3508 = vdwg.mxu0
  %3509 = vmatpush.msra.mxu0 %v1707
  %3510 = vmatpush.msra.mxu0 %v1699
  %3511 = vmatpush.msra.mxu0 %v1691
  %3512 = vmatpush.msra.mxu0 %v1683
  %3513 = vmatpush.msra.mxu0 %v1675
  %3514 = vmatpush.msra.mxu0 %v1667
  %3515 = vmatpush.msra.mxu0 %v1659
  %3516 = vmatpush.msra.mxu0 %v1651
  %3517 = vmatpush.msra.mxu0 %v1643
  %3518 = vmatpush.msra.mxu0 %v1635
  %3519 = vmatpush.msra.mxu0 %v1627
  %3520 = vmatpush.msra.mxu0 %v1619
  %3521 = vmatpush.msra.mxu0 %v1611
  %3522 = vmatpush.msra.mxu0 %v1603
  %3523 = vmatpush.msra.mxu0 %v1595
  %3524 = vmatpush.msra.mxu0 %v1587
  %3525 = vmatmul.f32.gmra.mxu0 %v38
  %v3526 = vpop.f32.mrf.mxu0
  %v3527 = vadd.f32 %v3507, %v3526
  %3528 = vdwg.mxu0
  %3529 = vmatpush.msra.mxu0 %v1835
  %3530 = vmatpush.msra.mxu0 %v1827
  %3531 = vmatpush.msra.mxu0 %v1819
  %3532 = vmatpush.msra.mxu0 %v1811
  %3533 = vmatpush.msra.mxu0 %v1803
  %3534 = vmatpush.msra.mxu0 %v1795
  %3535 = vmatpush.msra.mxu0 %v1787
  %3536 = vmatpush.msra.mxu0 %v1779
  %3537 = vmatpush.msra.mxu0 %v1771
  %3538 = vmatpush.msra.mxu0 %v1763
  %3539 = vmatpush.msra.mxu0 %v1755
  %3540 = vmatpush.msra.mxu0 %v1747
  %3541 = vmatpush.msra.mxu0 %v1739
  %3542 = vmatpush.msra.mxu0 %v1731
  %3543 = vmatpush.msra.mxu0 %v1723
  %3544 = vmatpush.msra.mxu0 %v1715
  %3545 = vmatmul.f32.gmra.mxu0 %v39
  %v3546 = vpop.f32.mrf.mxu0
  %v3547 = vadd.f32 %v3527, %v3546
  %3548 = vdwg.mxu0
  %3549 = vmatpush.msra.mxu0 %v1963
  %3550 = vmatpush.msra.mxu0 %v1955
  %3551 = vmatpush.msra.mxu0 %v1947
  %3552 = vmatpush.msra.mxu0 %v1939
  %3553 = vmatpush.msra.mxu0 %v1931
  %3554 = vmatpush.msra.mxu0 %v1923
  %3555 = vmatpush.msra.mxu0 %v1915
  %3556 = vmatpush.msra.mxu0 %v1907
  %3557 = vmatpush.msra.mxu0 %v1899
  %3558 = vmatpush.msra.mxu0 %v1891
  %3559 = vmatpush.msra.mxu0 %v1883
  %3560 = vmatpush.msra.mxu0 %v1875
  %3561 = vmatpush.msra.mxu0 %v1867
  %3562 = vmatpush.msra.mxu0 %v1859
  %3563 = vmatpush.msra.mxu0 %v1851
  %3564 = vmatpush.msra.mxu0 %v1843
  %3565 = vmatmul.f32.gmra.mxu0 %v40
  %v3566 = vpop.f32.mrf.mxu0
  %v3567 = vadd.f32 %v3547, %v3566
  %3568 = vdwg.mxu0
  %3569 = vmatpush.msra.mxu0 %v2091
  %3570 = vmatpush.msra.mxu0 %v2083
  %3571 = vmatpush.msra.mxu0 %v2075
  %3572 = vmatpush.msra.mxu0 %v2067
  %3573 = vmatpush.msra.mxu0 %v2059
  %3574 = vmatpush.msra.mxu0 %v2051
  %3575 = vmatpush.msra.mxu0 %v2043
  %3576 = vmatpush.msra.mxu0 %v2035
  %3577 = vmatpush.msra.mxu0 %v2027
  %3578 = vmatpush.msra.mxu0 %v2019
  %3579 = vmatpush.msra.mxu0 %v2011
  %3580 = vmatpush.msra.mxu0 %v2003
  %3581 = vmatpush.msra.mxu0 %v1995
  %3582 = vmatpush.msra.mxu0 %v1987
  %3583 = vmatpush.msra.mxu0 %v1979
  %3584 = vmatpush.msra.mxu0 %v1971
  %3585 = vmatmul.f32.gmra.mxu0 %v41
  %v3586 = vpop.f32.mrf.mxu0
  %v3587 = vadd.f32 %v3567, %v3586
  %3588 = vdwg.mxu0
  %3589 = vmatpush.msra.mxu0 %v2219
  %3590 = vmatpush.msra.mxu0 %v2211
  %3591 = vmatpush.msra.mxu0 %v2203
  %3592 = vmatpush.msra.mxu0 %v2195
  %3593 = vmatpush.msra.mxu0 %v2187
  %3594 = vmatpush.msra.mxu0 %v2179
  %3595 = vmatpush.msra.mxu0 %v2171
  %3596 = vmatpush.msra.mxu0 %v2163
  %3597 = vmatpush.msra.mxu0 %v2155
  %3598 = vmatpush.msra.mxu0 %v2147
  %3599 = vmatpush.msra.mxu0 %v2139
  %3600 = vmatpush.msra.mxu0 %v2131
  %3601 = vmatpush.msra.mxu0 %v2123
  %3602 = vmatpush.msra.mxu0 %v2115
  %3603 = vmatpush.msra.mxu0 %v2107
  %3604 = vmatpush.msra.mxu0 %v2099
  %3605 = vmatmul.f32.gmra.mxu0 %v42
  %v3606 = vpop.f32.mrf.mxu0
  %v3607 = vadd.f32 %v3587, %v3606
  %3608 = vdwg.mxu0
  %3609 = vmatpush.msra.mxu0 %v2347
  %3610 = vmatpush.msra.mxu0 %v2339
  %3611 = vmatpush.msra.mxu0 %v2331
  %3612 = vmatpush.msra.mxu0 %v2323
  %3613 = vmatpush.msra.mxu0 %v2315
  %3614 = vmatpush.msra.mxu0 %v2307
  %3615 = vmatpush.msra.mxu0 %v2299
  %3616 = vmatpush.msra.mxu0 %v2291
  %3617 = vmatpush.msra.mxu0 %v2283
  %3618 = vmatpush.msra.mxu0 %v2275
  %3619 = vmatpush.msra.mxu0 %v2267
  %3620 = vmatpush.msra.mxu0 %v2259
  %3621 = vmatpush.msra.mxu0 %v2251
  %3622 = vmatpush.msra.mxu0 %v2243
  %3623 = vmatpush.msra.mxu0 %v2235
  %3624 = vmatpush.msra.mxu0 %v2227
  %3625 = vmatmul.f32.gmra.mxu0 %v43
  %v3626 = vpop.f32.mrf.mxu0
  %v3627 = vadd.f32 %v3607, %v3626
  %3628 = vdwg.mxu0
  %3629 = vmatpush.msra.mxu0 %v2475
  %3630 = vmatpush.msra.mxu0 %v2467
  %3631 = vmatpush.msra.mxu0 %v2459
  %3632 = vmatpush.msra.mxu0 %v2451
  %3633 = vmatpush.msra.mxu0 %v2443
  %3634 = vmatpush.msra.mxu0 %v2435
  %3635 = vmatpush.msra.mxu0 %v2427
  %3636 = vmatpush.msra.mxu0 %v2419
  %3637 = vmatpush.msra.mxu0 %v2411
  %3638 = vmatpush.msra.mxu0 %v2403
  %3639 = vmatpush.msra.mxu0 %v2395
  %3640 = vmatpush.msra.mxu0 %v2387
  %3641 = vmatpush.msra.mxu0 %v2379
  %3642 = vmatpush.msra.mxu0 %v2371
  %3643 = vmatpush.msra.mxu0 %v2363
  %3644 = vmatpush.msra.mxu0 %v2355
  %3645 = vmatmul.f32.gmra.mxu0 %v44
  %v3646 = vpop.f32.mrf.mxu0
  %v3647 = vadd.f32 %v3627, %v3646
  %3648 = vdwg.mxu0
  %3649 = vmatpush.msra.mxu0 %v2603
  %3650 = vmatpush.msra.mxu0 %v2595
  %3651 = vmatpush.msra.mxu0 %v2587
  %3652 = vmatpush.msra.mxu0 %v2579
  %3653 = vmatpush.msra.mxu0 %v2571
  %3654 = vmatpush.msra.mxu0 %v2563
  %3655 = vmatpush.msra.mxu0 %v2555
  %3656 = vmatpush.msra.mxu0 %v2547
  %3657 = vmatpush.msra.mxu0 %v2539
  %3658 = vmatpush.msra.mxu0 %v2531
  %3659 = vmatpush.msra.mxu0 %v2523
  %3660 = vmatpush.msra.mxu0 %v2515
  %3661 = vmatpush.msra.mxu0 %v2507
  %3662 = vmatpush.msra.mxu0 %v2499
  %3663 = vmatpush.msra.mxu0 %v2491
  %3664 = vmatpush.msra.mxu0 %v2483
  %3665 = vmatmul.f32.gmra.mxu0 %v45
  %v3666 = vpop.f32.mrf.mxu0
  %v3667 = vadd.f32 %v3647, %v3666
  %3668 = vdwg.mxu0
  %3669 = vmatpush.msra.mxu0 %v2731
  %3670 = vmatpush.msra.mxu0 %v2723
  %3671 = vmatpush.msra.mxu0 %v2715
  %3672 = vmatpush.msra.mxu0 %v2707
  %3673 = vmatpush.msra.mxu0 %v2699
  %3674 = vmatpush.msra.mxu0 %v2691
  %3675 = vmatpush.msra.mxu0 %v2683
  %3676 = vmatpush.msra.mxu0 %v2675
  %3677 = vmatpush.msra.mxu0 %v2667
  %3678 = vmatpush.msra.mxu0 %v2659
  %3679 = vmatpush.msra.mxu0 %v2651
  %3680 = vmatpush.msra.mxu0 %v2643
  %3681 = vmatpush.msra.mxu0 %v2635
  %3682 = vmatpush.msra.mxu0 %v2627
  %3683 = vmatpush.msra.mxu0 %v2619
  %3684 = vmatpush.msra.mxu0 %v2611
  %3685 = vmatmul.f32.gmra.mxu0 %v46
  %v3686 = vpop.f32.mrf.mxu0
  %v3687 = vadd.f32 %v3667, %v3686
  %3688 = vdwg.mxu0
  %3689 = vmatpush.msra.mxu0 %v2859
  %3690 = vmatpush.msra.mxu0 %v2851
  %3691 = vmatpush.msra.mxu0 %v2843
  %3692 = vmatpush.msra.mxu0 %v2835
  %3693 = vmatpush.msra.mxu0 %v2827
  %3694 = vmatpush.msra.mxu0 %v2819
  %3695 = vmatpush.msra.mxu0 %v2811
  %3696 = vmatpush.msra.mxu0 %v2803
  %3697 = vmatpush.msra.mxu0 %v2795
  %3698 = vmatpush.msra.mxu0 %v2787
  %3699 = vmatpush.msra.mxu0 %v2779
  %3700 = vmatpush.msra.mxu0 %v2771
  %3701 = vmatpush.msra.mxu0 %v2763
  %3702 = vmatpush.msra.mxu0 %v2755
  %3703 = vmatpush.msra.mxu0 %v2747
  %3704 = vmatpush.msra.mxu0 %v2739
  %3705 = vmatmul.f32.gmra.mxu0 %v47
  %v3706 = vpop.f32.mrf.mxu0
  %v3707 = vadd.f32 %v3687, %v3706
  %3708 = vdwg.mxu0
  %3709 = vmatpush.msra.mxu0 %v2987
  %3710 = vmatpush.msra.mxu0 %v2979
  %3711 = vmatpush.msra.mxu0 %v2971
  %3712 = vmatpush.msra.mxu0 %v2963
  %3713 = vmatpush.msra.mxu0 %v2955
  %3714 = vmatpush.msra.mxu0 %v2947
  %3715 = vmatpush.msra.mxu0 %v2939
  %3716 = vmatpush.msra.mxu0 %v2931
  %3717 = vmatpush.msra.mxu0 %v2923
  %3718 = vmatpush.msra.mxu0 %v2915
  %3719 = vmatpush.msra.mxu0 %v2907
  %3720 = vmatpush.msra.mxu0 %v2899
  %3721 = vmatpush.msra.mxu0 %v2891
  %3722 = vmatpush.msra.mxu0 %v2883
  %3723 = vmatpush.msra.mxu0 %v2875
  %3724 = vmatpush.msra.mxu0 %v2867
  %3725 = vmatmul.f32.gmra.mxu0 %v48
  %v3726 = vpop.f32.mrf.mxu0
  %v3727 = vadd.f32 %v3707, %v3726
  %3728 = vdwg.mxu0
  %3729 = vmatpush.msra.mxu0 %v3115
  %3730 = vmatpush.msra.mxu0 %v3107
  %3731 = vmatpush.msra.mxu0 %v3099
  %3732 = vmatpush.msra.mxu0 %v3091
  %3733 = vmatpush.msra.mxu0 %v3083
  %3734 = vmatpush.msra.mxu0 %v3075
  %3735 = vmatpush.msra.mxu0 %v3067
  %3736 = vmatpush.msra.mxu0 %v3059
  %3737 = vmatpush.msra.mxu0 %v3051
  %3738 = vmatpush.msra.mxu0 %v3043
  %3739 = vmatpush.msra.mxu0 %v3035
  %3740 = vmatpush.msra.mxu0 %v3027
  %3741 = vmatpush.msra.mxu0 %v3019
  %3742 = vmatpush.msra.mxu0 %v3011
  %3743 = vmatpush.msra.mxu0 %v3003
  %3744 = vmatpush.msra.mxu0 %v2995
  %3745 = vmatmul.f32.gmra.mxu0 %v49
  %v3746 = vpop.f32.mrf.mxu0
  %v3747 = vadd.f32 %v3727, %v3746
  %3748 = vdwg.mxu0
  %3749 = vmatpush.msra.mxu0 %v3243
  %3750 = vmatpush.msra.mxu0 %v3235
  %3751 = vmatpush.msra.mxu0 %v3227
  %3752 = vmatpush.msra.mxu0 %v3219
  %3753 = vmatpush.msra.mxu0 %v3211
  %3754 = vmatpush.msra.mxu0 %v3203
  %3755 = vmatpush.msra.mxu0 %v3195
  %3756 = vmatpush.msra.mxu0 %v3187
  %3757 = vmatpush.msra.mxu0 %v3179
  %3758 = vmatpush.msra.mxu0 %v3171
  %3759 = vmatpush.msra.mxu0 %v3163
  %3760 = vmatpush.msra.mxu0 %v3155
  %3761 = vmatpush.msra.mxu0 %v3147
  %3762 = vmatpush.msra.mxu0 %v3139
  %3763 = vmatpush.msra.mxu0 %v3131
  %3764 = vmatpush.msra.mxu0 %v3123
  %3765 = vmatmul.f32.gmra.mxu0 %v50
  %v3766 = vpop.f32.mrf.mxu0
  %v3767 = vadd.f32 %v3747, %v3766
  %3768 = vdwg.mxu0
  %3769 = vmatpush.msra.mxu0 %v172
  %3770 = vmatpush.msra.mxu0 %v164
  %3771 = vmatpush.msra.mxu0 %v156
  %3772 = vmatpush.msra.mxu0 %v148
  %3773 = vmatpush.msra.mxu0 %v140
  %3774 = vmatpush.msra.mxu0 %v132
  %3775 = vmatpush.msra.mxu0 %v124
  %3776 = vmatpush.msra.mxu0 %v116
  %3777 = vmatpush.msra.mxu0 %v108
  %3778 = vmatpush.msra.mxu0 %v100
  %3779 = vmatpush.msra.mxu0 %v92
  %3780 = vmatpush.msra.mxu0 %v84
  %3781 = vmatpush.msra.mxu0 %v76
  %3782 = vmatpush.msra.mxu0 %v68
  %3783 = vmatpush.msra.mxu0 %v60
  %3784 = vmatpush.msra.mxu0 %v52
  %3785 = vmatmul.f32.gmra.mxu0 %v26
  %v3786 = vpop.f32.mrf.mxu0
  %v3787 = vadd.f32 %v3254, %v3786
  %3788 = vdwg.mxu0
  %3789 = vmatpush.msra.mxu0 %v300
  %3790 = vmatpush.msra.mxu0 %v292
  %3791 = vmatpush.msra.mxu0 %v284
  %3792 = vmatpush.msra.mxu0 %v276
  %3793 = vmatpush.msra.mxu0 %v268
  %3794 = vmatpush.msra.mxu0 %v260
  %3795 = vmatpush.msra.mxu0 %v252
  %3796 = vmatpush.msra.mxu0 %v244
  %3797 = vmatpush.msra.mxu0 %v236
  %3798 = vmatpush.msra.mxu0 %v228
  %3799 = vmatpush.msra.mxu0 %v220
  %3800 = vmatpush.msra.mxu0 %v212
  %3801 = vmatpush.msra.mxu0 %v204
  %3802 = vmatpush.msra.mxu0 %v196
  %3803 = vmatpush.msra.mxu0 %v188
  %3804 = vmatpush.msra.mxu0 %v180
  %3805 = vmatmul.f32.gmra.mxu0 %v27
  %v3806 = vpop.f32.mrf.mxu0
  %v3807 = vadd.f32 %v3787, %v3806
  %3808 = vdwg.mxu0
  %3809 = vmatpush.msra.mxu0 %v428
  %3810 = vmatpush.msra.mxu0 %v420
  %3811 = vmatpush.msra.mxu0 %v412
  %3812 = vmatpush.msra.mxu0 %v404
  %3813 = vmatpush.msra.mxu0 %v396
  %3814 = vmatpush.msra.mxu0 %v388
  %3815 = vmatpush.msra.mxu0 %v380
  %3816 = vmatpush.msra.mxu0 %v372
  %3817 = vmatpush.msra.mxu0 %v364
  %3818 = vmatpush.msra.mxu0 %v356
  %3819 = vmatpush.msra.mxu0 %v348
  %3820 = vmatpush.msra.mxu0 %v340
  %3821 = vmatpush.msra.mxu0 %v332
  %3822 = vmatpush.msra.mxu0 %v324
  %3823 = vmatpush.msra.mxu0 %v316
  %3824 = vmatpush.msra.mxu0 %v308
  %3825 = vmatmul.f32.gmra.mxu0 %v28
  %v3826 = vpop.f32.mrf.mxu0
  %v3827 = vadd.f32 %v3807, %v3826
  %3828 = vdwg.mxu0
  %3829 = vmatpush.msra.mxu0 %v556
  %3830 = vmatpush.msra.mxu0 %v548
  %3831 = vmatpush.msra.mxu0 %v540
  %3832 = vmatpush.msra.mxu0 %v532
  %3833 = vmatpush.msra.mxu0 %v524
  %3834 = vmatpush.msra.mxu0 %v516
  %3835 = vmatpush.msra.mxu0 %v508
  %3836 = vmatpush.msra.mxu0 %v500
  %3837 = vmatpush.msra.mxu0 %v492
  %3838 = vmatpush.msra.mxu0 %v484
  %3839 = vmatpush.msra.mxu0 %v476
  %3840 = vmatpush.msra.mxu0 %v468
  %3841 = vmatpush.msra.mxu0 %v460
  %3842 = vmatpush.msra.mxu0 %v452
  %3843 = vmatpush.msra.mxu0 %v444
  %3844 = vmatpush.msra.mxu0 %v436
  %3845 = vmatmul.f32.gmra.mxu0 %v29
  %v3846 = vpop.f32.mrf.mxu0
  %v3847 = vadd.f32 %v3827, %v3846
  %3848 = vdwg.mxu0
  %3849 = vmatpush.msra.mxu0 %v684
  %3850 = vmatpush.msra.mxu0 %v676
  %3851 = vmatpush.msra.mxu0 %v668
  %3852 = vmatpush.msra.mxu0 %v660
  %3853 = vmatpush.msra.mxu0 %v652
  %3854 = vmatpush.msra.mxu0 %v644
  %3855 = vmatpush.msra.mxu0 %v636
  %3856 = vmatpush.msra.mxu0 %v628
  %3857 = vmatpush.msra.mxu0 %v620
  %3858 = vmatpush.msra.mxu0 %v612
  %3859 = vmatpush.msra.mxu0 %v604
  %3860 = vmatpush.msra.mxu0 %v596
  %3861 = vmatpush.msra.mxu0 %v588
  %3862 = vmatpush.msra.mxu0 %v580
  %3863 = vmatpush.msra.mxu0 %v572
  %3864 = vmatpush.msra.mxu0 %v564
  %3865 = vmatmul.f32.gmra.mxu0 %v30
  %v3866 = vpop.f32.mrf.mxu0
  %v3867 = vadd.f32 %v3847, %v3866
  %3868 = vdwg.mxu0
  %3869 = vmatpush.msra.mxu0 %v812
  %3870 = vmatpush.msra.mxu0 %v804
  %3871 = vmatpush.msra.mxu0 %v796
  %3872 = vmatpush.msra.mxu0 %v788
  %3873 = vmatpush.msra.mxu0 %v780
  %3874 = vmatpush.msra.mxu0 %v772
  %3875 = vmatpush.msra.mxu0 %v764
  %3876 = vmatpush.msra.mxu0 %v756
  %3877 = vmatpush.msra.mxu0 %v748
  %3878 = vmatpush.msra.mxu0 %v740
  %3879 = vmatpush.msra.mxu0 %v732
  %3880 = vmatpush.msra.mxu0 %v724
  %3881 = vmatpush.msra.mxu0 %v716
  %3882 = vmatpush.msra.mxu0 %v708
  %3883 = vmatpush.msra.mxu0 %v700
  %3884 = vmatpush.msra.mxu0 %v692
  %3885 = vmatmul.f32.gmra.mxu0 %v31
  %v3886 = vpop.f32.mrf.mxu0
  %v3887 = vadd.f32 %v3867, %v3886
  %3888 = vdwg.mxu0
  %3889 = vmatpush.msra.mxu0 %v940
  %3890 = vmatpush.msra.mxu0 %v932
  %3891 = vmatpush.msra.mxu0 %v924
  %3892 = vmatpush.msra.mxu0 %v916
  %3893 = vmatpush.msra.mxu0 %v908
  %3894 = vmatpush.msra.mxu0 %v900
  %3895 = vmatpush.msra.mxu0 %v892
  %3896 = vmatpush.msra.mxu0 %v884
  %3897 = vmatpush.msra.mxu0 %v876
  %3898 = vmatpush.msra.mxu0 %v868
  %3899 = vmatpush.msra.mxu0 %v860
  %3900 = vmatpush.msra.mxu0 %v852
  %3901 = vmatpush.msra.mxu0 %v844
  %3902 = vmatpush.msra.mxu0 %v836
  %3903 = vmatpush.msra.mxu0 %v828
  %3904 = vmatpush.msra.mxu0 %v820
  %3905 = vmatmul.f32.gmra.mxu0 %v32
  %v3906 = vpop.f32.mrf.mxu0
  %v3907 = vadd.f32 %v3887, %v3906
  %3908 = vdwg.mxu0
  %3909 = vmatpush.msra.mxu0 %v1068
  %3910 = vmatpush.msra.mxu0 %v1060
  %3911 = vmatpush.msra.mxu0 %v1052
  %3912 = vmatpush.msra.mxu0 %v1044
  %3913 = vmatpush.msra.mxu0 %v1036
  %3914 = vmatpush.msra.mxu0 %v1028
  %3915 = vmatpush.msra.mxu0 %v1020
  %3916 = vmatpush.msra.mxu0 %v1012
  %3917 = vmatpush.msra.mxu0 %v1004
  %3918 = vmatpush.msra.mxu0 %v996
  %3919 = vmatpush.msra.mxu0 %v988
  %3920 = vmatpush.msra.mxu0 %v980
  %3921 = vmatpush.msra.mxu0 %v972
  %3922 = vmatpush.msra.mxu0 %v964
  %3923 = vmatpush.msra.mxu0 %v956
  %3924 = vmatpush.msra.mxu0 %v948
  %3925 = vmatmul.f32.gmra.mxu0 %v33
  %v3926 = vpop.f32.mrf.mxu0
  %v3927 = vadd.f32 %v3907, %v3926
  %3928 = vdwg.mxu0
  %3929 = vmatpush.msra.mxu0 %v1196
  %3930 = vmatpush.msra.mxu0 %v1188
  %3931 = vmatpush.msra.mxu0 %v1180
  %3932 = vmatpush.msra.mxu0 %v1172
  %3933 = vmatpush.msra.mxu0 %v1164
  %3934 = vmatpush.msra.mxu0 %v1156
  %3935 = vmatpush.msra.mxu0 %v1148
  %3936 = vmatpush.msra.mxu0 %v1140
  %3937 = vmatpush.msra.mxu0 %v1132
  %3938 = vmatpush.msra.mxu0 %v1124
  %3939 = vmatpush.msra.mxu0 %v1116
  %3940 = vmatpush.msra.mxu0 %v1108
  %3941 = vmatpush.msra.mxu0 %v1100
  %3942 = vmatpush.msra.mxu0 %v1092
  %3943 = vmatpush.msra.mxu0 %v1084
  %3944 = vmatpush.msra.mxu0 %v1076
  %3945 = vmatmul.f32.gmra.mxu0 %v34
  %v3946 = vpop.f32.mrf.mxu0
  %v3947 = vadd.f32 %v3927, %v3946
  %3948 = vdwg.mxu0
  %3949 = vmatpush.msra.mxu0 %v1324
  %3950 = vmatpush.msra.mxu0 %v1316
  %3951 = vmatpush.msra.mxu0 %v1308
  %3952 = vmatpush.msra.mxu0 %v1300
  %3953 = vmatpush.msra.mxu0 %v1292
  %3954 = vmatpush.msra.mxu0 %v1284
  %3955 = vmatpush.msra.mxu0 %v1276
  %3956 = vmatpush.msra.mxu0 %v1268
  %3957 = vmatpush.msra.mxu0 %v1260
  %3958 = vmatpush.msra.mxu0 %v1252
  %3959 = vmatpush.msra.mxu0 %v1244
  %3960 = vmatpush.msra.mxu0 %v1236
  %3961 = vmatpush.msra.mxu0 %v1228
  %3962 = vmatpush.msra.mxu0 %v1220
  %3963 = vmatpush.msra.mxu0 %v1212
  %3964 = vmatpush.msra.mxu0 %v1204
  %3965 = vmatmul.f32.gmra.mxu0 %v35
  %v3966 = vpop.f32.mrf.mxu0
  %v3967 = vadd.f32 %v3947, %v3966
  %3968 = vdwg.mxu0
  %3969 = vmatpush.msra.mxu0 %v1452
  %3970 = vmatpush.msra.mxu0 %v1444
  %3971 = vmatpush.msra.mxu0 %v1436
  %3972 = vmatpush.msra.mxu0 %v1428
  %3973 = vmatpush.msra.mxu0 %v1420
  %3974 = vmatpush.msra.mxu0 %v1412
  %3975 = vmatpush.msra.mxu0 %v1404
  %3976 = vmatpush.msra.mxu0 %v1396
  %3977 = vmatpush.msra.mxu0 %v1388
  %3978 = vmatpush.msra.mxu0 %v1380
  %3979 = vmatpush.msra.mxu0 %v1372
  %3980 = vmatpush.msra.mxu0 %v1364
  %3981 = vmatpush.msra.mxu0 %v1356
  %3982 = vmatpush.msra.mxu0 %v1348
  %3983 = vmatpush.msra.mxu0 %v1340
  %3984 = vmatpush.msra.mxu0 %v1332
  %3985 = vmatmul.f32.gmra.mxu0 %v36
  %v3986 = vpop.f32.mrf.mxu0
  %v3987 = vadd.f32 %v3967, %v3986
  %3988 = vdwg.mxu0
  %3989 = vmatpush.msra.mxu0 %v1580
  %3990 = vmatpush.msra.mxu0 %v1572
  %3991 = vmatpush.msra.mxu0 %v1564
  %3992 = vmatpush.msra.mxu0 %v1556
  %3993 = vmatpush.msra.mxu0 %v1548
  %3994 = vmatpush.msra.mxu0 %v1540
  %3995 = vmatpush.msra.mxu0 %v1532
  %3996 = vmatpush.msra.mxu0 %v1524
  %3997 = vmatpush.msra.mxu0 %v1516
  %3998 = vmatpush.msra.mxu0 %v1508
  %3999 = vmatpush.msra.mxu0 %v1500
  %4000 = vmatpush.msra.mxu0 %v1492
  %4001 = vmatpush.msra.mxu0 %v1484
  %4002 = vmatpush.msra.mxu0 %v1476
  %4003 = vmatpush.msra.mxu0 %v1468
  %4004 = vmatpush.msra.mxu0 %v1460
  %4005 = vmatmul.f32.gmra.mxu0 %v37
  %v4006 = vpop.f32.mrf.mxu0
  %v4007 = vadd.f32 %v3987, %v4006
  %4008 = vdwg.mxu0
  %4009 = vmatpush.msra.mxu0 %v1708
  %4010 = vmatpush.msra.mxu0 %v1700
  %4011 = vmatpush.msra.mxu0 %v1692
  %4012 = vmatpush.msra.mxu0 %v1684
  %4013 = vmatpush.msra.mxu0 %v1676
  %4014 = vmatpush.msra.mxu0 %v1668
  %4015 = vmatpush.msra.mxu0 %v1660
  %4016 = vmatpush.msra.mxu0 %v1652
  %4017 = vmatpush.msra.mxu0 %v1644
  %4018 = vmatpush.msra.mxu0 %v1636
  %4019 = vmatpush.msra.mxu0 %v1628
  %4020 = vmatpush.msra.mxu0 %v1620
  %4021 = vmatpush.msra.mxu0 %v1612
  %4022 = vmatpush.msra.mxu0 %v1604
  %4023 = vmatpush.msra.mxu0 %v1596
  %4024 = vmatpush.msra.mxu0 %v1588
  %4025 = vmatmul.f32.gmra.mxu0 %v38
  %v4026 = vpop.f32.mrf.mxu0
  %v4027 = vadd.f32 %v4007, %v4026
  %4028 = vdwg.mxu0
  %4029 = vmatpush.msra.mxu0 %v1836
  %4030 = vmatpush.msra.mxu0 %v1828
  %4031 = vmatpush.msra.mxu0 %v1820
  %4032 = vmatpush.msra.mxu0 %v1812
  %4033 = vmatpush.msra.mxu0 %v1804
  %4034 = vmatpush.msra.mxu0 %v1796
  %4035 = vmatpush.msra.mxu0 %v1788
  %4036 = vmatpush.msra.mxu0 %v1780
  %4037 = vmatpush.msra.mxu0 %v1772
  %4038 = vmatpush.msra.mxu0 %v1764
  %4039 = vmatpush.msra.mxu0 %v1756
  %4040 = vmatpush.msra.mxu0 %v1748
  %4041 = vmatpush.msra.mxu0 %v1740
  %4042 = vmatpush.msra.mxu0 %v1732
  %4043 = vmatpush.msra.mxu0 %v1724
  %4044 = vmatpush.msra.mxu0 %v1716
  %4045 = vmatmul.f32.gmra.mxu0 %v39
  %v4046 = vpop.f32.mrf.mxu0
  %v4047 = vadd.f32 %v4027, %v4046
  %4048 = vdwg.mxu0
  %4049 = vmatpush.msra.mxu0 %v1964
  %4050 = vmatpush.msra.mxu0 %v1956
  %4051 = vmatpush.msra.mxu0 %v1948
  %4052 = vmatpush.msra.mxu0 %v1940
  %4053 = vmatpush.msra.mxu0 %v1932
  %4054 = vmatpush.msra.mxu0 %v1924
  %4055 = vmatpush.msra.mxu0 %v1916
  %4056 = vmatpush.msra.mxu0 %v1908
  %4057 = vmatpush.msra.mxu0 %v1900
  %4058 = vmatpush.msra.mxu0 %v1892
  %4059 = vmatpush.msra.mxu0 %v1884
  %4060 = vmatpush.msra.mxu0 %v1876
  %4061 = vmatpush.msra.mxu0 %v1868
  %4062 = vmatpush.msra.mxu0 %v1860
  %4063 = vmatpush.msra.mxu0 %v1852
  %4064 = vmatpush.msra.mxu0 %v1844
  %4065 = vmatmul.f32.gmra.mxu0 %v40
  %v4066 = vpop.f32.mrf.mxu0
  %v4067 = vadd.f32 %v4047, %v4066
  %4068 = vdwg.mxu0
  %4069 = vmatpush.msra.mxu0 %v2092
  %4070 = vmatpush.msra.mxu0 %v2084
  %4071 = vmatpush.msra.mxu0 %v2076
  %4072 = vmatpush.msra.mxu0 %v2068
  %4073 = vmatpush.msra.mxu0 %v2060
  %4074 = vmatpush.msra.mxu0 %v2052
  %4075 = vmatpush.msra.mxu0 %v2044
  %4076 = vmatpush.msra.mxu0 %v2036
  %4077 = vmatpush.msra.mxu0 %v2028
  %4078 = vmatpush.msra.mxu0 %v2020
  %4079 = vmatpush.msra.mxu0 %v2012
  %4080 = vmatpush.msra.mxu0 %v2004
  %4081 = vmatpush.msra.mxu0 %v1996
  %4082 = vmatpush.msra.mxu0 %v1988
  %4083 = vmatpush.msra.mxu0 %v1980
  %4084 = vmatpush.msra.mxu0 %v1972
  %4085 = vmatmul.f32.gmra.mxu0 %v41
  %v4086 = vpop.f32.mrf.mxu0
  %v4087 = vadd.f32 %v4067, %v4086
  %4088 = vdwg.mxu0
  %4089 = vmatpush.msra.mxu0 %v2220
  %4090 = vmatpush.msra.mxu0 %v2212
  %4091 = vmatpush.msra.mxu0 %v2204
  %4092 = vmatpush.msra.mxu0 %v2196
  %4093 = vmatpush.msra.mxu0 %v2188
  %4094 = vmatpush.msra.mxu0 %v2180
  %4095 = vmatpush.msra.mxu0 %v2172
  %4096 = vmatpush.msra.mxu0 %v2164
  %4097 = vmatpush.msra.mxu0 %v2156
  %4098 = vmatpush.msra.mxu0 %v2148
  %4099 = vmatpush.msra.mxu0 %v2140
  %4100 = vmatpush.msra.mxu0 %v2132
  %4101 = vmatpush.msra.mxu0 %v2124
  %4102 = vmatpush.msra.mxu0 %v2116
  %4103 = vmatpush.msra.mxu0 %v2108
  %4104 = vmatpush.msra.mxu0 %v2100
  %4105 = vmatmul.f32.gmra.mxu0 %v42
  %v4106 = vpop.f32.mrf.mxu0
  %v4107 = vadd.f32 %v4087, %v4106
  %4108 = vdwg.mxu0
  %4109 = vmatpush.msra.mxu0 %v2348
  %4110 = vmatpush.msra.mxu0 %v2340
  %4111 = vmatpush.msra.mxu0 %v2332
  %4112 = vmatpush.msra.mxu0 %v2324
  %4113 = vmatpush.msra.mxu0 %v2316
  %4114 = vmatpush.msra.mxu0 %v2308
  %4115 = vmatpush.msra.mxu0 %v2300
  %4116 = vmatpush.msra.mxu0 %v2292
  %4117 = vmatpush.msra.mxu0 %v2284
  %4118 = vmatpush.msra.mxu0 %v2276
  %4119 = vmatpush.msra.mxu0 %v2268
  %4120 = vmatpush.msra.mxu0 %v2260
  %4121 = vmatpush.msra.mxu0 %v2252
  %4122 = vmatpush.msra.mxu0 %v2244
  %4123 = vmatpush.msra.mxu0 %v2236
  %4124 = vmatpush.msra.mxu0 %v2228
  %4125 = vmatmul.f32.gmra.mxu0 %v43
  %v4126 = vpop.f32.mrf.mxu0
  %v4127 = vadd.f32 %v4107, %v4126
  %4128 = vdwg.mxu0
  %4129 = vmatpush.msra.mxu0 %v2476
  %4130 = vmatpush.msra.mxu0 %v2468
  %4131 = vmatpush.msra.mxu0 %v2460
  %4132 = vmatpush.msra.mxu0 %v2452
  %4133 = vmatpush.msra.mxu0 %v2444
  %4134 = vmatpush.msra.mxu0 %v2436
  %4135 = vmatpush.msra.mxu0 %v2428
  %4136 = vmatpush.msra.mxu0 %v2420
  %4137 = vmatpush.msra.mxu0 %v2412
  %4138 = vmatpush.msra.mxu0 %v2404
  %4139 = vmatpush.msra.mxu0 %v2396
  %4140 = vmatpush.msra.mxu0 %v2388
  %4141 = vmatpush.msra.mxu0 %v2380
  %4142 = vmatpush.msra.mxu0 %v2372
  %4143 = vmatpush.msra.mxu0 %v2364
  %4144 = vmatpush.msra.mxu0 %v2356
  %4145 = vmatmul.f32.gmra.mxu0 %v44
  %v4146 = vpop.f32.mrf.mxu0
  %v4147 = vadd.f32 %v4127, %v4146
  %4148 = vdwg.mxu0
  %4149 = vmatpush.msra.mxu0 %v2604
  %4150 = vmatpush.msra.mxu0 %v2596
  %4151 = vmatpush.msra.mxu0 %v2588
  %4152 = vmatpush.msra.mxu0 %v2580
  %4153 = vmatpush.msra.mxu0 %v2572
  %4154 = vmatpush.msra.mxu0 %v2564
  %4155 = vmatpush.msra.mxu0 %v2556
  %4156 = vmatpush.msra.mxu0 %v2548
  %4157 = vmatpush.msra.mxu0 %v2540
  %4158 = vmatpush.msra.mxu0 %v2532
  %4159 = vmatpush.msra.mxu0 %v2524
  %4160 = vmatpush.msra.mxu0 %v2516
  %4161 = vmatpush.msra.mxu0 %v2508
  %4162 = vmatpush.msra.mxu0 %v2500
  %4163 = vmatpush.msra.mxu0 %v2492
  %4164 = vmatpush.msra.mxu0 %v2484
  %4165 = vmatmul.f32.gmra.mxu0 %v45
  %v4166 = vpop.f32.mrf.mxu0
  %v4167 = vadd.f32 %v4147, %v4166
  %4168 = vdwg.mxu0
  %4169 = vmatpush.msra.mxu0 %v2732
  %4170 = vmatpush.msra.mxu0 %v2724
  %4171 = vmatpush.msra.mxu0 %v2716
  %4172 = vmatpush.msra.mxu0 %v2708
  %4173 = vmatpush.msra.mxu0 %v2700
  %4174 = vmatpush.msra.mxu0 %v2692
  %4175 = vmatpush.msra.mxu0 %v2684
  %4176 = vmatpush.msra.mxu0 %v2676
  %4177 = vmatpush.msra.mxu0 %v2668
  %4178 = vmatpush.msra.mxu0 %v2660
  %4179 = vmatpush.msra.mxu0 %v2652
  %4180 = vmatpush.msra.mxu0 %v2644
  %4181 = vmatpush.msra.mxu0 %v2636
  %4182 = vmatpush.msra.mxu0 %v2628
  %4183 = vmatpush.msra.mxu0 %v2620
  %4184 = vmatpush.msra.mxu0 %v2612
  %4185 = vmatmul.f32.gmra.mxu0 %v46
  %v4186 = vpop.f32.mrf.mxu0
  %v4187 = vadd.f32 %v4167, %v4186
  %4188 = vdwg.mxu0
  %4189 = vmatpush.msra.mxu0 %v2860
  %4190 = vmatpush.msra.mxu0 %v2852
  %4191 = vmatpush.msra.mxu0 %v2844
  %4192 = vmatpush.msra.mxu0 %v2836
  %4193 = vmatpush.msra.mxu0 %v2828
  %4194 = vmatpush.msra.mxu0 %v2820
  %4195 = vmatpush.msra.mxu0 %v2812
  %4196 = vmatpush.msra.mxu0 %v2804
  %4197 = vmatpush.msra.mxu0 %v2796
  %4198 = vmatpush.msra.mxu0 %v2788
  %4199 = vmatpush.msra.mxu0 %v2780
  %4200 = vmatpush.msra.mxu0 %v2772
  %4201 = vmatpush.msra.mxu0 %v2764
  %4202 = vmatpush.msra.mxu0 %v2756
  %4203 = vmatpush.msra.mxu0 %v2748
  %4204 = vmatpush.msra.mxu0 %v2740
  %4205 = vmatmul.f32.gmra.mxu0 %v47
  %v4206 = vpop.f32.mrf.mxu0
  %v4207 = vadd.f32 %v4187, %v4206
  %4208 = vdwg.mxu0
  %4209 = vmatpush.msra.mxu0 %v2988
  %4210 = vmatpush.msra.mxu0 %v2980
  %4211 = vmatpush.msra.mxu0 %v2972
  %4212 = vmatpush.msra.mxu0 %v2964
  %4213 = vmatpush.msra.mxu0 %v2956
  %4214 = vmatpush.msra.mxu0 %v2948
  %4215 = vmatpush.msra.mxu0 %v2940
  %4216 = vmatpush.msra.mxu0 %v2932
  %4217 = vmatpush.msra.mxu0 %v2924
  %4218 = vmatpush.msra.mxu0 %v2916
  %4219 = vmatpush.msra.mxu0 %v2908
  %4220 = vmatpush.msra.mxu0 %v2900
  %4221 = vmatpush.msra.mxu0 %v2892
  %4222 = vmatpush.msra.mxu0 %v2884
  %4223 = vmatpush.msra.mxu0 %v2876
  %4224 = vmatpush.msra.mxu0 %v2868
  %4225 = vmatmul.f32.gmra.mxu0 %v48
  %v4226 = vpop.f32.mrf.mxu0
  %v4227 = vadd.f32 %v4207, %v4226
  %4228 = vdwg.mxu0
  %4229 = vmatpush.msra.mxu0 %v3116
  %4230 = vmatpush.msra.mxu0 %v3108
  %4231 = vmatpush.msra.mxu0 %v3100
  %4232 = vmatpush.msra.mxu0 %v3092
  %4233 = vmatpush.msra.mxu0 %v3084
  %4234 = vmatpush.msra.mxu0 %v3076
  %4235 = vmatpush.msra.mxu0 %v3068
  %4236 = vmatpush.msra.mxu0 %v3060
  %4237 = vmatpush.msra.mxu0 %v3052
  %4238 = vmatpush.msra.mxu0 %v3044
  %4239 = vmatpush.msra.mxu0 %v3036
  %4240 = vmatpush.msra.mxu0 %v3028
  %4241 = vmatpush.msra.mxu0 %v3020
  %4242 = vmatpush.msra.mxu0 %v3012
  %4243 = vmatpush.msra.mxu0 %v3004
  %4244 = vmatpush.msra.mxu0 %v2996
  %4245 = vmatmul.f32.gmra.mxu0 %v49
  %v4246 = vpop.f32.mrf.mxu0
  %v4247 = vadd.f32 %v4227, %v4246
  %4248 = vdwg.mxu0
  %4249 = vmatpush.msra.mxu0 %v3244
  %4250 = vmatpush.msra.mxu0 %v3236
  %4251 = vmatpush.msra.mxu0 %v3228
  %4252 = vmatpush.msra.mxu0 %v3220
  %4253 = vmatpush.msra.mxu0 %v3212
  %4254 = vmatpush.msra.mxu0 %v3204
  %4255 = vmatpush.msra.mxu0 %v3196
  %4256 = vmatpush.msra.mxu0 %v3188
  %4257 = vmatpush.msra.mxu0 %v3180
  %4258 = vmatpush.msra.mxu0 %v3172
  %4259 = vmatpush.msra.mxu0 %v3164
  %4260 = vmatpush.msra.mxu0 %v3156
  %4261 = vmatpush.msra.mxu0 %v3148
  %4262 = vmatpush.msra.mxu0 %v3140
  %4263 = vmatpush.msra.mxu0 %v3132
  %4264 = vmatpush.msra.mxu0 %v3124
  %4265 = vmatmul.f32.gmra.mxu0 %v50
  %v4266 = vpop.f32.mrf.mxu0
  %v4267 = vadd.f32 %v4247, %v4266
  %4268 = vdwg.mxu0
  %4269 = vmatpush.msra.mxu0 %v173
  %4270 = vmatpush.msra.mxu0 %v165
  %4271 = vmatpush.msra.mxu0 %v157
  %4272 = vmatpush.msra.mxu0 %v149
  %4273 = vmatpush.msra.mxu0 %v141
  %4274 = vmatpush.msra.mxu0 %v133
  %4275 = vmatpush.msra.mxu0 %v125
  %4276 = vmatpush.msra.mxu0 %v117
  %4277 = vmatpush.msra.mxu0 %v109
  %4278 = vmatpush.msra.mxu0 %v101
  %4279 = vmatpush.msra.mxu0 %v93
  %4280 = vmatpush.msra.mxu0 %v85
  %4281 = vmatpush.msra.mxu0 %v77
  %4282 = vmatpush.msra.mxu0 %v69
  %4283 = vmatpush.msra.mxu0 %v61
  %4284 = vmatpush.msra.mxu0 %v53
  %4285 = vmatmul.f32.gmra.mxu0 %v26
  %v4286 = vpop.f32.mrf.mxu0
  %v4287 = vadd.f32 %v3255, %v4286
  %4288 = vdwg.mxu0
  %4289 = vmatpush.msra.mxu0 %v301
  %4290 = vmatpush.msra.mxu0 %v293
  %4291 = vmatpush.msra.mxu0 %v285
  %4292 = vmatpush.msra.mxu0 %v277
  %4293 = vmatpush.msra.mxu0 %v269
  %4294 = vmatpush.msra.mxu0 %v261
  %4295 = vmatpush.msra.mxu0 %v253
  %4296 = vmatpush.msra.mxu0 %v245
  %4297 = vmatpush.msra.mxu0 %v237
  %4298 = vmatpush.msra.mxu0 %v229
  %4299 = vmatpush.msra.mxu0 %v221
  %4300 = vmatpush.msra.mxu0 %v213
  %4301 = vmatpush.msra.mxu0 %v205
  %4302 = vmatpush.msra.mxu0 %v197
  %4303 = vmatpush.msra.mxu0 %v189
  %4304 = vmatpush.msra.mxu0 %v181
  %4305 = vmatmul.f32.gmra.mxu0 %v27
  %v4306 = vpop.f32.mrf.mxu0
  %v4307 = vadd.f32 %v4287, %v4306
  %4308 = vdwg.mxu0
  %4309 = vmatpush.msra.mxu0 %v429
  %4310 = vmatpush.msra.mxu0 %v421
  %4311 = vmatpush.msra.mxu0 %v413
  %4312 = vmatpush.msra.mxu0 %v405
  %4313 = vmatpush.msra.mxu0 %v397
  %4314 = vmatpush.msra.mxu0 %v389
  %4315 = vmatpush.msra.mxu0 %v381
  %4316 = vmatpush.msra.mxu0 %v373
  %4317 = vmatpush.msra.mxu0 %v365
  %4318 = vmatpush.msra.mxu0 %v357
  %4319 = vmatpush.msra.mxu0 %v349
  %4320 = vmatpush.msra.mxu0 %v341
  %4321 = vmatpush.msra.mxu0 %v333
  %4322 = vmatpush.msra.mxu0 %v325
  %4323 = vmatpush.msra.mxu0 %v317
  %4324 = vmatpush.msra.mxu0 %v309
  %4325 = vmatmul.f32.gmra.mxu0 %v28
  %v4326 = vpop.f32.mrf.mxu0
  %v4327 = vadd.f32 %v4307, %v4326
  %4328 = vdwg.mxu0
  %4329 = vmatpush.msra.mxu0 %v557
  %4330 = vmatpush.msra.mxu0 %v549
  %4331 = vmatpush.msra.mxu0 %v541
  %4332 = vmatpush.msra.mxu0 %v533
  %4333 = vmatpush.msra.mxu0 %v525
  %4334 = vmatpush.msra.mxu0 %v517
  %4335 = vmatpush.msra.mxu0 %v509
  %4336 = vmatpush.msra.mxu0 %v501
  %4337 = vmatpush.msra.mxu0 %v493
  %4338 = vmatpush.msra.mxu0 %v485
  %4339 = vmatpush.msra.mxu0 %v477
  %4340 = vmatpush.msra.mxu0 %v469
  %4341 = vmatpush.msra.mxu0 %v461
  %4342 = vmatpush.msra.mxu0 %v453
  %4343 = vmatpush.msra.mxu0 %v445
  %4344 = vmatpush.msra.mxu0 %v437
  %4345 = vmatmul.f32.gmra.mxu0 %v29
  %v4346 = vpop.f32.mrf.mxu0
  %v4347 = vadd.f32 %v4327, %v4346
  %4348 = vdwg.mxu0
  %4349 = vmatpush.msra.mxu0 %v685
  %4350 = vmatpush.msra.mxu0 %v677
  %4351 = vmatpush.msra.mxu0 %v669
  %4352 = vmatpush.msra.mxu0 %v661
  %4353 = vmatpush.msra.mxu0 %v653
  %4354 = vmatpush.msra.mxu0 %v645
  %4355 = vmatpush.msra.mxu0 %v637
  %4356 = vmatpush.msra.mxu0 %v629
  %4357 = vmatpush.msra.mxu0 %v621
  %4358 = vmatpush.msra.mxu0 %v613
  %4359 = vmatpush.msra.mxu0 %v605
  %4360 = vmatpush.msra.mxu0 %v597
  %4361 = vmatpush.msra.mxu0 %v589
  %4362 = vmatpush.msra.mxu0 %v581
  %4363 = vmatpush.msra.mxu0 %v573
  %4364 = vmatpush.msra.mxu0 %v565
  %4365 = vmatmul.f32.gmra.mxu0 %v30
  %v4366 = vpop.f32.mrf.mxu0
  %v4367 = vadd.f32 %v4347, %v4366
  %4368 = vdwg.mxu0
  %4369 = vmatpush.msra.mxu0 %v813
  %4370 = vmatpush.msra.mxu0 %v805
  %4371 = vmatpush.msra.mxu0 %v797
  %4372 = vmatpush.msra.mxu0 %v789
  %4373 = vmatpush.msra.mxu0 %v781
  %4374 = vmatpush.msra.mxu0 %v773
  %4375 = vmatpush.msra.mxu0 %v765
  %4376 = vmatpush.msra.mxu0 %v757
  %4377 = vmatpush.msra.mxu0 %v749
  %4378 = vmatpush.msra.mxu0 %v741
  %4379 = vmatpush.msra.mxu0 %v733
  %4380 = vmatpush.msra.mxu0 %v725
  %4381 = vmatpush.msra.mxu0 %v717
  %4382 = vmatpush.msra.mxu0 %v709
  %4383 = vmatpush.msra.mxu0 %v701
  %4384 = vmatpush.msra.mxu0 %v693
  %4385 = vmatmul.f32.gmra.mxu0 %v31
  %v4386 = vpop.f32.mrf.mxu0
  %v4387 = vadd.f32 %v4367, %v4386
  %4388 = vdwg.mxu0
  %4389 = vmatpush.msra.mxu0 %v941
  %4390 = vmatpush.msra.mxu0 %v933
  %4391 = vmatpush.msra.mxu0 %v925
  %4392 = vmatpush.msra.mxu0 %v917
  %4393 = vmatpush.msra.mxu0 %v909
  %4394 = vmatpush.msra.mxu0 %v901
  %4395 = vmatpush.msra.mxu0 %v893
  %4396 = vmatpush.msra.mxu0 %v885
  %4397 = vmatpush.msra.mxu0 %v877
  %4398 = vmatpush.msra.mxu0 %v869
  %4399 = vmatpush.msra.mxu0 %v861
  %4400 = vmatpush.msra.mxu0 %v853
  %4401 = vmatpush.msra.mxu0 %v845
  %4402 = vmatpush.msra.mxu0 %v837
  %4403 = vmatpush.msra.mxu0 %v829
  %4404 = vmatpush.msra.mxu0 %v821
  %4405 = vmatmul.f32.gmra.mxu0 %v32
  %v4406 = vpop.f32.mrf.mxu0
  %v4407 = vadd.f32 %v4387, %v4406
  %4408 = vdwg.mxu0
  %4409 = vmatpush.msra.mxu0 %v1069
  %4410 = vmatpush.msra.mxu0 %v1061
  %4411 = vmatpush.msra.mxu0 %v1053
  %4412 = vmatpush.msra.mxu0 %v1045
  %4413 = vmatpush.msra.mxu0 %v1037
  %4414 = vmatpush.msra.mxu0 %v1029
  %4415 = vmatpush.msra.mxu0 %v1021
  %4416 = vmatpush.msra.mxu0 %v1013
  %4417 = vmatpush.msra.mxu0 %v1005
  %4418 = vmatpush.msra.mxu0 %v997
  %4419 = vmatpush.msra.mxu0 %v989
  %4420 = vmatpush.msra.mxu0 %v981
  %4421 = vmatpush.msra.mxu0 %v973
  %4422 = vmatpush.msra.mxu0 %v965
  %4423 = vmatpush.msra.mxu0 %v957
  %4424 = vmatpush.msra.mxu0 %v949
  %4425 = vmatmul.f32.gmra.mxu0 %v33
  %v4426 = vpop.f32.mrf.mxu0
  %v4427 = vadd.f32 %v4407, %v4426
  %4428 = vdwg.mxu0
  %4429 = vmatpush.msra.mxu0 %v1197
  %4430 = vmatpush.msra.mxu0 %v1189
  %4431 = vmatpush.msra.mxu0 %v1181
  %4432 = vmatpush.msra.mxu0 %v1173
  %4433 = vmatpush.msra.mxu0 %v1165
  %4434 = vmatpush.msra.mxu0 %v1157
  %4435 = vmatpush.msra.mxu0 %v1149
  %4436 = vmatpush.msra.mxu0 %v1141
  %4437 = vmatpush.msra.mxu0 %v1133
  %4438 = vmatpush.msra.mxu0 %v1125
  %4439 = vmatpush.msra.mxu0 %v1117
  %4440 = vmatpush.msra.mxu0 %v1109
  %4441 = vmatpush.msra.mxu0 %v1101
  %4442 = vmatpush.msra.mxu0 %v1093
  %4443 = vmatpush.msra.mxu0 %v1085
  %4444 = vmatpush.msra.mxu0 %v1077
  %4445 = vmatmul.f32.gmra.mxu0 %v34
  %v4446 = vpop.f32.mrf.mxu0
  %v4447 = vadd.f32 %v4427, %v4446
  %4448 = vdwg.mxu0
  %4449 = vmatpush.msra.mxu0 %v1325
  %4450 = vmatpush.msra.mxu0 %v1317
  %4451 = vmatpush.msra.mxu0 %v1309
  %4452 = vmatpush.msra.mxu0 %v1301
  %4453 = vmatpush.msra.mxu0 %v1293
  %4454 = vmatpush.msra.mxu0 %v1285
  %4455 = vmatpush.msra.mxu0 %v1277
  %4456 = vmatpush.msra.mxu0 %v1269
  %4457 = vmatpush.msra.mxu0 %v1261
  %4458 = vmatpush.msra.mxu0 %v1253
  %4459 = vmatpush.msra.mxu0 %v1245
  %4460 = vmatpush.msra.mxu0 %v1237
  %4461 = vmatpush.msra.mxu0 %v1229
  %4462 = vmatpush.msra.mxu0 %v1221
  %4463 = vmatpush.msra.mxu0 %v1213
  %4464 = vmatpush.msra.mxu0 %v1205
  %4465 = vmatmul.f32.gmra.mxu0 %v35
  %v4466 = vpop.f32.mrf.mxu0
  %v4467 = vadd.f32 %v4447, %v4466
  %4468 = vdwg.mxu0
  %4469 = vmatpush.msra.mxu0 %v1453
  %4470 = vmatpush.msra.mxu0 %v1445
  %4471 = vmatpush.msra.mxu0 %v1437
  %4472 = vmatpush.msra.mxu0 %v1429
  %4473 = vmatpush.msra.mxu0 %v1421
  %4474 = vmatpush.msra.mxu0 %v1413
  %4475 = vmatpush.msra.mxu0 %v1405
  %4476 = vmatpush.msra.mxu0 %v1397
  %4477 = vmatpush.msra.mxu0 %v1389
  %4478 = vmatpush.msra.mxu0 %v1381
  %4479 = vmatpush.msra.mxu0 %v1373
  %4480 = vmatpush.msra.mxu0 %v1365
  %4481 = vmatpush.msra.mxu0 %v1357
  %4482 = vmatpush.msra.mxu0 %v1349
  %4483 = vmatpush.msra.mxu0 %v1341
  %4484 = vmatpush.msra.mxu0 %v1333
  %4485 = vmatmul.f32.gmra.mxu0 %v36
  %v4486 = vpop.f32.mrf.mxu0
  %v4487 = vadd.f32 %v4467, %v4486
  %4488 = vdwg.mxu0
  %4489 = vmatpush.msra.mxu0 %v1581
  %4490 = vmatpush.msra.mxu0 %v1573
  %4491 = vmatpush.msra.mxu0 %v1565
  %4492 = vmatpush.msra.mxu0 %v1557
  %4493 = vmatpush.msra.mxu0 %v1549
  %4494 = vmatpush.msra.mxu0 %v1541
  %4495 = vmatpush.msra.mxu0 %v1533
  %4496 = vmatpush.msra.mxu0 %v1525
  %4497 = vmatpush.msra.mxu0 %v1517
  %4498 = vmatpush.msra.mxu0 %v1509
  %4499 = vmatpush.msra.mxu0 %v1501
  %4500 = vmatpush.msra.mxu0 %v1493
  %4501 = vmatpush.msra.mxu0 %v1485
  %4502 = vmatpush.msra.mxu0 %v1477
  %4503 = vmatpush.msra.mxu0 %v1469
  %4504 = vmatpush.msra.mxu0 %v1461
  %4505 = vmatmul.f32.gmra.mxu0 %v37
  %v4506 = vpop.f32.mrf.mxu0
  %v4507 = vadd.f32 %v4487, %v4506
  %4508 = vdwg.mxu0
  %4509 = vmatpush.msra.mxu0 %v1709
  %4510 = vmatpush.msra.mxu0 %v1701
  %4511 = vmatpush.msra.mxu0 %v1693
  %4512 = vmatpush.msra.mxu0 %v1685
  %4513 = vmatpush.msra.mxu0 %v1677
  %4514 = vmatpush.msra.mxu0 %v1669
  %4515 = vmatpush.msra.mxu0 %v1661
  %4516 = vmatpush.msra.mxu0 %v1653
  %4517 = vmatpush.msra.mxu0 %v1645
  %4518 = vmatpush.msra.mxu0 %v1637
  %4519 = vmatpush.msra.mxu0 %v1629
  %4520 = vmatpush.msra.mxu0 %v1621
  %4521 = vmatpush.msra.mxu0 %v1613
  %4522 = vmatpush.msra.mxu0 %v1605
  %4523 = vmatpush.msra.mxu0 %v1597
  %4524 = vmatpush.msra.mxu0 %v1589
  %4525 = vmatmul.f32.gmra.mxu0 %v38
  %v4526 = vpop.f32.mrf.mxu0
  %v4527 = vadd.f32 %v4507, %v4526
  %4528 = vdwg.mxu0
  %4529 = vmatpush.msra.mxu0 %v1837
  %4530 = vmatpush.msra.mxu0 %v1829
  %4531 = vmatpush.msra.mxu0 %v1821
  %4532 = vmatpush.msra.mxu0 %v1813
  %4533 = vmatpush.msra.mxu0 %v1805
  %4534 = vmatpush.msra.mxu0 %v1797
  %4535 = vmatpush.msra.mxu0 %v1789
  %4536 = vmatpush.msra.mxu0 %v1781
  %4537 = vmatpush.msra.mxu0 %v1773
  %4538 = vmatpush.msra.mxu0 %v1765
  %4539 = vmatpush.msra.mxu0 %v1757
  %4540 = vmatpush.msra.mxu0 %v1749
  %4541 = vmatpush.msra.mxu0 %v1741
  %4542 = vmatpush.msra.mxu0 %v1733
  %4543 = vmatpush.msra.mxu0 %v1725
  %4544 = vmatpush.msra.mxu0 %v1717
  %4545 = vmatmul.f32.gmra.mxu0 %v39
  %v4546 = vpop.f32.mrf.mxu0
  %v4547 = vadd.f32 %v4527, %v4546
  %4548 = vdwg.mxu0
  %4549 = vmatpush.msra.mxu0 %v1965
  %4550 = vmatpush.msra.mxu0 %v1957
  %4551 = vmatpush.msra.mxu0 %v1949
  %4552 = vmatpush.msra.mxu0 %v1941
  %4553 = vmatpush.msra.mxu0 %v1933
  %4554 = vmatpush.msra.mxu0 %v1925
  %4555 = vmatpush.msra.mxu0 %v1917
  %4556 = vmatpush.msra.mxu0 %v1909
  %4557 = vmatpush.msra.mxu0 %v1901
  %4558 = vmatpush.msra.mxu0 %v1893
  %4559 = vmatpush.msra.mxu0 %v1885
  %4560 = vmatpush.msra.mxu0 %v1877
  %4561 = vmatpush.msra.mxu0 %v1869
  %4562 = vmatpush.msra.mxu0 %v1861
  %4563 = vmatpush.msra.mxu0 %v1853
  %4564 = vmatpush.msra.mxu0 %v1845
  %4565 = vmatmul.f32.gmra.mxu0 %v40
  %v4566 = vpop.f32.mrf.mxu0
  %v4567 = vadd.f32 %v4547, %v4566
  %4568 = vdwg.mxu0
  %4569 = vmatpush.msra.mxu0 %v2093
  %4570 = vmatpush.msra.mxu0 %v2085
  %4571 = vmatpush.msra.mxu0 %v2077
  %4572 = vmatpush.msra.mxu0 %v2069
  %4573 = vmatpush.msra.mxu0 %v2061
  %4574 = vmatpush.msra.mxu0 %v2053
  %4575 = vmatpush.msra.mxu0 %v2045
  %4576 = vmatpush.msra.mxu0 %v2037
  %4577 = vmatpush.msra.mxu0 %v2029
  %4578 = vmatpush.msra.mxu0 %v2021
  %4579 = vmatpush.msra.mxu0 %v2013
  %4580 = vmatpush.msra.mxu0 %v2005
  %4581 = vmatpush.msra.mxu0 %v1997
  %4582 = vmatpush.msra.mxu0 %v1989
  %4583 = vmatpush.msra.mxu0 %v1981
  %4584 = vmatpush.msra.mxu0 %v1973
  %4585 = vmatmul.f32.gmra.mxu0 %v41
  %v4586 = vpop.f32.mrf.mxu0
  %v4587 = vadd.f32 %v4567, %v4586
  %4588 = vdwg.mxu0
  %4589 = vmatpush.msra.mxu0 %v2221
  %4590 = vmatpush.msra.mxu0 %v2213
  %4591 = vmatpush.msra.mxu0 %v2205
  %4592 = vmatpush.msra.mxu0 %v2197
  %4593 = vmatpush.msra.mxu0 %v2189
  %4594 = vmatpush.msra.mxu0 %v2181
  %4595 = vmatpush.msra.mxu0 %v2173
  %4596 = vmatpush.msra.mxu0 %v2165
  %4597 = vmatpush.msra.mxu0 %v2157
  %4598 = vmatpush.msra.mxu0 %v2149
  %4599 = vmatpush.msra.mxu0 %v2141
  %4600 = vmatpush.msra.mxu0 %v2133
  %4601 = vmatpush.msra.mxu0 %v2125
  %4602 = vmatpush.msra.mxu0 %v2117
  %4603 = vmatpush.msra.mxu0 %v2109
  %4604 = vmatpush.msra.mxu0 %v2101
  %4605 = vmatmul.f32.gmra.mxu0 %v42
  %v4606 = vpop.f32.mrf.mxu0
  %v4607 = vadd.f32 %v4587, %v4606
  %4608 = vdwg.mxu0
  %4609 = vmatpush.msra.mxu0 %v2349
  %4610 = vmatpush.msra.mxu0 %v2341
  %4611 = vmatpush.msra.mxu0 %v2333
  %4612 = vmatpush.msra.mxu0 %v2325
  %4613 = vmatpush.msra.mxu0 %v2317
  %4614 = vmatpush.msra.mxu0 %v2309
  %4615 = vmatpush.msra.mxu0 %v2301
  %4616 = vmatpush.msra.mxu0 %v2293
  %4617 = vmatpush.msra.mxu0 %v2285
  %4618 = vmatpush.msra.mxu0 %v2277
  %4619 = vmatpush.msra.mxu0 %v2269
  %4620 = vmatpush.msra.mxu0 %v2261
  %4621 = vmatpush.msra.mxu0 %v2253
  %4622 = vmatpush.msra.mxu0 %v2245
  %4623 = vmatpush.msra.mxu0 %v2237
  %4624 = vmatpush.msra.mxu0 %v2229
  %4625 = vmatmul.f32.gmra.mxu0 %v43
  %v4626 = vpop.f32.mrf.mxu0
  %v4627 = vadd.f32 %v4607, %v4626
  %4628 = vdwg.mxu0
  %4629 = vmatpush.msra.mxu0 %v2477
  %4630 = vmatpush.msra.mxu0 %v2469
  %4631 = vmatpush.msra.mxu0 %v2461
  %4632 = vmatpush.msra.mxu0 %v2453
  %4633 = vmatpush.msra.mxu0 %v2445
  %4634 = vmatpush.msra.mxu0 %v2437
  %4635 = vmatpush.msra.mxu0 %v2429
  %4636 = vmatpush.msra.mxu0 %v2421
  %4637 = vmatpush.msra.mxu0 %v2413
  %4638 = vmatpush.msra.mxu0 %v2405
  %4639 = vmatpush.msra.mxu0 %v2397
  %4640 = vmatpush.msra.mxu0 %v2389
  %4641 = vmatpush.msra.mxu0 %v2381
  %4642 = vmatpush.msra.mxu0 %v2373
  %4643 = vmatpush.msra.mxu0 %v2365
  %4644 = vmatpush.msra.mxu0 %v2357
  %4645 = vmatmul.f32.gmra.mxu0 %v44
  %v4646 = vpop.f32.mrf.mxu0
  %v4647 = vadd.f32 %v4627, %v4646
  %4648 = vdwg.mxu0
  %4649 = vmatpush.msra.mxu0 %v2605
  %4650 = vmatpush.msra.mxu0 %v2597
  %4651 = vmatpush.msra.mxu0 %v2589
  %4652 = vmatpush.msra.mxu0 %v2581
  %4653 = vmatpush.msra.mxu0 %v2573
  %4654 = vmatpush.msra.mxu0 %v2565
  %4655 = vmatpush.msra.mxu0 %v2557
  %4656 = vmatpush.msra.mxu0 %v2549
  %4657 = vmatpush.msra.mxu0 %v2541
  %4658 = vmatpush.msra.mxu0 %v2533
  %4659 = vmatpush.msra.mxu0 %v2525
  %4660 = vmatpush.msra.mxu0 %v2517
  %4661 = vmatpush.msra.mxu0 %v2509
  %4662 = vmatpush.msra.mxu0 %v2501
  %4663 = vmatpush.msra.mxu0 %v2493
  %4664 = vmatpush.msra.mxu0 %v2485
  %4665 = vmatmul.f32.gmra.mxu0 %v45
  %v4666 = vpop.f32.mrf.mxu0
  %v4667 = vadd.f32 %v4647, %v4666
  %4668 = vdwg.mxu0
  %4669 = vmatpush.msra.mxu0 %v2733
  %4670 = vmatpush.msra.mxu0 %v2725
  %4671 = vmatpush.msra.mxu0 %v2717
  %4672 = vmatpush.msra.mxu0 %v2709
  %4673 = vmatpush.msra.mxu0 %v2701
  %4674 = vmatpush.msra.mxu0 %v2693
  %4675 = vmatpush.msra.mxu0 %v2685
  %4676 = vmatpush.msra.mxu0 %v2677
  %4677 = vmatpush.msra.mxu0 %v2669
  %4678 = vmatpush.msra.mxu0 %v2661
  %4679 = vmatpush.msra.mxu0 %v2653
  %4680 = vmatpush.msra.mxu0 %v2645
  %4681 = vmatpush.msra.mxu0 %v2637
  %4682 = vmatpush.msra.mxu0 %v2629
  %4683 = vmatpush.msra.mxu0 %v2621
  %4684 = vmatpush.msra.mxu0 %v2613
  %4685 = vmatmul.f32.gmra.mxu0 %v46
  %v4686 = vpop.f32.mrf.mxu0
  %v4687 = vadd.f32 %v4667, %v4686
  %4688 = vdwg.mxu0
  %4689 = vmatpush.msra.mxu0 %v2861
  %4690 = vmatpush.msra.mxu0 %v2853
  %4691 = vmatpush.msra.mxu0 %v2845
  %4692 = vmatpush.msra.mxu0 %v2837
  %4693 = vmatpush.msra.mxu0 %v2829
  %4694 = vmatpush.msra.mxu0 %v2821
  %4695 = vmatpush.msra.mxu0 %v2813
  %4696 = vmatpush.msra.mxu0 %v2805
  %4697 = vmatpush.msra.mxu0 %v2797
  %4698 = vmatpush.msra.mxu0 %v2789
  %4699 = vmatpush.msra.mxu0 %v2781
  %4700 = vmatpush.msra.mxu0 %v2773
  %4701 = vmatpush.msra.mxu0 %v2765
  %4702 = vmatpush.msra.mxu0 %v2757
  %4703 = vmatpush.msra.mxu0 %v2749
  %4704 = vmatpush.msra.mxu0 %v2741
  %4705 = vmatmul.f32.gmra.mxu0 %v47
  %v4706 = vpop.f32.mrf.mxu0
  %v4707 = vadd.f32 %v4687, %v4706
  %4708 = vdwg.mxu0
  %4709 = vmatpush.msra.mxu0 %v2989
  %4710 = vmatpush.msra.mxu0 %v2981
  %4711 = vmatpush.msra.mxu0 %v2973
  %4712 = vmatpush.msra.mxu0 %v2965
  %4713 = vmatpush.msra.mxu0 %v2957
  %4714 = vmatpush.msra.mxu0 %v2949
  %4715 = vmatpush.msra.mxu0 %v2941
  %4716 = vmatpush.msra.mxu0 %v2933
  %4717 = vmatpush.msra.mxu0 %v2925
  %4718 = vmatpush.msra.mxu0 %v2917
  %4719 = vmatpush.msra.mxu0 %v2909
  %4720 = vmatpush.msra.mxu0 %v2901
  %4721 = vmatpush.msra.mxu0 %v2893
  %4722 = vmatpush.msra.mxu0 %v2885
  %4723 = vmatpush.msra.mxu0 %v2877
  %4724 = vmatpush.msra.mxu0 %v2869
  %4725 = vmatmul.f32.gmra.mxu0 %v48
  %v4726 = vpop.f32.mrf.mxu0
  %v4727 = vadd.f32 %v4707, %v4726
  %4728 = vdwg.mxu0
  %4729 = vmatpush.msra.mxu0 %v3117
  %4730 = vmatpush.msra.mxu0 %v3109
  %4731 = vmatpush.msra.mxu0 %v3101
  %4732 = vmatpush.msra.mxu0 %v3093
  %4733 = vmatpush.msra.mxu0 %v3085
  %4734 = vmatpush.msra.mxu0 %v3077
  %4735 = vmatpush.msra.mxu0 %v3069
  %4736 = vmatpush.msra.mxu0 %v3061
  %4737 = vmatpush.msra.mxu0 %v3053
  %4738 = vmatpush.msra.mxu0 %v3045
  %4739 = vmatpush.msra.mxu0 %v3037
  %4740 = vmatpush.msra.mxu0 %v3029
  %4741 = vmatpush.msra.mxu0 %v3021
  %4742 = vmatpush.msra.mxu0 %v3013
  %4743 = vmatpush.msra.mxu0 %v3005
  %4744 = vmatpush.msra.mxu0 %v2997
  %4745 = vmatmul.f32.gmra.mxu0 %v49
  %v4746 = vpop.f32.mrf.mxu0
  %v4747 = vadd.f32 %v4727, %v4746
  %4748 = vdwg.mxu0
  %4749 = vmatpush.msra.mxu0 %v3245
  %4750 = vmatpush.msra.mxu0 %v3237
  %4751 = vmatpush.msra.mxu0 %v3229
  %4752 = vmatpush.msra.mxu0 %v3221
  %4753 = vmatpush.msra.mxu0 %v3213
  %4754 = vmatpush.msra.mxu0 %v3205
  %4755 = vmatpush.msra.mxu0 %v3197
  %4756 = vmatpush.msra.mxu0 %v3189
  %4757 = vmatpush.msra.mxu0 %v3181
  %4758 = vmatpush.msra.mxu0 %v3173
  %4759 = vmatpush.msra.mxu0 %v3165
  %4760 = vmatpush.msra.mxu0 %v3157
  %4761 = vmatpush.msra.mxu0 %v3149
  %4762 = vmatpush.msra.mxu0 %v3141
  %4763 = vmatpush.msra.mxu0 %v3133
  %4764 = vmatpush.msra.mxu0 %v3125
  %4765 = vmatmul.f32.gmra.mxu0 %v50
  %v4766 = vpop.f32.mrf.mxu0
  %v4767 = vadd.f32 %v4747, %v4766
  %4768 = vdwg.mxu0
  %4769 = vmatpush.msra.mxu0 %v174
  %4770 = vmatpush.msra.mxu0 %v166
  %4771 = vmatpush.msra.mxu0 %v158
  %4772 = vmatpush.msra.mxu0 %v150
  %4773 = vmatpush.msra.mxu0 %v142
  %4774 = vmatpush.msra.mxu0 %v134
  %4775 = vmatpush.msra.mxu0 %v126
  %4776 = vmatpush.msra.mxu0 %v118
  %4777 = vmatpush.msra.mxu0 %v110
  %4778 = vmatpush.msra.mxu0 %v102
  %4779 = vmatpush.msra.mxu0 %v94
  %4780 = vmatpush.msra.mxu0 %v86
  %4781 = vmatpush.msra.mxu0 %v78
  %4782 = vmatpush.msra.mxu0 %v70
  %4783 = vmatpush.msra.mxu0 %v62
  %4784 = vmatpush.msra.mxu0 %v54
  %4785 = vmatmul.f32.gmra.mxu0 %v26
  %v4786 = vpop.f32.mrf.mxu0
  %v4787 = vadd.f32 %v3256, %v4786
  %4788 = vdwg.mxu0
  %4789 = vmatpush.msra.mxu0 %v302
  %4790 = vmatpush.msra.mxu0 %v294
  %4791 = vmatpush.msra.mxu0 %v286
  %4792 = vmatpush.msra.mxu0 %v278
  %4793 = vmatpush.msra.mxu0 %v270
  %4794 = vmatpush.msra.mxu0 %v262
  %4795 = vmatpush.msra.mxu0 %v254
  %4796 = vmatpush.msra.mxu0 %v246
  %4797 = vmatpush.msra.mxu0 %v238
  %4798 = vmatpush.msra.mxu0 %v230
  %4799 = vmatpush.msra.mxu0 %v222
  %4800 = vmatpush.msra.mxu0 %v214
  %4801 = vmatpush.msra.mxu0 %v206
  %4802 = vmatpush.msra.mxu0 %v198
  %4803 = vmatpush.msra.mxu0 %v190
  %4804 = vmatpush.msra.mxu0 %v182
  %4805 = vmatmul.f32.gmra.mxu0 %v27
  %v4806 = vpop.f32.mrf.mxu0
  %v4807 = vadd.f32 %v4787, %v4806
  %4808 = vdwg.mxu0
  %4809 = vmatpush.msra.mxu0 %v430
  %4810 = vmatpush.msra.mxu0 %v422
  %4811 = vmatpush.msra.mxu0 %v414
  %4812 = vmatpush.msra.mxu0 %v406
  %4813 = vmatpush.msra.mxu0 %v398
  %4814 = vmatpush.msra.mxu0 %v390
  %4815 = vmatpush.msra.mxu0 %v382
  %4816 = vmatpush.msra.mxu0 %v374
  %4817 = vmatpush.msra.mxu0 %v366
  %4818 = vmatpush.msra.mxu0 %v358
  %4819 = vmatpush.msra.mxu0 %v350
  %4820 = vmatpush.msra.mxu0 %v342
  %4821 = vmatpush.msra.mxu0 %v334
  %4822 = vmatpush.msra.mxu0 %v326
  %4823 = vmatpush.msra.mxu0 %v318
  %4824 = vmatpush.msra.mxu0 %v310
  %4825 = vmatmul.f32.gmra.mxu0 %v28
  %v4826 = vpop.f32.mrf.mxu0
  %v4827 = vadd.f32 %v4807, %v4826
  %4828 = vdwg.mxu0
  %4829 = vmatpush.msra.mxu0 %v558
  %4830 = vmatpush.msra.mxu0 %v550
  %4831 = vmatpush.msra.mxu0 %v542
  %4832 = vmatpush.msra.mxu0 %v534
  %4833 = vmatpush.msra.mxu0 %v526
  %4834 = vmatpush.msra.mxu0 %v518
  %4835 = vmatpush.msra.mxu0 %v510
  %4836 = vmatpush.msra.mxu0 %v502
  %4837 = vmatpush.msra.mxu0 %v494
  %4838 = vmatpush.msra.mxu0 %v486
  %4839 = vmatpush.msra.mxu0 %v478
  %4840 = vmatpush.msra.mxu0 %v470
  %4841 = vmatpush.msra.mxu0 %v462
  %4842 = vmatpush.msra.mxu0 %v454
  %4843 = vmatpush.msra.mxu0 %v446
  %4844 = vmatpush.msra.mxu0 %v438
  %4845 = vmatmul.f32.gmra.mxu0 %v29
  %v4846 = vpop.f32.mrf.mxu0
  %v4847 = vadd.f32 %v4827, %v4846
  %4848 = vdwg.mxu0
  %4849 = vmatpush.msra.mxu0 %v686
  %4850 = vmatpush.msra.mxu0 %v678
  %4851 = vmatpush.msra.mxu0 %v670
  %4852 = vmatpush.msra.mxu0 %v662
  %4853 = vmatpush.msra.mxu0 %v654
  %4854 = vmatpush.msra.mxu0 %v646
  %4855 = vmatpush.msra.mxu0 %v638
  %4856 = vmatpush.msra.mxu0 %v630
  %4857 = vmatpush.msra.mxu0 %v622
  %4858 = vmatpush.msra.mxu0 %v614
  %4859 = vmatpush.msra.mxu0 %v606
  %4860 = vmatpush.msra.mxu0 %v598
  %4861 = vmatpush.msra.mxu0 %v590
  %4862 = vmatpush.msra.mxu0 %v582
  %4863 = vmatpush.msra.mxu0 %v574
  %4864 = vmatpush.msra.mxu0 %v566
  %4865 = vmatmul.f32.gmra.mxu0 %v30
  %v4866 = vpop.f32.mrf.mxu0
  %v4867 = vadd.f32 %v4847, %v4866
  %4868 = vdwg.mxu0
  %4869 = vmatpush.msra.mxu0 %v814
  %4870 = vmatpush.msra.mxu0 %v806
  %4871 = vmatpush.msra.mxu0 %v798
  %4872 = vmatpush.msra.mxu0 %v790
  %4873 = vmatpush.msra.mxu0 %v782
  %4874 = vmatpush.msra.mxu0 %v774
  %4875 = vmatpush.msra.mxu0 %v766
  %4876 = vmatpush.msra.mxu0 %v758
  %4877 = vmatpush.msra.mxu0 %v750
  %4878 = vmatpush.msra.mxu0 %v742
  %4879 = vmatpush.msra.mxu0 %v734
  %4880 = vmatpush.msra.mxu0 %v726
  %4881 = vmatpush.msra.mxu0 %v718
  %4882 = vmatpush.msra.mxu0 %v710
  %4883 = vmatpush.msra.mxu0 %v702
  %4884 = vmatpush.msra.mxu0 %v694
  %4885 = vmatmul.f32.gmra.mxu0 %v31
  %v4886 = vpop.f32.mrf.mxu0
  %v4887 = vadd.f32 %v4867, %v4886
  %4888 = vdwg.mxu0
  %4889 = vmatpush.msra.mxu0 %v942
  %4890 = vmatpush.msra.mxu0 %v934
  %4891 = vmatpush.msra.mxu0 %v926
  %4892 = vmatpush.msra.mxu0 %v918
  %4893 = vmatpush.msra.mxu0 %v910
  %4894 = vmatpush.msra.mxu0 %v902
  %4895 = vmatpush.msra.mxu0 %v894
  %4896 = vmatpush.msra.mxu0 %v886
  %4897 = vmatpush.msra.mxu0 %v878
  %4898 = vmatpush.msra.mxu0 %v870
  %4899 = vmatpush.msra.mxu0 %v862
  %4900 = vmatpush.msra.mxu0 %v854
  %4901 = vmatpush.msra.mxu0 %v846
  %4902 = vmatpush.msra.mxu0 %v838
  %4903 = vmatpush.msra.mxu0 %v830
  %4904 = vmatpush.msra.mxu0 %v822
  %4905 = vmatmul.f32.gmra.mxu0 %v32
  %v4906 = vpop.f32.mrf.mxu0
  %v4907 = vadd.f32 %v4887, %v4906
  %4908 = vdwg.mxu0
  %4909 = vmatpush.msra.mxu0 %v1070
  %4910 = vmatpush.msra.mxu0 %v1062
  %4911 = vmatpush.msra.mxu0 %v1054
  %4912 = vmatpush.msra.mxu0 %v1046
  %4913 = vmatpush.msra.mxu0 %v1038
  %4914 = vmatpush.msra.mxu0 %v1030
  %4915 = vmatpush.msra.mxu0 %v1022
  %4916 = vmatpush.msra.mxu0 %v1014
  %4917 = vmatpush.msra.mxu0 %v1006
  %4918 = vmatpush.msra.mxu0 %v998
  %4919 = vmatpush.msra.mxu0 %v990
  %4920 = vmatpush.msra.mxu0 %v982
  %4921 = vmatpush.msra.mxu0 %v974
  %4922 = vmatpush.msra.mxu0 %v966
  %4923 = vmatpush.msra.mxu0 %v958
  %4924 = vmatpush.msra.mxu0 %v950
  %4925 = vmatmul.f32.gmra.mxu0 %v33
  %v4926 = vpop.f32.mrf.mxu0
  %v4927 = vadd.f32 %v4907, %v4926
  %4928 = vdwg.mxu0
  %4929 = vmatpush.msra.mxu0 %v1198
  %4930 = vmatpush.msra.mxu0 %v1190
  %4931 = vmatpush.msra.mxu0 %v1182
  %4932 = vmatpush.msra.mxu0 %v1174
  %4933 = vmatpush.msra.mxu0 %v1166
  %4934 = vmatpush.msra.mxu0 %v1158
  %4935 = vmatpush.msra.mxu0 %v1150
  %4936 = vmatpush.msra.mxu0 %v1142
  %4937 = vmatpush.msra.mxu0 %v1134
  %4938 = vmatpush.msra.mxu0 %v1126
  %4939 = vmatpush.msra.mxu0 %v1118
  %4940 = vmatpush.msra.mxu0 %v1110
  %4941 = vmatpush.msra.mxu0 %v1102
  %4942 = vmatpush.msra.mxu0 %v1094
  %4943 = vmatpush.msra.mxu0 %v1086
  %4944 = vmatpush.msra.mxu0 %v1078
  %4945 = vmatmul.f32.gmra.mxu0 %v34
  %v4946 = vpop.f32.mrf.mxu0
  %v4947 = vadd.f32 %v4927, %v4946
  %4948 = vdwg.mxu0
  %4949 = vmatpush.msra.mxu0 %v1326
  %4950 = vmatpush.msra.mxu0 %v1318
  %4951 = vmatpush.msra.mxu0 %v1310
  %4952 = vmatpush.msra.mxu0 %v1302
  %4953 = vmatpush.msra.mxu0 %v1294
  %4954 = vmatpush.msra.mxu0 %v1286
  %4955 = vmatpush.msra.mxu0 %v1278
  %4956 = vmatpush.msra.mxu0 %v1270
  %4957 = vmatpush.msra.mxu0 %v1262
  %4958 = vmatpush.msra.mxu0 %v1254
  %4959 = vmatpush.msra.mxu0 %v1246
  %4960 = vmatpush.msra.mxu0 %v1238
  %4961 = vmatpush.msra.mxu0 %v1230
  %4962 = vmatpush.msra.mxu0 %v1222
  %4963 = vmatpush.msra.mxu0 %v1214
  %4964 = vmatpush.msra.mxu0 %v1206
  %4965 = vmatmul.f32.gmra.mxu0 %v35
  %v4966 = vpop.f32.mrf.mxu0
  %v4967 = vadd.f32 %v4947, %v4966
  %4968 = vdwg.mxu0
  %4969 = vmatpush.msra.mxu0 %v1454
  %4970 = vmatpush.msra.mxu0 %v1446
  %4971 = vmatpush.msra.mxu0 %v1438
  %4972 = vmatpush.msra.mxu0 %v1430
  %4973 = vmatpush.msra.mxu0 %v1422
  %4974 = vmatpush.msra.mxu0 %v1414
  %4975 = vmatpush.msra.mxu0 %v1406
  %4976 = vmatpush.msra.mxu0 %v1398
  %4977 = vmatpush.msra.mxu0 %v1390
  %4978 = vmatpush.msra.mxu0 %v1382
  %4979 = vmatpush.msra.mxu0 %v1374
  %4980 = vmatpush.msra.mxu0 %v1366
  %4981 = vmatpush.msra.mxu0 %v1358
  %4982 = vmatpush.msra.mxu0 %v1350
  %4983 = vmatpush.msra.mxu0 %v1342
  %4984 = vmatpush.msra.mxu0 %v1334
  %4985 = vmatmul.f32.gmra.mxu0 %v36
  %v4986 = vpop.f32.mrf.mxu0
  %v4987 = vadd.f32 %v4967, %v4986
  %4988 = vdwg.mxu0
  %4989 = vmatpush.msra.mxu0 %v1582
  %4990 = vmatpush.msra.mxu0 %v1574
  %4991 = vmatpush.msra.mxu0 %v1566
  %4992 = vmatpush.msra.mxu0 %v1558
  %4993 = vmatpush.msra.mxu0 %v1550
  %4994 = vmatpush.msra.mxu0 %v1542
  %4995 = vmatpush.msra.mxu0 %v1534
  %4996 = vmatpush.msra.mxu0 %v1526
  %4997 = vmatpush.msra.mxu0 %v1518
  %4998 = vmatpush.msra.mxu0 %v1510
  %4999 = vmatpush.msra.mxu0 %v1502
  %5000 = vmatpush.msra.mxu0 %v1494
  %5001 = vmatpush.msra.mxu0 %v1486
  %5002 = vmatpush.msra.mxu0 %v1478
  %5003 = vmatpush.msra.mxu0 %v1470
  %5004 = vmatpush.msra.mxu0 %v1462
  %5005 = vmatmul.f32.gmra.mxu0 %v37
  %v5006 = vpop.f32.mrf.mxu0
  %v5007 = vadd.f32 %v4987, %v5006
  %5008 = vdwg.mxu0
  %5009 = vmatpush.msra.mxu0 %v1710
  %5010 = vmatpush.msra.mxu0 %v1702
  %5011 = vmatpush.msra.mxu0 %v1694
  %5012 = vmatpush.msra.mxu0 %v1686
  %5013 = vmatpush.msra.mxu0 %v1678
  %5014 = vmatpush.msra.mxu0 %v1670
  %5015 = vmatpush.msra.mxu0 %v1662
  %5016 = vmatpush.msra.mxu0 %v1654
  %5017 = vmatpush.msra.mxu0 %v1646
  %5018 = vmatpush.msra.mxu0 %v1638
  %5019 = vmatpush.msra.mxu0 %v1630
  %5020 = vmatpush.msra.mxu0 %v1622
  %5021 = vmatpush.msra.mxu0 %v1614
  %5022 = vmatpush.msra.mxu0 %v1606
  %5023 = vmatpush.msra.mxu0 %v1598
  %5024 = vmatpush.msra.mxu0 %v1590
  %5025 = vmatmul.f32.gmra.mxu0 %v38
  %v5026 = vpop.f32.mrf.mxu0
  %v5027 = vadd.f32 %v5007, %v5026
  %5028 = vdwg.mxu0
  %5029 = vmatpush.msra.mxu0 %v1838
  %5030 = vmatpush.msra.mxu0 %v1830
  %5031 = vmatpush.msra.mxu0 %v1822
  %5032 = vmatpush.msra.mxu0 %v1814
  %5033 = vmatpush.msra.mxu0 %v1806
  %5034 = vmatpush.msra.mxu0 %v1798
  %5035 = vmatpush.msra.mxu0 %v1790
  %5036 = vmatpush.msra.mxu0 %v1782
  %5037 = vmatpush.msra.mxu0 %v1774
  %5038 = vmatpush.msra.mxu0 %v1766
  %5039 = vmatpush.msra.mxu0 %v1758
  %5040 = vmatpush.msra.mxu0 %v1750
  %5041 = vmatpush.msra.mxu0 %v1742
  %5042 = vmatpush.msra.mxu0 %v1734
  %5043 = vmatpush.msra.mxu0 %v1726
  %5044 = vmatpush.msra.mxu0 %v1718
  %5045 = vmatmul.f32.gmra.mxu0 %v39
  %v5046 = vpop.f32.mrf.mxu0
  %v5047 = vadd.f32 %v5027, %v5046
  %5048 = vdwg.mxu0
  %5049 = vmatpush.msra.mxu0 %v1966
  %5050 = vmatpush.msra.mxu0 %v1958
  %5051 = vmatpush.msra.mxu0 %v1950
  %5052 = vmatpush.msra.mxu0 %v1942
  %5053 = vmatpush.msra.mxu0 %v1934
  %5054 = vmatpush.msra.mxu0 %v1926
  %5055 = vmatpush.msra.mxu0 %v1918
  %5056 = vmatpush.msra.mxu0 %v1910
  %5057 = vmatpush.msra.mxu0 %v1902
  %5058 = vmatpush.msra.mxu0 %v1894
  %5059 = vmatpush.msra.mxu0 %v1886
  %5060 = vmatpush.msra.mxu0 %v1878
  %5061 = vmatpush.msra.mxu0 %v1870
  %5062 = vmatpush.msra.mxu0 %v1862
  %5063 = vmatpush.msra.mxu0 %v1854
  %5064 = vmatpush.msra.mxu0 %v1846
  %5065 = vmatmul.f32.gmra.mxu0 %v40
  %v5066 = vpop.f32.mrf.mxu0
  %v5067 = vadd.f32 %v5047, %v5066
  %5068 = vdwg.mxu0
  %5069 = vmatpush.msra.mxu0 %v2094
  %5070 = vmatpush.msra.mxu0 %v2086
  %5071 = vmatpush.msra.mxu0 %v2078
  %5072 = vmatpush.msra.mxu0 %v2070
  %5073 = vmatpush.msra.mxu0 %v2062
  %5074 = vmatpush.msra.mxu0 %v2054
  %5075 = vmatpush.msra.mxu0 %v2046
  %5076 = vmatpush.msra.mxu0 %v2038
  %5077 = vmatpush.msra.mxu0 %v2030
  %5078 = vmatpush.msra.mxu0 %v2022
  %5079 = vmatpush.msra.mxu0 %v2014
  %5080 = vmatpush.msra.mxu0 %v2006
  %5081 = vmatpush.msra.mxu0 %v1998
  %5082 = vmatpush.msra.mxu0 %v1990
  %5083 = vmatpush.msra.mxu0 %v1982
  %5084 = vmatpush.msra.mxu0 %v1974
  %5085 = vmatmul.f32.gmra.mxu0 %v41
  %v5086 = vpop.f32.mrf.mxu0
  %v5087 = vadd.f32 %v5067, %v5086
  %5088 = vdwg.mxu0
  %5089 = vmatpush.msra.mxu0 %v2222
  %5090 = vmatpush.msra.mxu0 %v2214
  %5091 = vmatpush.msra.mxu0 %v2206
  %5092 = vmatpush.msra.mxu0 %v2198
  %5093 = vmatpush.msra.mxu0 %v2190
  %5094 = vmatpush.msra.mxu0 %v2182
  %5095 = vmatpush.msra.mxu0 %v2174
  %5096 = vmatpush.msra.mxu0 %v2166
  %5097 = vmatpush.msra.mxu0 %v2158
  %5098 = vmatpush.msra.mxu0 %v2150
  %5099 = vmatpush.msra.mxu0 %v2142
  %5100 = vmatpush.msra.mxu0 %v2134
  %5101 = vmatpush.msra.mxu0 %v2126
  %5102 = vmatpush.msra.mxu0 %v2118
  %5103 = vmatpush.msra.mxu0 %v2110
  %5104 = vmatpush.msra.mxu0 %v2102
  %5105 = vmatmul.f32.gmra.mxu0 %v42
  %v5106 = vpop.f32.mrf.mxu0
  %v5107 = vadd.f32 %v5087, %v5106
  %5108 = vdwg.mxu0
  %5109 = vmatpush.msra.mxu0 %v2350
  %5110 = vmatpush.msra.mxu0 %v2342
  %5111 = vmatpush.msra.mxu0 %v2334
  %5112 = vmatpush.msra.mxu0 %v2326
  %5113 = vmatpush.msra.mxu0 %v2318
  %5114 = vmatpush.msra.mxu0 %v2310
  %5115 = vmatpush.msra.mxu0 %v2302
  %5116 = vmatpush.msra.mxu0 %v2294
  %5117 = vmatpush.msra.mxu0 %v2286
  %5118 = vmatpush.msra.mxu0 %v2278
  %5119 = vmatpush.msra.mxu0 %v2270
  %5120 = vmatpush.msra.mxu0 %v2262
  %5121 = vmatpush.msra.mxu0 %v2254
  %5122 = vmatpush.msra.mxu0 %v2246
  %5123 = vmatpush.msra.mxu0 %v2238
  %5124 = vmatpush.msra.mxu0 %v2230
  %5125 = vmatmul.f32.gmra.mxu0 %v43
  %v5126 = vpop.f32.mrf.mxu0
  %v5127 = vadd.f32 %v5107, %v5126
  %5128 = vdwg.mxu0
  %5129 = vmatpush.msra.mxu0 %v2478
  %5130 = vmatpush.msra.mxu0 %v2470
  %5131 = vmatpush.msra.mxu0 %v2462
  %5132 = vmatpush.msra.mxu0 %v2454
  %5133 = vmatpush.msra.mxu0 %v2446
  %5134 = vmatpush.msra.mxu0 %v2438
  %5135 = vmatpush.msra.mxu0 %v2430
  %5136 = vmatpush.msra.mxu0 %v2422
  %5137 = vmatpush.msra.mxu0 %v2414
  %5138 = vmatpush.msra.mxu0 %v2406
  %5139 = vmatpush.msra.mxu0 %v2398
  %5140 = vmatpush.msra.mxu0 %v2390
  %5141 = vmatpush.msra.mxu0 %v2382
  %5142 = vmatpush.msra.mxu0 %v2374
  %5143 = vmatpush.msra.mxu0 %v2366
  %5144 = vmatpush.msra.mxu0 %v2358
  %5145 = vmatmul.f32.gmra.mxu0 %v44
  %v5146 = vpop.f32.mrf.mxu0
  %v5147 = vadd.f32 %v5127, %v5146
  %5148 = vdwg.mxu0
  %5149 = vmatpush.msra.mxu0 %v2606
  %5150 = vmatpush.msra.mxu0 %v2598
  %5151 = vmatpush.msra.mxu0 %v2590
  %5152 = vmatpush.msra.mxu0 %v2582
  %5153 = vmatpush.msra.mxu0 %v2574
  %5154 = vmatpush.msra.mxu0 %v2566
  %5155 = vmatpush.msra.mxu0 %v2558
  %5156 = vmatpush.msra.mxu0 %v2550
  %5157 = vmatpush.msra.mxu0 %v2542
  %5158 = vmatpush.msra.mxu0 %v2534
  %5159 = vmatpush.msra.mxu0 %v2526
  %5160 = vmatpush.msra.mxu0 %v2518
  %5161 = vmatpush.msra.mxu0 %v2510
  %5162 = vmatpush.msra.mxu0 %v2502
  %5163 = vmatpush.msra.mxu0 %v2494
  %5164 = vmatpush.msra.mxu0 %v2486
  %5165 = vmatmul.f32.gmra.mxu0 %v45
  %v5166 = vpop.f32.mrf.mxu0
  %v5167 = vadd.f32 %v5147, %v5166
  %5168 = vdwg.mxu0
  %5169 = vmatpush.msra.mxu0 %v2734
  %5170 = vmatpush.msra.mxu0 %v2726
  %5171 = vmatpush.msra.mxu0 %v2718
  %5172 = vmatpush.msra.mxu0 %v2710
  %5173 = vmatpush.msra.mxu0 %v2702
  %5174 = vmatpush.msra.mxu0 %v2694
  %5175 = vmatpush.msra.mxu0 %v2686
  %5176 = vmatpush.msra.mxu0 %v2678
  %5177 = vmatpush.msra.mxu0 %v2670
  %5178 = vmatpush.msra.mxu0 %v2662
  %5179 = vmatpush.msra.mxu0 %v2654
  %5180 = vmatpush.msra.mxu0 %v2646
  %5181 = vmatpush.msra.mxu0 %v2638
  %5182 = vmatpush.msra.mxu0 %v2630
  %5183 = vmatpush.msra.mxu0 %v2622
  %5184 = vmatpush.msra.mxu0 %v2614
  %5185 = vmatmul.f32.gmra.mxu0 %v46
  %v5186 = vpop.f32.mrf.mxu0
  %v5187 = vadd.f32 %v5167, %v5186
  %5188 = vdwg.mxu0
  %5189 = vmatpush.msra.mxu0 %v2862
  %5190 = vmatpush.msra.mxu0 %v2854
  %5191 = vmatpush.msra.mxu0 %v2846
  %5192 = vmatpush.msra.mxu0 %v2838
  %5193 = vmatpush.msra.mxu0 %v2830
  %5194 = vmatpush.msra.mxu0 %v2822
  %5195 = vmatpush.msra.mxu0 %v2814
  %5196 = vmatpush.msra.mxu0 %v2806
  %5197 = vmatpush.msra.mxu0 %v2798
  %5198 = vmatpush.msra.mxu0 %v2790
  %5199 = vmatpush.msra.mxu0 %v2782
  %5200 = vmatpush.msra.mxu0 %v2774
  %5201 = vmatpush.msra.mxu0 %v2766
  %5202 = vmatpush.msra.mxu0 %v2758
  %5203 = vmatpush.msra.mxu0 %v2750
  %5204 = vmatpush.msra.mxu0 %v2742
  %5205 = vmatmul.f32.gmra.mxu0 %v47
  %v5206 = vpop.f32.mrf.mxu0
  %v5207 = vadd.f32 %v5187, %v5206
  %5208 = vdwg.mxu0
  %5209 = vmatpush.msra.mxu0 %v2990
  %5210 = vmatpush.msra.mxu0 %v2982
  %5211 = vmatpush.msra.mxu0 %v2974
  %5212 = vmatpush.msra.mxu0 %v2966
  %5213 = vmatpush.msra.mxu0 %v2958
  %5214 = vmatpush.msra.mxu0 %v2950
  %5215 = vmatpush.msra.mxu0 %v2942
  %5216 = vmatpush.msra.mxu0 %v2934
  %5217 = vmatpush.msra.mxu0 %v2926
  %5218 = vmatpush.msra.mxu0 %v2918
  %5219 = vmatpush.msra.mxu0 %v2910
  %5220 = vmatpush.msra.mxu0 %v2902
  %5221 = vmatpush.msra.mxu0 %v2894
  %5222 = vmatpush.msra.mxu0 %v2886
  %5223 = vmatpush.msra.mxu0 %v2878
  %5224 = vmatpush.msra.mxu0 %v2870
  %5225 = vmatmul.f32.gmra.mxu0 %v48
  %v5226 = vpop.f32.mrf.mxu0
  %v5227 = vadd.f32 %v5207, %v5226
  %5228 = vdwg.mxu0
  %5229 = vmatpush.msra.mxu0 %v3118
  %5230 = vmatpush.msra.mxu0 %v3110
  %5231 = vmatpush.msra.mxu0 %v3102
  %5232 = vmatpush.msra.mxu0 %v3094
  %5233 = vmatpush.msra.mxu0 %v3086
  %5234 = vmatpush.msra.mxu0 %v3078
  %5235 = vmatpush.msra.mxu0 %v3070
  %5236 = vmatpush.msra.mxu0 %v3062
  %5237 = vmatpush.msra.mxu0 %v3054
  %5238 = vmatpush.msra.mxu0 %v3046
  %5239 = vmatpush.msra.mxu0 %v3038
  %5240 = vmatpush.msra.mxu0 %v3030
  %5241 = vmatpush.msra.mxu0 %v3022
  %5242 = vmatpush.msra.mxu0 %v3014
  %5243 = vmatpush.msra.mxu0 %v3006
  %5244 = vmatpush.msra.mxu0 %v2998
  %5245 = vmatmul.f32.gmra.mxu0 %v49
  %v5246 = vpop.f32.mrf.mxu0
  %v5247 = vadd.f32 %v5227, %v5246
  %5248 = vdwg.mxu0
  %5249 = vmatpush.msra.mxu0 %v3246
  %5250 = vmatpush.msra.mxu0 %v3238
  %5251 = vmatpush.msra.mxu0 %v3230
  %5252 = vmatpush.msra.mxu0 %v3222
  %5253 = vmatpush.msra.mxu0 %v3214
  %5254 = vmatpush.msra.mxu0 %v3206
  %5255 = vmatpush.msra.mxu0 %v3198
  %5256 = vmatpush.msra.mxu0 %v3190
  %5257 = vmatpush.msra.mxu0 %v3182
  %5258 = vmatpush.msra.mxu0 %v3174
  %5259 = vmatpush.msra.mxu0 %v3166
  %5260 = vmatpush.msra.mxu0 %v3158
  %5261 = vmatpush.msra.mxu0 %v3150
  %5262 = vmatpush.msra.mxu0 %v3142
  %5263 = vmatpush.msra.mxu0 %v3134
  %5264 = vmatpush.msra.mxu0 %v3126
  %5265 = vmatmul.f32.gmra.mxu0 %v50
  %v5266 = vpop.f32.mrf.mxu0
  %v5267 = vadd.f32 %v5247, %v5266
  %5268 = vdwg.mxu0
  %5269 = vmatpush.msra.mxu0 %v175
  %5270 = vmatpush.msra.mxu0 %v167
  %5271 = vmatpush.msra.mxu0 %v159
  %5272 = vmatpush.msra.mxu0 %v151
  %5273 = vmatpush.msra.mxu0 %v143
  %5274 = vmatpush.msra.mxu0 %v135
  %5275 = vmatpush.msra.mxu0 %v127
  %5276 = vmatpush.msra.mxu0 %v119
  %5277 = vmatpush.msra.mxu0 %v111
  %5278 = vmatpush.msra.mxu0 %v103
  %5279 = vmatpush.msra.mxu0 %v95
  %5280 = vmatpush.msra.mxu0 %v87
  %5281 = vmatpush.msra.mxu0 %v79
  %5282 = vmatpush.msra.mxu0 %v71
  %5283 = vmatpush.msra.mxu0 %v63
  %5284 = vmatpush.msra.mxu0 %v55
  %5285 = vmatmul.f32.gmra.mxu0 %v26
  %v5286 = vpop.f32.mrf.mxu0
  %v5287 = vadd.f32 %v3257, %v5286
  %5288 = vdwg.mxu0
  %5289 = vmatpush.msra.mxu0 %v303
  %5290 = vmatpush.msra.mxu0 %v295
  %5291 = vmatpush.msra.mxu0 %v287
  %5292 = vmatpush.msra.mxu0 %v279
  %5293 = vmatpush.msra.mxu0 %v271
  %5294 = vmatpush.msra.mxu0 %v263
  %5295 = vmatpush.msra.mxu0 %v255
  %5296 = vmatpush.msra.mxu0 %v247
  %5297 = vmatpush.msra.mxu0 %v239
  %5298 = vmatpush.msra.mxu0 %v231
  %5299 = vmatpush.msra.mxu0 %v223
  %5300 = vmatpush.msra.mxu0 %v215
  %5301 = vmatpush.msra.mxu0 %v207
  %5302 = vmatpush.msra.mxu0 %v199
  %5303 = vmatpush.msra.mxu0 %v191
  %5304 = vmatpush.msra.mxu0 %v183
  %5305 = vmatmul.f32.gmra.mxu0 %v27
  %v5306 = vpop.f32.mrf.mxu0
  %v5307 = vadd.f32 %v5287, %v5306
  %5308 = vdwg.mxu0
  %5309 = vmatpush.msra.mxu0 %v431
  %5310 = vmatpush.msra.mxu0 %v423
  %5311 = vmatpush.msra.mxu0 %v415
  %5312 = vmatpush.msra.mxu0 %v407
  %5313 = vmatpush.msra.mxu0 %v399
  %5314 = vmatpush.msra.mxu0 %v391
  %5315 = vmatpush.msra.mxu0 %v383
  %5316 = vmatpush.msra.mxu0 %v375
  %5317 = vmatpush.msra.mxu0 %v367
  %5318 = vmatpush.msra.mxu0 %v359
  %5319 = vmatpush.msra.mxu0 %v351
  %5320 = vmatpush.msra.mxu0 %v343
  %5321 = vmatpush.msra.mxu0 %v335
  %5322 = vmatpush.msra.mxu0 %v327
  %5323 = vmatpush.msra.mxu0 %v319
  %5324 = vmatpush.msra.mxu0 %v311
  %5325 = vmatmul.f32.gmra.mxu0 %v28
  %v5326 = vpop.f32.mrf.mxu0
  %v5327 = vadd.f32 %v5307, %v5326
  %5328 = vdwg.mxu0
  %5329 = vmatpush.msra.mxu0 %v559
  %5330 = vmatpush.msra.mxu0 %v551
  %5331 = vmatpush.msra.mxu0 %v543
  %5332 = vmatpush.msra.mxu0 %v535
  %5333 = vmatpush.msra.mxu0 %v527
  %5334 = vmatpush.msra.mxu0 %v519
  %5335 = vmatpush.msra.mxu0 %v511
  %5336 = vmatpush.msra.mxu0 %v503
  %5337 = vmatpush.msra.mxu0 %v495
  %5338 = vmatpush.msra.mxu0 %v487
  %5339 = vmatpush.msra.mxu0 %v479
  %5340 = vmatpush.msra.mxu0 %v471
  %5341 = vmatpush.msra.mxu0 %v463
  %5342 = vmatpush.msra.mxu0 %v455
  %5343 = vmatpush.msra.mxu0 %v447
  %5344 = vmatpush.msra.mxu0 %v439
  %5345 = vmatmul.f32.gmra.mxu0 %v29
  %v5346 = vpop.f32.mrf.mxu0
  %v5347 = vadd.f32 %v5327, %v5346
  %5348 = vdwg.mxu0
  %5349 = vmatpush.msra.mxu0 %v687
  %5350 = vmatpush.msra.mxu0 %v679
  %5351 = vmatpush.msra.mxu0 %v671
  %5352 = vmatpush.msra.mxu0 %v663
  %5353 = vmatpush.msra.mxu0 %v655
  %5354 = vmatpush.msra.mxu0 %v647
  %5355 = vmatpush.msra.mxu0 %v639
  %5356 = vmatpush.msra.mxu0 %v631
  %5357 = vmatpush.msra.mxu0 %v623
  %5358 = vmatpush.msra.mxu0 %v615
  %5359 = vmatpush.msra.mxu0 %v607
  %5360 = vmatpush.msra.mxu0 %v599
  %5361 = vmatpush.msra.mxu0 %v591
  %5362 = vmatpush.msra.mxu0 %v583
  %5363 = vmatpush.msra.mxu0 %v575
  %5364 = vmatpush.msra.mxu0 %v567
  %5365 = vmatmul.f32.gmra.mxu0 %v30
  %v5366 = vpop.f32.mrf.mxu0
  %v5367 = vadd.f32 %v5347, %v5366
  %5368 = vdwg.mxu0
  %5369 = vmatpush.msra.mxu0 %v815
  %5370 = vmatpush.msra.mxu0 %v807
  %5371 = vmatpush.msra.mxu0 %v799
  %5372 = vmatpush.msra.mxu0 %v791
  %5373 = vmatpush.msra.mxu0 %v783
  %5374 = vmatpush.msra.mxu0 %v775
  %5375 = vmatpush.msra.mxu0 %v767
  %5376 = vmatpush.msra.mxu0 %v759
  %5377 = vmatpush.msra.mxu0 %v751
  %5378 = vmatpush.msra.mxu0 %v743
  %5379 = vmatpush.msra.mxu0 %v735
  %5380 = vmatpush.msra.mxu0 %v727
  %5381 = vmatpush.msra.mxu0 %v719
  %5382 = vmatpush.msra.mxu0 %v711
  %5383 = vmatpush.msra.mxu0 %v703
  %5384 = vmatpush.msra.mxu0 %v695
  %5385 = vmatmul.f32.gmra.mxu0 %v31
  %v5386 = vpop.f32.mrf.mxu0
  %v5387 = vadd.f32 %v5367, %v5386
  %5388 = vdwg.mxu0
  %5389 = vmatpush.msra.mxu0 %v943
  %5390 = vmatpush.msra.mxu0 %v935
  %5391 = vmatpush.msra.mxu0 %v927
  %5392 = vmatpush.msra.mxu0 %v919
  %5393 = vmatpush.msra.mxu0 %v911
  %5394 = vmatpush.msra.mxu0 %v903
  %5395 = vmatpush.msra.mxu0 %v895
  %5396 = vmatpush.msra.mxu0 %v887
  %5397 = vmatpush.msra.mxu0 %v879
  %5398 = vmatpush.msra.mxu0 %v871
  %5399 = vmatpush.msra.mxu0 %v863
  %5400 = vmatpush.msra.mxu0 %v855
  %5401 = vmatpush.msra.mxu0 %v847
  %5402 = vmatpush.msra.mxu0 %v839
  %5403 = vmatpush.msra.mxu0 %v831
  %5404 = vmatpush.msra.mxu0 %v823
  %5405 = vmatmul.f32.gmra.mxu0 %v32
  %v5406 = vpop.f32.mrf.mxu0
  %v5407 = vadd.f32 %v5387, %v5406
  %5408 = vdwg.mxu0
  %5409 = vmatpush.msra.mxu0 %v1071
  %5410 = vmatpush.msra.mxu0 %v1063
  %5411 = vmatpush.msra.mxu0 %v1055
  %5412 = vmatpush.msra.mxu0 %v1047
  %5413 = vmatpush.msra.mxu0 %v1039
  %5414 = vmatpush.msra.mxu0 %v1031
  %5415 = vmatpush.msra.mxu0 %v1023
  %5416 = vmatpush.msra.mxu0 %v1015
  %5417 = vmatpush.msra.mxu0 %v1007
  %5418 = vmatpush.msra.mxu0 %v999
  %5419 = vmatpush.msra.mxu0 %v991
  %5420 = vmatpush.msra.mxu0 %v983
  %5421 = vmatpush.msra.mxu0 %v975
  %5422 = vmatpush.msra.mxu0 %v967
  %5423 = vmatpush.msra.mxu0 %v959
  %5424 = vmatpush.msra.mxu0 %v951
  %5425 = vmatmul.f32.gmra.mxu0 %v33
  %v5426 = vpop.f32.mrf.mxu0
  %v5427 = vadd.f32 %v5407, %v5426
  %5428 = vdwg.mxu0
  %5429 = vmatpush.msra.mxu0 %v1199
  %5430 = vmatpush.msra.mxu0 %v1191
  %5431 = vmatpush.msra.mxu0 %v1183
  %5432 = vmatpush.msra.mxu0 %v1175
  %5433 = vmatpush.msra.mxu0 %v1167
  %5434 = vmatpush.msra.mxu0 %v1159
  %5435 = vmatpush.msra.mxu0 %v1151
  %5436 = vmatpush.msra.mxu0 %v1143
  %5437 = vmatpush.msra.mxu0 %v1135
  %5438 = vmatpush.msra.mxu0 %v1127
  %5439 = vmatpush.msra.mxu0 %v1119
  %5440 = vmatpush.msra.mxu0 %v1111
  %5441 = vmatpush.msra.mxu0 %v1103
  %5442 = vmatpush.msra.mxu0 %v1095
  %5443 = vmatpush.msra.mxu0 %v1087
  %5444 = vmatpush.msra.mxu0 %v1079
  %5445 = vmatmul.f32.gmra.mxu0 %v34
  %v5446 = vpop.f32.mrf.mxu0
  %v5447 = vadd.f32 %v5427, %v5446
  %5448 = vdwg.mxu0
  %5449 = vmatpush.msra.mxu0 %v1327
  %5450 = vmatpush.msra.mxu0 %v1319
  %5451 = vmatpush.msra.mxu0 %v1311
  %5452 = vmatpush.msra.mxu0 %v1303
  %5453 = vmatpush.msra.mxu0 %v1295
  %5454 = vmatpush.msra.mxu0 %v1287
  %5455 = vmatpush.msra.mxu0 %v1279
  %5456 = vmatpush.msra.mxu0 %v1271
  %5457 = vmatpush.msra.mxu0 %v1263
  %5458 = vmatpush.msra.mxu0 %v1255
  %5459 = vmatpush.msra.mxu0 %v1247
  %5460 = vmatpush.msra.mxu0 %v1239
  %5461 = vmatpush.msra.mxu0 %v1231
  %5462 = vmatpush.msra.mxu0 %v1223
  %5463 = vmatpush.msra.mxu0 %v1215
  %5464 = vmatpush.msra.mxu0 %v1207
  %5465 = vmatmul.f32.gmra.mxu0 %v35
  %v5466 = vpop.f32.mrf.mxu0
  %v5467 = vadd.f32 %v5447, %v5466
  %5468 = vdwg.mxu0
  %5469 = vmatpush.msra.mxu0 %v1455
  %5470 = vmatpush.msra.mxu0 %v1447
  %5471 = vmatpush.msra.mxu0 %v1439
  %5472 = vmatpush.msra.mxu0 %v1431
  %5473 = vmatpush.msra.mxu0 %v1423
  %5474 = vmatpush.msra.mxu0 %v1415
  %5475 = vmatpush.msra.mxu0 %v1407
  %5476 = vmatpush.msra.mxu0 %v1399
  %5477 = vmatpush.msra.mxu0 %v1391
  %5478 = vmatpush.msra.mxu0 %v1383
  %5479 = vmatpush.msra.mxu0 %v1375
  %5480 = vmatpush.msra.mxu0 %v1367
  %5481 = vmatpush.msra.mxu0 %v1359
  %5482 = vmatpush.msra.mxu0 %v1351
  %5483 = vmatpush.msra.mxu0 %v1343
  %5484 = vmatpush.msra.mxu0 %v1335
  %5485 = vmatmul.f32.gmra.mxu0 %v36
  %v5486 = vpop.f32.mrf.mxu0
  %v5487 = vadd.f32 %v5467, %v5486
  %5488 = vdwg.mxu0
  %5489 = vmatpush.msra.mxu0 %v1583
  %5490 = vmatpush.msra.mxu0 %v1575
  %5491 = vmatpush.msra.mxu0 %v1567
  %5492 = vmatpush.msra.mxu0 %v1559
  %5493 = vmatpush.msra.mxu0 %v1551
  %5494 = vmatpush.msra.mxu0 %v1543
  %5495 = vmatpush.msra.mxu0 %v1535
  %5496 = vmatpush.msra.mxu0 %v1527
  %5497 = vmatpush.msra.mxu0 %v1519
  %5498 = vmatpush.msra.mxu0 %v1511
  %5499 = vmatpush.msra.mxu0 %v1503
  %5500 = vmatpush.msra.mxu0 %v1495
  %5501 = vmatpush.msra.mxu0 %v1487
  %5502 = vmatpush.msra.mxu0 %v1479
  %5503 = vmatpush.msra.mxu0 %v1471
  %5504 = vmatpush.msra.mxu0 %v1463
  %5505 = vmatmul.f32.gmra.mxu0 %v37
  %v5506 = vpop.f32.mrf.mxu0
  %v5507 = vadd.f32 %v5487, %v5506
  %5508 = vdwg.mxu0
  %5509 = vmatpush.msra.mxu0 %v1711
  %5510 = vmatpush.msra.mxu0 %v1703
  %5511 = vmatpush.msra.mxu0 %v1695
  %5512 = vmatpush.msra.mxu0 %v1687
  %5513 = vmatpush.msra.mxu0 %v1679
  %5514 = vmatpush.msra.mxu0 %v1671
  %5515 = vmatpush.msra.mxu0 %v1663
  %5516 = vmatpush.msra.mxu0 %v1655
  %5517 = vmatpush.msra.mxu0 %v1647
  %5518 = vmatpush.msra.mxu0 %v1639
  %5519 = vmatpush.msra.mxu0 %v1631
  %5520 = vmatpush.msra.mxu0 %v1623
  %5521 = vmatpush.msra.mxu0 %v1615
  %5522 = vmatpush.msra.mxu0 %v1607
  %5523 = vmatpush.msra.mxu0 %v1599
  %5524 = vmatpush.msra.mxu0 %v1591
  %5525 = vmatmul.f32.gmra.mxu0 %v38
  %v5526 = vpop.f32.mrf.mxu0
  %v5527 = vadd.f32 %v5507, %v5526
  %5528 = vdwg.mxu0
  %5529 = vmatpush.msra.mxu0 %v1839
  %5530 = vmatpush.msra.mxu0 %v1831
  %5531 = vmatpush.msra.mxu0 %v1823
  %5532 = vmatpush.msra.mxu0 %v1815
  %5533 = vmatpush.msra.mxu0 %v1807
  %5534 = vmatpush.msra.mxu0 %v1799
  %5535 = vmatpush.msra.mxu0 %v1791
  %5536 = vmatpush.msra.mxu0 %v1783
  %5537 = vmatpush.msra.mxu0 %v1775
  %5538 = vmatpush.msra.mxu0 %v1767
  %5539 = vmatpush.msra.mxu0 %v1759
  %5540 = vmatpush.msra.mxu0 %v1751
  %5541 = vmatpush.msra.mxu0 %v1743
  %5542 = vmatpush.msra.mxu0 %v1735
  %5543 = vmatpush.msra.mxu0 %v1727
  %5544 = vmatpush.msra.mxu0 %v1719
  %5545 = vmatmul.f32.gmra.mxu0 %v39
  %v5546 = vpop.f32.mrf.mxu0
  %v5547 = vadd.f32 %v5527, %v5546
  %5548 = vdwg.mxu0
  %5549 = vmatpush.msra.mxu0 %v1967
  %5550 = vmatpush.msra.mxu0 %v1959
  %5551 = vmatpush.msra.mxu0 %v1951
  %5552 = vmatpush.msra.mxu0 %v1943
  %5553 = vmatpush.msra.mxu0 %v1935
  %5554 = vmatpush.msra.mxu0 %v1927
  %5555 = vmatpush.msra.mxu0 %v1919
  %5556 = vmatpush.msra.mxu0 %v1911
  %5557 = vmatpush.msra.mxu0 %v1903
  %5558 = vmatpush.msra.mxu0 %v1895
  %5559 = vmatpush.msra.mxu0 %v1887
  %5560 = vmatpush.msra.mxu0 %v1879
  %5561 = vmatpush.msra.mxu0 %v1871
  %5562 = vmatpush.msra.mxu0 %v1863
  %5563 = vmatpush.msra.mxu0 %v1855
  %5564 = vmatpush.msra.mxu0 %v1847
  %5565 = vmatmul.f32.gmra.mxu0 %v40
  %v5566 = vpop.f32.mrf.mxu0
  %v5567 = vadd.f32 %v5547, %v5566
  %5568 = vdwg.mxu0
  %5569 = vmatpush.msra.mxu0 %v2095
  %5570 = vmatpush.msra.mxu0 %v2087
  %5571 = vmatpush.msra.mxu0 %v2079
  %5572 = vmatpush.msra.mxu0 %v2071
  %5573 = vmatpush.msra.mxu0 %v2063
  %5574 = vmatpush.msra.mxu0 %v2055
  %5575 = vmatpush.msra.mxu0 %v2047
  %5576 = vmatpush.msra.mxu0 %v2039
  %5577 = vmatpush.msra.mxu0 %v2031
  %5578 = vmatpush.msra.mxu0 %v2023
  %5579 = vmatpush.msra.mxu0 %v2015
  %5580 = vmatpush.msra.mxu0 %v2007
  %5581 = vmatpush.msra.mxu0 %v1999
  %5582 = vmatpush.msra.mxu0 %v1991
  %5583 = vmatpush.msra.mxu0 %v1983
  %5584 = vmatpush.msra.mxu0 %v1975
  %5585 = vmatmul.f32.gmra.mxu0 %v41
  %v5586 = vpop.f32.mrf.mxu0
  %v5587 = vadd.f32 %v5567, %v5586
  %5588 = vdwg.mxu0
  %5589 = vmatpush.msra.mxu0 %v2223
  %5590 = vmatpush.msra.mxu0 %v2215
  %5591 = vmatpush.msra.mxu0 %v2207
  %5592 = vmatpush.msra.mxu0 %v2199
  %5593 = vmatpush.msra.mxu0 %v2191
  %5594 = vmatpush.msra.mxu0 %v2183
  %5595 = vmatpush.msra.mxu0 %v2175
  %5596 = vmatpush.msra.mxu0 %v2167
  %5597 = vmatpush.msra.mxu0 %v2159
  %5598 = vmatpush.msra.mxu0 %v2151
  %5599 = vmatpush.msra.mxu0 %v2143
  %5600 = vmatpush.msra.mxu0 %v2135
  %5601 = vmatpush.msra.mxu0 %v2127
  %5602 = vmatpush.msra.mxu0 %v2119
  %5603 = vmatpush.msra.mxu0 %v2111
  %5604 = vmatpush.msra.mxu0 %v2103
  %5605 = vmatmul.f32.gmra.mxu0 %v42
  %v5606 = vpop.f32.mrf.mxu0
  %v5607 = vadd.f32 %v5587, %v5606
  %5608 = vdwg.mxu0
  %5609 = vmatpush.msra.mxu0 %v2351
  %5610 = vmatpush.msra.mxu0 %v2343
  %5611 = vmatpush.msra.mxu0 %v2335
  %5612 = vmatpush.msra.mxu0 %v2327
  %5613 = vmatpush.msra.mxu0 %v2319
  %5614 = vmatpush.msra.mxu0 %v2311
  %5615 = vmatpush.msra.mxu0 %v2303
  %5616 = vmatpush.msra.mxu0 %v2295
  %5617 = vmatpush.msra.mxu0 %v2287
  %5618 = vmatpush.msra.mxu0 %v2279
  %5619 = vmatpush.msra.mxu0 %v2271
  %5620 = vmatpush.msra.mxu0 %v2263
  %5621 = vmatpush.msra.mxu0 %v2255
  %5622 = vmatpush.msra.mxu0 %v2247
  %5623 = vmatpush.msra.mxu0 %v2239
  %5624 = vmatpush.msra.mxu0 %v2231
  %5625 = vmatmul.f32.gmra.mxu0 %v43
  %v5626 = vpop.f32.mrf.mxu0
  %v5627 = vadd.f32 %v5607, %v5626
  %5628 = vdwg.mxu0
  %5629 = vmatpush.msra.mxu0 %v2479
  %5630 = vmatpush.msra.mxu0 %v2471
  %5631 = vmatpush.msra.mxu0 %v2463
  %5632 = vmatpush.msra.mxu0 %v2455
  %5633 = vmatpush.msra.mxu0 %v2447
  %5634 = vmatpush.msra.mxu0 %v2439
  %5635 = vmatpush.msra.mxu0 %v2431
  %5636 = vmatpush.msra.mxu0 %v2423
  %5637 = vmatpush.msra.mxu0 %v2415
  %5638 = vmatpush.msra.mxu0 %v2407
  %5639 = vmatpush.msra.mxu0 %v2399
  %5640 = vmatpush.msra.mxu0 %v2391
  %5641 = vmatpush.msra.mxu0 %v2383
  %5642 = vmatpush.msra.mxu0 %v2375
  %5643 = vmatpush.msra.mxu0 %v2367
  %5644 = vmatpush.msra.mxu0 %v2359
  %5645 = vmatmul.f32.gmra.mxu0 %v44
  %v5646 = vpop.f32.mrf.mxu0
  %v5647 = vadd.f32 %v5627, %v5646
  %5648 = vdwg.mxu0
  %5649 = vmatpush.msra.mxu0 %v2607
  %5650 = vmatpush.msra.mxu0 %v2599
  %5651 = vmatpush.msra.mxu0 %v2591
  %5652 = vmatpush.msra.mxu0 %v2583
  %5653 = vmatpush.msra.mxu0 %v2575
  %5654 = vmatpush.msra.mxu0 %v2567
  %5655 = vmatpush.msra.mxu0 %v2559
  %5656 = vmatpush.msra.mxu0 %v2551
  %5657 = vmatpush.msra.mxu0 %v2543
  %5658 = vmatpush.msra.mxu0 %v2535
  %5659 = vmatpush.msra.mxu0 %v2527
  %5660 = vmatpush.msra.mxu0 %v2519
  %5661 = vmatpush.msra.mxu0 %v2511
  %5662 = vmatpush.msra.mxu0 %v2503
  %5663 = vmatpush.msra.mxu0 %v2495
  %5664 = vmatpush.msra.mxu0 %v2487
  %5665 = vmatmul.f32.gmra.mxu0 %v45
  %v5666 = vpop.f32.mrf.mxu0
  %v5667 = vadd.f32 %v5647, %v5666
  %5668 = vdwg.mxu0
  %5669 = vmatpush.msra.mxu0 %v2735
  %5670 = vmatpush.msra.mxu0 %v2727
  %5671 = vmatpush.msra.mxu0 %v2719
  %5672 = vmatpush.msra.mxu0 %v2711
  %5673 = vmatpush.msra.mxu0 %v2703
  %5674 = vmatpush.msra.mxu0 %v2695
  %5675 = vmatpush.msra.mxu0 %v2687
  %5676 = vmatpush.msra.mxu0 %v2679
  %5677 = vmatpush.msra.mxu0 %v2671
  %5678 = vmatpush.msra.mxu0 %v2663
  %5679 = vmatpush.msra.mxu0 %v2655
  %5680 = vmatpush.msra.mxu0 %v2647
  %5681 = vmatpush.msra.mxu0 %v2639
  %5682 = vmatpush.msra.mxu0 %v2631
  %5683 = vmatpush.msra.mxu0 %v2623
  %5684 = vmatpush.msra.mxu0 %v2615
  %5685 = vmatmul.f32.gmra.mxu0 %v46
  %v5686 = vpop.f32.mrf.mxu0
  %v5687 = vadd.f32 %v5667, %v5686
  %5688 = vdwg.mxu0
  %5689 = vmatpush.msra.mxu0 %v2863
  %5690 = vmatpush.msra.mxu0 %v2855
  %5691 = vmatpush.msra.mxu0 %v2847
  %5692 = vmatpush.msra.mxu0 %v2839
  %5693 = vmatpush.msra.mxu0 %v2831
  %5694 = vmatpush.msra.mxu0 %v2823
  %5695 = vmatpush.msra.mxu0 %v2815
  %5696 = vmatpush.msra.mxu0 %v2807
  %5697 = vmatpush.msra.mxu0 %v2799
  %5698 = vmatpush.msra.mxu0 %v2791
  %5699 = vmatpush.msra.mxu0 %v2783
  %5700 = vmatpush.msra.mxu0 %v2775
  %5701 = vmatpush.msra.mxu0 %v2767
  %5702 = vmatpush.msra.mxu0 %v2759
  %5703 = vmatpush.msra.mxu0 %v2751
  %5704 = vmatpush.msra.mxu0 %v2743
  %5705 = vmatmul.f32.gmra.mxu0 %v47
  %v5706 = vpop.f32.mrf.mxu0
  %v5707 = vadd.f32 %v5687, %v5706
  %5708 = vdwg.mxu0
  %5709 = vmatpush.msra.mxu0 %v2991
  %5710 = vmatpush.msra.mxu0 %v2983
  %5711 = vmatpush.msra.mxu0 %v2975
  %5712 = vmatpush.msra.mxu0 %v2967
  %5713 = vmatpush.msra.mxu0 %v2959
  %5714 = vmatpush.msra.mxu0 %v2951
  %5715 = vmatpush.msra.mxu0 %v2943
  %5716 = vmatpush.msra.mxu0 %v2935
  %5717 = vmatpush.msra.mxu0 %v2927
  %5718 = vmatpush.msra.mxu0 %v2919
  %5719 = vmatpush.msra.mxu0 %v2911
  %5720 = vmatpush.msra.mxu0 %v2903
  %5721 = vmatpush.msra.mxu0 %v2895
  %5722 = vmatpush.msra.mxu0 %v2887
  %5723 = vmatpush.msra.mxu0 %v2879
  %5724 = vmatpush.msra.mxu0 %v2871
  %5725 = vmatmul.f32.gmra.mxu0 %v48
  %v5726 = vpop.f32.mrf.mxu0
  %v5727 = vadd.f32 %v5707, %v5726
  %5728 = vdwg.mxu0
  %5729 = vmatpush.msra.mxu0 %v3119
  %5730 = vmatpush.msra.mxu0 %v3111
  %5731 = vmatpush.msra.mxu0 %v3103
  %5732 = vmatpush.msra.mxu0 %v3095
  %5733 = vmatpush.msra.mxu0 %v3087
  %5734 = vmatpush.msra.mxu0 %v3079
  %5735 = vmatpush.msra.mxu0 %v3071
  %5736 = vmatpush.msra.mxu0 %v3063
  %5737 = vmatpush.msra.mxu0 %v3055
  %5738 = vmatpush.msra.mxu0 %v3047
  %5739 = vmatpush.msra.mxu0 %v3039
  %5740 = vmatpush.msra.mxu0 %v3031
  %5741 = vmatpush.msra.mxu0 %v3023
  %5742 = vmatpush.msra.mxu0 %v3015
  %5743 = vmatpush.msra.mxu0 %v3007
  %5744 = vmatpush.msra.mxu0 %v2999
  %5745 = vmatmul.f32.gmra.mxu0 %v49
  %v5746 = vpop.f32.mrf.mxu0
  %v5747 = vadd.f32 %v5727, %v5746
  %5748 = vdwg.mxu0
  %5749 = vmatpush.msra.mxu0 %v3247
  %5750 = vmatpush.msra.mxu0 %v3239
  %5751 = vmatpush.msra.mxu0 %v3231
  %5752 = vmatpush.msra.mxu0 %v3223
  %5753 = vmatpush.msra.mxu0 %v3215
  %5754 = vmatpush.msra.mxu0 %v3207
  %5755 = vmatpush.msra.mxu0 %v3199
  %5756 = vmatpush.msra.mxu0 %v3191
  %5757 = vmatpush.msra.mxu0 %v3183
  %5758 = vmatpush.msra.mxu0 %v3175
  %5759 = vmatpush.msra.mxu0 %v3167
  %5760 = vmatpush.msra.mxu0 %v3159
  %5761 = vmatpush.msra.mxu0 %v3151
  %5762 = vmatpush.msra.mxu0 %v3143
  %5763 = vmatpush.msra.mxu0 %v3135
  %5764 = vmatpush.msra.mxu0 %v3127
  %5765 = vmatmul.f32.gmra.mxu0 %v50
  %v5766 = vpop.f32.mrf.mxu0
  %v5767 = vadd.f32 %v5747, %v5766
  %5768 = vdwg.mxu0
  %5769 = vmatpush.msra.mxu0 %v176
  %5770 = vmatpush.msra.mxu0 %v168
  %5771 = vmatpush.msra.mxu0 %v160
  %5772 = vmatpush.msra.mxu0 %v152
  %5773 = vmatpush.msra.mxu0 %v144
  %5774 = vmatpush.msra.mxu0 %v136
  %5775 = vmatpush.msra.mxu0 %v128
  %5776 = vmatpush.msra.mxu0 %v120
  %5777 = vmatpush.msra.mxu0 %v112
  %5778 = vmatpush.msra.mxu0 %v104
  %5779 = vmatpush.msra.mxu0 %v96
  %5780 = vmatpush.msra.mxu0 %v88
  %5781 = vmatpush.msra.mxu0 %v80
  %5782 = vmatpush.msra.mxu0 %v72
  %5783 = vmatpush.msra.mxu0 %v64
  %5784 = vmatpush.msra.mxu0 %v56
  %5785 = vmatmul.f32.gmra.mxu0 %v26
  %v5786 = vpop.f32.mrf.mxu0
  %v5787 = vadd.f32 %v3258, %v5786
  %5788 = vdwg.mxu0
  %5789 = vmatpush.msra.mxu0 %v304
  %5790 = vmatpush.msra.mxu0 %v296
  %5791 = vmatpush.msra.mxu0 %v288
  %5792 = vmatpush.msra.mxu0 %v280
  %5793 = vmatpush.msra.mxu0 %v272
  %5794 = vmatpush.msra.mxu0 %v264
  %5795 = vmatpush.msra.mxu0 %v256
  %5796 = vmatpush.msra.mxu0 %v248
  %5797 = vmatpush.msra.mxu0 %v240
  %5798 = vmatpush.msra.mxu0 %v232
  %5799 = vmatpush.msra.mxu0 %v224
  %5800 = vmatpush.msra.mxu0 %v216
  %5801 = vmatpush.msra.mxu0 %v208
  %5802 = vmatpush.msra.mxu0 %v200
  %5803 = vmatpush.msra.mxu0 %v192
  %5804 = vmatpush.msra.mxu0 %v184
  %5805 = vmatmul.f32.gmra.mxu0 %v27
  %v5806 = vpop.f32.mrf.mxu0
  %v5807 = vadd.f32 %v5787, %v5806
  %5808 = vdwg.mxu0
  %5809 = vmatpush.msra.mxu0 %v432
  %5810 = vmatpush.msra.mxu0 %v424
  %5811 = vmatpush.msra.mxu0 %v416
  %5812 = vmatpush.msra.mxu0 %v408
  %5813 = vmatpush.msra.mxu0 %v400
  %5814 = vmatpush.msra.mxu0 %v392
  %5815 = vmatpush.msra.mxu0 %v384
  %5816 = vmatpush.msra.mxu0 %v376
  %5817 = vmatpush.msra.mxu0 %v368
  %5818 = vmatpush.msra.mxu0 %v360
  %5819 = vmatpush.msra.mxu0 %v352
  %5820 = vmatpush.msra.mxu0 %v344
  %5821 = vmatpush.msra.mxu0 %v336
  %5822 = vmatpush.msra.mxu0 %v328
  %5823 = vmatpush.msra.mxu0 %v320
  %5824 = vmatpush.msra.mxu0 %v312
  %5825 = vmatmul.f32.gmra.mxu0 %v28
  %v5826 = vpop.f32.mrf.mxu0
  %v5827 = vadd.f32 %v5807, %v5826
  %5828 = vdwg.mxu0
  %5829 = vmatpush.msra.mxu0 %v560
  %5830 = vmatpush.msra.mxu0 %v552
  %5831 = vmatpush.msra.mxu0 %v544
  %5832 = vmatpush.msra.mxu0 %v536
  %5833 = vmatpush.msra.mxu0 %v528
  %5834 = vmatpush.msra.mxu0 %v520
  %5835 = vmatpush.msra.mxu0 %v512
  %5836 = vmatpush.msra.mxu0 %v504
  %5837 = vmatpush.msra.mxu0 %v496
  %5838 = vmatpush.msra.mxu0 %v488
  %5839 = vmatpush.msra.mxu0 %v480
  %5840 = vmatpush.msra.mxu0 %v472
  %5841 = vmatpush.msra.mxu0 %v464
  %5842 = vmatpush.msra.mxu0 %v456
  %5843 = vmatpush.msra.mxu0 %v448
  %5844 = vmatpush.msra.mxu0 %v440
  %5845 = vmatmul.f32.gmra.mxu0 %v29
  %v5846 = vpop.f32.mrf.mxu0
  %v5847 = vadd.f32 %v5827, %v5846
  %5848 = vdwg.mxu0
  %5849 = vmatpush.msra.mxu0 %v688
  %5850 = vmatpush.msra.mxu0 %v680
  %5851 = vmatpush.msra.mxu0 %v672
  %5852 = vmatpush.msra.mxu0 %v664
  %5853 = vmatpush.msra.mxu0 %v656
  %5854 = vmatpush.msra.mxu0 %v648
  %5855 = vmatpush.msra.mxu0 %v640
  %5856 = vmatpush.msra.mxu0 %v632
  %5857 = vmatpush.msra.mxu0 %v624
  %5858 = vmatpush.msra.mxu0 %v616
  %5859 = vmatpush.msra.mxu0 %v608
  %5860 = vmatpush.msra.mxu0 %v600
  %5861 = vmatpush.msra.mxu0 %v592
  %5862 = vmatpush.msra.mxu0 %v584
  %5863 = vmatpush.msra.mxu0 %v576
  %5864 = vmatpush.msra.mxu0 %v568
  %5865 = vmatmul.f32.gmra.mxu0 %v30
  %v5866 = vpop.f32.mrf.mxu0
  %v5867 = vadd.f32 %v5847, %v5866
  %5868 = vdwg.mxu0
  %5869 = vmatpush.msra.mxu0 %v816
  %5870 = vmatpush.msra.mxu0 %v808
  %5871 = vmatpush.msra.mxu0 %v800
  %5872 = vmatpush.msra.mxu0 %v792
  %5873 = vmatpush.msra.mxu0 %v784
  %5874 = vmatpush.msra.mxu0 %v776
  %5875 = vmatpush.msra.mxu0 %v768
  %5876 = vmatpush.msra.mxu0 %v760
  %5877 = vmatpush.msra.mxu0 %v752
  %5878 = vmatpush.msra.mxu0 %v744
  %5879 = vmatpush.msra.mxu0 %v736
  %5880 = vmatpush.msra.mxu0 %v728
  %5881 = vmatpush.msra.mxu0 %v720
  %5882 = vmatpush.msra.mxu0 %v712
  %5883 = vmatpush.msra.mxu0 %v704
  %5884 = vmatpush.msra.mxu0 %v696
  %5885 = vmatmul.f32.gmra.mxu0 %v31
  %v5886 = vpop.f32.mrf.mxu0
  %v5887 = vadd.f32 %v5867, %v5886
  %5888 = vdwg.mxu0
  %5889 = vmatpush.msra.mxu0 %v944
  %5890 = vmatpush.msra.mxu0 %v936
  %5891 = vmatpush.msra.mxu0 %v928
  %5892 = vmatpush.msra.mxu0 %v920
  %5893 = vmatpush.msra.mxu0 %v912
  %5894 = vmatpush.msra.mxu0 %v904
  %5895 = vmatpush.msra.mxu0 %v896
  %5896 = vmatpush.msra.mxu0 %v888
  %5897 = vmatpush.msra.mxu0 %v880
  %5898 = vmatpush.msra.mxu0 %v872
  %5899 = vmatpush.msra.mxu0 %v864
  %5900 = vmatpush.msra.mxu0 %v856
  %5901 = vmatpush.msra.mxu0 %v848
  %5902 = vmatpush.msra.mxu0 %v840
  %5903 = vmatpush.msra.mxu0 %v832
  %5904 = vmatpush.msra.mxu0 %v824
  %5905 = vmatmul.f32.gmra.mxu0 %v32
  %v5906 = vpop.f32.mrf.mxu0
  %v5907 = vadd.f32 %v5887, %v5906
  %5908 = vdwg.mxu0
  %5909 = vmatpush.msra.mxu0 %v1072
  %5910 = vmatpush.msra.mxu0 %v1064
  %5911 = vmatpush.msra.mxu0 %v1056
  %5912 = vmatpush.msra.mxu0 %v1048
  %5913 = vmatpush.msra.mxu0 %v1040
  %5914 = vmatpush.msra.mxu0 %v1032
  %5915 = vmatpush.msra.mxu0 %v1024
  %5916 = vmatpush.msra.mxu0 %v1016
  %5917 = vmatpush.msra.mxu0 %v1008
  %5918 = vmatpush.msra.mxu0 %v1000
  %5919 = vmatpush.msra.mxu0 %v992
  %5920 = vmatpush.msra.mxu0 %v984
  %5921 = vmatpush.msra.mxu0 %v976
  %5922 = vmatpush.msra.mxu0 %v968
  %5923 = vmatpush.msra.mxu0 %v960
  %5924 = vmatpush.msra.mxu0 %v952
  %5925 = vmatmul.f32.gmra.mxu0 %v33
  %v5926 = vpop.f32.mrf.mxu0
  %v5927 = vadd.f32 %v5907, %v5926
  %5928 = vdwg.mxu0
  %5929 = vmatpush.msra.mxu0 %v1200
  %5930 = vmatpush.msra.mxu0 %v1192
  %5931 = vmatpush.msra.mxu0 %v1184
  %5932 = vmatpush.msra.mxu0 %v1176
  %5933 = vmatpush.msra.mxu0 %v1168
  %5934 = vmatpush.msra.mxu0 %v1160
  %5935 = vmatpush.msra.mxu0 %v1152
  %5936 = vmatpush.msra.mxu0 %v1144
  %5937 = vmatpush.msra.mxu0 %v1136
  %5938 = vmatpush.msra.mxu0 %v1128
  %5939 = vmatpush.msra.mxu0 %v1120
  %5940 = vmatpush.msra.mxu0 %v1112
  %5941 = vmatpush.msra.mxu0 %v1104
  %5942 = vmatpush.msra.mxu0 %v1096
  %5943 = vmatpush.msra.mxu0 %v1088
  %5944 = vmatpush.msra.mxu0 %v1080
  %5945 = vmatmul.f32.gmra.mxu0 %v34
  %v5946 = vpop.f32.mrf.mxu0
  %v5947 = vadd.f32 %v5927, %v5946
  %5948 = vdwg.mxu0
  %5949 = vmatpush.msra.mxu0 %v1328
  %5950 = vmatpush.msra.mxu0 %v1320
  %5951 = vmatpush.msra.mxu0 %v1312
  %5952 = vmatpush.msra.mxu0 %v1304
  %5953 = vmatpush.msra.mxu0 %v1296
  %5954 = vmatpush.msra.mxu0 %v1288
  %5955 = vmatpush.msra.mxu0 %v1280
  %5956 = vmatpush.msra.mxu0 %v1272
  %5957 = vmatpush.msra.mxu0 %v1264
  %5958 = vmatpush.msra.mxu0 %v1256
  %5959 = vmatpush.msra.mxu0 %v1248
  %5960 = vmatpush.msra.mxu0 %v1240
  %5961 = vmatpush.msra.mxu0 %v1232
  %5962 = vmatpush.msra.mxu0 %v1224
  %5963 = vmatpush.msra.mxu0 %v1216
  %5964 = vmatpush.msra.mxu0 %v1208
  %5965 = vmatmul.f32.gmra.mxu0 %v35
  %v5966 = vpop.f32.mrf.mxu0
  %v5967 = vadd.f32 %v5947, %v5966
  %5968 = vdwg.mxu0
  %5969 = vmatpush.msra.mxu0 %v1456
  %5970 = vmatpush.msra.mxu0 %v1448
  %5971 = vmatpush.msra.mxu0 %v1440
  %5972 = vmatpush.msra.mxu0 %v1432
  %5973 = vmatpush.msra.mxu0 %v1424
  %5974 = vmatpush.msra.mxu0 %v1416
  %5975 = vmatpush.msra.mxu0 %v1408
  %5976 = vmatpush.msra.mxu0 %v1400
  %5977 = vmatpush.msra.mxu0 %v1392
  %5978 = vmatpush.msra.mxu0 %v1384
  %5979 = vmatpush.msra.mxu0 %v1376
  %5980 = vmatpush.msra.mxu0 %v1368
  %5981 = vmatpush.msra.mxu0 %v1360
  %5982 = vmatpush.msra.mxu0 %v1352
  %5983 = vmatpush.msra.mxu0 %v1344
  %5984 = vmatpush.msra.mxu0 %v1336
  %5985 = vmatmul.f32.gmra.mxu0 %v36
  %v5986 = vpop.f32.mrf.mxu0
  %v5987 = vadd.f32 %v5967, %v5986
  %5988 = vdwg.mxu0
  %5989 = vmatpush.msra.mxu0 %v1584
  %5990 = vmatpush.msra.mxu0 %v1576
  %5991 = vmatpush.msra.mxu0 %v1568
  %5992 = vmatpush.msra.mxu0 %v1560
  %5993 = vmatpush.msra.mxu0 %v1552
  %5994 = vmatpush.msra.mxu0 %v1544
  %5995 = vmatpush.msra.mxu0 %v1536
  %5996 = vmatpush.msra.mxu0 %v1528
  %5997 = vmatpush.msra.mxu0 %v1520
  %5998 = vmatpush.msra.mxu0 %v1512
  %5999 = vmatpush.msra.mxu0 %v1504
  %6000 = vmatpush.msra.mxu0 %v1496
  %6001 = vmatpush.msra.mxu0 %v1488
  %6002 = vmatpush.msra.mxu0 %v1480
  %6003 = vmatpush.msra.mxu0 %v1472
  %6004 = vmatpush.msra.mxu0 %v1464
  %6005 = vmatmul.f32.gmra.mxu0 %v37
  %v6006 = vpop.f32.mrf.mxu0
  %v6007 = vadd.f32 %v5987, %v6006
  %6008 = vdwg.mxu0
  %6009 = vmatpush.msra.mxu0 %v1712
  %6010 = vmatpush.msra.mxu0 %v1704
  %6011 = vmatpush.msra.mxu0 %v1696
  %6012 = vmatpush.msra.mxu0 %v1688
  %6013 = vmatpush.msra.mxu0 %v1680
  %6014 = vmatpush.msra.mxu0 %v1672
  %6015 = vmatpush.msra.mxu0 %v1664
  %6016 = vmatpush.msra.mxu0 %v1656
  %6017 = vmatpush.msra.mxu0 %v1648
  %6018 = vmatpush.msra.mxu0 %v1640
  %6019 = vmatpush.msra.mxu0 %v1632
  %6020 = vmatpush.msra.mxu0 %v1624
  %6021 = vmatpush.msra.mxu0 %v1616
  %6022 = vmatpush.msra.mxu0 %v1608
  %6023 = vmatpush.msra.mxu0 %v1600
  %6024 = vmatpush.msra.mxu0 %v1592
  %6025 = vmatmul.f32.gmra.mxu0 %v38
  %v6026 = vpop.f32.mrf.mxu0
  %v6027 = vadd.f32 %v6007, %v6026
  %6028 = vdwg.mxu0
  %6029 = vmatpush.msra.mxu0 %v1840
  %6030 = vmatpush.msra.mxu0 %v1832
  %6031 = vmatpush.msra.mxu0 %v1824
  %6032 = vmatpush.msra.mxu0 %v1816
  %6033 = vmatpush.msra.mxu0 %v1808
  %6034 = vmatpush.msra.mxu0 %v1800
  %6035 = vmatpush.msra.mxu0 %v1792
  %6036 = vmatpush.msra.mxu0 %v1784
  %6037 = vmatpush.msra.mxu0 %v1776
  %6038 = vmatpush.msra.mxu0 %v1768
  %6039 = vmatpush.msra.mxu0 %v1760
  %6040 = vmatpush.msra.mxu0 %v1752
  %6041 = vmatpush.msra.mxu0 %v1744
  %6042 = vmatpush.msra.mxu0 %v1736
  %6043 = vmatpush.msra.mxu0 %v1728
  %6044 = vmatpush.msra.mxu0 %v1720
  %6045 = vmatmul.f32.gmra.mxu0 %v39
  %v6046 = vpop.f32.mrf.mxu0
  %v6047 = vadd.f32 %v6027, %v6046
  %6048 = vdwg.mxu0
  %6049 = vmatpush.msra.mxu0 %v1968
  %6050 = vmatpush.msra.mxu0 %v1960
  %6051 = vmatpush.msra.mxu0 %v1952
  %6052 = vmatpush.msra.mxu0 %v1944
  %6053 = vmatpush.msra.mxu0 %v1936
  %6054 = vmatpush.msra.mxu0 %v1928
  %6055 = vmatpush.msra.mxu0 %v1920
  %6056 = vmatpush.msra.mxu0 %v1912
  %6057 = vmatpush.msra.mxu0 %v1904
  %6058 = vmatpush.msra.mxu0 %v1896
  %6059 = vmatpush.msra.mxu0 %v1888
  %6060 = vmatpush.msra.mxu0 %v1880
  %6061 = vmatpush.msra.mxu0 %v1872
  %6062 = vmatpush.msra.mxu0 %v1864
  %6063 = vmatpush.msra.mxu0 %v1856
  %6064 = vmatpush.msra.mxu0 %v1848
  %6065 = vmatmul.f32.gmra.mxu0 %v40
  %v6066 = vpop.f32.mrf.mxu0
  %v6067 = vadd.f32 %v6047, %v6066
  %6068 = vdwg.mxu0
  %6069 = vmatpush.msra.mxu0 %v2096
  %6070 = vmatpush.msra.mxu0 %v2088
  %6071 = vmatpush.msra.mxu0 %v2080
  %6072 = vmatpush.msra.mxu0 %v2072
  %6073 = vmatpush.msra.mxu0 %v2064
  %6074 = vmatpush.msra.mxu0 %v2056
  %6075 = vmatpush.msra.mxu0 %v2048
  %6076 = vmatpush.msra.mxu0 %v2040
  %6077 = vmatpush.msra.mxu0 %v2032
  %6078 = vmatpush.msra.mxu0 %v2024
  %6079 = vmatpush.msra.mxu0 %v2016
  %6080 = vmatpush.msra.mxu0 %v2008
  %6081 = vmatpush.msra.mxu0 %v2000
  %6082 = vmatpush.msra.mxu0 %v1992
  %6083 = vmatpush.msra.mxu0 %v1984
  %6084 = vmatpush.msra.mxu0 %v1976
  %6085 = vmatmul.f32.gmra.mxu0 %v41
  %v6086 = vpop.f32.mrf.mxu0
  %v6087 = vadd.f32 %v6067, %v6086
  %6088 = vdwg.mxu0
  %6089 = vmatpush.msra.mxu0 %v2224
  %6090 = vmatpush.msra.mxu0 %v2216
  %6091 = vmatpush.msra.mxu0 %v2208
  %6092 = vmatpush.msra.mxu0 %v2200
  %6093 = vmatpush.msra.mxu0 %v2192
  %6094 = vmatpush.msra.mxu0 %v2184
  %6095 = vmatpush.msra.mxu0 %v2176
  %6096 = vmatpush.msra.mxu0 %v2168
  %6097 = vmatpush.msra.mxu0 %v2160
  %6098 = vmatpush.msra.mxu0 %v2152
  %6099 = vmatpush.msra.mxu0 %v2144
  %6100 = vmatpush.msra.mxu0 %v2136
  %6101 = vmatpush.msra.mxu0 %v2128
  %6102 = vmatpush.msra.mxu0 %v2120
  %6103 = vmatpush.msra.mxu0 %v2112
  %6104 = vmatpush.msra.mxu0 %v2104
  %6105 = vmatmul.f32.gmra.mxu0 %v42
  %v6106 = vpop.f32.mrf.mxu0
  %v6107 = vadd.f32 %v6087, %v6106
  %6108 = vdwg.mxu0
  %6109 = vmatpush.msra.mxu0 %v2352
  %6110 = vmatpush.msra.mxu0 %v2344
  %6111 = vmatpush.msra.mxu0 %v2336
  %6112 = vmatpush.msra.mxu0 %v2328
  %6113 = vmatpush.msra.mxu0 %v2320
  %6114 = vmatpush.msra.mxu0 %v2312
  %6115 = vmatpush.msra.mxu0 %v2304
  %6116 = vmatpush.msra.mxu0 %v2296
  %6117 = vmatpush.msra.mxu0 %v2288
  %6118 = vmatpush.msra.mxu0 %v2280
  %6119 = vmatpush.msra.mxu0 %v2272
  %6120 = vmatpush.msra.mxu0 %v2264
  %6121 = vmatpush.msra.mxu0 %v2256
  %6122 = vmatpush.msra.mxu0 %v2248
  %6123 = vmatpush.msra.mxu0 %v2240
  %6124 = vmatpush.msra.mxu0 %v2232
  %6125 = vmatmul.f32.gmra.mxu0 %v43
  %v6126 = vpop.f32.mrf.mxu0
  %v6127 = vadd.f32 %v6107, %v6126
  %6128 = vdwg.mxu0
  %6129 = vmatpush.msra.mxu0 %v2480
  %6130 = vmatpush.msra.mxu0 %v2472
  %6131 = vmatpush.msra.mxu0 %v2464
  %6132 = vmatpush.msra.mxu0 %v2456
  %6133 = vmatpush.msra.mxu0 %v2448
  %6134 = vmatpush.msra.mxu0 %v2440
  %6135 = vmatpush.msra.mxu0 %v2432
  %6136 = vmatpush.msra.mxu0 %v2424
  %6137 = vmatpush.msra.mxu0 %v2416
  %6138 = vmatpush.msra.mxu0 %v2408
  %6139 = vmatpush.msra.mxu0 %v2400
  %6140 = vmatpush.msra.mxu0 %v2392
  %6141 = vmatpush.msra.mxu0 %v2384
  %6142 = vmatpush.msra.mxu0 %v2376
  %6143 = vmatpush.msra.mxu0 %v2368
  %6144 = vmatpush.msra.mxu0 %v2360
  %6145 = vmatmul.f32.gmra.mxu0 %v44
  %v6146 = vpop.f32.mrf.mxu0
  %v6147 = vadd.f32 %v6127, %v6146
  %6148 = vdwg.mxu0
  %6149 = vmatpush.msra.mxu0 %v2608
  %6150 = vmatpush.msra.mxu0 %v2600
  %6151 = vmatpush.msra.mxu0 %v2592
  %6152 = vmatpush.msra.mxu0 %v2584
  %6153 = vmatpush.msra.mxu0 %v2576
  %6154 = vmatpush.msra.mxu0 %v2568
  %6155 = vmatpush.msra.mxu0 %v2560
  %6156 = vmatpush.msra.mxu0 %v2552
  %6157 = vmatpush.msra.mxu0 %v2544
  %6158 = vmatpush.msra.mxu0 %v2536
  %6159 = vmatpush.msra.mxu0 %v2528
  %6160 = vmatpush.msra.mxu0 %v2520
  %6161 = vmatpush.msra.mxu0 %v2512
  %6162 = vmatpush.msra.mxu0 %v2504
  %6163 = vmatpush.msra.mxu0 %v2496
  %6164 = vmatpush.msra.mxu0 %v2488
  %6165 = vmatmul.f32.gmra.mxu0 %v45
  %v6166 = vpop.f32.mrf.mxu0
  %v6167 = vadd.f32 %v6147, %v6166
  %6168 = vdwg.mxu0
  %6169 = vmatpush.msra.mxu0 %v2736
  %6170 = vmatpush.msra.mxu0 %v2728
  %6171 = vmatpush.msra.mxu0 %v2720
  %6172 = vmatpush.msra.mxu0 %v2712
  %6173 = vmatpush.msra.mxu0 %v2704
  %6174 = vmatpush.msra.mxu0 %v2696
  %6175 = vmatpush.msra.mxu0 %v2688
  %6176 = vmatpush.msra.mxu0 %v2680
  %6177 = vmatpush.msra.mxu0 %v2672
  %6178 = vmatpush.msra.mxu0 %v2664
  %6179 = vmatpush.msra.mxu0 %v2656
  %6180 = vmatpush.msra.mxu0 %v2648
  %6181 = vmatpush.msra.mxu0 %v2640
  %6182 = vmatpush.msra.mxu0 %v2632
  %6183 = vmatpush.msra.mxu0 %v2624
  %6184 = vmatpush.msra.mxu0 %v2616
  %6185 = vmatmul.f32.gmra.mxu0 %v46
  %v6186 = vpop.f32.mrf.mxu0
  %v6187 = vadd.f32 %v6167, %v6186
  %6188 = vdwg.mxu0
  %6189 = vmatpush.msra.mxu0 %v2864
  %6190 = vmatpush.msra.mxu0 %v2856
  %6191 = vmatpush.msra.mxu0 %v2848
  %6192 = vmatpush.msra.mxu0 %v2840
  %6193 = vmatpush.msra.mxu0 %v2832
  %6194 = vmatpush.msra.mxu0 %v2824
  %6195 = vmatpush.msra.mxu0 %v2816
  %6196 = vmatpush.msra.mxu0 %v2808
  %6197 = vmatpush.msra.mxu0 %v2800
  %6198 = vmatpush.msra.mxu0 %v2792
  %6199 = vmatpush.msra.mxu0 %v2784
  %6200 = vmatpush.msra.mxu0 %v2776
  %6201 = vmatpush.msra.mxu0 %v2768
  %6202 = vmatpush.msra.mxu0 %v2760
  %6203 = vmatpush.msra.mxu0 %v2752
  %6204 = vmatpush.msra.mxu0 %v2744
  %6205 = vmatmul.f32.gmra.mxu0 %v47
  %v6206 = vpop.f32.mrf.mxu0
  %v6207 = vadd.f32 %v6187, %v6206
  %6208 = vdwg.mxu0
  %6209 = vmatpush.msra.mxu0 %v2992
  %6210 = vmatpush.msra.mxu0 %v2984
  %6211 = vmatpush.msra.mxu0 %v2976
  %6212 = vmatpush.msra.mxu0 %v2968
  %6213 = vmatpush.msra.mxu0 %v2960
  %6214 = vmatpush.msra.mxu0 %v2952
  %6215 = vmatpush.msra.mxu0 %v2944
  %6216 = vmatpush.msra.mxu0 %v2936
  %6217 = vmatpush.msra.mxu0 %v2928
  %6218 = vmatpush.msra.mxu0 %v2920
  %6219 = vmatpush.msra.mxu0 %v2912
  %6220 = vmatpush.msra.mxu0 %v2904
  %6221 = vmatpush.msra.mxu0 %v2896
  %6222 = vmatpush.msra.mxu0 %v2888
  %6223 = vmatpush.msra.mxu0 %v2880
  %6224 = vmatpush.msra.mxu0 %v2872
  %6225 = vmatmul.f32.gmra.mxu0 %v48
  %v6226 = vpop.f32.mrf.mxu0
  %v6227 = vadd.f32 %v6207, %v6226
  %6228 = vdwg.mxu0
  %6229 = vmatpush.msra.mxu0 %v3120
  %6230 = vmatpush.msra.mxu0 %v3112
  %6231 = vmatpush.msra.mxu0 %v3104
  %6232 = vmatpush.msra.mxu0 %v3096
  %6233 = vmatpush.msra.mxu0 %v3088
  %6234 = vmatpush.msra.mxu0 %v3080
  %6235 = vmatpush.msra.mxu0 %v3072
  %6236 = vmatpush.msra.mxu0 %v3064
  %6237 = vmatpush.msra.mxu0 %v3056
  %6238 = vmatpush.msra.mxu0 %v3048
  %6239 = vmatpush.msra.mxu0 %v3040
  %6240 = vmatpush.msra.mxu0 %v3032
  %6241 = vmatpush.msra.mxu0 %v3024
  %6242 = vmatpush.msra.mxu0 %v3016
  %6243 = vmatpush.msra.mxu0 %v3008
  %6244 = vmatpush.msra.mxu0 %v3000
  %6245 = vmatmul.f32.gmra.mxu0 %v49
  %v6246 = vpop.f32.mrf.mxu0
  %v6247 = vadd.f32 %v6227, %v6246
  %6248 = vdwg.mxu0
  %6249 = vmatpush.msra.mxu0 %v3248
  %6250 = vmatpush.msra.mxu0 %v3240
  %6251 = vmatpush.msra.mxu0 %v3232
  %6252 = vmatpush.msra.mxu0 %v3224
  %6253 = vmatpush.msra.mxu0 %v3216
  %6254 = vmatpush.msra.mxu0 %v3208
  %6255 = vmatpush.msra.mxu0 %v3200
  %6256 = vmatpush.msra.mxu0 %v3192
  %6257 = vmatpush.msra.mxu0 %v3184
  %6258 = vmatpush.msra.mxu0 %v3176
  %6259 = vmatpush.msra.mxu0 %v3168
  %6260 = vmatpush.msra.mxu0 %v3160
  %6261 = vmatpush.msra.mxu0 %v3152
  %6262 = vmatpush.msra.mxu0 %v3144
  %6263 = vmatpush.msra.mxu0 %v3136
  %6264 = vmatpush.msra.mxu0 %v3128
  %6265 = vmatmul.f32.gmra.mxu0 %v50
  %v6266 = vpop.f32.mrf.mxu0
  %v6267 = vadd.f32 %v6247, %v6266
  %6268 = vdwg.mxu0
  %6269 = vmatpush.msra.mxu0 %v177
  %6270 = vmatpush.msra.mxu0 %v169
  %6271 = vmatpush.msra.mxu0 %v161
  %6272 = vmatpush.msra.mxu0 %v153
  %6273 = vmatpush.msra.mxu0 %v145
  %6274 = vmatpush.msra.mxu0 %v137
  %6275 = vmatpush.msra.mxu0 %v129
  %6276 = vmatpush.msra.mxu0 %v121
  %6277 = vmatpush.msra.mxu0 %v113
  %6278 = vmatpush.msra.mxu0 %v105
  %6279 = vmatpush.msra.mxu0 %v97
  %6280 = vmatpush.msra.mxu0 %v89
  %6281 = vmatpush.msra.mxu0 %v81
  %6282 = vmatpush.msra.mxu0 %v73
  %6283 = vmatpush.msra.mxu0 %v65
  %6284 = vmatpush.msra.mxu0 %v57
  %6285 = vmatmul.f32.gmra.mxu0 %v26
  %v6286 = vpop.f32.mrf.mxu0
  %v6287 = vadd.f32 %v3259, %v6286
  %6288 = vdwg.mxu0
  %6289 = vmatpush.msra.mxu0 %v305
  %6290 = vmatpush.msra.mxu0 %v297
  %6291 = vmatpush.msra.mxu0 %v289
  %6292 = vmatpush.msra.mxu0 %v281
  %6293 = vmatpush.msra.mxu0 %v273
  %6294 = vmatpush.msra.mxu0 %v265
  %6295 = vmatpush.msra.mxu0 %v257
  %6296 = vmatpush.msra.mxu0 %v249
  %6297 = vmatpush.msra.mxu0 %v241
  %6298 = vmatpush.msra.mxu0 %v233
  %6299 = vmatpush.msra.mxu0 %v225
  %6300 = vmatpush.msra.mxu0 %v217
  %6301 = vmatpush.msra.mxu0 %v209
  %6302 = vmatpush.msra.mxu0 %v201
  %6303 = vmatpush.msra.mxu0 %v193
  %6304 = vmatpush.msra.mxu0 %v185
  %6305 = vmatmul.f32.gmra.mxu0 %v27
  %v6306 = vpop.f32.mrf.mxu0
  %v6307 = vadd.f32 %v6287, %v6306
  %6308 = vdwg.mxu0
  %6309 = vmatpush.msra.mxu0 %v433
  %6310 = vmatpush.msra.mxu0 %v425
  %6311 = vmatpush.msra.mxu0 %v417
  %6312 = vmatpush.msra.mxu0 %v409
  %6313 = vmatpush.msra.mxu0 %v401
  %6314 = vmatpush.msra.mxu0 %v393
  %6315 = vmatpush.msra.mxu0 %v385
  %6316 = vmatpush.msra.mxu0 %v377
  %6317 = vmatpush.msra.mxu0 %v369
  %6318 = vmatpush.msra.mxu0 %v361
  %6319 = vmatpush.msra.mxu0 %v353
  %6320 = vmatpush.msra.mxu0 %v345
  %6321 = vmatpush.msra.mxu0 %v337
  %6322 = vmatpush.msra.mxu0 %v329
  %6323 = vmatpush.msra.mxu0 %v321
  %6324 = vmatpush.msra.mxu0 %v313
  %6325 = vmatmul.f32.gmra.mxu0 %v28
  %v6326 = vpop.f32.mrf.mxu0
  %v6327 = vadd.f32 %v6307, %v6326
  %6328 = vdwg.mxu0
  %6329 = vmatpush.msra.mxu0 %v561
  %6330 = vmatpush.msra.mxu0 %v553
  %6331 = vmatpush.msra.mxu0 %v545
  %6332 = vmatpush.msra.mxu0 %v537
  %6333 = vmatpush.msra.mxu0 %v529
  %6334 = vmatpush.msra.mxu0 %v521
  %6335 = vmatpush.msra.mxu0 %v513
  %6336 = vmatpush.msra.mxu0 %v505
  %6337 = vmatpush.msra.mxu0 %v497
  %6338 = vmatpush.msra.mxu0 %v489
  %6339 = vmatpush.msra.mxu0 %v481
  %6340 = vmatpush.msra.mxu0 %v473
  %6341 = vmatpush.msra.mxu0 %v465
  %6342 = vmatpush.msra.mxu0 %v457
  %6343 = vmatpush.msra.mxu0 %v449
  %6344 = vmatpush.msra.mxu0 %v441
  %6345 = vmatmul.f32.gmra.mxu0 %v29
  %v6346 = vpop.f32.mrf.mxu0
  %v6347 = vadd.f32 %v6327, %v6346
  %6348 = vdwg.mxu0
  %6349 = vmatpush.msra.mxu0 %v689
  %6350 = vmatpush.msra.mxu0 %v681
  %6351 = vmatpush.msra.mxu0 %v673
  %6352 = vmatpush.msra.mxu0 %v665
  %6353 = vmatpush.msra.mxu0 %v657
  %6354 = vmatpush.msra.mxu0 %v649
  %6355 = vmatpush.msra.mxu0 %v641
  %6356 = vmatpush.msra.mxu0 %v633
  %6357 = vmatpush.msra.mxu0 %v625
  %6358 = vmatpush.msra.mxu0 %v617
  %6359 = vmatpush.msra.mxu0 %v609
  %6360 = vmatpush.msra.mxu0 %v601
  %6361 = vmatpush.msra.mxu0 %v593
  %6362 = vmatpush.msra.mxu0 %v585
  %6363 = vmatpush.msra.mxu0 %v577
  %6364 = vmatpush.msra.mxu0 %v569
  %6365 = vmatmul.f32.gmra.mxu0 %v30
  %v6366 = vpop.f32.mrf.mxu0
  %v6367 = vadd.f32 %v6347, %v6366
  %6368 = vdwg.mxu0
  %6369 = vmatpush.msra.mxu0 %v817
  %6370 = vmatpush.msra.mxu0 %v809
  %6371 = vmatpush.msra.mxu0 %v801
  %6372 = vmatpush.msra.mxu0 %v793
  %6373 = vmatpush.msra.mxu0 %v785
  %6374 = vmatpush.msra.mxu0 %v777
  %6375 = vmatpush.msra.mxu0 %v769
  %6376 = vmatpush.msra.mxu0 %v761
  %6377 = vmatpush.msra.mxu0 %v753
  %6378 = vmatpush.msra.mxu0 %v745
  %6379 = vmatpush.msra.mxu0 %v737
  %6380 = vmatpush.msra.mxu0 %v729
  %6381 = vmatpush.msra.mxu0 %v721
  %6382 = vmatpush.msra.mxu0 %v713
  %6383 = vmatpush.msra.mxu0 %v705
  %6384 = vmatpush.msra.mxu0 %v697
  %6385 = vmatmul.f32.gmra.mxu0 %v31
  %v6386 = vpop.f32.mrf.mxu0
  %v6387 = vadd.f32 %v6367, %v6386
  %6388 = vdwg.mxu0
  %6389 = vmatpush.msra.mxu0 %v945
  %6390 = vmatpush.msra.mxu0 %v937
  %6391 = vmatpush.msra.mxu0 %v929
  %6392 = vmatpush.msra.mxu0 %v921
  %6393 = vmatpush.msra.mxu0 %v913
  %6394 = vmatpush.msra.mxu0 %v905
  %6395 = vmatpush.msra.mxu0 %v897
  %6396 = vmatpush.msra.mxu0 %v889
  %6397 = vmatpush.msra.mxu0 %v881
  %6398 = vmatpush.msra.mxu0 %v873
  %6399 = vmatpush.msra.mxu0 %v865
  %6400 = vmatpush.msra.mxu0 %v857
  %6401 = vmatpush.msra.mxu0 %v849
  %6402 = vmatpush.msra.mxu0 %v841
  %6403 = vmatpush.msra.mxu0 %v833
  %6404 = vmatpush.msra.mxu0 %v825
  %6405 = vmatmul.f32.gmra.mxu0 %v32
  %v6406 = vpop.f32.mrf.mxu0
  %v6407 = vadd.f32 %v6387, %v6406
  %6408 = vdwg.mxu0
  %6409 = vmatpush.msra.mxu0 %v1073
  %6410 = vmatpush.msra.mxu0 %v1065
  %6411 = vmatpush.msra.mxu0 %v1057
  %6412 = vmatpush.msra.mxu0 %v1049
  %6413 = vmatpush.msra.mxu0 %v1041
  %6414 = vmatpush.msra.mxu0 %v1033
  %6415 = vmatpush.msra.mxu0 %v1025
  %6416 = vmatpush.msra.mxu0 %v1017
  %6417 = vmatpush.msra.mxu0 %v1009
  %6418 = vmatpush.msra.mxu0 %v1001
  %6419 = vmatpush.msra.mxu0 %v993
  %6420 = vmatpush.msra.mxu0 %v985
  %6421 = vmatpush.msra.mxu0 %v977
  %6422 = vmatpush.msra.mxu0 %v969
  %6423 = vmatpush.msra.mxu0 %v961
  %6424 = vmatpush.msra.mxu0 %v953
  %6425 = vmatmul.f32.gmra.mxu0 %v33
  %v6426 = vpop.f32.mrf.mxu0
  %v6427 = vadd.f32 %v6407, %v6426
  %6428 = vdwg.mxu0
  %6429 = vmatpush.msra.mxu0 %v1201
  %6430 = vmatpush.msra.mxu0 %v1193
  %6431 = vmatpush.msra.mxu0 %v1185
  %6432 = vmatpush.msra.mxu0 %v1177
  %6433 = vmatpush.msra.mxu0 %v1169
  %6434 = vmatpush.msra.mxu0 %v1161
  %6435 = vmatpush.msra.mxu0 %v1153
  %6436 = vmatpush.msra.mxu0 %v1145
  %6437 = vmatpush.msra.mxu0 %v1137
  %6438 = vmatpush.msra.mxu0 %v1129
  %6439 = vmatpush.msra.mxu0 %v1121
  %6440 = vmatpush.msra.mxu0 %v1113
  %6441 = vmatpush.msra.mxu0 %v1105
  %6442 = vmatpush.msra.mxu0 %v1097
  %6443 = vmatpush.msra.mxu0 %v1089
  %6444 = vmatpush.msra.mxu0 %v1081
  %6445 = vmatmul.f32.gmra.mxu0 %v34
  %v6446 = vpop.f32.mrf.mxu0
  %v6447 = vadd.f32 %v6427, %v6446
  %6448 = vdwg.mxu0
  %6449 = vmatpush.msra.mxu0 %v1329
  %6450 = vmatpush.msra.mxu0 %v1321
  %6451 = vmatpush.msra.mxu0 %v1313
  %6452 = vmatpush.msra.mxu0 %v1305
  %6453 = vmatpush.msra.mxu0 %v1297
  %6454 = vmatpush.msra.mxu0 %v1289
  %6455 = vmatpush.msra.mxu0 %v1281
  %6456 = vmatpush.msra.mxu0 %v1273
  %6457 = vmatpush.msra.mxu0 %v1265
  %6458 = vmatpush.msra.mxu0 %v1257
  %6459 = vmatpush.msra.mxu0 %v1249
  %6460 = vmatpush.msra.mxu0 %v1241
  %6461 = vmatpush.msra.mxu0 %v1233
  %6462 = vmatpush.msra.mxu0 %v1225
  %6463 = vmatpush.msra.mxu0 %v1217
  %6464 = vmatpush.msra.mxu0 %v1209
  %6465 = vmatmul.f32.gmra.mxu0 %v35
  %v6466 = vpop.f32.mrf.mxu0
  %v6467 = vadd.f32 %v6447, %v6466
  %6468 = vdwg.mxu0
  %6469 = vmatpush.msra.mxu0 %v1457
  %6470 = vmatpush.msra.mxu0 %v1449
  %6471 = vmatpush.msra.mxu0 %v1441
  %6472 = vmatpush.msra.mxu0 %v1433
  %6473 = vmatpush.msra.mxu0 %v1425
  %6474 = vmatpush.msra.mxu0 %v1417
  %6475 = vmatpush.msra.mxu0 %v1409
  %6476 = vmatpush.msra.mxu0 %v1401
  %6477 = vmatpush.msra.mxu0 %v1393
  %6478 = vmatpush.msra.mxu0 %v1385
  %6479 = vmatpush.msra.mxu0 %v1377
  %6480 = vmatpush.msra.mxu0 %v1369
  %6481 = vmatpush.msra.mxu0 %v1361
  %6482 = vmatpush.msra.mxu0 %v1353
  %6483 = vmatpush.msra.mxu0 %v1345
  %6484 = vmatpush.msra.mxu0 %v1337
  %6485 = vmatmul.f32.gmra.mxu0 %v36
  %v6486 = vpop.f32.mrf.mxu0
  %v6487 = vadd.f32 %v6467, %v6486
  %6488 = vdwg.mxu0
  %6489 = vmatpush.msra.mxu0 %v1585
  %6490 = vmatpush.msra.mxu0 %v1577
  %6491 = vmatpush.msra.mxu0 %v1569
  %6492 = vmatpush.msra.mxu0 %v1561
  %6493 = vmatpush.msra.mxu0 %v1553
  %6494 = vmatpush.msra.mxu0 %v1545
  %6495 = vmatpush.msra.mxu0 %v1537
  %6496 = vmatpush.msra.mxu0 %v1529
  %6497 = vmatpush.msra.mxu0 %v1521
  %6498 = vmatpush.msra.mxu0 %v1513
  %6499 = vmatpush.msra.mxu0 %v1505
  %6500 = vmatpush.msra.mxu0 %v1497
  %6501 = vmatpush.msra.mxu0 %v1489
  %6502 = vmatpush.msra.mxu0 %v1481
  %6503 = vmatpush.msra.mxu0 %v1473
  %6504 = vmatpush.msra.mxu0 %v1465
  %6505 = vmatmul.f32.gmra.mxu0 %v37
  %v6506 = vpop.f32.mrf.mxu0
  %v6507 = vadd.f32 %v6487, %v6506
  %6508 = vdwg.mxu0
  %6509 = vmatpush.msra.mxu0 %v1713
  %6510 = vmatpush.msra.mxu0 %v1705
  %6511 = vmatpush.msra.mxu0 %v1697
  %6512 = vmatpush.msra.mxu0 %v1689
  %6513 = vmatpush.msra.mxu0 %v1681
  %6514 = vmatpush.msra.mxu0 %v1673
  %6515 = vmatpush.msra.mxu0 %v1665
  %6516 = vmatpush.msra.mxu0 %v1657
  %6517 = vmatpush.msra.mxu0 %v1649
  %6518 = vmatpush.msra.mxu0 %v1641
  %6519 = vmatpush.msra.mxu0 %v1633
  %6520 = vmatpush.msra.mxu0 %v1625
  %6521 = vmatpush.msra.mxu0 %v1617
  %6522 = vmatpush.msra.mxu0 %v1609
  %6523 = vmatpush.msra.mxu0 %v1601
  %6524 = vmatpush.msra.mxu0 %v1593
  %6525 = vmatmul.f32.gmra.mxu0 %v38
  %v6526 = vpop.f32.mrf.mxu0
  %v6527 = vadd.f32 %v6507, %v6526
  %6528 = vdwg.mxu0
  %6529 = vmatpush.msra.mxu0 %v1841
  %6530 = vmatpush.msra.mxu0 %v1833
  %6531 = vmatpush.msra.mxu0 %v1825
  %6532 = vmatpush.msra.mxu0 %v1817
  %6533 = vmatpush.msra.mxu0 %v1809
  %6534 = vmatpush.msra.mxu0 %v1801
  %6535 = vmatpush.msra.mxu0 %v1793
  %6536 = vmatpush.msra.mxu0 %v1785
  %6537 = vmatpush.msra.mxu0 %v1777
  %6538 = vmatpush.msra.mxu0 %v1769
  %6539 = vmatpush.msra.mxu0 %v1761
  %6540 = vmatpush.msra.mxu0 %v1753
  %6541 = vmatpush.msra.mxu0 %v1745
  %6542 = vmatpush.msra.mxu0 %v1737
  %6543 = vmatpush.msra.mxu0 %v1729
  %6544 = vmatpush.msra.mxu0 %v1721
  %6545 = vmatmul.f32.gmra.mxu0 %v39
  %v6546 = vpop.f32.mrf.mxu0
  %v6547 = vadd.f32 %v6527, %v6546
  %6548 = vdwg.mxu0
  %6549 = vmatpush.msra.mxu0 %v1969
  %6550 = vmatpush.msra.mxu0 %v1961
  %6551 = vmatpush.msra.mxu0 %v1953
  %6552 = vmatpush.msra.mxu0 %v1945
  %6553 = vmatpush.msra.mxu0 %v1937
  %6554 = vmatpush.msra.mxu0 %v1929
  %6555 = vmatpush.msra.mxu0 %v1921
  %6556 = vmatpush.msra.mxu0 %v1913
  %6557 = vmatpush.msra.mxu0 %v1905
  %6558 = vmatpush.msra.mxu0 %v1897
  %6559 = vmatpush.msra.mxu0 %v1889
  %6560 = vmatpush.msra.mxu0 %v1881
  %6561 = vmatpush.msra.mxu0 %v1873
  %6562 = vmatpush.msra.mxu0 %v1865
  %6563 = vmatpush.msra.mxu0 %v1857
  %6564 = vmatpush.msra.mxu0 %v1849
  %6565 = vmatmul.f32.gmra.mxu0 %v40
  %v6566 = vpop.f32.mrf.mxu0
  %v6567 = vadd.f32 %v6547, %v6566
  %6568 = vdwg.mxu0
  %6569 = vmatpush.msra.mxu0 %v2097
  %6570 = vmatpush.msra.mxu0 %v2089
  %6571 = vmatpush.msra.mxu0 %v2081
  %6572 = vmatpush.msra.mxu0 %v2073
  %6573 = vmatpush.msra.mxu0 %v2065
  %6574 = vmatpush.msra.mxu0 %v2057
  %6575 = vmatpush.msra.mxu0 %v2049
  %6576 = vmatpush.msra.mxu0 %v2041
  %6577 = vmatpush.msra.mxu0 %v2033
  %6578 = vmatpush.msra.mxu0 %v2025
  %6579 = vmatpush.msra.mxu0 %v2017
  %6580 = vmatpush.msra.mxu0 %v2009
  %6581 = vmatpush.msra.mxu0 %v2001
  %6582 = vmatpush.msra.mxu0 %v1993
  %6583 = vmatpush.msra.mxu0 %v1985
  %6584 = vmatpush.msra.mxu0 %v1977
  %6585 = vmatmul.f32.gmra.mxu0 %v41
  %v6586 = vpop.f32.mrf.mxu0
  %v6587 = vadd.f32 %v6567, %v6586
  %6588 = vdwg.mxu0
  %6589 = vmatpush.msra.mxu0 %v2225
  %6590 = vmatpush.msra.mxu0 %v2217
  %6591 = vmatpush.msra.mxu0 %v2209
  %6592 = vmatpush.msra.mxu0 %v2201
  %6593 = vmatpush.msra.mxu0 %v2193
  %6594 = vmatpush.msra.mxu0 %v2185
  %6595 = vmatpush.msra.mxu0 %v2177
  %6596 = vmatpush.msra.mxu0 %v2169
  %6597 = vmatpush.msra.mxu0 %v2161
  %6598 = vmatpush.msra.mxu0 %v2153
  %6599 = vmatpush.msra.mxu0 %v2145
  %6600 = vmatpush.msra.mxu0 %v2137
  %6601 = vmatpush.msra.mxu0 %v2129
  %6602 = vmatpush.msra.mxu0 %v2121
  %6603 = vmatpush.msra.mxu0 %v2113
  %6604 = vmatpush.msra.mxu0 %v2105
  %6605 = vmatmul.f32.gmra.mxu0 %v42
  %v6606 = vpop.f32.mrf.mxu0
  %v6607 = vadd.f32 %v6587, %v6606
  %6608 = vdwg.mxu0
  %6609 = vmatpush.msra.mxu0 %v2353
  %6610 = vmatpush.msra.mxu0 %v2345
  %6611 = vmatpush.msra.mxu0 %v2337
  %6612 = vmatpush.msra.mxu0 %v2329
  %6613 = vmatpush.msra.mxu0 %v2321
  %6614 = vmatpush.msra.mxu0 %v2313
  %6615 = vmatpush.msra.mxu0 %v2305
  %6616 = vmatpush.msra.mxu0 %v2297
  %6617 = vmatpush.msra.mxu0 %v2289
  %6618 = vmatpush.msra.mxu0 %v2281
  %6619 = vmatpush.msra.mxu0 %v2273
  %6620 = vmatpush.msra.mxu0 %v2265
  %6621 = vmatpush.msra.mxu0 %v2257
  %6622 = vmatpush.msra.mxu0 %v2249
  %6623 = vmatpush.msra.mxu0 %v2241
  %6624 = vmatpush.msra.mxu0 %v2233
  %6625 = vmatmul.f32.gmra.mxu0 %v43
  %v6626 = vpop.f32.mrf.mxu0
  %v6627 = vadd.f32 %v6607, %v6626
  %6628 = vdwg.mxu0
  %6629 = vmatpush.msra.mxu0 %v2481
  %6630 = vmatpush.msra.mxu0 %v2473
  %6631 = vmatpush.msra.mxu0 %v2465
  %6632 = vmatpush.msra.mxu0 %v2457
  %6633 = vmatpush.msra.mxu0 %v2449
  %6634 = vmatpush.msra.mxu0 %v2441
  %6635 = vmatpush.msra.mxu0 %v2433
  %6636 = vmatpush.msra.mxu0 %v2425
  %6637 = vmatpush.msra.mxu0 %v2417
  %6638 = vmatpush.msra.mxu0 %v2409
  %6639 = vmatpush.msra.mxu0 %v2401
  %6640 = vmatpush.msra.mxu0 %v2393
  %6641 = vmatpush.msra.mxu0 %v2385
  %6642 = vmatpush.msra.mxu0 %v2377
  %6643 = vmatpush.msra.mxu0 %v2369
  %6644 = vmatpush.msra.mxu0 %v2361
  %6645 = vmatmul.f32.gmra.mxu0 %v44
  %v6646 = vpop.f32.mrf.mxu0
  %v6647 = vadd.f32 %v6627, %v6646
  %6648 = vdwg.mxu0
  %6649 = vmatpush.msra.mxu0 %v2609
  %6650 = vmatpush.msra.mxu0 %v2601
  %6651 = vmatpush.msra.mxu0 %v2593
  %6652 = vmatpush.msra.mxu0 %v2585
  %6653 = vmatpush.msra.mxu0 %v2577
  %6654 = vmatpush.msra.mxu0 %v2569
  %6655 = vmatpush.msra.mxu0 %v2561
  %6656 = vmatpush.msra.mxu0 %v2553
  %6657 = vmatpush.msra.mxu0 %v2545
  %6658 = vmatpush.msra.mxu0 %v2537
  %6659 = vmatpush.msra.mxu0 %v2529
  %6660 = vmatpush.msra.mxu0 %v2521
  %6661 = vmatpush.msra.mxu0 %v2513
  %6662 = vmatpush.msra.mxu0 %v2505
  %6663 = vmatpush.msra.mxu0 %v2497
  %6664 = vmatpush.msra.mxu0 %v2489
  %6665 = vmatmul.f32.gmra.mxu0 %v45
  %v6666 = vpop.f32.mrf.mxu0
  %v6667 = vadd.f32 %v6647, %v6666
  %6668 = vdwg.mxu0
  %6669 = vmatpush.msra.mxu0 %v2737
  %6670 = vmatpush.msra.mxu0 %v2729
  %6671 = vmatpush.msra.mxu0 %v2721
  %6672 = vmatpush.msra.mxu0 %v2713
  %6673 = vmatpush.msra.mxu0 %v2705
  %6674 = vmatpush.msra.mxu0 %v2697
  %6675 = vmatpush.msra.mxu0 %v2689
  %6676 = vmatpush.msra.mxu0 %v2681
  %6677 = vmatpush.msra.mxu0 %v2673
  %6678 = vmatpush.msra.mxu0 %v2665
  %6679 = vmatpush.msra.mxu0 %v2657
  %6680 = vmatpush.msra.mxu0 %v2649
  %6681 = vmatpush.msra.mxu0 %v2641
  %6682 = vmatpush.msra.mxu0 %v2633
  %6683 = vmatpush.msra.mxu0 %v2625
  %6684 = vmatpush.msra.mxu0 %v2617
  %6685 = vmatmul.f32.gmra.mxu0 %v46
  %v6686 = vpop.f32.mrf.mxu0
  %v6687 = vadd.f32 %v6667, %v6686
  %6688 = vdwg.mxu0
  %6689 = vmatpush.msra.mxu0 %v2865
  %6690 = vmatpush.msra.mxu0 %v2857
  %6691 = vmatpush.msra.mxu0 %v2849
  %6692 = vmatpush.msra.mxu0 %v2841
  %6693 = vmatpush.msra.mxu0 %v2833
  %6694 = vmatpush.msra.mxu0 %v2825
  %6695 = vmatpush.msra.mxu0 %v2817
  %6696 = vmatpush.msra.mxu0 %v2809
  %6697 = vmatpush.msra.mxu0 %v2801
  %6698 = vmatpush.msra.mxu0 %v2793
  %6699 = vmatpush.msra.mxu0 %v2785
  %6700 = vmatpush.msra.mxu0 %v2777
  %6701 = vmatpush.msra.mxu0 %v2769
  %6702 = vmatpush.msra.mxu0 %v2761
  %6703 = vmatpush.msra.mxu0 %v2753
  %6704 = vmatpush.msra.mxu0 %v2745
  %6705 = vmatmul.f32.gmra.mxu0 %v47
  %v6706 = vpop.f32.mrf.mxu0
  %v6707 = vadd.f32 %v6687, %v6706
  %6708 = vdwg.mxu0
  %6709 = vmatpush.msra.mxu0 %v2993
  %6710 = vmatpush.msra.mxu0 %v2985
  %6711 = vmatpush.msra.mxu0 %v2977
  %6712 = vmatpush.msra.mxu0 %v2969
  %6713 = vmatpush.msra.mxu0 %v2961
  %6714 = vmatpush.msra.mxu0 %v2953
  %6715 = vmatpush.msra.mxu0 %v2945
  %6716 = vmatpush.msra.mxu0 %v2937
  %6717 = vmatpush.msra.mxu0 %v2929
  %6718 = vmatpush.msra.mxu0 %v2921
  %6719 = vmatpush.msra.mxu0 %v2913
  %6720 = vmatpush.msra.mxu0 %v2905
  %6721 = vmatpush.msra.mxu0 %v2897
  %6722 = vmatpush.msra.mxu0 %v2889
  %6723 = vmatpush.msra.mxu0 %v2881
  %6724 = vmatpush.msra.mxu0 %v2873
  %6725 = vmatmul.f32.gmra.mxu0 %v48
  %v6726 = vpop.f32.mrf.mxu0
  %v6727 = vadd.f32 %v6707, %v6726
  %6728 = vdwg.mxu0
  %6729 = vmatpush.msra.mxu0 %v3121
  %6730 = vmatpush.msra.mxu0 %v3113
  %6731 = vmatpush.msra.mxu0 %v3105
  %6732 = vmatpush.msra.mxu0 %v3097
  %6733 = vmatpush.msra.mxu0 %v3089
  %6734 = vmatpush.msra.mxu0 %v3081
  %6735 = vmatpush.msra.mxu0 %v3073
  %6736 = vmatpush.msra.mxu0 %v3065
  %6737 = vmatpush.msra.mxu0 %v3057
  %6738 = vmatpush.msra.mxu0 %v3049
  %6739 = vmatpush.msra.mxu0 %v3041
  %6740 = vmatpush.msra.mxu0 %v3033
  %6741 = vmatpush.msra.mxu0 %v3025
  %6742 = vmatpush.msra.mxu0 %v3017
  %6743 = vmatpush.msra.mxu0 %v3009
  %6744 = vmatpush.msra.mxu0 %v3001
  %6745 = vmatmul.f32.gmra.mxu0 %v49
  %v6746 = vpop.f32.mrf.mxu0
  %v6747 = vadd.f32 %v6727, %v6746
  %6748 = vdwg.mxu0
  %6749 = vmatpush.msra.mxu0 %v3249
  %6750 = vmatpush.msra.mxu0 %v3241
  %6751 = vmatpush.msra.mxu0 %v3233
  %6752 = vmatpush.msra.mxu0 %v3225
  %6753 = vmatpush.msra.mxu0 %v3217
  %6754 = vmatpush.msra.mxu0 %v3209
  %6755 = vmatpush.msra.mxu0 %v3201
  %6756 = vmatpush.msra.mxu0 %v3193
  %6757 = vmatpush.msra.mxu0 %v3185
  %6758 = vmatpush.msra.mxu0 %v3177
  %6759 = vmatpush.msra.mxu0 %v3169
  %6760 = vmatpush.msra.mxu0 %v3161
  %6761 = vmatpush.msra.mxu0 %v3153
  %6762 = vmatpush.msra.mxu0 %v3145
  %6763 = vmatpush.msra.mxu0 %v3137
  %6764 = vmatpush.msra.mxu0 %v3129
  %6765 = vmatmul.f32.gmra.mxu0 %v50
  %v6766 = vpop.f32.mrf.mxu0
  %v6767 = vadd.f32 %v6747, %v6766
  %6768 = vdwg.mxu0
  %6769 = vmatpush.msra.mxu0 %v178
  %6770 = vmatpush.msra.mxu0 %v170
  %6771 = vmatpush.msra.mxu0 %v162
  %6772 = vmatpush.msra.mxu0 %v154
  %6773 = vmatpush.msra.mxu0 %v146
  %6774 = vmatpush.msra.mxu0 %v138
  %6775 = vmatpush.msra.mxu0 %v130
  %6776 = vmatpush.msra.mxu0 %v122
  %6777 = vmatpush.msra.mxu0 %v114
  %6778 = vmatpush.msra.mxu0 %v106
  %6779 = vmatpush.msra.mxu0 %v98
  %6780 = vmatpush.msra.mxu0 %v90
  %6781 = vmatpush.msra.mxu0 %v82
  %6782 = vmatpush.msra.mxu0 %v74
  %6783 = vmatpush.msra.mxu0 %v66
  %6784 = vmatpush.msra.mxu0 %v58
  %6785 = vmatmul.f32.gmra.mxu0 %v26
  %v6786 = vpop.f32.mrf.mxu0
  %v6787 = vadd.f32 %v3260, %v6786
  %6788 = vdwg.mxu0
  %6789 = vmatpush.msra.mxu0 %v306
  %6790 = vmatpush.msra.mxu0 %v298
  %6791 = vmatpush.msra.mxu0 %v290
  %6792 = vmatpush.msra.mxu0 %v282
  %6793 = vmatpush.msra.mxu0 %v274
  %6794 = vmatpush.msra.mxu0 %v266
  %6795 = vmatpush.msra.mxu0 %v258
  %6796 = vmatpush.msra.mxu0 %v250
  %6797 = vmatpush.msra.mxu0 %v242
  %6798 = vmatpush.msra.mxu0 %v234
  %6799 = vmatpush.msra.mxu0 %v226
  %6800 = vmatpush.msra.mxu0 %v218
  %6801 = vmatpush.msra.mxu0 %v210
  %6802 = vmatpush.msra.mxu0 %v202
  %6803 = vmatpush.msra.mxu0 %v194
  %6804 = vmatpush.msra.mxu0 %v186
  %6805 = vmatmul.f32.gmra.mxu0 %v27
  %v6806 = vpop.f32.mrf.mxu0
  %v6807 = vadd.f32 %v6787, %v6806
  %6808 = vdwg.mxu0
  %6809 = vmatpush.msra.mxu0 %v434
  %6810 = vmatpush.msra.mxu0 %v426
  %6811 = vmatpush.msra.mxu0 %v418
  %6812 = vmatpush.msra.mxu0 %v410
  %6813 = vmatpush.msra.mxu0 %v402
  %6814 = vmatpush.msra.mxu0 %v394
  %6815 = vmatpush.msra.mxu0 %v386
  %6816 = vmatpush.msra.mxu0 %v378
  %6817 = vmatpush.msra.mxu0 %v370
  %6818 = vmatpush.msra.mxu0 %v362
  %6819 = vmatpush.msra.mxu0 %v354
  %6820 = vmatpush.msra.mxu0 %v346
  %6821 = vmatpush.msra.mxu0 %v338
  %6822 = vmatpush.msra.mxu0 %v330
  %6823 = vmatpush.msra.mxu0 %v322
  %6824 = vmatpush.msra.mxu0 %v314
  %6825 = vmatmul.f32.gmra.mxu0 %v28
  %v6826 = vpop.f32.mrf.mxu0
  %v6827 = vadd.f32 %v6807, %v6826
  %6828 = vdwg.mxu0
  %6829 = vmatpush.msra.mxu0 %v562
  %6830 = vmatpush.msra.mxu0 %v554
  %6831 = vmatpush.msra.mxu0 %v546
  %6832 = vmatpush.msra.mxu0 %v538
  %6833 = vmatpush.msra.mxu0 %v530
  %6834 = vmatpush.msra.mxu0 %v522
  %6835 = vmatpush.msra.mxu0 %v514
  %6836 = vmatpush.msra.mxu0 %v506
  %6837 = vmatpush.msra.mxu0 %v498
  %6838 = vmatpush.msra.mxu0 %v490
  %6839 = vmatpush.msra.mxu0 %v482
  %6840 = vmatpush.msra.mxu0 %v474
  %6841 = vmatpush.msra.mxu0 %v466
  %6842 = vmatpush.msra.mxu0 %v458
  %6843 = vmatpush.msra.mxu0 %v450
  %6844 = vmatpush.msra.mxu0 %v442
  %6845 = vmatmul.f32.gmra.mxu0 %v29
  %v6846 = vpop.f32.mrf.mxu0
  %v6847 = vadd.f32 %v6827, %v6846
  %6848 = vdwg.mxu0
  %6849 = vmatpush.msra.mxu0 %v690
  %6850 = vmatpush.msra.mxu0 %v682
  %6851 = vmatpush.msra.mxu0 %v674
  %6852 = vmatpush.msra.mxu0 %v666
  %6853 = vmatpush.msra.mxu0 %v658
  %6854 = vmatpush.msra.mxu0 %v650
  %6855 = vmatpush.msra.mxu0 %v642
  %6856 = vmatpush.msra.mxu0 %v634
  %6857 = vmatpush.msra.mxu0 %v626
  %6858 = vmatpush.msra.mxu0 %v618
  %6859 = vmatpush.msra.mxu0 %v610
  %6860 = vmatpush.msra.mxu0 %v602
  %6861 = vmatpush.msra.mxu0 %v594
  %6862 = vmatpush.msra.mxu0 %v586
  %6863 = vmatpush.msra.mxu0 %v578
  %6864 = vmatpush.msra.mxu0 %v570
  %6865 = vmatmul.f32.gmra.mxu0 %v30
  %v6866 = vpop.f32.mrf.mxu0
  %v6867 = vadd.f32 %v6847, %v6866
  %6868 = vdwg.mxu0
  %6869 = vmatpush.msra.mxu0 %v818
  %6870 = vmatpush.msra.mxu0 %v810
  %6871 = vmatpush.msra.mxu0 %v802
  %6872 = vmatpush.msra.mxu0 %v794
  %6873 = vmatpush.msra.mxu0 %v786
  %6874 = vmatpush.msra.mxu0 %v778
  %6875 = vmatpush.msra.mxu0 %v770
  %6876 = vmatpush.msra.mxu0 %v762
  %6877 = vmatpush.msra.mxu0 %v754
  %6878 = vmatpush.msra.mxu0 %v746
  %6879 = vmatpush.msra.mxu0 %v738
  %6880 = vmatpush.msra.mxu0 %v730
  %6881 = vmatpush.msra.mxu0 %v722
  %6882 = vmatpush.msra.mxu0 %v714
  %6883 = vmatpush.msra.mxu0 %v706
  %6884 = vmatpush.msra.mxu0 %v698
  %6885 = vmatmul.f32.gmra.mxu0 %v31
  %v6886 = vpop.f32.mrf.mxu0
  %v6887 = vadd.f32 %v6867, %v6886
  %6888 = vdwg.mxu0
  %6889 = vmatpush.msra.mxu0 %v946
  %6890 = vmatpush.msra.mxu0 %v938
  %6891 = vmatpush.msra.mxu0 %v930
  %6892 = vmatpush.msra.mxu0 %v922
  %6893 = vmatpush.msra.mxu0 %v914
  %6894 = vmatpush.msra.mxu0 %v906
  %6895 = vmatpush.msra.mxu0 %v898
  %6896 = vmatpush.msra.mxu0 %v890
  %6897 = vmatpush.msra.mxu0 %v882
  %6898 = vmatpush.msra.mxu0 %v874
  %6899 = vmatpush.msra.mxu0 %v866
  %6900 = vmatpush.msra.mxu0 %v858
  %6901 = vmatpush.msra.mxu0 %v850
  %6902 = vmatpush.msra.mxu0 %v842
  %6903 = vmatpush.msra.mxu0 %v834
  %6904 = vmatpush.msra.mxu0 %v826
  %6905 = vmatmul.f32.gmra.mxu0 %v32
  %v6906 = vpop.f32.mrf.mxu0
  %v6907 = vadd.f32 %v6887, %v6906
  %6908 = vdwg.mxu0
  %6909 = vmatpush.msra.mxu0 %v1074
  %6910 = vmatpush.msra.mxu0 %v1066
  %6911 = vmatpush.msra.mxu0 %v1058
  %6912 = vmatpush.msra.mxu0 %v1050
  %6913 = vmatpush.msra.mxu0 %v1042
  %6914 = vmatpush.msra.mxu0 %v1034
  %6915 = vmatpush.msra.mxu0 %v1026
  %6916 = vmatpush.msra.mxu0 %v1018
  %6917 = vmatpush.msra.mxu0 %v1010
  %6918 = vmatpush.msra.mxu0 %v1002
  %6919 = vmatpush.msra.mxu0 %v994
  %6920 = vmatpush.msra.mxu0 %v986
  %6921 = vmatpush.msra.mxu0 %v978
  %6922 = vmatpush.msra.mxu0 %v970
  %6923 = vmatpush.msra.mxu0 %v962
  %6924 = vmatpush.msra.mxu0 %v954
  %6925 = vmatmul.f32.gmra.mxu0 %v33
  %v6926 = vpop.f32.mrf.mxu0
  %v6927 = vadd.f32 %v6907, %v6926
  %6928 = vdwg.mxu0
  %6929 = vmatpush.msra.mxu0 %v1202
  %6930 = vmatpush.msra.mxu0 %v1194
  %6931 = vmatpush.msra.mxu0 %v1186
  %6932 = vmatpush.msra.mxu0 %v1178
  %6933 = vmatpush.msra.mxu0 %v1170
  %6934 = vmatpush.msra.mxu0 %v1162
  %6935 = vmatpush.msra.mxu0 %v1154
  %6936 = vmatpush.msra.mxu0 %v1146
  %6937 = vmatpush.msra.mxu0 %v1138
  %6938 = vmatpush.msra.mxu0 %v1130
  %6939 = vmatpush.msra.mxu0 %v1122
  %6940 = vmatpush.msra.mxu0 %v1114
  %6941 = vmatpush.msra.mxu0 %v1106
  %6942 = vmatpush.msra.mxu0 %v1098
  %6943 = vmatpush.msra.mxu0 %v1090
  %6944 = vmatpush.msra.mxu0 %v1082
  %6945 = vmatmul.f32.gmra.mxu0 %v34
  %v6946 = vpop.f32.mrf.mxu0
  %v6947 = vadd.f32 %v6927, %v6946
  %6948 = vdwg.mxu0
  %6949 = vmatpush.msra.mxu0 %v1330
  %6950 = vmatpush.msra.mxu0 %v1322
  %6951 = vmatpush.msra.mxu0 %v1314
  %6952 = vmatpush.msra.mxu0 %v1306
  %6953 = vmatpush.msra.mxu0 %v1298
  %6954 = vmatpush.msra.mxu0 %v1290
  %6955 = vmatpush.msra.mxu0 %v1282
  %6956 = vmatpush.msra.mxu0 %v1274
  %6957 = vmatpush.msra.mxu0 %v1266
  %6958 = vmatpush.msra.mxu0 %v1258
  %6959 = vmatpush.msra.mxu0 %v1250
  %6960 = vmatpush.msra.mxu0 %v1242
  %6961 = vmatpush.msra.mxu0 %v1234
  %6962 = vmatpush.msra.mxu0 %v1226
  %6963 = vmatpush.msra.mxu0 %v1218
  %6964 = vmatpush.msra.mxu0 %v1210
  %6965 = vmatmul.f32.gmra.mxu0 %v35
  %v6966 = vpop.f32.mrf.mxu0
  %v6967 = vadd.f32 %v6947, %v6966
  %6968 = vdwg.mxu0
  %6969 = vmatpush.msra.mxu0 %v1458
  %6970 = vmatpush.msra.mxu0 %v1450
  %6971 = vmatpush.msra.mxu0 %v1442
  %6972 = vmatpush.msra.mxu0 %v1434
  %6973 = vmatpush.msra.mxu0 %v1426
  %6974 = vmatpush.msra.mxu0 %v1418
  %6975 = vmatpush.msra.mxu0 %v1410
  %6976 = vmatpush.msra.mxu0 %v1402
  %6977 = vmatpush.msra.mxu0 %v1394
  %6978 = vmatpush.msra.mxu0 %v1386
  %6979 = vmatpush.msra.mxu0 %v1378
  %6980 = vmatpush.msra.mxu0 %v1370
  %6981 = vmatpush.msra.mxu0 %v1362
  %6982 = vmatpush.msra.mxu0 %v1354
  %6983 = vmatpush.msra.mxu0 %v1346
  %6984 = vmatpush.msra.mxu0 %v1338
  %6985 = vmatmul.f32.gmra.mxu0 %v36
  %v6986 = vpop.f32.mrf.mxu0
  %v6987 = vadd.f32 %v6967, %v6986
  %6988 = vdwg.mxu0
  %6989 = vmatpush.msra.mxu0 %v1586
  %6990 = vmatpush.msra.mxu0 %v1578
  %6991 = vmatpush.msra.mxu0 %v1570
  %6992 = vmatpush.msra.mxu0 %v1562
  %6993 = vmatpush.msra.mxu0 %v1554
  %6994 = vmatpush.msra.mxu0 %v1546
  %6995 = vmatpush.msra.mxu0 %v1538
  %6996 = vmatpush.msra.mxu0 %v1530
  %6997 = vmatpush.msra.mxu0 %v1522
  %6998 = vmatpush.msra.mxu0 %v1514
  %6999 = vmatpush.msra.mxu0 %v1506
  %7000 = vmatpush.msra.mxu0 %v1498
  %7001 = vmatpush.msra.mxu0 %v1490
  %7002 = vmatpush.msra.mxu0 %v1482
  %7003 = vmatpush.msra.mxu0 %v1474
  %7004 = vmatpush.msra.mxu0 %v1466
  %7005 = vmatmul.f32.gmra.mxu0 %v37
  %v7006 = vpop.f32.mrf.mxu0
  %v7007 = vadd.f32 %v6987, %v7006
  %7008 = vdwg.mxu0
  %7009 = vmatpush.msra.mxu0 %v1714
  %7010 = vmatpush.msra.mxu0 %v1706
  %7011 = vmatpush.msra.mxu0 %v1698
  %7012 = vmatpush.msra.mxu0 %v1690
  %7013 = vmatpush.msra.mxu0 %v1682
  %7014 = vmatpush.msra.mxu0 %v1674
  %7015 = vmatpush.msra.mxu0 %v1666
  %7016 = vmatpush.msra.mxu0 %v1658
  %7017 = vmatpush.msra.mxu0 %v1650
  %7018 = vmatpush.msra.mxu0 %v1642
  %7019 = vmatpush.msra.mxu0 %v1634
  %7020 = vmatpush.msra.mxu0 %v1626
  %7021 = vmatpush.msra.mxu0 %v1618
  %7022 = vmatpush.msra.mxu0 %v1610
  %7023 = vmatpush.msra.mxu0 %v1602
  %7024 = vmatpush.msra.mxu0 %v1594
  %7025 = vmatmul.f32.gmra.mxu0 %v38
  %v7026 = vpop.f32.mrf.mxu0
  %v7027 = vadd.f32 %v7007, %v7026
  %7028 = vdwg.mxu0
  %7029 = vmatpush.msra.mxu0 %v1842
  %7030 = vmatpush.msra.mxu0 %v1834
  %7031 = vmatpush.msra.mxu0 %v1826
  %7032 = vmatpush.msra.mxu0 %v1818
  %7033 = vmatpush.msra.mxu0 %v1810
  %7034 = vmatpush.msra.mxu0 %v1802
  %7035 = vmatpush.msra.mxu0 %v1794
  %7036 = vmatpush.msra.mxu0 %v1786
  %7037 = vmatpush.msra.mxu0 %v1778
  %7038 = vmatpush.msra.mxu0 %v1770
  %7039 = vmatpush.msra.mxu0 %v1762
  %7040 = vmatpush.msra.mxu0 %v1754
  %7041 = vmatpush.msra.mxu0 %v1746
  %7042 = vmatpush.msra.mxu0 %v1738
  %7043 = vmatpush.msra.mxu0 %v1730
  %7044 = vmatpush.msra.mxu0 %v1722
  %7045 = vmatmul.f32.gmra.mxu0 %v39
  %v7046 = vpop.f32.mrf.mxu0
  %v7047 = vadd.f32 %v7027, %v7046
  %7048 = vdwg.mxu0
  %7049 = vmatpush.msra.mxu0 %v1970
  %7050 = vmatpush.msra.mxu0 %v1962
  %7051 = vmatpush.msra.mxu0 %v1954
  %7052 = vmatpush.msra.mxu0 %v1946
  %7053 = vmatpush.msra.mxu0 %v1938
  %7054 = vmatpush.msra.mxu0 %v1930
  %7055 = vmatpush.msra.mxu0 %v1922
  %7056 = vmatpush.msra.mxu0 %v1914
  %7057 = vmatpush.msra.mxu0 %v1906
  %7058 = vmatpush.msra.mxu0 %v1898
  %7059 = vmatpush.msra.mxu0 %v1890
  %7060 = vmatpush.msra.mxu0 %v1882
  %7061 = vmatpush.msra.mxu0 %v1874
  %7062 = vmatpush.msra.mxu0 %v1866
  %7063 = vmatpush.msra.mxu0 %v1858
  %7064 = vmatpush.msra.mxu0 %v1850
  %7065 = vmatmul.f32.gmra.mxu0 %v40
  %v7066 = vpop.f32.mrf.mxu0
  %v7067 = vadd.f32 %v7047, %v7066
  %7068 = vdwg.mxu0
  %7069 = vmatpush.msra.mxu0 %v2098
  %7070 = vmatpush.msra.mxu0 %v2090
  %7071 = vmatpush.msra.mxu0 %v2082
  %7072 = vmatpush.msra.mxu0 %v2074
  %7073 = vmatpush.msra.mxu0 %v2066
  %7074 = vmatpush.msra.mxu0 %v2058
  %7075 = vmatpush.msra.mxu0 %v2050
  %7076 = vmatpush.msra.mxu0 %v2042
  %7077 = vmatpush.msra.mxu0 %v2034
  %7078 = vmatpush.msra.mxu0 %v2026
  %7079 = vmatpush.msra.mxu0 %v2018
  %7080 = vmatpush.msra.mxu0 %v2010
  %7081 = vmatpush.msra.mxu0 %v2002
  %7082 = vmatpush.msra.mxu0 %v1994
  %7083 = vmatpush.msra.mxu0 %v1986
  %7084 = vmatpush.msra.mxu0 %v1978
  %7085 = vmatmul.f32.gmra.mxu0 %v41
  %v7086 = vpop.f32.mrf.mxu0
  %v7087 = vadd.f32 %v7067, %v7086
  %7088 = vdwg.mxu0
  %7089 = vmatpush.msra.mxu0 %v2226
  %7090 = vmatpush.msra.mxu0 %v2218
  %7091 = vmatpush.msra.mxu0 %v2210
  %7092 = vmatpush.msra.mxu0 %v2202
  %7093 = vmatpush.msra.mxu0 %v2194
  %7094 = vmatpush.msra.mxu0 %v2186
  %7095 = vmatpush.msra.mxu0 %v2178
  %7096 = vmatpush.msra.mxu0 %v2170
  %7097 = vmatpush.msra.mxu0 %v2162
  %7098 = vmatpush.msra.mxu0 %v2154
  %7099 = vmatpush.msra.mxu0 %v2146
  %7100 = vmatpush.msra.mxu0 %v2138
  %7101 = vmatpush.msra.mxu0 %v2130
  %7102 = vmatpush.msra.mxu0 %v2122
  %7103 = vmatpush.msra.mxu0 %v2114
  %7104 = vmatpush.msra.mxu0 %v2106
  %7105 = vmatmul.f32.gmra.mxu0 %v42
  %v7106 = vpop.f32.mrf.mxu0
  %v7107 = vadd.f32 %v7087, %v7106
  %7108 = vdwg.mxu0
  %7109 = vmatpush.msra.mxu0 %v2354
  %7110 = vmatpush.msra.mxu0 %v2346
  %7111 = vmatpush.msra.mxu0 %v2338
  %7112 = vmatpush.msra.mxu0 %v2330
  %7113 = vmatpush.msra.mxu0 %v2322
  %7114 = vmatpush.msra.mxu0 %v2314
  %7115 = vmatpush.msra.mxu0 %v2306
  %7116 = vmatpush.msra.mxu0 %v2298
  %7117 = vmatpush.msra.mxu0 %v2290
  %7118 = vmatpush.msra.mxu0 %v2282
  %7119 = vmatpush.msra.mxu0 %v2274
  %7120 = vmatpush.msra.mxu0 %v2266
  %7121 = vmatpush.msra.mxu0 %v2258
  %7122 = vmatpush.msra.mxu0 %v2250
  %7123 = vmatpush.msra.mxu0 %v2242
  %7124 = vmatpush.msra.mxu0 %v2234
  %7125 = vmatmul.f32.gmra.mxu0 %v43
  %v7126 = vpop.f32.mrf.mxu0
  %v7127 = vadd.f32 %v7107, %v7126
  %7128 = vdwg.mxu0
  %7129 = vmatpush.msra.mxu0 %v2482
  %7130 = vmatpush.msra.mxu0 %v2474
  %7131 = vmatpush.msra.mxu0 %v2466
  %7132 = vmatpush.msra.mxu0 %v2458
  %7133 = vmatpush.msra.mxu0 %v2450
  %7134 = vmatpush.msra.mxu0 %v2442
  %7135 = vmatpush.msra.mxu0 %v2434
  %7136 = vmatpush.msra.mxu0 %v2426
  %7137 = vmatpush.msra.mxu0 %v2418
  %7138 = vmatpush.msra.mxu0 %v2410
  %7139 = vmatpush.msra.mxu0 %v2402
  %7140 = vmatpush.msra.mxu0 %v2394
  %7141 = vmatpush.msra.mxu0 %v2386
  %7142 = vmatpush.msra.mxu0 %v2378
  %7143 = vmatpush.msra.mxu0 %v2370
  %7144 = vmatpush.msra.mxu0 %v2362
  %7145 = vmatmul.f32.gmra.mxu0 %v44
  %v7146 = vpop.f32.mrf.mxu0
  %v7147 = vadd.f32 %v7127, %v7146
  %7148 = vdwg.mxu0
  %7149 = vmatpush.msra.mxu0 %v2610
  %7150 = vmatpush.msra.mxu0 %v2602
  %7151 = vmatpush.msra.mxu0 %v2594
  %7152 = vmatpush.msra.mxu0 %v2586
  %7153 = vmatpush.msra.mxu0 %v2578
  %7154 = vmatpush.msra.mxu0 %v2570
  %7155 = vmatpush.msra.mxu0 %v2562
  %7156 = vmatpush.msra.mxu0 %v2554
  %7157 = vmatpush.msra.mxu0 %v2546
  %7158 = vmatpush.msra.mxu0 %v2538
  %7159 = vmatpush.msra.mxu0 %v2530
  %7160 = vmatpush.msra.mxu0 %v2522
  %7161 = vmatpush.msra.mxu0 %v2514
  %7162 = vmatpush.msra.mxu0 %v2506
  %7163 = vmatpush.msra.mxu0 %v2498
  %7164 = vmatpush.msra.mxu0 %v2490
  %7165 = vmatmul.f32.gmra.mxu0 %v45
  %v7166 = vpop.f32.mrf.mxu0
  %v7167 = vadd.f32 %v7147, %v7166
  %7168 = vdwg.mxu0
  %7169 = vmatpush.msra.mxu0 %v2738
  %7170 = vmatpush.msra.mxu0 %v2730
  %7171 = vmatpush.msra.mxu0 %v2722
  %7172 = vmatpush.msra.mxu0 %v2714
  %7173 = vmatpush.msra.mxu0 %v2706
  %7174 = vmatpush.msra.mxu0 %v2698
  %7175 = vmatpush.msra.mxu0 %v2690
  %7176 = vmatpush.msra.mxu0 %v2682
  %7177 = vmatpush.msra.mxu0 %v2674
  %7178 = vmatpush.msra.mxu0 %v2666
  %7179 = vmatpush.msra.mxu0 %v2658
  %7180 = vmatpush.msra.mxu0 %v2650
  %7181 = vmatpush.msra.mxu0 %v2642
  %7182 = vmatpush.msra.mxu0 %v2634
  %7183 = vmatpush.msra.mxu0 %v2626
  %7184 = vmatpush.msra.mxu0 %v2618
  %7185 = vmatmul.f32.gmra.mxu0 %v46
  %v7186 = vpop.f32.mrf.mxu0
  %v7187 = vadd.f32 %v7167, %v7186
  %7188 = vdwg.mxu0
  %7189 = vmatpush.msra.mxu0 %v2866
  %7190 = vmatpush.msra.mxu0 %v2858
  %7191 = vmatpush.msra.mxu0 %v2850
  %7192 = vmatpush.msra.mxu0 %v2842
  %7193 = vmatpush.msra.mxu0 %v2834
  %7194 = vmatpush.msra.mxu0 %v2826
  %7195 = vmatpush.msra.mxu0 %v2818
  %7196 = vmatpush.msra.mxu0 %v2810
  %7197 = vmatpush.msra.mxu0 %v2802
  %7198 = vmatpush.msra.mxu0 %v2794
  %7199 = vmatpush.msra.mxu0 %v2786
  %7200 = vmatpush.msra.mxu0 %v2778
  %7201 = vmatpush.msra.mxu0 %v2770
  %7202 = vmatpush.msra.mxu0 %v2762
  %7203 = vmatpush.msra.mxu0 %v2754
  %7204 = vmatpush.msra.mxu0 %v2746
  %7205 = vmatmul.f32.gmra.mxu0 %v47
  %v7206 = vpop.f32.mrf.mxu0
  %v7207 = vadd.f32 %v7187, %v7206
  %7208 = vdwg.mxu0
  %7209 = vmatpush.msra.mxu0 %v2994
  %7210 = vmatpush.msra.mxu0 %v2986
  %7211 = vmatpush.msra.mxu0 %v2978
  %7212 = vmatpush.msra.mxu0 %v2970
  %7213 = vmatpush.msra.mxu0 %v2962
  %7214 = vmatpush.msra.mxu0 %v2954
  %7215 = vmatpush.msra.mxu0 %v2946
  %7216 = vmatpush.msra.mxu0 %v2938
  %7217 = vmatpush.msra.mxu0 %v2930
  %7218 = vmatpush.msra.mxu0 %v2922
  %7219 = vmatpush.msra.mxu0 %v2914
  %7220 = vmatpush.msra.mxu0 %v2906
  %7221 = vmatpush.msra.mxu0 %v2898
  %7222 = vmatpush.msra.mxu0 %v2890
  %7223 = vmatpush.msra.mxu0 %v2882
  %7224 = vmatpush.msra.mxu0 %v2874
  %7225 = vmatmul.f32.gmra.mxu0 %v48
  %v7226 = vpop.f32.mrf.mxu0
  %v7227 = vadd.f32 %v7207, %v7226
  %7228 = vdwg.mxu0
  %7229 = vmatpush.msra.mxu0 %v3122
  %7230 = vmatpush.msra.mxu0 %v3114
  %7231 = vmatpush.msra.mxu0 %v3106
  %7232 = vmatpush.msra.mxu0 %v3098
  %7233 = vmatpush.msra.mxu0 %v3090
  %7234 = vmatpush.msra.mxu0 %v3082
  %7235 = vmatpush.msra.mxu0 %v3074
  %7236 = vmatpush.msra.mxu0 %v3066
  %7237 = vmatpush.msra.mxu0 %v3058
  %7238 = vmatpush.msra.mxu0 %v3050
  %7239 = vmatpush.msra.mxu0 %v3042
  %7240 = vmatpush.msra.mxu0 %v3034
  %7241 = vmatpush.msra.mxu0 %v3026
  %7242 = vmatpush.msra.mxu0 %v3018
  %7243 = vmatpush.msra.mxu0 %v3010
  %7244 = vmatpush.msra.mxu0 %v3002
  %7245 = vmatmul.f32.gmra.mxu0 %v49
  %v7246 = vpop.f32.mrf.mxu0
  %v7247 = vadd.f32 %v7227, %v7246
  %7248 = vdwg.mxu0
  %7249 = vmatpush.msra.mxu0 %v3250
  %7250 = vmatpush.msra.mxu0 %v3242
  %7251 = vmatpush.msra.mxu0 %v3234
  %7252 = vmatpush.msra.mxu0 %v3226
  %7253 = vmatpush.msra.mxu0 %v3218
  %7254 = vmatpush.msra.mxu0 %v3210
  %7255 = vmatpush.msra.mxu0 %v3202
  %7256 = vmatpush.msra.mxu0 %v3194
  %7257 = vmatpush.msra.mxu0 %v3186
  %7258 = vmatpush.msra.mxu0 %v3178
  %7259 = vmatpush.msra.mxu0 %v3170
  %7260 = vmatpush.msra.mxu0 %v3162
  %7261 = vmatpush.msra.mxu0 %v3154
  %7262 = vmatpush.msra.mxu0 %v3146
  %7263 = vmatpush.msra.mxu0 %v3138
  %7264 = vmatpush.msra.mxu0 %v3130
  %7265 = vmatmul.f32.gmra.mxu0 %v50
  %v7266 = vpop.f32.mrf.mxu0
  %v7267 = vadd.f32 %v7247, %v7266
  %7268 = vdwg.mxu0
  %v7269 = vmax.f32 %v3767, 0.0
  %v7270 = vmax.f32 %v4267, 0.0
  %v7271 = vmax.f32 %v4767, 0.0
  %v7272 = vmax.f32 %v5267, 0.0
  %v7273 = vmax.f32 %v5767, 0.0
  %v7274 = vmax.f32 %v6267, 0.0
  %v7275 = vmax.f32 %v6767, 0.0
  %v7276 = vmax.f32 %v7267, 0.0
  %v7277 = vld [vmem:[%s3] sm:$0xff]
  %v7278 = vld [vmem:[%s3 + $0x8] sm:$0xff]
  %v7279 = vld [vmem:[%s3 + $0x10] sm:$0xff]
  %v7280 = vld [vmem:[%s3 + $0x18] sm:$0xff]
  %v7281 = vld [vmem:[%s3 + $0x20] sm:$0xff]
  %v7282 = vld [vmem:[%s3 + $0x28] sm:$0xff]
  %v7283 = vld [vmem:[%s3 + $0x30] sm:$0xff]
  %v7284 = vld [vmem:[%s3 + $0x38] sm:$0xff]
  %v7285 = vld [vmem:[%s3 + $0x40] sm:$0xff]
  %v7286 = vld [vmem:[%s3 + $0x48] sm:$0xff]
  %v7287 = vld [vmem:[%s3 + $0x50] sm:$0xff]
  %v7288 = vld [vmem:[%s3 + $0x58] sm:$0xff]
  %v7289 = vld [vmem:[%s3 + $0x60] sm:$0xff]
  %v7290 = vld [vmem:[%s3 + $0x68] sm:$0xff]
  %v7291 = vld [vmem:[%s3 + $0x70] sm:$0xff]
  %v7292 = vld [vmem:[%s3 + $0x78] sm:$0xff]
  %v7293 = vld [vmem:[%s3 + $0x80] sm:$0xff]
  %v7294 = vld [vmem:[%s3 + $0x88] sm:$0xff]
  %v7295 = vld [vmem:[%s3 + $0x90] sm:$0xff]
  %v7296 = vld [vmem:[%s3 + $0x98] sm:$0xff]
  %v7297 = vld [vmem:[%s3 + $0xa0] sm:$0xff]
  %v7298 = vld [vmem:[%s3 + $0xa8] sm:$0xff]
  %v7299 = vld [vmem:[%s3 + $0xb0] sm:$0xff]
  %v7300 = vld [vmem:[%s3 + $0xb8] sm:$0xff]
  %v7301 = vld [vmem:[%s3 + $0xc0] sm:$0xff]
  %v7302 = vld [vmem:[%s3 + $0xc8] sm:$0xff]
  %v7303 = vld [vmem:[%s3 + $0xd0] sm:$0xff]
  %v7304 = vld [vmem:[%s3 + $0xd8] sm:$0xff]
  %v7305 = vld [vmem:[%s3 + $0xe0] sm:$0xff]
  %v7306 = vld [vmem:[%s3 + $0xe8] sm:$0xff]
  %v7307 = vld [vmem:[%s3 + $0xf0] sm:$0xff]
  %v7308 = vld [vmem:[%s3 + $0xf8] sm:$0xff]
  %v7309 = vld [vmem:[%s3 + $0x100] sm:$0xff]
  %v7310 = vld [vmem:[%s3 + $0x108] sm:$0xff]
  %v7311 = vld [vmem:[%s3 + $0x110] sm:$0xff]
  %v7312 = vld [vmem:[%s3 + $0x118] sm:$0xff]
  %v7313 = vld [vmem:[%s3 + $0x120] sm:$0xff]
  %v7314 = vld [vmem:[%s3 + $0x128] sm:$0xff]
  %v7315 = vld [vmem:[%s3 + $0x130] sm:$0xff]
  %v7316 = vld [vmem:[%s3 + $0x138] sm:$0xff]
  %v7317 = vld [vmem:[%s3 + $0x140] sm:$0xff]
  %v7318 = vld [vmem:[%s3 + $0x148] sm:$0xff]
  %v7319 = vld [vmem:[%s3 + $0x150] sm:$0xff]
  %v7320 = vld [vmem:[%s3 + $0x158] sm:$0xff]
  %v7321 = vld [vmem:[%s3 + $0x160] sm:$0xff]
  %v7322 = vld [vmem:[%s3 + $0x168] sm:$0xff]
  %v7323 = vld [vmem:[%s3 + $0x170] sm:$0xff]
  %v7324 = vld [vmem:[%s3 + $0x178] sm:$0xff]
  %v7325 = vld [vmem:[%s3 + $0x180] sm:$0xff]
  %v7326 = vld [vmem:[%s3 + $0x188] sm:$0xff]
  %v7327 = vld [vmem:[%s3 + $0x190] sm:$0xff]
  %v7328 = vld [vmem:[%s3 + $0x198] sm:$0xff]
  %v7329 = vld [vmem:[%s3 + $0x1a0] sm:$0xff]
  %v7330 = vld [vmem:[%s3 + $0x1a8] sm:$0xff]
  %v7331 = vld [vmem:[%s3 + $0x1b0] sm:$0xff]
  %v7332 = vld [vmem:[%s3 + $0x1b8] sm:$0xff]
  %v7333 = vld [vmem:[%s3 + $0x1c0] sm:$0xff]
  %v7334 = vld [vmem:[%s3 + $0x1c8] sm:$0xff]
  %v7335 = vld [vmem:[%s3 + $0x1d0] sm:$0xff]
  %v7336 = vld [vmem:[%s3 + $0x1d8] sm:$0xff]
  %v7337 = vld [vmem:[%s3 + $0x1e0] sm:$0xff]
  %v7338 = vld [vmem:[%s3 + $0x1e8] sm:$0xff]
  %v7339 = vld [vmem:[%s3 + $0x1f0] sm:$0xff]
  %v7340 = vld [vmem:[%s3 + $0x1f8] sm:$0xff]
  %v7341 = vld [vmem:[%s3 + $0x200] sm:$0xff]
  %v7342 = vld [vmem:[%s3 + $0x208] sm:$0xff]
  %v7343 = vld [vmem:[%s3 + $0x210] sm:$0xff]
  %v7344 = vld [vmem:[%s3 + $0x218] sm:$0xff]
  %v7345 = vld [vmem:[%s3 + $0x220] sm:$0xff]
  %v7346 = vld [vmem:[%s3 + $0x228] sm:$0xff]
  %v7347 = vld [vmem:[%s3 + $0x230] sm:$0xff]
  %v7348 = vld [vmem:[%s3 + $0x238] sm:$0xff]
  %v7349 = vld [vmem:[%s3 + $0x240] sm:$0xff]
  %v7350 = vld [vmem:[%s3 + $0x248] sm:$0xff]
  %v7351 = vld [vmem:[%s3 + $0x250] sm:$0xff]
  %v7352 = vld [vmem:[%s3 + $0x258] sm:$0xff]
  %v7353 = vld [vmem:[%s3 + $0x260] sm:$0xff]
  %v7354 = vld [vmem:[%s3 + $0x268] sm:$0xff]
  %v7355 = vld [vmem:[%s3 + $0x270] sm:$0xff]
  %v7356 = vld [vmem:[%s3 + $0x278] sm:$0xff]
  %v7357 = vld [vmem:[%s3 + $0x280] sm:$0xff]
  %v7358 = vld [vmem:[%s3 + $0x288] sm:$0xff]
  %v7359 = vld [vmem:[%s3 + $0x290] sm:$0xff]
  %v7360 = vld [vmem:[%s3 + $0x298] sm:$0xff]
  %v7361 = vld [vmem:[%s3 + $0x2a0] sm:$0xff]
  %v7362 = vld [vmem:[%s3 + $0x2a8] sm:$0xff]
  %v7363 = vld [vmem:[%s3 + $0x2b0] sm:$0xff]
  %v7364 = vld [vmem:[%s3 + $0x2b8] sm:$0xff]
  %v7365 = vld [vmem:[%s3 + $0x2c0] sm:$0xff]
  %v7366 = vld [vmem:[%s3 + $0x2c8] sm:$0xff]
  %v7367 = vld [vmem:[%s3 + $0x2d0] sm:$0xff]
  %v7368 = vld [vmem:[%s3 + $0x2d8] sm:$0xff]
  %v7369 = vld [vmem:[%s3 + $0x2e0] sm:$0xff]
  %v7370 = vld [vmem:[%s3 + $0x2e8] sm:$0xff]
  %v7371 = vld [vmem:[%s3 + $0x2f0] sm:$0xff]
  %v7372 = vld [vmem:[%s3 + $0x2f8] sm:$0xff]
  %v7373 = vld [vmem:[%s3 + $0x300] sm:$0xff]
  %v7374 = vld [vmem:[%s3 + $0x308] sm:$0xff]
  %v7375 = vld [vmem:[%s3 + $0x310] sm:$0xff]
  %v7376 = vld [vmem:[%s3 + $0x318] sm:$0xff]
  %v7377 = vld [vmem:[%s3 + $0x320] sm:$0xff]
  %v7378 = vld [vmem:[%s3 + $0x328] sm:$0xff]
  %v7379 = vld [vmem:[%s3 + $0x330] sm:$0xff]
  %v7380 = vld [vmem:[%s3 + $0x338] sm:$0xff]
  %v7381 = vld [vmem:[%s3 + $0x340] sm:$0xff]
  %v7382 = vld [vmem:[%s3 + $0x348] sm:$0xff]
  %v7383 = vld [vmem:[%s3 + $0x350] sm:$0xff]
  %v7384 = vld [vmem:[%s3 + $0x358] sm:$0xff]
  %v7385 = vld [vmem:[%s3 + $0x360] sm:$0xff]
  %v7386 = vld [vmem:[%s3 + $0x368] sm:$0xff]
  %v7387 = vld [vmem:[%s3 + $0x370] sm:$0xff]
  %v7388 = vld [vmem:[%s3 + $0x378] sm:$0xff]
  %v7389 = vld [vmem:[%s3 + $0x380] sm:$0xff]
  %v7390 = vld [vmem:[%s3 + $0x388] sm:$0xff]
  %v7391 = vld [vmem:[%s3 + $0x390] sm:$0xff]
  %v7392 = vld [vmem:[%s3 + $0x398] sm:$0xff]
  %v7393 = vld [vmem:[%s3 + $0x3a0] sm:$0xff]
  %v7394 = vld [vmem:[%s3 + $0x3a8] sm:$0xff]
  %v7395 = vld [vmem:[%s3 + $0x3b0] sm:$0xff]
  %v7396 = vld [vmem:[%s3 + $0x3b8] sm:$0xff]
  %v7397 = vld [vmem:[%s3 + $0x3c0] sm:$0xff]
  %v7398 = vld [vmem:[%s3 + $0x3c8] sm:$0xff]
  %v7399 = vld [vmem:[%s3 + $0x3d0] sm:$0xff]
  %v7400 = vld [vmem:[%s3 + $0x3d8] sm:$0xff]
  %v7401 = vld [vmem:[%s3 + $0x3e0] sm:$0xff]
  %v7402 = vld [vmem:[%s3 + $0x3e8] sm:$0xff]
  %v7403 = vld [vmem:[%s3 + $0x3f0] sm:$0xff]
  %v7404 = vld [vmem:[%s3 + $0x3f8] sm:$0xff]
  %v7405 = vld [vmem:[%s3 + $0x400] sm:$0xff]
  %v7406 = vld [vmem:[%s3 + $0x408] sm:$0xff]
  %v7407 = vld [vmem:[%s3 + $0x410] sm:$0xff]
  %v7408 = vld [vmem:[%s3 + $0x418] sm:$0xff]
  %v7409 = vld [vmem:[%s3 + $0x420] sm:$0xff]
  %v7410 = vld [vmem:[%s3 + $0x428] sm:$0xff]
  %v7411 = vld [vmem:[%s3 + $0x430] sm:$0xff]
  %v7412 = vld [vmem:[%s3 + $0x438] sm:$0xff]
  %v7413 = vld [vmem:[%s3 + $0x440] sm:$0xff]
  %v7414 = vld [vmem:[%s3 + $0x448] sm:$0xff]
  %v7415 = vld [vmem:[%s3 + $0x450] sm:$0xff]
  %v7416 = vld [vmem:[%s3 + $0x458] sm:$0xff]
  %v7417 = vld [vmem:[%s3 + $0x460] sm:$0xff]
  %v7418 = vld [vmem:[%s3 + $0x468] sm:$0xff]
  %v7419 = vld [vmem:[%s3 + $0x470] sm:$0xff]
  %v7420 = vld [vmem:[%s3 + $0x478] sm:$0xff]
  %v7421 = vld [vmem:[%s3 + $0x480] sm:$0xff]
  %v7422 = vld [vmem:[%s3 + $0x488] sm:$0xff]
  %v7423 = vld [vmem:[%s3 + $0x490] sm:$0xff]
  %v7424 = vld [vmem:[%s3 + $0x498] sm:$0xff]
  %v7425 = vld [vmem:[%s3 + $0x4a0] sm:$0xff]
  %v7426 = vld [vmem:[%s3 + $0x4a8] sm:$0xff]
  %v7427 = vld [vmem:[%s3 + $0x4b0] sm:$0xff]
  %v7428 = vld [vmem:[%s3 + $0x4b8] sm:$0xff]
  %v7429 = vld [vmem:[%s3 + $0x4c0] sm:$0xff]
  %v7430 = vld [vmem:[%s3 + $0x4c8] sm:$0xff]
  %v7431 = vld [vmem:[%s3 + $0x4d0] sm:$0xff]
  %v7432 = vld [vmem:[%s3 + $0x4d8] sm:$0xff]
  %v7433 = vld [vmem:[%s3 + $0x4e0] sm:$0xff]
  %v7434 = vld [vmem:[%s3 + $0x4e8] sm:$0xff]
  %v7435 = vld [vmem:[%s3 + $0x4f0] sm:$0xff]
  %v7436 = vld [vmem:[%s3 + $0x4f8] sm:$0xff]
  %v7437 = vld [vmem:[%s3 + $0x500] sm:$0xff]
  %v7438 = vld [vmem:[%s3 + $0x508] sm:$0xff]
  %v7439 = vld [vmem:[%s3 + $0x510] sm:$0xff]
  %v7440 = vld [vmem:[%s3 + $0x518] sm:$0xff]
  %v7441 = vld [vmem:[%s3 + $0x520] sm:$0xff]
  %v7442 = vld [vmem:[%s3 + $0x528] sm:$0xff]
  %v7443 = vld [vmem:[%s3 + $0x530] sm:$0xff]
  %v7444 = vld [vmem:[%s3 + $0x538] sm:$0xff]
  %v7445 = vld [vmem:[%s3 + $0x540] sm:$0xff]
  %v7446 = vld [vmem:[%s3 + $0x548] sm:$0xff]
  %v7447 = vld [vmem:[%s3 + $0x550] sm:$0xff]
  %v7448 = vld [vmem:[%s3 + $0x558] sm:$0xff]
  %v7449 = vld [vmem:[%s3 + $0x560] sm:$0xff]
  %v7450 = vld [vmem:[%s3 + $0x568] sm:$0xff]
  %v7451 = vld [vmem:[%s3 + $0x570] sm:$0xff]
  %v7452 = vld [vmem:[%s3 + $0x578] sm:$0xff]
  %v7453 = vld [vmem:[%s3 + $0x580] sm:$0xff]
  %v7454 = vld [vmem:[%s3 + $0x588] sm:$0xff]
  %v7455 = vld [vmem:[%s3 + $0x590] sm:$0xff]
  %v7456 = vld [vmem:[%s3 + $0x598] sm:$0xff]
  %v7457 = vld [vmem:[%s3 + $0x5a0] sm:$0xff]
  %v7458 = vld [vmem:[%s3 + $0x5a8] sm:$0xff]
  %v7459 = vld [vmem:[%s3 + $0x5b0] sm:$0xff]
  %v7460 = vld [vmem:[%s3 + $0x5b8] sm:$0xff]
  %v7461 = vld [vmem:[%s3 + $0x5c0] sm:$0xff]
  %v7462 = vld [vmem:[%s3 + $0x5c8] sm:$0xff]
  %v7463 = vld [vmem:[%s3 + $0x5d0] sm:$0xff]
  %v7464 = vld [vmem:[%s3 + $0x5d8] sm:$0xff]
  %v7465 = vld [vmem:[%s3 + $0x5e0] sm:$0xff]
  %v7466 = vld [vmem:[%s3 + $0x5e8] sm:$0xff]
  %v7467 = vld [vmem:[%s3 + $0x5f0] sm:$0xff]
  %v7468 = vld [vmem:[%s3 + $0x5f8] sm:$0xff]
  %v7469 = vld [vmem:[%s3 + $0x600] sm:$0xff]
  %v7470 = vld [vmem:[%s3 + $0x608] sm:$0xff]
  %v7471 = vld [vmem:[%s3 + $0x610] sm:$0xff]
  %v7472 = vld [vmem:[%s3 + $0x618] sm:$0xff]
  %v7473 = vld [vmem:[%s3 + $0x620] sm:$0xff]
  %v7474 = vld [vmem:[%s3 + $0x628] sm:$0xff]
  %v7475 = vld [vmem:[%s3 + $0x630] sm:$0xff]
  %v7476 = vld [vmem:[%s3 + $0x638] sm:$0xff]
  %v7477 = vld [vmem:[%s3 + $0x640] sm:$0xff]
  %v7478 = vld [vmem:[%s3 + $0x648] sm:$0xff]
  %v7479 = vld [vmem:[%s3 + $0x650] sm:$0xff]
  %v7480 = vld [vmem:[%s3 + $0x658] sm:$0xff]
  %v7481 = vld [vmem:[%s3 + $0x660] sm:$0xff]
  %v7482 = vld [vmem:[%s3 + $0x668] sm:$0xff]
  %v7483 = vld [vmem:[%s3 + $0x670] sm:$0xff]
  %v7484 = vld [vmem:[%s3 + $0x678] sm:$0xff]
  %v7485 = vld [vmem:[%s3 + $0x680] sm:$0xff]
  %v7486 = vld [vmem:[%s3 + $0x688] sm:$0xff]
  %v7487 = vld [vmem:[%s3 + $0x690] sm:$0xff]
  %v7488 = vld [vmem:[%s3 + $0x698] sm:$0xff]
  %v7489 = vld [vmem:[%s3 + $0x6a0] sm:$0xff]
  %v7490 = vld [vmem:[%s3 + $0x6a8] sm:$0xff]
  %v7491 = vld [vmem:[%s3 + $0x6b0] sm:$0xff]
  %v7492 = vld [vmem:[%s3 + $0x6b8] sm:$0xff]
  %v7493 = vld [vmem:[%s3 + $0x6c0] sm:$0xff]
  %v7494 = vld [vmem:[%s3 + $0x6c8] sm:$0xff]
  %v7495 = vld [vmem:[%s3 + $0x6d0] sm:$0xff]
  %v7496 = vld [vmem:[%s3 + $0x6d8] sm:$0xff]
  %v7497 = vld [vmem:[%s3 + $0x6e0] sm:$0xff]
  %v7498 = vld [vmem:[%s3 + $0x6e8] sm:$0xff]
  %v7499 = vld [vmem:[%s3 + $0x6f0] sm:$0xff]
  %v7500 = vld [vmem:[%s3 + $0x6f8] sm:$0xff]
  %v7501 = vld [vmem:[%s3 + $0x700] sm:$0xff]
  %v7502 = vld [vmem:[%s3 + $0x708] sm:$0xff]
  %v7503 = vld [vmem:[%s3 + $0x710] sm:$0xff]
  %v7504 = vld [vmem:[%s3 + $0x718] sm:$0xff]
  %v7505 = vld [vmem:[%s3 + $0x720] sm:$0xff]
  %v7506 = vld [vmem:[%s3 + $0x728] sm:$0xff]
  %v7507 = vld [vmem:[%s3 + $0x730] sm:$0xff]
  %v7508 = vld [vmem:[%s3 + $0x738] sm:$0xff]
  %v7509 = vld [vmem:[%s3 + $0x740] sm:$0xff]
  %v7510 = vld [vmem:[%s3 + $0x748] sm:$0xff]
  %v7511 = vld [vmem:[%s3 + $0x750] sm:$0xff]
  %v7512 = vld [vmem:[%s3 + $0x758] sm:$0xff]
  %v7513 = vld [vmem:[%s3 + $0x760] sm:$0xff]
  %v7514 = vld [vmem:[%s3 + $0x768] sm:$0xff]
  %v7515 = vld [vmem:[%s3 + $0x770] sm:$0xff]
  %v7516 = vld [vmem:[%s3 + $0x778] sm:$0xff]
  %v7517 = vld [vmem:[%s3 + $0x780] sm:$0xff]
  %v7518 = vld [vmem:[%s3 + $0x788] sm:$0xff]
  %v7519 = vld [vmem:[%s3 + $0x790] sm:$0xff]
  %v7520 = vld [vmem:[%s3 + $0x798] sm:$0xff]
  %v7521 = vld [vmem:[%s3 + $0x7a0] sm:$0xff]
  %v7522 = vld [vmem:[%s3 + $0x7a8] sm:$0xff]
  %v7523 = vld [vmem:[%s3 + $0x7b0] sm:$0xff]
  %v7524 = vld [vmem:[%s3 + $0x7b8] sm:$0xff]
  %v7525 = vld [vmem:[%s3 + $0x7c0] sm:$0xff]
  %v7526 = vld [vmem:[%s3 + $0x7c8] sm:$0xff]
  %v7527 = vld [vmem:[%s3 + $0x7d0] sm:$0xff]
  %v7528 = vld [vmem:[%s3 + $0x7d8] sm:$0xff]
  %v7529 = vld [vmem:[%s3 + $0x7e0] sm:$0xff]
  %v7530 = vld [vmem:[%s3 + $0x7e8] sm:$0xff]
  %v7531 = vld [vmem:[%s3 + $0x7f0] sm:$0xff]
  %v7532 = vld [vmem:[%s3 + $0x7f8] sm:$0xff]
  %v7533 = vld [vmem:[%s3 + $0x800] sm:$0xff]
  %v7534 = vld [vmem:[%s3 + $0x808] sm:$0xff]
  %v7535 = vld [vmem:[%s3 + $0x810] sm:$0xff]
  %v7536 = vld [vmem:[%s3 + $0x818] sm:$0xff]
  %v7537 = vld [vmem:[%s3 + $0x820] sm:$0xff]
  %v7538 = vld [vmem:[%s3 + $0x828] sm:$0xff]
  %v7539 = vld [vmem:[%s3 + $0x830] sm:$0xff]
  %v7540 = vld [vmem:[%s3 + $0x838] sm:$0xff]
  %v7541 = vld [vmem:[%s3 + $0x840] sm:$0xff]
  %v7542 = vld [vmem:[%s3 + $0x848] sm:$0xff]
  %v7543 = vld [vmem:[%s3 + $0x850] sm:$0xff]
  %v7544 = vld [vmem:[%s3 + $0x858] sm:$0xff]
  %v7545 = vld [vmem:[%s3 + $0x860] sm:$0xff]
  %v7546 = vld [vmem:[%s3 + $0x868] sm:$0xff]
  %v7547 = vld [vmem:[%s3 + $0x870] sm:$0xff]
  %v7548 = vld [vmem:[%s3 + $0x878] sm:$0xff]
  %v7549 = vld [vmem:[%s3 + $0x880] sm:$0xff]
  %v7550 = vld [vmem:[%s3 + $0x888] sm:$0xff]
  %v7551 = vld [vmem:[%s3 + $0x890] sm:$0xff]
  %v7552 = vld [vmem:[%s3 + $0x898] sm:$0xff]
  %v7553 = vld [vmem:[%s3 + $0x8a0] sm:$0xff]
  %v7554 = vld [vmem:[%s3 + $0x8a8] sm:$0xff]
  %v7555 = vld [vmem:[%s3 + $0x8b0] sm:$0xff]
  %v7556 = vld [vmem:[%s3 + $0x8b8] sm:$0xff]
  %v7557 = vld [vmem:[%s3 + $0x8c0] sm:$0xff]
  %v7558 = vld [vmem:[%s3 + $0x8c8] sm:$0xff]
  %v7559 = vld [vmem:[%s3 + $0x8d0] sm:$0xff]
  %v7560 = vld [vmem:[%s3 + $0x8d8] sm:$0xff]
  %v7561 = vld [vmem:[%s3 + $0x8e0] sm:$0xff]
  %v7562 = vld [vmem:[%s3 + $0x8e8] sm:$0xff]
  %v7563 = vld [vmem:[%s3 + $0x8f0] sm:$0xff]
  %v7564 = vld [vmem:[%s3 + $0x8f8] sm:$0xff]
  %v7565 = vld [vmem:[%s3 + $0x900] sm:$0xff]
  %v7566 = vld [vmem:[%s3 + $0x908] sm:$0xff]
  %v7567 = vld [vmem:[%s3 + $0x910] sm:$0xff]
  %v7568 = vld [vmem:[%s3 + $0x918] sm:$0xff]
  %v7569 = vld [vmem:[%s3 + $0x920] sm:$0xff]
  %v7570 = vld [vmem:[%s3 + $0x928] sm:$0xff]
  %v7571 = vld [vmem:[%s3 + $0x930] sm:$0xff]
  %v7572 = vld [vmem:[%s3 + $0x938] sm:$0xff]
  %v7573 = vld [vmem:[%s3 + $0x940] sm:$0xff]
  %v7574 = vld [vmem:[%s3 + $0x948] sm:$0xff]
  %v7575 = vld [vmem:[%s3 + $0x950] sm:$0xff]
  %v7576 = vld [vmem:[%s3 + $0x958] sm:$0xff]
  %v7577 = vld [vmem:[%s3 + $0x960] sm:$0xff]
  %v7578 = vld [vmem:[%s3 + $0x968] sm:$0xff]
  %v7579 = vld [vmem:[%s3 + $0x970] sm:$0xff]
  %v7580 = vld [vmem:[%s3 + $0x978] sm:$0xff]
  %v7581 = vld [vmem:[%s3 + $0x980] sm:$0xff]
  %v7582 = vld [vmem:[%s3 + $0x988] sm:$0xff]
  %v7583 = vld [vmem:[%s3 + $0x990] sm:$0xff]
  %v7584 = vld [vmem:[%s3 + $0x998] sm:$0xff]
  %v7585 = vld [vmem:[%s3 + $0x9a0] sm:$0xff]
  %v7586 = vld [vmem:[%s3 + $0x9a8] sm:$0xff]
  %v7587 = vld [vmem:[%s3 + $0x9b0] sm:$0xff]
  %v7588 = vld [vmem:[%s3 + $0x9b8] sm:$0xff]
  %v7589 = vld [vmem:[%s3 + $0x9c0] sm:$0xff]
  %v7590 = vld [vmem:[%s3 + $0x9c8] sm:$0xff]
  %v7591 = vld [vmem:[%s3 + $0x9d0] sm:$0xff]
  %v7592 = vld [vmem:[%s3 + $0x9d8] sm:$0xff]
  %v7593 = vld [vmem:[%s3 + $0x9e0] sm:$0xff]
  %v7594 = vld [vmem:[%s3 + $0x9e8] sm:$0xff]
  %v7595 = vld [vmem:[%s3 + $0x9f0] sm:$0xff]
  %v7596 = vld [vmem:[%s3 + $0x9f8] sm:$0xff]
  %v7597 = vld [vmem:[%s3 + $0xa00] sm:$0xff]
  %v7598 = vld [vmem:[%s3 + $0xa08] sm:$0xff]
  %v7599 = vld [vmem:[%s3 + $0xa10] sm:$0xff]
  %v7600 = vld [vmem:[%s3 + $0xa18] sm:$0xff]
  %v7601 = vld [vmem:[%s3 + $0xa20] sm:$0xff]
  %v7602 = vld [vmem:[%s3 + $0xa28] sm:$0xff]
  %v7603 = vld [vmem:[%s3 + $0xa30] sm:$0xff]
  %v7604 = vld [vmem:[%s3 + $0xa38] sm:$0xff]
  %v7605 = vld [vmem:[%s3 + $0xa40] sm:$0xff]
  %v7606 = vld [vmem:[%s3 + $0xa48] sm:$0xff]
  %v7607 = vld [vmem:[%s3 + $0xa50] sm:$0xff]
  %v7608 = vld [vmem:[%s3 + $0xa58] sm:$0xff]
  %v7609 = vld [vmem:[%s3 + $0xa60] sm:$0xff]
  %v7610 = vld [vmem:[%s3 + $0xa68] sm:$0xff]
  %v7611 = vld [vmem:[%s3 + $0xa70] sm:$0xff]
  %v7612 = vld [vmem:[%s3 + $0xa78] sm:$0xff]
  %v7613 = vld [vmem:[%s3 + $0xa80] sm:$0xff]
  %v7614 = vld [vmem:[%s3 + $0xa88] sm:$0xff]
  %v7615 = vld [vmem:[%s3 + $0xa90] sm:$0xff]
  %v7616 = vld [vmem:[%s3 + $0xa98] sm:$0xff]
  %v7617 = vld [vmem:[%s3 + $0xaa0] sm:$0xff]
  %v7618 = vld [vmem:[%s3 + $0xaa8] sm:$0xff]
  %v7619 = vld [vmem:[%s3 + $0xab0] sm:$0xff]
  %v7620 = vld [vmem:[%s3 + $0xab8] sm:$0xff]
  %v7621 = vld [vmem:[%s3 + $0xac0] sm:$0xff]
  %v7622 = vld [vmem:[%s3 + $0xac8] sm:$0xff]
  %v7623 = vld [vmem:[%s3 + $0xad0] sm:$0xff]
  %v7624 = vld [vmem:[%s3 + $0xad8] sm:$0xff]
  %v7625 = vld [vmem:[%s3 + $0xae0] sm:$0xff]
  %v7626 = vld [vmem:[%s3 + $0xae8] sm:$0xff]
  %v7627 = vld [vmem:[%s3 + $0xaf0] sm:$0xff]
  %v7628 = vld [vmem:[%s3 + $0xaf8] sm:$0xff]
  %v7629 = vld [vmem:[%s3 + $0xb00] sm:$0xff]
  %v7630 = vld [vmem:[%s3 + $0xb08] sm:$0xff]
  %v7631 = vld [vmem:[%s3 + $0xb10] sm:$0xff]
  %v7632 = vld [vmem:[%s3 + $0xb18] sm:$0xff]
  %v7633 = vld [vmem:[%s3 + $0xb20] sm:$0xff]
  %v7634 = vld [vmem:[%s3 + $0xb28] sm:$0xff]
  %v7635 = vld [vmem:[%s3 + $0xb30] sm:$0xff]
  %v7636 = vld [vmem:[%s3 + $0xb38] sm:$0xff]
  %v7637 = vld [vmem:[%s3 + $0xb40] sm:$0xff]
  %v7638 = vld [vmem:[%s3 + $0xb48] sm:$0xff]
  %v7639 = vld [vmem:[%s3 + $0xb50] sm:$0xff]
  %v7640 = vld [vmem:[%s3 + $0xb58] sm:$0xff]
  %v7641 = vld [vmem:[%s3 + $0xb60] sm:$0xff]
  %v7642 = vld [vmem:[%s3 + $0xb68] sm:$0xff]
  %v7643 = vld [vmem:[%s3 + $0xb70] sm:$0xff]
  %v7644 = vld [vmem:[%s3 + $0xb78] sm:$0xff]
  %v7645 = vld [vmem:[%s3 + $0xb80] sm:$0xff]
  %v7646 = vld [vmem:[%s3 + $0xb88] sm:$0xff]
  %v7647 = vld [vmem:[%s3 + $0xb90] sm:$0xff]
  %v7648 = vld [vmem:[%s3 + $0xb98] sm:$0xff]
  %v7649 = vld [vmem:[%s3 + $0xba0] sm:$0xff]
  %v7650 = vld [vmem:[%s3 + $0xba8] sm:$0xff]
  %v7651 = vld [vmem:[%s3 + $0xbb0] sm:$0xff]
  %v7652 = vld [vmem:[%s3 + $0xbb8] sm:$0xff]
  %v7653 = vld [vmem:[%s3 + $0xbc0] sm:$0xff]
  %v7654 = vld [vmem:[%s3 + $0xbc8] sm:$0xff]
  %v7655 = vld [vmem:[%s3 + $0xbd0] sm:$0xff]
  %v7656 = vld [vmem:[%s3 + $0xbd8] sm:$0xff]
  %v7657 = vld [vmem:[%s3 + $0xbe0] sm:$0xff]
  %v7658 = vld [vmem:[%s3 + $0xbe8] sm:$0xff]
  %v7659 = vld [vmem:[%s3 + $0xbf0] sm:$0xff]
  %v7660 = vld [vmem:[%s3 + $0xbf8] sm:$0xff]
  %v7661 = vld [vmem:[%s3 + $0xc00] sm:$0xff]
  %v7662 = vld [vmem:[%s3 + $0xc08] sm:$0xff]
  %v7663 = vld [vmem:[%s3 + $0xc10] sm:$0xff]
  %v7664 = vld [vmem:[%s3 + $0xc18] sm:$0xff]
  %v7665 = vld [vmem:[%s3 + $0xc20] sm:$0xff]
  %v7666 = vld [vmem:[%s3 + $0xc28] sm:$0xff]
  %v7667 = vld [vmem:[%s3 + $0xc30] sm:$0xff]
  %v7668 = vld [vmem:[%s3 + $0xc38] sm:$0xff]
  %v7669 = vld [vmem:[%s3 + $0xc40] sm:$0xff]
  %v7670 = vld [vmem:[%s3 + $0xc48] sm:$0xff]
  %v7671 = vld [vmem:[%s3 + $0xc50] sm:$0xff]
  %v7672 = vld [vmem:[%s3 + $0xc58] sm:$0xff]
  %v7673 = vld [vmem:[%s3 + $0xc60] sm:$0xff]
  %v7674 = vld [vmem:[%s3 + $0xc68] sm:$0xff]
  %v7675 = vld [vmem:[%s3 + $0xc70] sm:$0xff]
  %v7676 = vld [vmem:[%s3 + $0xc78] sm:$0xff]
  %v7677 = vld [vmem:[%s3 + $0xc80] sm:$0xff]
  %v7678 = vld [vmem:[%s3 + $0xc88] sm:$0xff]
  %v7679 = vld [vmem:[%s3 + $0xc90] sm:$0xff]
  %v7680 = vld [vmem:[%s3 + $0xc98] sm:$0xff]
  %v7681 = vld [vmem:[%s3 + $0xca0] sm:$0xff]
  %v7682 = vld [vmem:[%s3 + $0xca8] sm:$0xff]
  %v7683 = vld [vmem:[%s3 + $0xcb0] sm:$0xff]
  %v7684 = vld [vmem:[%s3 + $0xcb8] sm:$0xff]
  %v7685 = vld [vmem:[%s3 + $0xcc0] sm:$0xff]
  %v7686 = vld [vmem:[%s3 + $0xcc8] sm:$0xff]
  %v7687 = vld [vmem:[%s3 + $0xcd0] sm:$0xff]
  %v7688 = vld [vmem:[%s3 + $0xcd8] sm:$0xff]
  %v7689 = vld [vmem:[%s3 + $0xce0] sm:$0xff]
  %v7690 = vld [vmem:[%s3 + $0xce8] sm:$0xff]
  %v7691 = vld [vmem:[%s3 + $0xcf0] sm:$0xff]
  %v7692 = vld [vmem:[%s3 + $0xcf8] sm:$0xff]
  %v7693 = vld [vmem:[%s3 + $0xd00] sm:$0xff]
  %v7694 = vld [vmem:[%s3 + $0xd08] sm:$0xff]
  %v7695 = vld [vmem:[%s3 + $0xd10] sm:$0xff]
  %v7696 = vld [vmem:[%s3 + $0xd18] sm:$0xff]
  %v7697 = vld [vmem:[%s3 + $0xd20] sm:$0xff]
  %v7698 = vld [vmem:[%s3 + $0xd28] sm:$0xff]
  %v7699 = vld [vmem:[%s3 + $0xd30] sm:$0xff]
  %v7700 = vld [vmem:[%s3 + $0xd38] sm:$0xff]
  %v7701 = vld [vmem:[%s3 + $0xd40] sm:$0xff]
  %v7702 = vld [vmem:[%s3 + $0xd48] sm:$0xff]
  %v7703 = vld [vmem:[%s3 + $0xd50] sm:$0xff]
  %v7704 = vld [vmem:[%s3 + $0xd58] sm:$0xff]
  %v7705 = vld [vmem:[%s3 + $0xd60] sm:$0xff]
  %v7706 = vld [vmem:[%s3 + $0xd68] sm:$0xff]
  %v7707 = vld [vmem:[%s3 + $0xd70] sm:$0xff]
  %v7708 = vld [vmem:[%s3 + $0xd78] sm:$0xff]
  %v7709 = vld [vmem:[%s3 + $0xd80] sm:$0xff]
  %v7710 = vld [vmem:[%s3 + $0xd88] sm:$0xff]
  %v7711 = vld [vmem:[%s3 + $0xd90] sm:$0xff]
  %v7712 = vld [vmem:[%s3 + $0xd98] sm:$0xff]
  %v7713 = vld [vmem:[%s3 + $0xda0] sm:$0xff]
  %v7714 = vld [vmem:[%s3 + $0xda8] sm:$0xff]
  %v7715 = vld [vmem:[%s3 + $0xdb0] sm:$0xff]
  %v7716 = vld [vmem:[%s3 + $0xdb8] sm:$0xff]
  %v7717 = vld [vmem:[%s3 + $0xdc0] sm:$0xff]
  %v7718 = vld [vmem:[%s3 + $0xdc8] sm:$0xff]
  %v7719 = vld [vmem:[%s3 + $0xdd0] sm:$0xff]
  %v7720 = vld [vmem:[%s3 + $0xdd8] sm:$0xff]
  %v7721 = vld [vmem:[%s3 + $0xde0] sm:$0xff]
  %v7722 = vld [vmem:[%s3 + $0xde8] sm:$0xff]
  %v7723 = vld [vmem:[%s3 + $0xdf0] sm:$0xff]
  %v7724 = vld [vmem:[%s3 + $0xdf8] sm:$0xff]
  %v7725 = vld [vmem:[%s3 + $0xe00] sm:$0xff]
  %v7726 = vld [vmem:[%s3 + $0xe08] sm:$0xff]
  %v7727 = vld [vmem:[%s3 + $0xe10] sm:$0xff]
  %v7728 = vld [vmem:[%s3 + $0xe18] sm:$0xff]
  %v7729 = vld [vmem:[%s3 + $0xe20] sm:$0xff]
  %v7730 = vld [vmem:[%s3 + $0xe28] sm:$0xff]
  %v7731 = vld [vmem:[%s3 + $0xe30] sm:$0xff]
  %v7732 = vld [vmem:[%s3 + $0xe38] sm:$0xff]
  %v7733 = vld [vmem:[%s3 + $0xe40] sm:$0xff]
  %v7734 = vld [vmem:[%s3 + $0xe48] sm:$0xff]
  %v7735 = vld [vmem:[%s3 + $0xe50] sm:$0xff]
  %v7736 = vld [vmem:[%s3 + $0xe58] sm:$0xff]
  %v7737 = vld [vmem:[%s3 + $0xe60] sm:$0xff]
  %v7738 = vld [vmem:[%s3 + $0xe68] sm:$0xff]
  %v7739 = vld [vmem:[%s3 + $0xe70] sm:$0xff]
  %v7740 = vld [vmem:[%s3 + $0xe78] sm:$0xff]
  %v7741 = vld [vmem:[%s3 + $0xe80] sm:$0xff]
  %v7742 = vld [vmem:[%s3 + $0xe88] sm:$0xff]
  %v7743 = vld [vmem:[%s3 + $0xe90] sm:$0xff]
  %v7744 = vld [vmem:[%s3 + $0xe98] sm:$0xff]
  %v7745 = vld [vmem:[%s3 + $0xea0] sm:$0xff]
  %v7746 = vld [vmem:[%s3 + $0xea8] sm:$0xff]
  %v7747 = vld [vmem:[%s3 + $0xeb0] sm:$0xff]
  %v7748 = vld [vmem:[%s3 + $0xeb8] sm:$0xff]
  %v7749 = vld [vmem:[%s3 + $0xec0] sm:$0xff]
  %v7750 = vld [vmem:[%s3 + $0xec8] sm:$0xff]
  %v7751 = vld [vmem:[%s3 + $0xed0] sm:$0xff]
  %v7752 = vld [vmem:[%s3 + $0xed8] sm:$0xff]
  %v7753 = vld [vmem:[%s3 + $0xee0] sm:$0xff]
  %v7754 = vld [vmem:[%s3 + $0xee8] sm:$0xff]
  %v7755 = vld [vmem:[%s3 + $0xef0] sm:$0xff]
  %v7756 = vld [vmem:[%s3 + $0xef8] sm:$0xff]
  %v7757 = vld [vmem:[%s3 + $0xf00] sm:$0xff]
  %v7758 = vld [vmem:[%s3 + $0xf08] sm:$0xff]
  %v7759 = vld [vmem:[%s3 + $0xf10] sm:$0xff]
  %v7760 = vld [vmem:[%s3 + $0xf18] sm:$0xff]
  %v7761 = vld [vmem:[%s3 + $0xf20] sm:$0xff]
  %v7762 = vld [vmem:[%s3 + $0xf28] sm:$0xff]
  %v7763 = vld [vmem:[%s3 + $0xf30] sm:$0xff]
  %v7764 = vld [vmem:[%s3 + $0xf38] sm:$0xff]
  %v7765 = vld [vmem:[%s3 + $0xf40] sm:$0xff]
  %v7766 = vld [vmem:[%s3 + $0xf48] sm:$0xff]
  %v7767 = vld [vmem:[%s3 + $0xf50] sm:$0xff]
  %v7768 = vld [vmem:[%s3 + $0xf58] sm:$0xff]
  %v7769 = vld [vmem:[%s3 + $0xf60] sm:$0xff]
  %v7770 = vld [vmem:[%s3 + $0xf68] sm:$0xff]
  %v7771 = vld [vmem:[%s3 + $0xf70] sm:$0xff]
  %v7772 = vld [vmem:[%s3 + $0xf78] sm:$0xff]
  %v7773 = vld [vmem:[%s3 + $0xf80] sm:$0xff]
  %v7774 = vld [vmem:[%s3 + $0xf88] sm:$0xff]
  %v7775 = vld [vmem:[%s3 + $0xf90] sm:$0xff]
  %v7776 = vld [vmem:[%s3 + $0xf98] sm:$0xff]
  %v7777 = vld [vmem:[%s3 + $0xfa0] sm:$0xff]
  %v7778 = vld [vmem:[%s3 + $0xfa8] sm:$0xff]
  %v7779 = vld [vmem:[%s3 + $0xfb0] sm:$0xff]
  %v7780 = vld [vmem:[%s3 + $0xfb8] sm:$0xff]
  %v7781 = vld [vmem:[%s3 + $0xfc0] sm:$0xff]
  %v7782 = vld [vmem:[%s3 + $0xfc8] sm:$0xff]
  %v7783 = vld [vmem:[%s3 + $0xfd0] sm:$0xff]
  %v7784 = vld [vmem:[%s3 + $0xfd8] sm:$0xff]
  %v7785 = vld [vmem:[%s3 + $0xfe0] sm:$0xff]
  %v7786 = vld [vmem:[%s3 + $0xfe8] sm:$0xff]
  %v7787 = vld [vmem:[%s3 + $0xff0] sm:$0xff]
  %v7788 = vld [vmem:[%s3 + $0xff8] sm:$0xff]
  %v7789 = vld [vmem:[%s4] sm:$0xf]
  %v7791 = vperm.slane %v7789, 0
  %v7792 = vperm.slane %v7789, 1
  %v7793 = vperm.slane %v7789, 2
  %v7794 = vperm.slane %v7789, 3
  %7799 = vmatpush.msra.mxu0 %v7337
  %7800 = vmatpush.msra.mxu0 %v7333
  %7801 = vmatpush.msra.mxu0 %v7329
  %7802 = vmatpush.msra.mxu0 %v7325
  %7803 = vmatpush.msra.mxu0 %v7321
  %7804 = vmatpush.msra.mxu0 %v7317
  %7805 = vmatpush.msra.mxu0 %v7313
  %7806 = vmatpush.msra.mxu0 %v7309
  %7807 = vmatpush.msra.mxu0 %v7305
  %7808 = vmatpush.msra.mxu0 %v7301
  %7809 = vmatpush.msra.mxu0 %v7297
  %7810 = vmatpush.msra.mxu0 %v7293
  %7811 = vmatpush.msra.mxu0 %v7289
  %7812 = vmatpush.msra.mxu0 %v7285
  %7813 = vmatpush.msra.mxu0 %v7281
  %7814 = vmatpush.msra.mxu0 %v7277
  %7815 = vmatmul.f32.gmra.mxu0 %v7269
  %v7816 = vpop.f32.mrf.mxu0
  %v7817 = vadd.f32 %v7791, %v7816
  %7818 = vdwg.mxu0
  %7819 = vmatpush.msra.mxu0 %v7401
  %7820 = vmatpush.msra.mxu0 %v7397
  %7821 = vmatpush.msra.mxu0 %v7393
  %7822 = vmatpush.msra.mxu0 %v7389
  %7823 = vmatpush.msra.mxu0 %v7385
  %7824 = vmatpush.msra.mxu0 %v7381
  %7825 = vmatpush.msra.mxu0 %v7377
  %7826 = vmatpush.msra.mxu0 %v7373
  %7827 = vmatpush.msra.mxu0 %v7369
  %7828 = vmatpush.msra.mxu0 %v7365
  %7829 = vmatpush.msra.mxu0 %v7361
  %7830 = vmatpush.msra.mxu0 %v7357
  %7831 = vmatpush.msra.mxu0 %v7353
  %7832 = vmatpush.msra.mxu0 %v7349
  %7833 = vmatpush.msra.mxu0 %v7345
  %7834 = vmatpush.msra.mxu0 %v7341
  %7835 = vmatmul.f32.gmra.mxu0 %v7270
  %v7836 = vpop.f32.mrf.mxu0
  %v7837 = vadd.f32 %v7817, %v7836
  %7838 = vdwg.mxu0
  %7839 = vmatpush.msra.mxu0 %v7465
  %7840 = vmatpush.msra.mxu0 %v7461
  %7841 = vmatpush.msra.mxu0 %v7457
  %7842 = vmatpush.msra.mxu0 %v7453
  %7843 = vmatpush.msra.mxu0 %v7449
  %7844 = vmatpush.msra.mxu0 %v7445
  %7845 = vmatpush.msra.mxu0 %v7441
  %7846 = vmatpush.msra.mxu0 %v7437
  %7847 = vmatpush.msra.mxu0 %v7433
  %7848 = vmatpush.msra.mxu0 %v7429
  %7849 = vmatpush.msra.mxu0 %v7425
  %7850 = vmatpush.msra.mxu0 %v7421
  %7851 = vmatpush.msra.mxu0 %v7417
  %7852 = vmatpush.msra.mxu0 %v7413
  %7853 = vmatpush.msra.mxu0 %v7409
  %7854 = vmatpush.msra.mxu0 %v7405
  %7855 = vmatmul.f32.gmra.mxu0 %v7271
  %v7856 = vpop.f32.mrf.mxu0
  %v7857 = vadd.f32 %v7837, %v7856
  %7858 = vdwg.mxu0
  %7859 = vmatpush.msra.mxu0 %v7529
  %7860 = vmatpush.msra.mxu0 %v7525
  %7861 = vmatpush.msra.mxu0 %v7521
  %7862 = vmatpush.msra.mxu0 %v7517
  %7863 = vmatpush.msra.mxu0 %v7513
  %7864 = vmatpush.msra.mxu0 %v7509
  %7865 = vmatpush.msra.mxu0 %v7505
  %7866 = vmatpush.msra.mxu0 %v7501
  %7867 = vmatpush.msra.mxu0 %v7497
  %7868 = vmatpush.msra.mxu0 %v7493
  %7869 = vmatpush.msra.mxu0 %v7489
  %7870 = vmatpush.msra.mxu0 %v7485
  %7871 = vmatpush.msra.mxu0 %v7481
  %7872 = vmatpush.msra.mxu0 %v7477
  %7873 = vmatpush.msra.mxu0 %v7473
  %7874 = vmatpush.msra.mxu0 %v7469
  %7875 = vmatmul.f32.gmra.mxu0 %v7272
  %v7876 = vpop.f32.mrf.mxu0
  %v7877 = vadd.f32 %v7857, %v7876
  %7878 = vdwg.mxu0
  %7879 = vmatpush.msra.mxu0 %v7593
  %7880 = vmatpush.msra.mxu0 %v7589
  %7881 = vmatpush.msra.mxu0 %v7585
  %7882 = vmatpush.msra.mxu0 %v7581
  %7883 = vmatpush.msra.mxu0 %v7577
  %7884 = vmatpush.msra.mxu0 %v7573
  %7885 = vmatpush.msra.mxu0 %v7569
  %7886 = vmatpush.msra.mxu0 %v7565
  %7887 = vmatpush.msra.mxu0 %v7561
  %7888 = vmatpush.msra.mxu0 %v7557
  %7889 = vmatpush.msra.mxu0 %v7553
  %7890 = vmatpush.msra.mxu0 %v7549
  %7891 = vmatpush.msra.mxu0 %v7545
  %7892 = vmatpush.msra.mxu0 %v7541
  %7893 = vmatpush.msra.mxu0 %v7537
  %7894 = vmatpush.msra.mxu0 %v7533
  %7895 = vmatmul.f32.gmra.mxu0 %v7273
  %v7896 = vpop.f32.mrf.mxu0
  %v7897 = vadd.f32 %v7877, %v7896
  %7898 = vdwg.mxu0
  %7899 = vmatpush.msra.mxu0 %v7657
  %7900 = vmatpush.msra.mxu0 %v7653
  %7901 = vmatpush.msra.mxu0 %v7649
  %7902 = vmatpush.msra.mxu0 %v7645
  %7903 = vmatpush.msra.mxu0 %v7641
  %7904 = vmatpush.msra.mxu0 %v7637
  %7905 = vmatpush.msra.mxu0 %v7633
  %7906 = vmatpush.msra.mxu0 %v7629
  %7907 = vmatpush.msra.mxu0 %v7625
  %7908 = vmatpush.msra.mxu0 %v7621
  %7909 = vmatpush.msra.mxu0 %v7617
  %7910 = vmatpush.msra.mxu0 %v7613
  %7911 = vmatpush.msra.mxu0 %v7609
  %7912 = vmatpush.msra.mxu0 %v7605
  %7913 = vmatpush.msra.mxu0 %v7601
  %7914 = vmatpush.msra.mxu0 %v7597
  %7915 = vmatmul.f32.gmra.mxu0 %v7274
  %v7916 = vpop.f32.mrf.mxu0
  %v7917 = vadd.f32 %v7897, %v7916
  %7918 = vdwg.mxu0
  %7919 = vmatpush.msra.mxu0 %v7721
  %7920 = vmatpush.msra.mxu0 %v7717
  %7921 = vmatpush.msra.mxu0 %v7713
  %7922 = vmatpush.msra.mxu0 %v7709
  %7923 = vmatpush.msra.mxu0 %v7705
  %7924 = vmatpush.msra.mxu0 %v7701
  %7925 = vmatpush.msra.mxu0 %v7697
  %7926 = vmatpush.msra.mxu0 %v7693
  %7927 = vmatpush.msra.mxu0 %v7689
  %7928 = vmatpush.msra.mxu0 %v7685
  %7929 = vmatpush.msra.mxu0 %v7681
  %7930 = vmatpush.msra.mxu0 %v7677
  %7931 = vmatpush.msra.mxu0 %v7673
  %7932 = vmatpush.msra.mxu0 %v7669
  %7933 = vmatpush.msra.mxu0 %v7665
  %7934 = vmatpush.msra.mxu0 %v7661
  %7935 = vmatmul.f32.gmra.mxu0 %v7275
  %v7936 = vpop.f32.mrf.mxu0
  %v7937 = vadd.f32 %v7917, %v7936
  %7938 = vdwg.mxu0
  %7939 = vmatpush.msra.mxu0 %v7785
  %7940 = vmatpush.msra.mxu0 %v7781
  %7941 = vmatpush.msra.mxu0 %v7777
  %7942 = vmatpush.msra.mxu0 %v7773
  %7943 = vmatpush.msra.mxu0 %v7769
  %7944 = vmatpush.msra.mxu0 %v7765
  %7945 = vmatpush.msra.mxu0 %v7761
  %7946 = vmatpush.msra.mxu0 %v7757
  %7947 = vmatpush.msra.mxu0 %v7753
  %7948 = vmatpush.msra.mxu0 %v7749
  %7949 = vmatpush.msra.mxu0 %v7745
  %7950 = vmatpush.msra.mxu0 %v7741
  %7951 = vmatpush.msra.mxu0 %v7737
  %7952 = vmatpush.msra.mxu0 %v7733
  %7953 = vmatpush.msra.mxu0 %v7729
  %7954 = vmatpush.msra.mxu0 %v7725
  %7955 = vmatmul.f32.gmra.mxu0 %v7276
  %v7956 = vpop.f32.mrf.mxu0
  %v7957 = vadd.f32 %v7937, %v7956
  %7958 = vdwg.mxu0
  %7959 = vmatpush.msra.mxu0 %v7338
  %7960 = vmatpush.msra.mxu0 %v7334
  %7961 = vmatpush.msra.mxu0 %v7330
  %7962 = vmatpush.msra.mxu0 %v7326
  %7963 = vmatpush.msra.mxu0 %v7322
  %7964 = vmatpush.msra.mxu0 %v7318
  %7965 = vmatpush.msra.mxu0 %v7314
  %7966 = vmatpush.msra.mxu0 %v7310
  %7967 = vmatpush.msra.mxu0 %v7306
  %7968 = vmatpush.msra.mxu0 %v7302
  %7969 = vmatpush.msra.mxu0 %v7298
  %7970 = vmatpush.msra.mxu0 %v7294
  %7971 = vmatpush.msra.mxu0 %v7290
  %7972 = vmatpush.msra.mxu0 %v7286
  %7973 = vmatpush.msra.mxu0 %v7282
  %7974 = vmatpush.msra.mxu0 %v7278
  %7975 = vmatmul.f32.gmra.mxu0 %v7269
  %v7976 = vpop.f32.mrf.mxu0
  %v7977 = vadd.f32 %v7792, %v7976
  %7978 = vdwg.mxu0
  %7979 = vmatpush.msra.mxu0 %v7402
  %7980 = vmatpush.msra.mxu0 %v7398
  %7981 = vmatpush.msra.mxu0 %v7394
  %7982 = vmatpush.msra.mxu0 %v7390
  %7983 = vmatpush.msra.mxu0 %v7386
  %7984 = vmatpush.msra.mxu0 %v7382
  %7985 = vmatpush.msra.mxu0 %v7378
  %7986 = vmatpush.msra.mxu0 %v7374
  %7987 = vmatpush.msra.mxu0 %v7370
  %7988 = vmatpush.msra.mxu0 %v7366
  %7989 = vmatpush.msra.mxu0 %v7362
  %7990 = vmatpush.msra.mxu0 %v7358
  %7991 = vmatpush.msra.mxu0 %v7354
  %7992 = vmatpush.msra.mxu0 %v7350
  %7993 = vmatpush.msra.mxu0 %v7346
  %7994 = vmatpush.msra.mxu0 %v7342
  %7995 = vmatmul.f32.gmra.mxu0 %v7270
  %v7996 = vpop.f32.mrf.mxu0
  %v7997 = vadd.f32 %v7977, %v7996
  %7998 = vdwg.mxu0
  %7999 = vmatpush.msra.mxu0 %v7466
  %8000 = vmatpush.msra.mxu0 %v7462
  %8001 = vmatpush.msra.mxu0 %v7458
  %8002 = vmatpush.msra.mxu0 %v7454
  %8003 = vmatpush.msra.mxu0 %v7450
  %8004 = vmatpush.msra.mxu0 %v7446
  %8005 = vmatpush.msra.mxu0 %v7442
  %8006 = vmatpush.msra.mxu0 %v7438
  %8007 = vmatpush.msra.mxu0 %v7434
  %8008 = vmatpush.msra.mxu0 %v7430
  %8009 = vmatpush.msra.mxu0 %v7426
  %8010 = vmatpush.msra.mxu0 %v7422
  %8011 = vmatpush.msra.mxu0 %v7418
  %8012 = vmatpush.msra.mxu0 %v7414
  %8013 = vmatpush.msra.mxu0 %v7410
  %8014 = vmatpush.msra.mxu0 %v7406
  %8015 = vmatmul.f32.gmra.mxu0 %v7271
  %v8016 = vpop.f32.mrf.mxu0
  %v8017 = vadd.f32 %v7997, %v8016
  %8018 = vdwg.mxu0
  %8019 = vmatpush.msra.mxu0 %v7530
  %8020 = vmatpush.msra.mxu0 %v7526
  %8021 = vmatpush.msra.mxu0 %v7522
  %8022 = vmatpush.msra.mxu0 %v7518
  %8023 = vmatpush.msra.mxu0 %v7514
  %8024 = vmatpush.msra.mxu0 %v7510
  %8025 = vmatpush.msra.mxu0 %v7506
  %8026 = vmatpush.msra.mxu0 %v7502
  %8027 = vmatpush.msra.mxu0 %v7498
  %8028 = vmatpush.msra.mxu0 %v7494
  %8029 = vmatpush.msra.mxu0 %v7490
  %8030 = vmatpush.msra.mxu0 %v7486
  %8031 = vmatpush.msra.mxu0 %v7482
  %8032 = vmatpush.msra.mxu0 %v7478
  %8033 = vmatpush.msra.mxu0 %v7474
  %8034 = vmatpush.msra.mxu0 %v7470
  %8035 = vmatmul.f32.gmra.mxu0 %v7272
  %v8036 = vpop.f32.mrf.mxu0
  %v8037 = vadd.f32 %v8017, %v8036
  %8038 = vdwg.mxu0
  %8039 = vmatpush.msra.mxu0 %v7594
  %8040 = vmatpush.msra.mxu0 %v7590
  %8041 = vmatpush.msra.mxu0 %v7586
  %8042 = vmatpush.msra.mxu0 %v7582
  %8043 = vmatpush.msra.mxu0 %v7578
  %8044 = vmatpush.msra.mxu0 %v7574
  %8045 = vmatpush.msra.mxu0 %v7570
  %8046 = vmatpush.msra.mxu0 %v7566
  %8047 = vmatpush.msra.mxu0 %v7562
  %8048 = vmatpush.msra.mxu0 %v7558
  %8049 = vmatpush.msra.mxu0 %v7554
  %8050 = vmatpush.msra.mxu0 %v7550
  %8051 = vmatpush.msra.mxu0 %v7546
  %8052 = vmatpush.msra.mxu0 %v7542
  %8053 = vmatpush.msra.mxu0 %v7538
  %8054 = vmatpush.msra.mxu0 %v7534
  %8055 = vmatmul.f32.gmra.mxu0 %v7273
  %v8056 = vpop.f32.mrf.mxu0
  %v8057 = vadd.f32 %v8037, %v8056
  %8058 = vdwg.mxu0
  %8059 = vmatpush.msra.mxu0 %v7658
  %8060 = vmatpush.msra.mxu0 %v7654
  %8061 = vmatpush.msra.mxu0 %v7650
  %8062 = vmatpush.msra.mxu0 %v7646
  %8063 = vmatpush.msra.mxu0 %v7642
  %8064 = vmatpush.msra.mxu0 %v7638
  %8065 = vmatpush.msra.mxu0 %v7634
  %8066 = vmatpush.msra.mxu0 %v7630
  %8067 = vmatpush.msra.mxu0 %v7626
  %8068 = vmatpush.msra.mxu0 %v7622
  %8069 = vmatpush.msra.mxu0 %v7618
  %8070 = vmatpush.msra.mxu0 %v7614
  %8071 = vmatpush.msra.mxu0 %v7610
  %8072 = vmatpush.msra.mxu0 %v7606
  %8073 = vmatpush.msra.mxu0 %v7602
  %8074 = vmatpush.msra.mxu0 %v7598
  %8075 = vmatmul.f32.gmra.mxu0 %v7274
  %v8076 = vpop.f32.mrf.mxu0
  %v8077 = vadd.f32 %v8057, %v8076
  %8078 = vdwg.mxu0
  %8079 = vmatpush.msra.mxu0 %v7722
  %8080 = vmatpush.msra.mxu0 %v7718
  %8081 = vmatpush.msra.mxu0 %v7714
  %8082 = vmatpush.msra.mxu0 %v7710
  %8083 = vmatpush.msra.mxu0 %v7706
  %8084 = vmatpush.msra.mxu0 %v7702
  %8085 = vmatpush.msra.mxu0 %v7698
  %8086 = vmatpush.msra.mxu0 %v7694
  %8087 = vmatpush.msra.mxu0 %v7690
  %8088 = vmatpush.msra.mxu0 %v7686
  %8089 = vmatpush.msra.mxu0 %v7682
  %8090 = vmatpush.msra.mxu0 %v7678
  %8091 = vmatpush.msra.mxu0 %v7674
  %8092 = vmatpush.msra.mxu0 %v7670
  %8093 = vmatpush.msra.mxu0 %v7666
  %8094 = vmatpush.msra.mxu0 %v7662
  %8095 = vmatmul.f32.gmra.mxu0 %v7275
  %v8096 = vpop.f32.mrf.mxu0
  %v8097 = vadd.f32 %v8077, %v8096
  %8098 = vdwg.mxu0
  %8099 = vmatpush.msra.mxu0 %v7786
  %8100 = vmatpush.msra.mxu0 %v7782
  %8101 = vmatpush.msra.mxu0 %v7778
  %8102 = vmatpush.msra.mxu0 %v7774
  %8103 = vmatpush.msra.mxu0 %v7770
  %8104 = vmatpush.msra.mxu0 %v7766
  %8105 = vmatpush.msra.mxu0 %v7762
  %8106 = vmatpush.msra.mxu0 %v7758
  %8107 = vmatpush.msra.mxu0 %v7754
  %8108 = vmatpush.msra.mxu0 %v7750
  %8109 = vmatpush.msra.mxu0 %v7746
  %8110 = vmatpush.msra.mxu0 %v7742
  %8111 = vmatpush.msra.mxu0 %v7738
  %8112 = vmatpush.msra.mxu0 %v7734
  %8113 = vmatpush.msra.mxu0 %v7730
  %8114 = vmatpush.msra.mxu0 %v7726
  %8115 = vmatmul.f32.gmra.mxu0 %v7276
  %v8116 = vpop.f32.mrf.mxu0
  %v8117 = vadd.f32 %v8097, %v8116
  %8118 = vdwg.mxu0
  %8119 = vmatpush.msra.mxu0 %v7339
  %8120 = vmatpush.msra.mxu0 %v7335
  %8121 = vmatpush.msra.mxu0 %v7331
  %8122 = vmatpush.msra.mxu0 %v7327
  %8123 = vmatpush.msra.mxu0 %v7323
  %8124 = vmatpush.msra.mxu0 %v7319
  %8125 = vmatpush.msra.mxu0 %v7315
  %8126 = vmatpush.msra.mxu0 %v7311
  %8127 = vmatpush.msra.mxu0 %v7307
  %8128 = vmatpush.msra.mxu0 %v7303
  %8129 = vmatpush.msra.mxu0 %v7299
  %8130 = vmatpush.msra.mxu0 %v7295
  %8131 = vmatpush.msra.mxu0 %v7291
  %8132 = vmatpush.msra.mxu0 %v7287
  %8133 = vmatpush.msra.mxu0 %v7283
  %8134 = vmatpush.msra.mxu0 %v7279
  %8135 = vmatmul.f32.gmra.mxu0 %v7269
  %v8136 = vpop.f32.mrf.mxu0
  %v8137 = vadd.f32 %v7793, %v8136
  %8138 = vdwg.mxu0
  %8139 = vmatpush.msra.mxu0 %v7403
  %8140 = vmatpush.msra.mxu0 %v7399
  %8141 = vmatpush.msra.mxu0 %v7395
  %8142 = vmatpush.msra.mxu0 %v7391
  %8143 = vmatpush.msra.mxu0 %v7387
  %8144 = vmatpush.msra.mxu0 %v7383
  %8145 = vmatpush.msra.mxu0 %v7379
  %8146 = vmatpush.msra.mxu0 %v7375
  %8147 = vmatpush.msra.mxu0 %v7371
  %8148 = vmatpush.msra.mxu0 %v7367
  %8149 = vmatpush.msra.mxu0 %v7363
  %8150 = vmatpush.msra.mxu0 %v7359
  %8151 = vmatpush.msra.mxu0 %v7355
  %8152 = vmatpush.msra.mxu0 %v7351
  %8153 = vmatpush.msra.mxu0 %v7347
  %8154 = vmatpush.msra.mxu0 %v7343
  %8155 = vmatmul.f32.gmra.mxu0 %v7270
  %v8156 = vpop.f32.mrf.mxu0
  %v8157 = vadd.f32 %v8137, %v8156
  %8158 = vdwg.mxu0
  %8159 = vmatpush.msra.mxu0 %v7467
  %8160 = vmatpush.msra.mxu0 %v7463
  %8161 = vmatpush.msra.mxu0 %v7459
  %8162 = vmatpush.msra.mxu0 %v7455
  %8163 = vmatpush.msra.mxu0 %v7451
  %8164 = vmatpush.msra.mxu0 %v7447
  %8165 = vmatpush.msra.mxu0 %v7443
  %8166 = vmatpush.msra.mxu0 %v7439
  %8167 = vmatpush.msra.mxu0 %v7435
  %8168 = vmatpush.msra.mxu0 %v7431
  %8169 = vmatpush.msra.mxu0 %v7427
  %8170 = vmatpush.msra.mxu0 %v7423
  %8171 = vmatpush.msra.mxu0 %v7419
  %8172 = vmatpush.msra.mxu0 %v7415
  %8173 = vmatpush.msra.mxu0 %v7411
  %8174 = vmatpush.msra.mxu0 %v7407
  %8175 = vmatmul.f32.gmra.mxu0 %v7271
  %v8176 = vpop.f32.mrf.mxu0
  %v8177 = vadd.f32 %v8157, %v8176
  %8178 = vdwg.mxu0
  %8179 = vmatpush.msra.mxu0 %v7531
  %8180 = vmatpush.msra.mxu0 %v7527
  %8181 = vmatpush.msra.mxu0 %v7523
  %8182 = vmatpush.msra.mxu0 %v7519
  %8183 = vmatpush.msra.mxu0 %v7515
  %8184 = vmatpush.msra.mxu0 %v7511
  %8185 = vmatpush.msra.mxu0 %v7507
  %8186 = vmatpush.msra.mxu0 %v7503
  %8187 = vmatpush.msra.mxu0 %v7499
  %8188 = vmatpush.msra.mxu0 %v7495
  %8189 = vmatpush.msra.mxu0 %v7491
  %8190 = vmatpush.msra.mxu0 %v7487
  %8191 = vmatpush.msra.mxu0 %v7483
  %8192 = vmatpush.msra.mxu0 %v7479
  %8193 = vmatpush.msra.mxu0 %v7475
  %8194 = vmatpush.msra.mxu0 %v7471
  %8195 = vmatmul.f32.gmra.mxu0 %v7272
  %v8196 = vpop.f32.mrf.mxu0
  %v8197 = vadd.f32 %v8177, %v8196
  %8198 = vdwg.mxu0
  %8199 = vmatpush.msra.mxu0 %v7595
  %8200 = vmatpush.msra.mxu0 %v7591
  %8201 = vmatpush.msra.mxu0 %v7587
  %8202 = vmatpush.msra.mxu0 %v7583
  %8203 = vmatpush.msra.mxu0 %v7579
  %8204 = vmatpush.msra.mxu0 %v7575
  %8205 = vmatpush.msra.mxu0 %v7571
  %8206 = vmatpush.msra.mxu0 %v7567
  %8207 = vmatpush.msra.mxu0 %v7563
  %8208 = vmatpush.msra.mxu0 %v7559
  %8209 = vmatpush.msra.mxu0 %v7555
  %8210 = vmatpush.msra.mxu0 %v7551
  %8211 = vmatpush.msra.mxu0 %v7547
  %8212 = vmatpush.msra.mxu0 %v7543
  %8213 = vmatpush.msra.mxu0 %v7539
  %8214 = vmatpush.msra.mxu0 %v7535
  %8215 = vmatmul.f32.gmra.mxu0 %v7273
  %v8216 = vpop.f32.mrf.mxu0
  %v8217 = vadd.f32 %v8197, %v8216
  %8218 = vdwg.mxu0
  %8219 = vmatpush.msra.mxu0 %v7659
  %8220 = vmatpush.msra.mxu0 %v7655
  %8221 = vmatpush.msra.mxu0 %v7651
  %8222 = vmatpush.msra.mxu0 %v7647
  %8223 = vmatpush.msra.mxu0 %v7643
  %8224 = vmatpush.msra.mxu0 %v7639
  %8225 = vmatpush.msra.mxu0 %v7635
  %8226 = vmatpush.msra.mxu0 %v7631
  %8227 = vmatpush.msra.mxu0 %v7627
  %8228 = vmatpush.msra.mxu0 %v7623
  %8229 = vmatpush.msra.mxu0 %v7619
  %8230 = vmatpush.msra.mxu0 %v7615
  %8231 = vmatpush.msra.mxu0 %v7611
  %8232 = vmatpush.msra.mxu0 %v7607
  %8233 = vmatpush.msra.mxu0 %v7603
  %8234 = vmatpush.msra.mxu0 %v7599
  %8235 = vmatmul.f32.gmra.mxu0 %v7274
  %v8236 = vpop.f32.mrf.mxu0
  %v8237 = vadd.f32 %v8217, %v8236
  %8238 = vdwg.mxu0
  %8239 = vmatpush.msra.mxu0 %v7723
  %8240 = vmatpush.msra.mxu0 %v7719
  %8241 = vmatpush.msra.mxu0 %v7715
  %8242 = vmatpush.msra.mxu0 %v7711
  %8243 = vmatpush.msra.mxu0 %v7707
  %8244 = vmatpush.msra.mxu0 %v7703
  %8245 = vmatpush.msra.mxu0 %v7699
  %8246 = vmatpush.msra.mxu0 %v7695
  %8247 = vmatpush.msra.mxu0 %v7691
  %8248 = vmatpush.msra.mxu0 %v7687
  %8249 = vmatpush.msra.mxu0 %v7683
  %8250 = vmatpush.msra.mxu0 %v7679
  %8251 = vmatpush.msra.mxu0 %v7675
  %8252 = vmatpush.msra.mxu0 %v7671
  %8253 = vmatpush.msra.mxu0 %v7667
  %8254 = vmatpush.msra.mxu0 %v7663
  %8255 = vmatmul.f32.gmra.mxu0 %v7275
  %v8256 = vpop.f32.mrf.mxu0
  %v8257 = vadd.f32 %v8237, %v8256
  %8258 = vdwg.mxu0
  %8259 = vmatpush.msra.mxu0 %v7787
  %8260 = vmatpush.msra.mxu0 %v7783
  %8261 = vmatpush.msra.mxu0 %v7779
  %8262 = vmatpush.msra.mxu0 %v7775
  %8263 = vmatpush.msra.mxu0 %v7771
  %8264 = vmatpush.msra.mxu0 %v7767
  %8265 = vmatpush.msra.mxu0 %v7763
  %8266 = vmatpush.msra.mxu0 %v7759
  %8267 = vmatpush.msra.mxu0 %v7755
  %8268 = vmatpush.msra.mxu0 %v7751
  %8269 = vmatpush.msra.mxu0 %v7747
  %8270 = vmatpush.msra.mxu0 %v7743
  %8271 = vmatpush.msra.mxu0 %v7739
  %8272 = vmatpush.msra.mxu0 %v7735
  %8273 = vmatpush.msra.mxu0 %v7731
  %8274 = vmatpush.msra.mxu0 %v7727
  %8275 = vmatmul.f32.gmra.mxu0 %v7276
  %v8276 = vpop.f32.mrf.mxu0
  %v8277 = vadd.f32 %v8257, %v8276
  %8278 = vdwg.mxu0
  %8279 = vmatpush.msra.mxu0 %v7340
  %8280 = vmatpush.msra.mxu0 %v7336
  %8281 = vmatpush.msra.mxu0 %v7332
  %8282 = vmatpush.msra.mxu0 %v7328
  %8283 = vmatpush.msra.mxu0 %v7324
  %8284 = vmatpush.msra.mxu0 %v7320
  %8285 = vmatpush.msra.mxu0 %v7316
  %8286 = vmatpush.msra.mxu0 %v7312
  %8287 = vmatpush.msra.mxu0 %v7308
  %8288 = vmatpush.msra.mxu0 %v7304
  %8289 = vmatpush.msra.mxu0 %v7300
  %8290 = vmatpush.msra.mxu0 %v7296
  %8291 = vmatpush.msra.mxu0 %v7292
  %8292 = vmatpush.msra.mxu0 %v7288
  %8293 = vmatpush.msra.mxu0 %v7284
  %8294 = vmatpush.msra.mxu0 %v7280
  %8295 = vmatmul.f32.gmra.mxu0 %v7269
  %v8296 = vpop.f32.mrf.mxu0
  %v8297 = vadd.f32 %v7794, %v8296
  %8298 = vdwg.mxu0
  %8299 = vmatpush.msra.mxu0 %v7404
  %8300 = vmatpush.msra.mxu0 %v7400
  %8301 = vmatpush.msra.mxu0 %v7396
  %8302 = vmatpush.msra.mxu0 %v7392
  %8303 = vmatpush.msra.mxu0 %v7388
  %8304 = vmatpush.msra.mxu0 %v7384
  %8305 = vmatpush.msra.mxu0 %v7380
  %8306 = vmatpush.msra.mxu0 %v7376
  %8307 = vmatpush.msra.mxu0 %v7372
  %8308 = vmatpush.msra.mxu0 %v7368
  %8309 = vmatpush.msra.mxu0 %v7364
  %8310 = vmatpush.msra.mxu0 %v7360
  %8311 = vmatpush.msra.mxu0 %v7356
  %8312 = vmatpush.msra.mxu0 %v7352
  %8313 = vmatpush.msra.mxu0 %v7348
  %8314 = vmatpush.msra.mxu0 %v7344
  %8315 = vmatmul.f32.gmra.mxu0 %v7270
  %v8316 = vpop.f32.mrf.mxu0
  %v8317 = vadd.f32 %v8297, %v8316
  %8318 = vdwg.mxu0
  %8319 = vmatpush.msra.mxu0 %v7468
  %8320 = vmatpush.msra.mxu0 %v7464
  %8321 = vmatpush.msra.mxu0 %v7460
  %8322 = vmatpush.msra.mxu0 %v7456
  %8323 = vmatpush.msra.mxu0 %v7452
  %8324 = vmatpush.msra.mxu0 %v7448
  %8325 = vmatpush.msra.mxu0 %v7444
  %8326 = vmatpush.msra.mxu0 %v7440
  %8327 = vmatpush.msra.mxu0 %v7436
  %8328 = vmatpush.msra.mxu0 %v7432
  %8329 = vmatpush.msra.mxu0 %v7428
  %8330 = vmatpush.msra.mxu0 %v7424
  %8331 = vmatpush.msra.mxu0 %v7420
  %8332 = vmatpush.msra.mxu0 %v7416
  %8333 = vmatpush.msra.mxu0 %v7412
  %8334 = vmatpush.msra.mxu0 %v7408
  %8335 = vmatmul.f32.gmra.mxu0 %v7271
  %v8336 = vpop.f32.mrf.mxu0
  %v8337 = vadd.f32 %v8317, %v8336
  %8338 = vdwg.mxu0
  %8339 = vmatpush.msra.mxu0 %v7532
  %8340 = vmatpush.msra.mxu0 %v7528
  %8341 = vmatpush.msra.mxu0 %v7524
  %8342 = vmatpush.msra.mxu0 %v7520
  %8343 = vmatpush.msra.mxu0 %v7516
  %8344 = vmatpush.msra.mxu0 %v7512
  %8345 = vmatpush.msra.mxu0 %v7508
  %8346 = vmatpush.msra.mxu0 %v7504
  %8347 = vmatpush.msra.mxu0 %v7500
  %8348 = vmatpush.msra.mxu0 %v7496
  %8349 = vmatpush.msra.mxu0 %v7492
  %8350 = vmatpush.msra.mxu0 %v7488
  %8351 = vmatpush.msra.mxu0 %v7484
  %8352 = vmatpush.msra.mxu0 %v7480
  %8353 = vmatpush.msra.mxu0 %v7476
  %8354 = vmatpush.msra.mxu0 %v7472
  %8355 = vmatmul.f32.gmra.mxu0 %v7272
  %v8356 = vpop.f32.mrf.mxu0
  %v8357 = vadd.f32 %v8337, %v8356
  %8358 = vdwg.mxu0
  %8359 = vmatpush.msra.mxu0 %v7596
  %8360 = vmatpush.msra.mxu0 %v7592
  %8361 = vmatpush.msra.mxu0 %v7588
  %8362 = vmatpush.msra.mxu0 %v7584
  %8363 = vmatpush.msra.mxu0 %v7580
  %8364 = vmatpush.msra.mxu0 %v7576
  %8365 = vmatpush.msra.mxu0 %v7572
  %8366 = vmatpush.msra.mxu0 %v7568
  %8367 = vmatpush.msra.mxu0 %v7564
  %8368 = vmatpush.msra.mxu0 %v7560
  %8369 = vmatpush.msra.mxu0 %v7556
  %8370 = vmatpush.msra.mxu0 %v7552
  %8371 = vmatpush.msra.mxu0 %v7548
  %8372 = vmatpush.msra.mxu0 %v7544
  %8373 = vmatpush.msra.mxu0 %v7540
  %8374 = vmatpush.msra.mxu0 %v7536
  %8375 = vmatmul.f32.gmra.mxu0 %v7273
  %v8376 = vpop.f32.mrf.mxu0
  %v8377 = vadd.f32 %v8357, %v8376
  %8378 = vdwg.mxu0
  %8379 = vmatpush.msra.mxu0 %v7660
  %8380 = vmatpush.msra.mxu0 %v7656
  %8381 = vmatpush.msra.mxu0 %v7652
  %8382 = vmatpush.msra.mxu0 %v7648
  %8383 = vmatpush.msra.mxu0 %v7644
  %8384 = vmatpush.msra.mxu0 %v7640
  %8385 = vmatpush.msra.mxu0 %v7636
  %8386 = vmatpush.msra.mxu0 %v7632
  %8387 = vmatpush.msra.mxu0 %v7628
  %8388 = vmatpush.msra.mxu0 %v7624
  %8389 = vmatpush.msra.mxu0 %v7620
  %8390 = vmatpush.msra.mxu0 %v7616
  %8391 = vmatpush.msra.mxu0 %v7612
  %8392 = vmatpush.msra.mxu0 %v7608
  %8393 = vmatpush.msra.mxu0 %v7604
  %8394 = vmatpush.msra.mxu0 %v7600
  %8395 = vmatmul.f32.gmra.mxu0 %v7274
  %v8396 = vpop.f32.mrf.mxu0
  %v8397 = vadd.f32 %v8377, %v8396
  %8398 = vdwg.mxu0
  %8399 = vmatpush.msra.mxu0 %v7724
  %8400 = vmatpush.msra.mxu0 %v7720
  %8401 = vmatpush.msra.mxu0 %v7716
  %8402 = vmatpush.msra.mxu0 %v7712
  %8403 = vmatpush.msra.mxu0 %v7708
  %8404 = vmatpush.msra.mxu0 %v7704
  %8405 = vmatpush.msra.mxu0 %v7700
  %8406 = vmatpush.msra.mxu0 %v7696
  %8407 = vmatpush.msra.mxu0 %v7692
  %8408 = vmatpush.msra.mxu0 %v7688
  %8409 = vmatpush.msra.mxu0 %v7684
  %8410 = vmatpush.msra.mxu0 %v7680
  %8411 = vmatpush.msra.mxu0 %v7676
  %8412 = vmatpush.msra.mxu0 %v7672
  %8413 = vmatpush.msra.mxu0 %v7668
  %8414 = vmatpush.msra.mxu0 %v7664
  %8415 = vmatmul.f32.gmra.mxu0 %v7275
  %v8416 = vpop.f32.mrf.mxu0
  %v8417 = vadd.f32 %v8397, %v8416
  %8418 = vdwg.mxu0
  %8419 = vmatpush.msra.mxu0 %v7788
  %8420 = vmatpush.msra.mxu0 %v7784
  %8421 = vmatpush.msra.mxu0 %v7780
  %8422 = vmatpush.msra.mxu0 %v7776
  %8423 = vmatpush.msra.mxu0 %v7772
  %8424 = vmatpush.msra.mxu0 %v7768
  %8425 = vmatpush.msra.mxu0 %v7764
  %8426 = vmatpush.msra.mxu0 %v7760
  %8427 = vmatpush.msra.mxu0 %v7756
  %8428 = vmatpush.msra.mxu0 %v7752
  %8429 = vmatpush.msra.mxu0 %v7748
  %8430 = vmatpush.msra.mxu0 %v7744
  %8431 = vmatpush.msra.mxu0 %v7740
  %8432 = vmatpush.msra.mxu0 %v7736
  %8433 = vmatpush.msra.mxu0 %v7732
  %8434 = vmatpush.msra.mxu0 %v7728
  %8435 = vmatmul.f32.gmra.mxu0 %v7276
  %v8436 = vpop.f32.mrf.mxu0
  %v8437 = vadd.f32 %v8417, %v8436
  %8438 = vdwg.mxu0
  %v8439 = vmax.f32 %v7957, 0.0
  %v8440 = vmax.f32 %v8117, 0.0
  %v8441 = vmax.f32 %v8277, 0.0
  %v8442 = vmax.f32 %v8437, 0.0
  %v8443 = vld [vmem:[%s5] sm:$0xff]
  %v8444 = vld [vmem:[%s5 + $0x8] sm:$0xff]
  %v8445 = vld [vmem:[%s5 + $0x10] sm:$0xff]
  %v8446 = vld [vmem:[%s5 + $0x18] sm:$0xff]
  %v8447 = vld [vmem:[%s5 + $0x20] sm:$0xff]
  %v8448 = vld [vmem:[%s5 + $0x28] sm:$0xff]
  %v8449 = vld [vmem:[%s5 + $0x30] sm:$0xff]
  %v8450 = vld [vmem:[%s5 + $0x38] sm:$0xff]
  %v8451 = vld [vmem:[%s5 + $0x40] sm:$0xff]
  %v8452 = vld [vmem:[%s5 + $0x48] sm:$0xff]
  %v8453 = vld [vmem:[%s5 + $0x50] sm:$0xff]
  %v8454 = vld [vmem:[%s5 + $0x58] sm:$0xff]
  %v8455 = vld [vmem:[%s5 + $0x60] sm:$0xff]
  %v8456 = vld [vmem:[%s5 + $0x68] sm:$0xff]
  %v8457 = vld [vmem:[%s5 + $0x70] sm:$0xff]
  %v8458 = vld [vmem:[%s5 + $0x78] sm:$0xff]
  %v8459 = vld [vmem:[%s5 + $0x80] sm:$0xff]
  %v8460 = vld [vmem:[%s5 + $0x88] sm:$0xff]
  %v8461 = vld [vmem:[%s5 + $0x90] sm:$0xff]
  %v8462 = vld [vmem:[%s5 + $0x98] sm:$0xff]
  %v8463 = vld [vmem:[%s5 + $0xa0] sm:$0xff]
  %v8464 = vld [vmem:[%s5 + $0xa8] sm:$0xff]
  %v8465 = vld [vmem:[%s5 + $0xb0] sm:$0xff]
  %v8466 = vld [vmem:[%s5 + $0xb8] sm:$0xff]
  %v8467 = vld [vmem:[%s5 + $0xc0] sm:$0xff]
  %v8468 = vld [vmem:[%s5 + $0xc8] sm:$0xff]
  %v8469 = vld [vmem:[%s5 + $0xd0] sm:$0xff]
  %v8470 = vld [vmem:[%s5 + $0xd8] sm:$0xff]
  %v8471 = vld [vmem:[%s5 + $0xe0] sm:$0xff]
  %v8472 = vld [vmem:[%s5 + $0xe8] sm:$0xff]
  %v8473 = vld [vmem:[%s5 + $0xf0] sm:$0xff]
  %v8474 = vld [vmem:[%s5 + $0xf8] sm:$0xff]
  %v8475 = vld [vmem:[%s5 + $0x100] sm:$0xff]
  %v8476 = vld [vmem:[%s5 + $0x108] sm:$0xff]
  %v8477 = vld [vmem:[%s5 + $0x110] sm:$0xff]
  %v8478 = vld [vmem:[%s5 + $0x118] sm:$0xff]
  %v8479 = vld [vmem:[%s5 + $0x120] sm:$0xff]
  %v8480 = vld [vmem:[%s5 + $0x128] sm:$0xff]
  %v8481 = vld [vmem:[%s5 + $0x130] sm:$0xff]
  %v8482 = vld [vmem:[%s5 + $0x138] sm:$0xff]
  %v8483 = vld [vmem:[%s5 + $0x140] sm:$0xff]
  %v8484 = vld [vmem:[%s5 + $0x148] sm:$0xff]
  %v8485 = vld [vmem:[%s5 + $0x150] sm:$0xff]
  %v8486 = vld [vmem:[%s5 + $0x158] sm:$0xff]
  %v8487 = vld [vmem:[%s5 + $0x160] sm:$0xff]
  %v8488 = vld [vmem:[%s5 + $0x168] sm:$0xff]
  %v8489 = vld [vmem:[%s5 + $0x170] sm:$0xff]
  %v8490 = vld [vmem:[%s5 + $0x178] sm:$0xff]
  %v8491 = vld [vmem:[%s5 + $0x180] sm:$0xff]
  %v8492 = vld [vmem:[%s5 + $0x188] sm:$0xff]
  %v8493 = vld [vmem:[%s5 + $0x190] sm:$0xff]
  %v8494 = vld [vmem:[%s5 + $0x198] sm:$0xff]
  %v8495 = vld [vmem:[%s5 + $0x1a0] sm:$0xff]
  %v8496 = vld [vmem:[%s5 + $0x1a8] sm:$0xff]
  %v8497 = vld [vmem:[%s5 + $0x1b0] sm:$0xff]
  %v8498 = vld [vmem:[%s5 + $0x1b8] sm:$0xff]
  %v8499 = vld [vmem:[%s5 + $0x1c0] sm:$0xff]
  %v8500 = vld [vmem:[%s5 + $0x1c8] sm:$0xff]
  %v8501 = vld [vmem:[%s5 + $0x1d0] sm:$0xff]
  %v8502 = vld [vmem:[%s5 + $0x1d8] sm:$0xff]
  %v8503 = vld [vmem:[%s5 + $0x1e0] sm:$0xff]
  %v8504 = vld [vmem:[%s5 + $0x1e8] sm:$0xff]
  %v8505 = vld [vmem:[%s5 + $0x1f0] sm:$0xff]
  %v8506 = vld [vmem:[%s5 + $0x1f8] sm:$0xff]
  %v8507 = vld [vmem:[%s6] sm:$0x1]
  %v8509 = vperm.slane %v8507, 0
  %8511 = vmatpush.msra.mxu0 %v8458
  %8512 = vmatpush.msra.mxu0 %v8457
  %8513 = vmatpush.msra.mxu0 %v8456
  %8514 = vmatpush.msra.mxu0 %v8455
  %8515 = vmatpush.msra.mxu0 %v8454
  %8516 = vmatpush.msra.mxu0 %v8453
  %8517 = vmatpush.msra.mxu0 %v8452
  %8518 = vmatpush.msra.mxu0 %v8451
  %8519 = vmatpush.msra.mxu0 %v8450
  %8520 = vmatpush.msra.mxu0 %v8449
  %8521 = vmatpush.msra.mxu0 %v8448
  %8522 = vmatpush.msra.mxu0 %v8447
  %8523 = vmatpush.msra.mxu0 %v8446
  %8524 = vmatpush.msra.mxu0 %v8445
  %8525 = vmatpush.msra.mxu0 %v8444
  %8526 = vmatpush.msra.mxu0 %v8443
  %8527 = vmatmul.f32.gmra.mxu0 %v8439
  %v8528 = vpop.f32.mrf.mxu0
  %v8529 = vadd.f32 %v8509, %v8528
  %8530 = vdwg.mxu0
  %8531 = vmatpush.msra.mxu0 %v8474
  %8532 = vmatpush.msra.mxu0 %v8473
  %8533 = vmatpush.msra.mxu0 %v8472
  %8534 = vmatpush.msra.mxu0 %v8471
  %8535 = vmatpush.msra.mxu0 %v8470
  %8536 = vmatpush.msra.mxu0 %v8469
  %8537 = vmatpush.msra.mxu0 %v8468
  %8538 = vmatpush.msra.mxu0 %v8467
  %8539 = vmatpush.msra.mxu0 %v8466
  %8540 = vmatpush.msra.mxu0 %v8465
  %8541 = vmatpush.msra.mxu0 %v8464
  %8542 = vmatpush.msra.mxu0 %v8463
  %8543 = vmatpush.msra.mxu0 %v8462
  %8544 = vmatpush.msra.mxu0 %v8461
  %8545 = vmatpush.msra.mxu0 %v8460
  %8546 = vmatpush.msra.mxu0 %v8459
  %8547 = vmatmul.f32.gmra.mxu0 %v8440
  %v8548 = vpop.f32.mrf.mxu0
  %v8549 = vadd.f32 %v8529, %v8548
  %8550 = vdwg.mxu0
  %8551 = vmatpush.msra.mxu0 %v8490
  %8552 = vmatpush.msra.mxu0 %v8489
  %8553 = vmatpush.msra.mxu0 %v8488
  %8554 = vmatpush.msra.mxu0 %v8487
  %8555 = vmatpush.msra.mxu0 %v8486
  %8556 = vmatpush.msra.mxu0 %v8485
  %8557 = vmatpush.msra.mxu0 %v8484
  %8558 = vmatpush.msra.mxu0 %v8483
  %8559 = vmatpush.msra.mxu0 %v8482
  %8560 = vmatpush.msra.mxu0 %v8481
  %8561 = vmatpush.msra.mxu0 %v8480
  %8562 = vmatpush.msra.mxu0 %v8479
  %8563 = vmatpush.msra.mxu0 %v8478
  %8564 = vmatpush.msra.mxu0 %v8477
  %8565 = vmatpush.msra.mxu0 %v8476
  %8566 = vmatpush.msra.mxu0 %v8475
  %8567 = vmatmul.f32.gmra.mxu0 %v8441
  %v8568 = vpop.f32.mrf.mxu0
  %v8569 = vadd.f32 %v8549, %v8568
  %8570 = vdwg.mxu0
  %8571 = vmatpush.msra.mxu0 %v8506
  %8572 = vmatpush.msra.mxu0 %v8505
  %8573 = vmatpush.msra.mxu0 %v8504
  %8574 = vmatpush.msra.mxu0 %v8503
  %8575 = vmatpush.msra.mxu0 %v8502
  %8576 = vmatpush.msra.mxu0 %v8501
  %8577 = vmatpush.msra.mxu0 %v8500
  %8578 = vmatpush.msra.mxu0 %v8499
  %8579 = vmatpush.msra.mxu0 %v8498
  %8580 = vmatpush.msra.mxu0 %v8497
  %8581 = vmatpush.msra.mxu0 %v8496
  %8582 = vmatpush.msra.mxu0 %v8495
  %8583 = vmatpush.msra.mxu0 %v8494
  %8584 = vmatpush.msra.mxu0 %v8493
  %8585 = vmatpush.msra.mxu0 %v8492
  %8586 = vmatpush.msra.mxu0 %v8491
  %8587 = vmatmul.f32.gmra.mxu0 %v8442
  %v8588 = vpop.f32.mrf.mxu0
  %v8589 = vadd.f32 %v8569, %v8588
  %8590 = vdwg.mxu0
  %8591 = vst [vmem:[%s7] sm:$0xff] %v8589
  // Predicated region
  $region30: #{net2_forward.7} parent=0 // pred_check
    _
  $region31: #{net2_forward.7} parent=0 // pred_check_branch
    %8593 = sbr.rel (0) target = $region33
  $region32: #{net2_forward.7} parent=0 // pred_region
    _
  $region33: #{net2_forward.7} parent=0 // pred_fallthru
    _
  // Predicated region
  $region34: #{net2_forward.7} parent=0 // pred_check
    _
  $region35: #{net2_forward.7} parent=0 // pred_check_branch
    %8595 = sbr.rel (0) target = $region37
  $region36: #{net2_forward.7} parent=0 // pred_region
    _
  $region37: #{net2_forward.7} parent=0 // pred_fallthru
    _

</llo_original>
